<compile_context>
chip_gen: v7x
topology: tpu7x:2x2x1
jax: 0.10.0
libtpu: 0.0.40
codegen_flags: <defaults>
</compile_context>

<pallas_src>
import math
import functools

import jax
import jax.numpy as jnp
from jax.experimental import pallas as pl
from jax.experimental.pallas import tpu as pltpu


def _round_up(x, m):
    return ((x + m - 1) // m) * m


# ----------------------------------------------------------------------------
# Fused Pallas kernel
# ----------------------------------------------------------------------------
def _dft_fused_kernel(H, W, lr_ref, mask_ref, wf_ref, bf_ref, wm_ref, bm_ref,
                      wmid_ref, bmid_ref, wfe_ref, bfe_ref,
                      o_ref, x_ref, p_ref):
    """One grid step = one full image through the whole network.

    x_ref : (C, Npad) f32 VMEM scratch -- residual stream, flat padded spatial
            on lanes, 1-px halo (and lane tail) kept at exactly 0.
    p_ref : (18C, Npad) bf16 VMEM scratch -- lane-dense im2col^T taps.
    """
    C = x_ref.shape[0]
    Np = x_ref.shape[1]                    # padded flat length (mult. of 128)
    Wp = W + 2
    K9 = 9 * C

    # Flat-index offset of tap (ky, kx) is (ky-1)*Wp + (kx-1); pltpu.roll has
    # jnp.roll semantics (out[p] = in[p - shift]), so shift = -offset mod Np.
    # Interior outputs never read wrapped lanes (|offset| <= Wp+1 << Np).
    shifts = [(-((ky - 1) * Wp + (kx - 1))) % Np
              for ky in range(3) for kx in range(3)]

    def fill_patches(src_f32, base):
        # src_f32: (C, Np) f32.  9 lane-rolled copies -> bf16 -> patch scratch
        # at aligned sublane offsets base + t*C.
        for t, s in enumerate(shifts):
            tap = src_f32 if s == 0 else pltpu.roll(src_f32, s, 1)
            p_ref[base + t * C: base + (t + 1) * C, :] = tap.astype(jnp.bfloat16)

    def conv(w, b, *, kdim, relu=False, residual=None):
        # One lane-dense MXU matmul: (Cout, kdim) @ (kdim, Np) with f32 acc.
        acc = jnp.dot(w, p_ref[0:kdim, :], preferred_element_type=jnp.float32)
        acc = acc + b                                  # b: (Cout, 1)
        if relu:
            acc = jnp.maximum(acc, 0.0)
        if residual is not None:
            acc = acc + residual
        # Interior mask: implements the convs' zero "same" padding (halo stays
        # 0) and zeroes the rolls' wrap-around garbage at border/tail lanes.
        return acc * mask_ref[...]

    # conv_first (no activation after it in the reference forward).
    fill_patches(lr_ref[0], 0)
    x_ref[...] = conv(wf_ref[...], bf_ref[...], kdim=K9)

    # ResidualBlockNoBN: x + conv2(relu(conv1(x)))   (res_scale = 1.0)
    def make_res_block(w_ref, b_ref):
        def body(i, carry):
            fill_patches(x_ref[...], 0)
            y = conv(w_ref[2 * i], b_ref[2 * i], kdim=K9, relu=True)
            fill_patches(y, 0)
            x_ref[...] = conv(w_ref[2 * i + 1], b_ref[2 * i + 1], kdim=K9,
                              residual=x_ref[...])
            return carry
        return body

    n_main = wm_ref.shape[0] // 2
    jax.lax.fori_loop(0, n_main, make_res_block(wm_ref, bm_ref), 0)

    # DFT projection fused with conv_middle as a single K = 18C matmul over
    # [sin taps ; cos taps].  sin(2*pi*0) = 0 keeps the halo zero for free;
    # cos needs an explicit halo mask before its taps are built.
    xp = x_ref[...] * jnp.float32(2.0 * math.pi)
    fill_patches(jnp.sin(xp), 0)
    fill_patches(jnp.cos(xp) * mask_ref[...], K9)
    x_ref[...] = conv(wmid_ref[...], bmid_ref[...], kdim=2 * K9)

    # feature_extractor: num_blocks residual blocks.
    n_feat = wfe_ref.shape[0] // 2
    jax.lax.fori_loop(0, n_feat, make_res_block(wfe_ref, bfe_ref), 0)

    o_ref[0] = x_ref[...].astype(o_ref.dtype)


def _forward_pallas(lr_flat, mask, wf, bf, wm, bm, wmid, bmid, wfe, bfe, *, H, W):
    B, C, Np = lr_flat.shape

    def rep(arr):
        # Full-array block, same block every grid step -> stays VMEM-resident.
        n = arr.ndim
        return pl.BlockSpec(arr.shape, lambda i: (0,) * n)

    kernel = functools.partial(_dft_fused_kernel, H, W)
    return pl.pallas_call(
        kernel,
        out_shape=jax.ShapeDtypeStruct((B, C, Np), lr_flat.dtype),
        grid=(B,),
        in_specs=[
            pl.BlockSpec((1, C, Np), lambda i: (i, 0, 0)),
            rep(mask), rep(wf), rep(bf), rep(wm), rep(bm),
            rep(wmid), rep(bmid), rep(wfe), rep(bfe),
        ],
        out_specs=pl.BlockSpec((1, C, Np), lambda i: (i, 0, 0)),
        scratch_shapes=[
            pltpu.VMEM((C, Np), jnp.float32),          # residual stream (flat)
            pltpu.VMEM((18 * C, Np), jnp.bfloat16),    # lane-dense bf16 taps
        ],
        compiler_params=pltpu.CompilerParams(
            dimension_semantics=("parallel",),
            vmem_limit_bytes=48 * 1024 * 1024),
    )(lr_flat, mask, wf, bf, wm, bm, wmid, bmid, wfe, bfe)


# ----------------------------------------------------------------------------
# Parameters: init (conv-style layout) + kernel-side preparation
# ----------------------------------------------------------------------------
def _conv_params(key, cin, cout):
    k_w, k_b = jax.random.split(key)
    scale = 0.1 / math.sqrt(9.0 * cin)
    w = jax.random.normal(k_w, (3, 3, cin, cout), jnp.float32) * scale
    b = jax.random.normal(k_b, (cout,), jnp.float32) * 0.01
    return w, b


def init_params(key, mid_channels=32, num_blocks=4, num_main=6):
    # NOTE: the reference module's conv_first is mid_channels -> mid_channels,
    # so the input channel count equals mid_channels.
    n_conv = 1 + 2 * num_main + 1 + 2 * num_blocks
    keys = iter(jax.random.split(key, n_conv))
    params = {}
    params["conv_first"] = _conv_params(next(keys), mid_channels, mid_channels)
    params["main"] = [
        (_conv_params(next(keys), mid_channels, mid_channels),
         _conv_params(next(keys), mid_channels, mid_channels))
        for _ in range(num_main)
    ]
    params["conv_middle"] = _conv_params(next(keys), 2 * mid_channels, mid_channels)
    params["feature_extractor"] = [
        (_conv_params(next(keys), mid_channels, mid_channels),
         _conv_params(next(keys), mid_channels, mid_channels))
        for _ in range(num_blocks)
    ]
    return params


def _flatten_w_t(w):
    # (3, 3, Cin, Cout) -> (Cout, 9*Cin) bf16; K order (ky, kx, ci) matches the
    # tap-row order of the patch scratch.
    kh, kw, ci, co = w.shape
    return jnp.transpose(w.reshape(kh * kw * ci, co)).astype(jnp.bfloat16)


def _prep_params(params):
    wf, bf = params["conv_first"]
    wf_k = _flatten_w_t(wf)
    bf_k = bf.reshape(-1, 1).astype(jnp.float32)

    def stack_blocks(blocks):
        ws_l, bs_l = [], []
        for (w1, b1), (w2, b2) in blocks:
            ws_l += [_flatten_w_t(w1), _flatten_w_t(w2)]
            bs_l += [b1.reshape(-1, 1).astype(jnp.float32),
                     b2.reshape(-1, 1).astype(jnp.float32)]
        return jnp.stack(ws_l), jnp.stack(bs_l)

    wm, bm = stack_blocks(params["main"])

    wmid_raw, bmid = params["conv_middle"]
    c = wmid_raw.shape[-1]
    w_sin = _flatten_w_t(wmid_raw[:, :, :c, :])            # sin half of concat
    w_cos = _flatten_w_t(wmid_raw[:, :, c:, :])            # cos half of concat
    wmid_k = jnp.concatenate([w_sin, w_cos], axis=1)       # (C, 18C)
    bmid_k = bmid.reshape(-1, 1).astype(jnp.float32)

    wfe, bfe = stack_blocks(params["feature_extractor"])
    return wf_k, bf_k, wm, bm, wmid_k, bmid_k, wfe, bfe


@jax.jit
def dft_feature_extractor(lr_nchw, params):
    """Matches the PyTorch module interface: NCHW in, NCHW out (with_gauss=False)."""
    B, C, H, W = lr_nchw.shape
    Hp, Wp = H + 2, W + 2
    Np = Hp * Wp
    Np_pad = _round_up(Np, 128)

    # Pre-pad + flatten once in XLA (layout plumbing); halo and lane tail are 0.
    lr_flat = jnp.pad(lr_nchw, ((0, 0), (0, 0), (1, 1), (1, 1))).reshape(B, C, Np)
    mask = jnp.pad(jnp.ones((H, W), jnp.float32), ((1, 1), (1, 1))).reshape(1, Np)
    if Np_pad != Np:
        lr_flat = jnp.pad(lr_flat, ((0, 0), (0, 0), (0, Np_pad - Np)))
        mask = jnp.pad(mask, ((0, 0), (0, Np_pad - Np)))

    prepped = _prep_params(params)
    out_flat = _forward_pallas(lr_flat, mask, *prepped, H=H, W=W)

    out = out_flat[:, :, :Np].reshape(B, C, Hp, Wp)[:, :, 1:-1, 1:-1]
    return out


# ----------------------------------------------------------------------------
if __name__ == "__main__":
    key = jax.random.PRNGKey(0)
    k_in, k_par = jax.random.split(key)

    B, C, H, W = 2, 32, 16, 16
    lr = jax.random.normal(k_in, (B, C, H, W), jnp.float32)

    params = init_params(k_par, mid_channels=C, num_blocks=4, num_main=6)

    out = dft_feature_extractor(lr, params)
    out = jax.block_until_ready(out)

    assert out.shape == (B, C, H, W), out.shape
    assert bool(jnp.all(jnp.isfinite(out))), "non-finite output"
    print("KERNEL_OK")
</pallas_src>

<mosaic_0001>
module attributes {stable_mosaic.version = 11 : i64} {
  func.func @_dft_fused_kernel(%arg0: i32, %arg1: memref<1x32x384xf32, #tpu.memory_space<vmem>>, %arg2: memref<1x384xf32, #tpu.memory_space<vmem>>, %arg3: memref<32x288xbf16, #tpu.memory_space<vmem>>, %arg4: memref<32x1xf32, #tpu.memory_space<vmem>>, %arg5: memref<12x32x288xbf16, #tpu.memory_space<vmem>>, %arg6: memref<12x32x1xf32, #tpu.memory_space<vmem>>, %arg7: memref<32x576xbf16, #tpu.memory_space<vmem>>, %arg8: memref<32x1xf32, #tpu.memory_space<vmem>>, %arg9: memref<8x32x288xbf16, #tpu.memory_space<vmem>>, %arg10: memref<8x32x1xf32, #tpu.memory_space<vmem>>, %arg11: memref<1x32x384xf32, #tpu.memory_space<vmem>>, %arg12: memref<32x384xf32, #tpu.memory_space<vmem>>, %arg13: memref<576x384xbf16, #tpu.memory_space<vmem>>) attributes {dimension_semantics = [#tpu.dimension_semantics<parallel>], iteration_bounds = array<i64: 2>, scalar_prefetch = 0 : i64, scratch_operands = 2 : i64, tpu.core_type = #tpu.core_type<tc>, window_params = [{transform_indices = @transform_0, window_bounds = array<i64: 1, 32, 384>}, {pipeline_mode = #tpu.pipeline_mode<synchronous>, transform_indices = @transform_1, window_bounds = array<i64: 1, 384>}, {pipeline_mode = #tpu.pipeline_mode<synchronous>, transform_indices = @transform_2, window_bounds = array<i64: 32, 288>}, {pipeline_mode = #tpu.pipeline_mode<synchronous>, transform_indices = @transform_3, window_bounds = array<i64: 32, 1>}, {pipeline_mode = #tpu.pipeline_mode<synchronous>, transform_indices = @transform_4, window_bounds = array<i64: 12, 32, 288>}, {pipeline_mode = #tpu.pipeline_mode<synchronous>, transform_indices = @transform_5, window_bounds = array<i64: 12, 32, 1>}, {pipeline_mode = #tpu.pipeline_mode<synchronous>, transform_indices = @transform_6, window_bounds = array<i64: 32, 576>}, {pipeline_mode = #tpu.pipeline_mode<synchronous>, transform_indices = @transform_7, window_bounds = array<i64: 32, 1>}, {pipeline_mode = #tpu.pipeline_mode<synchronous>, transform_indices = @transform_8, window_bounds = array<i64: 8, 32, 288>}, {pipeline_mode = #tpu.pipeline_mode<synchronous>, transform_indices = @transform_9, window_bounds = array<i64: 8, 32, 1>}, {transform_indices = @transform_10, window_bounds = array<i64: 1, 32, 384>}]} {
    %c0 = arith.constant 0 : index
    %c0_0 = arith.constant 0 : index
    %c0_1 = arith.constant 0 : index
    %0 = vector.load %arg1[%c0, %c0_0, %c0_1] : memref<1x32x384xf32, #tpu.memory_space<vmem>>, vector<1x32x384xf32>
    %1 = vector.shape_cast %0 : vector<1x32x384xf32> to vector<32x384xf32>
    %c19_i32 = arith.constant 19 : i32
    %2 = tpu.dynamic_rotate %1 by %c19_i32 dim 1 : vector<32x384xf32>, i32 -> vector<32x384xf32>
    %3 = arith.truncf %2 : vector<32x384xf32> to vector<32x384xbf16>
    %c0_2 = arith.constant 0 : index
    %c0_3 = arith.constant 0 : index
    %4 = vector.load %arg13[%c0_2, %c0_3] : memref<576x384xbf16, #tpu.memory_space<vmem>>, vector<32x384xbf16>
    tpu.vector_store %arg13[%c0_2, %c0_3], %3 {strides = array<i32>} : memref<576x384xbf16, #tpu.memory_space<vmem>>, vector<32x384xbf16>,
    %c18_i32 = arith.constant 18 : i32
    %5 = tpu.dynamic_rotate %1 by %c18_i32 dim 1 : vector<32x384xf32>, i32 -> vector<32x384xf32>
    %6 = arith.truncf %5 : vector<32x384xf32> to vector<32x384xbf16>
    %c32 = arith.constant 32 : index
    %c0_4 = arith.constant 0 : index
    %7 = vector.load %arg13[%c32, %c0_4] : memref<576x384xbf16, #tpu.memory_space<vmem>>, vector<32x384xbf16>
    tpu.vector_store %arg13[%c32, %c0_4], %6 {strides = array<i32>} : memref<576x384xbf16, #tpu.memory_space<vmem>>, vector<32x384xbf16>,
    %c17_i32 = arith.constant 17 : i32
    %8 = tpu.dynamic_rotate %1 by %c17_i32 dim 1 : vector<32x384xf32>, i32 -> vector<32x384xf32>
    %9 = arith.truncf %8 : vector<32x384xf32> to vector<32x384xbf16>
    %c64 = arith.constant 64 : index
    %c0_5 = arith.constant 0 : index
    %10 = vector.load %arg13[%c64, %c0_5] : memref<576x384xbf16, #tpu.memory_space<vmem>>, vector<32x384xbf16>
    tpu.vector_store %arg13[%c64, %c0_5], %9 {strides = array<i32>} : memref<576x384xbf16, #tpu.memory_space<vmem>>, vector<32x384xbf16>,
    %c1_i32 = arith.constant 1 : i32
    %11 = tpu.dynamic_rotate %1 by %c1_i32 dim 1 : vector<32x384xf32>, i32 -> vector<32x384xf32>
    %12 = arith.truncf %11 : vector<32x384xf32> to vector<32x384xbf16>
    %c96 = arith.constant 96 : index
    %c0_6 = arith.constant 0 : index
    %13 = vector.load %arg13[%c96, %c0_6] : memref<576x384xbf16, #tpu.memory_space<vmem>>, vector<32x384xbf16>
    tpu.vector_store %arg13[%c96, %c0_6], %12 {strides = array<i32>} : memref<576x384xbf16, #tpu.memory_space<vmem>>, vector<32x384xbf16>,
    %14 = arith.truncf %1 : vector<32x384xf32> to vector<32x384xbf16>
    %c128 = arith.constant 128 : index
    %c0_7 = arith.constant 0 : index
    %15 = vector.load %arg13[%c128, %c0_7] : memref<576x384xbf16, #tpu.memory_space<vmem>>, vector<32x384xbf16>
    tpu.vector_store %arg13[%c128, %c0_7], %14 {strides = array<i32>} : memref<576x384xbf16, #tpu.memory_space<vmem>>, vector<32x384xbf16>,
    %c383_i32 = arith.constant 383 : i32
    %16 = tpu.dynamic_rotate %1 by %c383_i32 dim 1 : vector<32x384xf32>, i32 -> vector<32x384xf32>
    %17 = arith.truncf %16 : vector<32x384xf32> to vector<32x384xbf16>
    %c160 = arith.constant 160 : index
    %c0_8 = arith.constant 0 : index
    %18 = vector.load %arg13[%c160, %c0_8] : memref<576x384xbf16, #tpu.memory_space<vmem>>, vector<32x384xbf16>
    tpu.vector_store %arg13[%c160, %c0_8], %17 {strides = array<i32>} : memref<576x384xbf16, #tpu.memory_space<vmem>>, vector<32x384xbf16>,
    %c367_i32 = arith.constant 367 : i32
    %19 = tpu.dynamic_rotate %1 by %c367_i32 dim 1 : vector<32x384xf32>, i32 -> vector<32x384xf32>
    %20 = arith.truncf %19 : vector<32x384xf32> to vector<32x384xbf16>
    %c192 = arith.constant 192 : index
    %c0_9 = arith.constant 0 : index
    %21 = vector.load %arg13[%c192, %c0_9] : memref<576x384xbf16, #tpu.memory_space<vmem>>, vector<32x384xbf16>
    tpu.vector_store %arg13[%c192, %c0_9], %20 {strides = array<i32>} : memref<576x384xbf16, #tpu.memory_space<vmem>>, vector<32x384xbf16>,
    %c366_i32 = arith.constant 366 : i32
    %22 = tpu.dynamic_rotate %1 by %c366_i32 dim 1 : vector<32x384xf32>, i32 -> vector<32x384xf32>
    %23 = arith.truncf %22 : vector<32x384xf32> to vector<32x384xbf16>
    %c224 = arith.constant 224 : index
    %c0_10 = arith.constant 0 : index
    %24 = vector.load %arg13[%c224, %c0_10] : memref<576x384xbf16, #tpu.memory_space<vmem>>, vector<32x384xbf16>
    tpu.vector_store %arg13[%c224, %c0_10], %23 {strides = array<i32>} : memref<576x384xbf16, #tpu.memory_space<vmem>>, vector<32x384xbf16>,
    %c365_i32 = arith.constant 365 : i32
    %25 = tpu.dynamic_rotate %1 by %c365_i32 dim 1 : vector<32x384xf32>, i32 -> vector<32x384xf32>
    %26 = arith.truncf %25 : vector<32x384xf32> to vector<32x384xbf16>
    %c256 = arith.constant 256 : index
    %c0_11 = arith.constant 0 : index
    %27 = vector.load %arg13[%c256, %c0_11] : memref<576x384xbf16, #tpu.memory_space<vmem>>, vector<32x384xbf16>
    tpu.vector_store %arg13[%c256, %c0_11], %26 {strides = array<i32>} : memref<576x384xbf16, #tpu.memory_space<vmem>>, vector<32x384xbf16>,
    %c0_12 = arith.constant 0 : index
    %c0_13 = arith.constant 0 : index
    %28 = vector.load %arg3[%c0_12, %c0_13] : memref<32x288xbf16, #tpu.memory_space<vmem>>, vector<32x288xbf16>
    %c0_14 = arith.constant 0 : index
    %c0_15 = arith.constant 0 : index
    %29 = vector.load %arg4[%c0_14, %c0_15] : memref<32x1xf32, #tpu.memory_space<vmem>>, vector<32x1xf32>
    %c0_16 = arith.constant 0 : index
    %c0_17 = arith.constant 0 : index
    %30 = vector.load %arg13[%c0_16, %c0_17] : memref<576x384xbf16, #tpu.memory_space<vmem>>, vector<288x384xbf16>
    %cst = arith.constant dense<0.000000e+00> : vector<32x384xf32>
    %31 = tpu.matmul %28, %30, %cst {dimension_numbers = #tpu.dot_dimension_numbers<[1], [0], [0], [1], [0, 0, 1, 1], [], []>} : vector<32x288xbf16>, vector<288x384xbf16>, vector<32x384xf32> -> vector<32x384xf32>
    %32 = vector.broadcast %29 : vector<32x1xf32> to vector<32x384xf32>
    %33 = arith.addf %31, %32 : vector<32x384xf32>
    %c0_18 = arith.constant 0 : index
    %c0_19 = arith.constant 0 : index
    %34 = vector.load %arg2[%c0_18, %c0_19] : memref<1x384xf32, #tpu.memory_space<vmem>>, vector<1x384xf32>
    %35 = vector.broadcast %34 : vector<1x384xf32> to vector<32x384xf32>
    %36 = arith.mulf %33, %35 : vector<32x384xf32>
    %c0_20 = arith.constant 0 : index
    %c0_21 = arith.constant 0 : index
    %37 = vector.load %arg12[%c0_20, %c0_21] : memref<32x384xf32, #tpu.memory_space<vmem>>, vector<32x384xf32>
    tpu.vector_store %arg12[%c0_20, %c0_21], %36 {strides = array<i32>} : memref<32x384xf32, #tpu.memory_space<vmem>>, vector<32x384xf32>,
    %c0_i32 = arith.constant 0 : i32
    %c6_i32 = arith.constant 6 : i32
    %38 = arith.addi %c0_i32, %c6_i32 : i32
    %c1_i32_22 = arith.constant 1 : i32
    scf.for %arg14 = %c0_i32 to %38 step %c1_i32_22  : i32 {
      %c0_91 = arith.constant 0 : index
      %c0_92 = arith.constant 0 : index
      %114 = vector.load %arg12[%c0_91, %c0_92] : memref<32x384xf32, #tpu.memory_space<vmem>>, vector<32x384xf32>
      %c19_i32_93 = arith.constant 19 : i32
      %115 = tpu.dynamic_rotate %114 by %c19_i32_93 dim 1 : vector<32x384xf32>, i32 -> vector<32x384xf32>
      %116 = arith.truncf %115 : vector<32x384xf32> to vector<32x384xbf16>
      %c0_94 = arith.constant 0 : index
      %c0_95 = arith.constant 0 : index
      %117 = vector.load %arg13[%c0_94, %c0_95] : memref<576x384xbf16, #tpu.memory_space<vmem>>, vector<32x384xbf16>
      tpu.vector_store %arg13[%c0_94, %c0_95], %116 {strides = array<i32>} : memref<576x384xbf16, #tpu.memory_space<vmem>>, vector<32x384xbf16>,
      %c18_i32_96 = arith.constant 18 : i32
      %118 = tpu.dynamic_rotate %114 by %c18_i32_96 dim 1 : vector<32x384xf32>, i32 -> vector<32x384xf32>
      %119 = arith.truncf %118 : vector<32x384xf32> to vector<32x384xbf16>
      %c32_97 = arith.constant 32 : index
      %c0_98 = arith.constant 0 : index
      %120 = vector.load %arg13[%c32_97, %c0_98] : memref<576x384xbf16, #tpu.memory_space<vmem>>, vector<32x384xbf16>
      tpu.vector_store %arg13[%c32_97, %c0_98], %119 {strides = array<i32>} : memref<576x384xbf16, #tpu.memory_space<vmem>>, vector<32x384xbf16>,
      %c17_i32_99 = arith.constant 17 : i32
      %121 = tpu.dynamic_rotate %114 by %c17_i32_99 dim 1 : vector<32x384xf32>, i32 -> vector<32x384xf32>
      %122 = arith.truncf %121 : vector<32x384xf32> to vector<32x384xbf16>
      %c64_100 = arith.constant 64 : index
      %c0_101 = arith.constant 0 : index
      %123 = vector.load %arg13[%c64_100, %c0_101] : memref<576x384xbf16, #tpu.memory_space<vmem>>, vector<32x384xbf16>
      tpu.vector_store %arg13[%c64_100, %c0_101], %122 {strides = array<i32>} : memref<576x384xbf16, #tpu.memory_space<vmem>>, vector<32x384xbf16>,
      %c1_i32_102 = arith.constant 1 : i32
      %124 = tpu.dynamic_rotate %114 by %c1_i32_102 dim 1 : vector<32x384xf32>, i32 -> vector<32x384xf32>
      %125 = arith.truncf %124 : vector<32x384xf32> to vector<32x384xbf16>
      %c96_103 = arith.constant 96 : index
      %c0_104 = arith.constant 0 : index
      %126 = vector.load %arg13[%c96_103, %c0_104] : memref<576x384xbf16, #tpu.memory_space<vmem>>, vector<32x384xbf16>
      tpu.vector_store %arg13[%c96_103, %c0_104], %125 {strides = array<i32>} : memref<576x384xbf16, #tpu.memory_space<vmem>>, vector<32x384xbf16>,
      %127 = arith.truncf %114 : vector<32x384xf32> to vector<32x384xbf16>
      %c128_105 = arith.constant 128 : index
      %c0_106 = arith.constant 0 : index
      %128 = vector.load %arg13[%c128_105, %c0_106] : memref<576x384xbf16, #tpu.memory_space<vmem>>, vector<32x384xbf16>
      tpu.vector_store %arg13[%c128_105, %c0_106], %127 {strides = array<i32>} : memref<576x384xbf16, #tpu.memory_space<vmem>>, vector<32x384xbf16>,
      %c383_i32_107 = arith.constant 383 : i32
      %129 = tpu.dynamic_rotate %114 by %c383_i32_107 dim 1 : vector<32x384xf32>, i32 -> vector<32x384xf32>
      %130 = arith.truncf %129 : vector<32x384xf32> to vector<32x384xbf16>
      %c160_108 = arith.constant 160 : index
      %c0_109 = arith.constant 0 : index
      %131 = vector.load %arg13[%c160_108, %c0_109] : memref<576x384xbf16, #tpu.memory_space<vmem>>, vector<32x384xbf16>
      tpu.vector_store %arg13[%c160_108, %c0_109], %130 {strides = array<i32>} : memref<576x384xbf16, #tpu.memory_space<vmem>>, vector<32x384xbf16>,
      %c367_i32_110 = arith.constant 367 : i32
      %132 = tpu.dynamic_rotate %114 by %c367_i32_110 dim 1 : vector<32x384xf32>, i32 -> vector<32x384xf32>
      %133 = arith.truncf %132 : vector<32x384xf32> to vector<32x384xbf16>
      %c192_111 = arith.constant 192 : index
      %c0_112 = arith.constant 0 : index
      %134 = vector.load %arg13[%c192_111, %c0_112] : memref<576x384xbf16, #tpu.memory_space<vmem>>, vector<32x384xbf16>
      tpu.vector_store %arg13[%c192_111, %c0_112], %133 {strides = array<i32>} : memref<576x384xbf16, #tpu.memory_space<vmem>>, vector<32x384xbf16>,
      %c366_i32_113 = arith.constant 366 : i32
      %135 = tpu.dynamic_rotate %114 by %c366_i32_113 dim 1 : vector<32x384xf32>, i32 -> vector<32x384xf32>
      %136 = arith.truncf %135 : vector<32x384xf32> to vector<32x384xbf16>
      %c224_114 = arith.constant 224 : index
      %c0_115 = arith.constant 0 : index
      %137 = vector.load %arg13[%c224_114, %c0_115] : memref<576x384xbf16, #tpu.memory_space<vmem>>, vector<32x384xbf16>
      tpu.vector_store %arg13[%c224_114, %c0_115], %136 {strides = array<i32>} : memref<576x384xbf16, #tpu.memory_space<vmem>>, vector<32x384xbf16>,
      %c365_i32_116 = arith.constant 365 : i32
      %138 = tpu.dynamic_rotate %114 by %c365_i32_116 dim 1 : vector<32x384xf32>, i32 -> vector<32x384xf32>
      %139 = arith.truncf %138 : vector<32x384xf32> to vector<32x384xbf16>
      %c256_117 = arith.constant 256 : index
      %c0_118 = arith.constant 0 : index
      %140 = vector.load %arg13[%c256_117, %c0_118] : memref<576x384xbf16, #tpu.memory_space<vmem>>, vector<32x384xbf16>
      tpu.vector_store %arg13[%c256_117, %c0_118], %139 {strides = array<i32>} : memref<576x384xbf16, #tpu.memory_space<vmem>>, vector<32x384xbf16>,
      %c2_i32 = arith.constant 2 : i32
      %141 = arith.muli %c2_i32, %arg14 : i32
      %142 = arith.index_cast %141 : i32 to index
      %c0_119 = arith.constant 0 : index
      %c0_120 = arith.constant 0 : index
      %143 = vector.load %arg5[%142, %c0_119, %c0_120] : memref<12x32x288xbf16, #tpu.memory_space<vmem>>, vector<1x32x288xbf16>
      %144 = vector.shape_cast %143 : vector<1x32x288xbf16> to vector<32x288xbf16>
      %c2_i32_121 = arith.constant 2 : i32
      %145 = arith.muli %c2_i32_121, %arg14 : i32
      %146 = arith.index_cast %145 : i32 to index
      %c0_122 = arith.constant 0 : index
      %c0_123 = arith.constant 0 : index
      %147 = vector.load %arg6[%146, %c0_122, %c0_123] : memref<12x32x1xf32, #tpu.memory_space<vmem>>, vector<1x32x1xf32>
      %148 = vector.shape_cast %147 : vector<1x32x1xf32> to vector<32x1xf32>
      %c0_124 = arith.constant 0 : index
      %c0_125 = arith.constant 0 : index
      %149 = vector.load %arg13[%c0_124, %c0_125] : memref<576x384xbf16, #tpu.memory_space<vmem>>, vector<288x384xbf16>
      %cst_126 = arith.constant dense<0.000000e+00> : vector<32x384xf32>
      %150 = tpu.matmul %144, %149, %cst_126 {dimension_numbers = #tpu.dot_dimension_numbers<[1], [0], [0], [1], [0, 0, 1, 1], [], []>} : vector<32x288xbf16>, vector<288x384xbf16>, vector<32x384xf32> -> vector<32x384xf32>
      %151 = vector.broadcast %148 : vector<32x1xf32> to vector<32x384xf32>
      %152 = arith.addf %150, %151 : vector<32x384xf32>
      %cst_127 = arith.constant 0.000000e+00 : f32
      %153 = vector.broadcast %cst_127 : f32 to vector<32x384xf32>
      %154 = arith.maximumf %152, %153 : vector<32x384xf32>
      %c0_128 = arith.constant 0 : index
      %c0_129 = arith.constant 0 : index
      %155 = vector.load %arg2[%c0_128, %c0_129] : memref<1x384xf32, #tpu.memory_space<vmem>>, vector<1x384xf32>
      %156 = vector.broadcast %155 : vector<1x384xf32> to vector<32x384xf32>
      %157 = arith.mulf %154, %156 : vector<32x384xf32>
      %c19_i32_130 = arith.constant 19 : i32
      %158 = tpu.dynamic_rotate %157 by %c19_i32_130 dim 1 : vector<32x384xf32>, i32 -> vector<32x384xf32>
      %159 = arith.truncf %158 : vector<32x384xf32> to vector<32x384xbf16>
      %c0_131 = arith.constant 0 : index
      %c0_132 = arith.constant 0 : index
      %160 = vector.load %arg13[%c0_131, %c0_132] : memref<576x384xbf16, #tpu.memory_space<vmem>>, vector<32x384xbf16>
      tpu.vector_store %arg13[%c0_131, %c0_132], %159 {strides = array<i32>} : memref<576x384xbf16, #tpu.memory_space<vmem>>, vector<32x384xbf16>,
      %c18_i32_133 = arith.constant 18 : i32
      %161 = tpu.dynamic_rotate %157 by %c18_i32_133 dim 1 : vector<32x384xf32>, i32 -> vector<32x384xf32>
      %162 = arith.truncf %161 : vector<32x384xf32> to vector<32x384xbf16>
      %c32_134 = arith.constant 32 : index
      %c0_135 = arith.constant 0 : index
      %163 = vector.load %arg13[%c32_134, %c0_135] : memref<576x384xbf16, #tpu.memory_space<vmem>>, vector<32x384xbf16>
      tpu.vector_store %arg13[%c32_134, %c0_135], %162 {strides = array<i32>} : memref<576x384xbf16, #tpu.memory_space<vmem>>, vector<32x384xbf16>,
      %c17_i32_136 = arith.constant 17 : i32
      %164 = tpu.dynamic_rotate %157 by %c17_i32_136 dim 1 : vector<32x384xf32>, i32 -> vector<32x384xf32>
      %165 = arith.truncf %164 : vector<32x384xf32> to vector<32x384xbf16>
      %c64_137 = arith.constant 64 : index
      %c0_138 = arith.constant 0 : index
      %166 = vector.load %arg13[%c64_137, %c0_138] : memref<576x384xbf16, #tpu.memory_space<vmem>>, vector<32x384xbf16>
      tpu.vector_store %arg13[%c64_137, %c0_138], %165 {strides = array<i32>} : memref<576x384xbf16, #tpu.memory_space<vmem>>, vector<32x384xbf16>,
      %c1_i32_139 = arith.constant 1 : i32
      %167 = tpu.dynamic_rotate %157 by %c1_i32_139 dim 1 : vector<32x384xf32>, i32 -> vector<32x384xf32>
      %168 = arith.truncf %167 : vector<32x384xf32> to vector<32x384xbf16>
      %c96_140 = arith.constant 96 : index
      %c0_141 = arith.constant 0 : index
      %169 = vector.load %arg13[%c96_140, %c0_141] : memref<576x384xbf16, #tpu.memory_space<vmem>>, vector<32x384xbf16>
      tpu.vector_store %arg13[%c96_140, %c0_141], %168 {strides = array<i32>} : memref<576x384xbf16, #tpu.memory_space<vmem>>, vector<32x384xbf16>,
      %170 = arith.truncf %157 : vector<32x384xf32> to vector<32x384xbf16>
      %c128_142 = arith.constant 128 : index
      %c0_143 = arith.constant 0 : index
      %171 = vector.load %arg13[%c128_142, %c0_143] : memref<576x384xbf16, #tpu.memory_space<vmem>>, vector<32x384xbf16>
      tpu.vector_store %arg13[%c128_142, %c0_143], %170 {strides = array<i32>} : memref<576x384xbf16, #tpu.memory_space<vmem>>, vector<32x384xbf16>,
      %c383_i32_144 = arith.constant 383 : i32
      %172 = tpu.dynamic_rotate %157 by %c383_i32_144 dim 1 : vector<32x384xf32>, i32 -> vector<32x384xf32>
      %173 = arith.truncf %172 : vector<32x384xf32> to vector<32x384xbf16>
      %c160_145 = arith.constant 160 : index
      %c0_146 = arith.constant 0 : index
      %174 = vector.load %arg13[%c160_145, %c0_146] : memref<576x384xbf16, #tpu.memory_space<vmem>>, vector<32x384xbf16>
      tpu.vector_store %arg13[%c160_145, %c0_146], %173 {strides = array<i32>} : memref<576x384xbf16, #tpu.memory_space<vmem>>, vector<32x384xbf16>,
      %c367_i32_147 = arith.constant 367 : i32
      %175 = tpu.dynamic_rotate %157 by %c367_i32_147 dim 1 : vector<32x384xf32>, i32 -> vector<32x384xf32>
      %176 = arith.truncf %175 : vector<32x384xf32> to vector<32x384xbf16>
      %c192_148 = arith.constant 192 : index
      %c0_149 = arith.constant 0 : index
      %177 = vector.load %arg13[%c192_148, %c0_149] : memref<576x384xbf16, #tpu.memory_space<vmem>>, vector<32x384xbf16>
      tpu.vector_store %arg13[%c192_148, %c0_149], %176 {strides = array<i32>} : memref<576x384xbf16, #tpu.memory_space<vmem>>, vector<32x384xbf16>,
      %c366_i32_150 = arith.constant 366 : i32
      %178 = tpu.dynamic_rotate %157 by %c366_i32_150 dim 1 : vector<32x384xf32>, i32 -> vector<32x384xf32>
      %179 = arith.truncf %178 : vector<32x384xf32> to vector<32x384xbf16>
      %c224_151 = arith.constant 224 : index
      %c0_152 = arith.constant 0 : index
      %180 = vector.load %arg13[%c224_151, %c0_152] : memref<576x384xbf16, #tpu.memory_space<vmem>>, vector<32x384xbf16>
      tpu.vector_store %arg13[%c224_151, %c0_152], %179 {strides = array<i32>} : memref<576x384xbf16, #tpu.memory_space<vmem>>, vector<32x384xbf16>,
      %c365_i32_153 = arith.constant 365 : i32
      %181 = tpu.dynamic_rotate %157 by %c365_i32_153 dim 1 : vector<32x384xf32>, i32 -> vector<32x384xf32>
      %182 = arith.truncf %181 : vector<32x384xf32> to vector<32x384xbf16>
      %c256_154 = arith.constant 256 : index
      %c0_155 = arith.constant 0 : index
      %183 = vector.load %arg13[%c256_154, %c0_155] : memref<576x384xbf16, #tpu.memory_space<vmem>>, vector<32x384xbf16>
      tpu.vector_store %arg13[%c256_154, %c0_155], %182 {strides = array<i32>} : memref<576x384xbf16, #tpu.memory_space<vmem>>, vector<32x384xbf16>,
      %c2_i32_156 = arith.constant 2 : i32
      %184 = arith.muli %c2_i32_156, %arg14 : i32
      %c1_i32_157 = arith.constant 1 : i32
      %185 = arith.addi %184, %c1_i32_157 : i32
      %186 = arith.index_cast %185 : i32 to index
      %c0_158 = arith.constant 0 : index
      %c0_159 = arith.constant 0 : index
      %187 = vector.load %arg5[%186, %c0_158, %c0_159] : memref<12x32x288xbf16, #tpu.memory_space<vmem>>, vector<1x32x288xbf16>
      %188 = vector.shape_cast %187 : vector<1x32x288xbf16> to vector<32x288xbf16>
      %c2_i32_160 = arith.constant 2 : i32
      %189 = arith.muli %c2_i32_160, %arg14 : i32
      %c1_i32_161 = arith.constant 1 : i32
      %190 = arith.addi %189, %c1_i32_161 : i32
      %191 = arith.index_cast %190 : i32 to index
      %c0_162 = arith.constant 0 : index
      %c0_163 = arith.constant 0 : index
      %192 = vector.load %arg6[%191, %c0_162, %c0_163] : memref<12x32x1xf32, #tpu.memory_space<vmem>>, vector<1x32x1xf32>
      %193 = vector.shape_cast %192 : vector<1x32x1xf32> to vector<32x1xf32>
      %c0_164 = arith.constant 0 : index
      %c0_165 = arith.constant 0 : index
      %194 = vector.load %arg12[%c0_164, %c0_165] : memref<32x384xf32, #tpu.memory_space<vmem>>, vector<32x384xf32>
      %c0_166 = arith.constant 0 : index
      %c0_167 = arith.constant 0 : index
      %195 = vector.load %arg13[%c0_166, %c0_167] : memref<576x384xbf16, #tpu.memory_space<vmem>>, vector<288x384xbf16>
      %cst_168 = arith.constant dense<0.000000e+00> : vector<32x384xf32>
      %196 = tpu.matmul %188, %195, %cst_168 {dimension_numbers = #tpu.dot_dimension_numbers<[1], [0], [0], [1], [0, 0, 1, 1], [], []>} : vector<32x288xbf16>, vector<288x384xbf16>, vector<32x384xf32> -> vector<32x384xf32>
      %197 = vector.broadcast %193 : vector<32x1xf32> to vector<32x384xf32>
      %198 = arith.addf %196, %197 : vector<32x384xf32>
      %199 = arith.addf %198, %194 : vector<32x384xf32>
      %c0_169 = arith.constant 0 : index
      %c0_170 = arith.constant 0 : index
      %200 = vector.load %arg2[%c0_169, %c0_170] : memref<1x384xf32, #tpu.memory_space<vmem>>, vector<1x384xf32>
      %201 = vector.broadcast %200 : vector<1x384xf32> to vector<32x384xf32>
      %202 = arith.mulf %199, %201 : vector<32x384xf32>
      %c0_171 = arith.constant 0 : index
      %c0_172 = arith.constant 0 : index
      %203 = vector.load %arg12[%c0_171, %c0_172] : memref<32x384xf32, #tpu.memory_space<vmem>>, vector<32x384xf32>
      tpu.vector_store %arg12[%c0_171, %c0_172], %202 {strides = array<i32>} : memref<32x384xf32, #tpu.memory_space<vmem>>, vector<32x384xf32>,
    }
    %c6_i32_23 = arith.constant 6 : i32
    %c0_24 = arith.constant 0 : index
    %c0_25 = arith.constant 0 : index
    %39 = vector.load %arg12[%c0_24, %c0_25] : memref<32x384xf32, #tpu.memory_space<vmem>>, vector<32x384xf32>
    %cst_26 = arith.constant 6.28318548 : f32
    %40 = vector.broadcast %cst_26 : f32 to vector<32x384xf32>
    %41 = arith.mulf %39, %40 : vector<32x384xf32>
    %42 = math.sin %41 : vector<32x384xf32>
    %c19_i32_27 = arith.constant 19 : i32
    %43 = tpu.dynamic_rotate %42 by %c19_i32_27 dim 1 : vector<32x384xf32>, i32 -> vector<32x384xf32>
    %44 = arith.truncf %43 : vector<32x384xf32> to vector<32x384xbf16>
    %c0_28 = arith.constant 0 : index
    %c0_29 = arith.constant 0 : index
    %45 = vector.load %arg13[%c0_28, %c0_29] : memref<576x384xbf16, #tpu.memory_space<vmem>>, vector<32x384xbf16>
    tpu.vector_store %arg13[%c0_28, %c0_29], %44 {strides = array<i32>} : memref<576x384xbf16, #tpu.memory_space<vmem>>, vector<32x384xbf16>,
    %c18_i32_30 = arith.constant 18 : i32
    %46 = tpu.dynamic_rotate %42 by %c18_i32_30 dim 1 : vector<32x384xf32>, i32 -> vector<32x384xf32>
    %47 = arith.truncf %46 : vector<32x384xf32> to vector<32x384xbf16>
    %c32_31 = arith.constant 32 : index
    %c0_32 = arith.constant 0 : index
    %48 = vector.load %arg13[%c32_31, %c0_32] : memref<576x384xbf16, #tpu.memory_space<vmem>>, vector<32x384xbf16>
    tpu.vector_store %arg13[%c32_31, %c0_32], %47 {strides = array<i32>} : memref<576x384xbf16, #tpu.memory_space<vmem>>, vector<32x384xbf16>,
    %c17_i32_33 = arith.constant 17 : i32
    %49 = tpu.dynamic_rotate %42 by %c17_i32_33 dim 1 : vector<32x384xf32>, i32 -> vector<32x384xf32>
    %50 = arith.truncf %49 : vector<32x384xf32> to vector<32x384xbf16>
    %c64_34 = arith.constant 64 : index
    %c0_35 = arith.constant 0 : index
    %51 = vector.load %arg13[%c64_34, %c0_35] : memref<576x384xbf16, #tpu.memory_space<vmem>>, vector<32x384xbf16>
    tpu.vector_store %arg13[%c64_34, %c0_35], %50 {strides = array<i32>} : memref<576x384xbf16, #tpu.memory_space<vmem>>, vector<32x384xbf16>,
    %c1_i32_36 = arith.constant 1 : i32
    %52 = tpu.dynamic_rotate %42 by %c1_i32_36 dim 1 : vector<32x384xf32>, i32 -> vector<32x384xf32>
    %53 = arith.truncf %52 : vector<32x384xf32> to vector<32x384xbf16>
    %c96_37 = arith.constant 96 : index
    %c0_38 = arith.constant 0 : index
    %54 = vector.load %arg13[%c96_37, %c0_38] : memref<576x384xbf16, #tpu.memory_space<vmem>>, vector<32x384xbf16>
    tpu.vector_store %arg13[%c96_37, %c0_38], %53 {strides = array<i32>} : memref<576x384xbf16, #tpu.memory_space<vmem>>, vector<32x384xbf16>,
    %55 = arith.truncf %42 : vector<32x384xf32> to vector<32x384xbf16>
    %c128_39 = arith.constant 128 : index
    %c0_40 = arith.constant 0 : index
    %56 = vector.load %arg13[%c128_39, %c0_40] : memref<576x384xbf16, #tpu.memory_space<vmem>>, vector<32x384xbf16>
    tpu.vector_store %arg13[%c128_39, %c0_40], %55 {strides = array<i32>} : memref<576x384xbf16, #tpu.memory_space<vmem>>, vector<32x384xbf16>,
    %c383_i32_41 = arith.constant 383 : i32
    %57 = tpu.dynamic_rotate %42 by %c383_i32_41 dim 1 : vector<32x384xf32>, i32 -> vector<32x384xf32>
    %58 = arith.truncf %57 : vector<32x384xf32> to vector<32x384xbf16>
    %c160_42 = arith.constant 160 : index
    %c0_43 = arith.constant 0 : index
    %59 = vector.load %arg13[%c160_42, %c0_43] : memref<576x384xbf16, #tpu.memory_space<vmem>>, vector<32x384xbf16>
    tpu.vector_store %arg13[%c160_42, %c0_43], %58 {strides = array<i32>} : memref<576x384xbf16, #tpu.memory_space<vmem>>, vector<32x384xbf16>,
    %c367_i32_44 = arith.constant 367 : i32
    %60 = tpu.dynamic_rotate %42 by %c367_i32_44 dim 1 : vector<32x384xf32>, i32 -> vector<32x384xf32>
    %61 = arith.truncf %60 : vector<32x384xf32> to vector<32x384xbf16>
    %c192_45 = arith.constant 192 : index
    %c0_46 = arith.constant 0 : index
    %62 = vector.load %arg13[%c192_45, %c0_46] : memref<576x384xbf16, #tpu.memory_space<vmem>>, vector<32x384xbf16>
    tpu.vector_store %arg13[%c192_45, %c0_46], %61 {strides = array<i32>} : memref<576x384xbf16, #tpu.memory_space<vmem>>, vector<32x384xbf16>,
    %c366_i32_47 = arith.constant 366 : i32
    %63 = tpu.dynamic_rotate %42 by %c366_i32_47 dim 1 : vector<32x384xf32>, i32 -> vector<32x384xf32>
    %64 = arith.truncf %63 : vector<32x384xf32> to vector<32x384xbf16>
    %c224_48 = arith.constant 224 : index
    %c0_49 = arith.constant 0 : index
    %65 = vector.load %arg13[%c224_48, %c0_49] : memref<576x384xbf16, #tpu.memory_space<vmem>>, vector<32x384xbf16>
    tpu.vector_store %arg13[%c224_48, %c0_49], %64 {strides = array<i32>} : memref<576x384xbf16, #tpu.memory_space<vmem>>, vector<32x384xbf16>,
    %c365_i32_50 = arith.constant 365 : i32
    %66 = tpu.dynamic_rotate %42 by %c365_i32_50 dim 1 : vector<32x384xf32>, i32 -> vector<32x384xf32>
    %67 = arith.truncf %66 : vector<32x384xf32> to vector<32x384xbf16>
    %c256_51 = arith.constant 256 : index
    %c0_52 = arith.constant 0 : index
    %68 = vector.load %arg13[%c256_51, %c0_52] : memref<576x384xbf16, #tpu.memory_space<vmem>>, vector<32x384xbf16>
    tpu.vector_store %arg13[%c256_51, %c0_52], %67 {strides = array<i32>} : memref<576x384xbf16, #tpu.memory_space<vmem>>, vector<32x384xbf16>,
    %69 = math.cos %41 : vector<32x384xf32>
    %c0_53 = arith.constant 0 : index
    %c0_54 = arith.constant 0 : index
    %70 = vector.load %arg2[%c0_53, %c0_54] : memref<1x384xf32, #tpu.memory_space<vmem>>, vector<1x384xf32>
    %71 = vector.broadcast %70 : vector<1x384xf32> to vector<32x384xf32>
    %72 = arith.mulf %69, %71 : vector<32x384xf32>
    %c19_i32_55 = arith.constant 19 : i32
    %73 = tpu.dynamic_rotate %72 by %c19_i32_55 dim 1 : vector<32x384xf32>, i32 -> vector<32x384xf32>
    %74 = arith.truncf %73 : vector<32x384xf32> to vector<32x384xbf16>
    %c288 = arith.constant 288 : index
    %c0_56 = arith.constant 0 : index
    %75 = vector.load %arg13[%c288, %c0_56] : memref<576x384xbf16, #tpu.memory_space<vmem>>, vector<32x384xbf16>
    tpu.vector_store %arg13[%c288, %c0_56], %74 {strides = array<i32>} : memref<576x384xbf16, #tpu.memory_space<vmem>>, vector<32x384xbf16>,
    %c18_i32_57 = arith.constant 18 : i32
    %76 = tpu.dynamic_rotate %72 by %c18_i32_57 dim 1 : vector<32x384xf32>, i32 -> vector<32x384xf32>
    %77 = arith.truncf %76 : vector<32x384xf32> to vector<32x384xbf16>
    %c320 = arith.constant 320 : index
    %c0_58 = arith.constant 0 : index
    %78 = vector.load %arg13[%c320, %c0_58] : memref<576x384xbf16, #tpu.memory_space<vmem>>, vector<32x384xbf16>
    tpu.vector_store %arg13[%c320, %c0_58], %77 {strides = array<i32>} : memref<576x384xbf16, #tpu.memory_space<vmem>>, vector<32x384xbf16>,
    %c17_i32_59 = arith.constant 17 : i32
    %79 = tpu.dynamic_rotate %72 by %c17_i32_59 dim 1 : vector<32x384xf32>, i32 -> vector<32x384xf32>
    %80 = arith.truncf %79 : vector<32x384xf32> to vector<32x384xbf16>
    %c352 = arith.constant 352 : index
    %c0_60 = arith.constant 0 : index
    %81 = vector.load %arg13[%c352, %c0_60] : memref<576x384xbf16, #tpu.memory_space<vmem>>, vector<32x384xbf16>
    tpu.vector_store %arg13[%c352, %c0_60], %80 {strides = array<i32>} : memref<576x384xbf16, #tpu.memory_space<vmem>>, vector<32x384xbf16>,
    %c1_i32_61 = arith.constant 1 : i32
    %82 = tpu.dynamic_rotate %72 by %c1_i32_61 dim 1 : vector<32x384xf32>, i32 -> vector<32x384xf32>
    %83 = arith.truncf %82 : vector<32x384xf32> to vector<32x384xbf16>
    %c384 = arith.constant 384 : index
    %c0_62 = arith.constant 0 : index
    %84 = vector.load %arg13[%c384, %c0_62] : memref<576x384xbf16, #tpu.memory_space<vmem>>, vector<32x384xbf16>
    tpu.vector_store %arg13[%c384, %c0_62], %83 {strides = array<i32>} : memref<576x384xbf16, #tpu.memory_space<vmem>>, vector<32x384xbf16>,
    %85 = arith.truncf %72 : vector<32x384xf32> to vector<32x384xbf16>
    %c416 = arith.constant 416 : index
    %c0_63 = arith.constant 0 : index
    %86 = vector.load %arg13[%c416, %c0_63] : memref<576x384xbf16, #tpu.memory_space<vmem>>, vector<32x384xbf16>
    tpu.vector_store %arg13[%c416, %c0_63], %85 {strides = array<i32>} : memref<576x384xbf16, #tpu.memory_space<vmem>>, vector<32x384xbf16>,
    %c383_i32_64 = arith.constant 383 : i32
    %87 = tpu.dynamic_rotate %72 by %c383_i32_64 dim 1 : vector<32x384xf32>, i32 -> vector<32x384xf32>
    %88 = arith.truncf %87 : vector<32x384xf32> to vector<32x384xbf16>
    %c448 = arith.constant 448 : index
    %c0_65 = arith.constant 0 : index
    %89 = vector.load %arg13[%c448, %c0_65] : memref<576x384xbf16, #tpu.memory_space<vmem>>, vector<32x384xbf16>
    tpu.vector_store %arg13[%c448, %c0_65], %88 {strides = array<i32>} : memref<576x384xbf16, #tpu.memory_space<vmem>>, vector<32x384xbf16>,
    %c367_i32_66 = arith.constant 367 : i32
    %90 = tpu.dynamic_rotate %72 by %c367_i32_66 dim 1 : vector<32x384xf32>, i32 -> vector<32x384xf32>
    %91 = arith.truncf %90 : vector<32x384xf32> to vector<32x384xbf16>
    %c480 = arith.constant 480 : index
    %c0_67 = arith.constant 0 : index
    %92 = vector.load %arg13[%c480, %c0_67] : memref<576x384xbf16, #tpu.memory_space<vmem>>, vector<32x384xbf16>
    tpu.vector_store %arg13[%c480, %c0_67], %91 {strides = array<i32>} : memref<576x384xbf16, #tpu.memory_space<vmem>>, vector<32x384xbf16>,
    %c366_i32_68 = arith.constant 366 : i32
    %93 = tpu.dynamic_rotate %72 by %c366_i32_68 dim 1 : vector<32x384xf32>, i32 -> vector<32x384xf32>
    %94 = arith.truncf %93 : vector<32x384xf32> to vector<32x384xbf16>
    %c512 = arith.constant 512 : index
    %c0_69 = arith.constant 0 : index
    %95 = vector.load %arg13[%c512, %c0_69] : memref<576x384xbf16, #tpu.memory_space<vmem>>, vector<32x384xbf16>
    tpu.vector_store %arg13[%c512, %c0_69], %94 {strides = array<i32>} : memref<576x384xbf16, #tpu.memory_space<vmem>>, vector<32x384xbf16>,
    %c365_i32_70 = arith.constant 365 : i32
    %96 = tpu.dynamic_rotate %72 by %c365_i32_70 dim 1 : vector<32x384xf32>, i32 -> vector<32x384xf32>
    %97 = arith.truncf %96 : vector<32x384xf32> to vector<32x384xbf16>
    %c544 = arith.constant 544 : index
    %c0_71 = arith.constant 0 : index
    %98 = vector.load %arg13[%c544, %c0_71] : memref<576x384xbf16, #tpu.memory_space<vmem>>, vector<32x384xbf16>
    tpu.vector_store %arg13[%c544, %c0_71], %97 {strides = array<i32>} : memref<576x384xbf16, #tpu.memory_space<vmem>>, vector<32x384xbf16>,
    %c0_72 = arith.constant 0 : index
    %c0_73 = arith.constant 0 : index
    %99 = vector.load %arg7[%c0_72, %c0_73] : memref<32x576xbf16, #tpu.memory_space<vmem>>, vector<32x576xbf16>
    %c0_74 = arith.constant 0 : index
    %c0_75 = arith.constant 0 : index
    %100 = vector.load %arg8[%c0_74, %c0_75] : memref<32x1xf32, #tpu.memory_space<vmem>>, vector<32x1xf32>
    %c0_76 = arith.constant 0 : index
    %c0_77 = arith.constant 0 : index
    %101 = vector.load %arg13[%c0_76, %c0_77] : memref<576x384xbf16, #tpu.memory_space<vmem>>, vector<576x384xbf16>
    %cst_78 = arith.constant dense<0.000000e+00> : vector<32x384xf32>
    %102 = tpu.matmul %99, %101, %cst_78 {dimension_numbers = #tpu.dot_dimension_numbers<[1], [0], [0], [1], [0, 0, 1, 1], [], []>} : vector<32x576xbf16>, vector<576x384xbf16>, vector<32x384xf32> -> vector<32x384xf32>
    %103 = vector.broadcast %100 : vector<32x1xf32> to vector<32x384xf32>
    %104 = arith.addf %102, %103 : vector<32x384xf32>
    %c0_79 = arith.constant 0 : index
    %c0_80 = arith.constant 0 : index
    %105 = vector.load %arg2[%c0_79, %c0_80] : memref<1x384xf32, #tpu.memory_space<vmem>>, vector<1x384xf32>
    %106 = vector.broadcast %105 : vector<1x384xf32> to vector<32x384xf32>
    %107 = arith.mulf %104, %106 : vector<32x384xf32>
    %c0_81 = arith.constant 0 : index
    %c0_82 = arith.constant 0 : index
    %108 = vector.load %arg12[%c0_81, %c0_82] : memref<32x384xf32, #tpu.memory_space<vmem>>, vector<32x384xf32>
    tpu.vector_store %arg12[%c0_81, %c0_82], %107 {strides = array<i32>} : memref<32x384xf32, #tpu.memory_space<vmem>>, vector<32x384xf32>,
    %c0_i32_83 = arith.constant 0 : i32
    %c4_i32 = arith.constant 4 : i32
    %109 = arith.addi %c0_i32_83, %c4_i32 : i32
    %c1_i32_84 = arith.constant 1 : i32
    scf.for %arg14 = %c0_i32_83 to %109 step %c1_i32_84  : i32 {
      %c0_91 = arith.constant 0 : index
      %c0_92 = arith.constant 0 : index
      %114 = vector.load %arg12[%c0_91, %c0_92] : memref<32x384xf32, #tpu.memory_space<vmem>>, vector<32x384xf32>
      %c19_i32_93 = arith.constant 19 : i32
      %115 = tpu.dynamic_rotate %114 by %c19_i32_93 dim 1 : vector<32x384xf32>, i32 -> vector<32x384xf32>
      %116 = arith.truncf %115 : vector<32x384xf32> to vector<32x384xbf16>
      %c0_94 = arith.constant 0 : index
      %c0_95 = arith.constant 0 : index
      %117 = vector.load %arg13[%c0_94, %c0_95] : memref<576x384xbf16, #tpu.memory_space<vmem>>, vector<32x384xbf16>
      tpu.vector_store %arg13[%c0_94, %c0_95], %116 {strides = array<i32>} : memref<576x384xbf16, #tpu.memory_space<vmem>>, vector<32x384xbf16>,
      %c18_i32_96 = arith.constant 18 : i32
      %118 = tpu.dynamic_rotate %114 by %c18_i32_96 dim 1 : vector<32x384xf32>, i32 -> vector<32x384xf32>
      %119 = arith.truncf %118 : vector<32x384xf32> to vector<32x384xbf16>
      %c32_97 = arith.constant 32 : index
      %c0_98 = arith.constant 0 : index
      %120 = vector.load %arg13[%c32_97, %c0_98] : memref<576x384xbf16, #tpu.memory_space<vmem>>, vector<32x384xbf16>
      tpu.vector_store %arg13[%c32_97, %c0_98], %119 {strides = array<i32>} : memref<576x384xbf16, #tpu.memory_space<vmem>>, vector<32x384xbf16>,
      %c17_i32_99 = arith.constant 17 : i32
      %121 = tpu.dynamic_rotate %114 by %c17_i32_99 dim 1 : vector<32x384xf32>, i32 -> vector<32x384xf32>
      %122 = arith.truncf %121 : vector<32x384xf32> to vector<32x384xbf16>
      %c64_100 = arith.constant 64 : index
      %c0_101 = arith.constant 0 : index
      %123 = vector.load %arg13[%c64_100, %c0_101] : memref<576x384xbf16, #tpu.memory_space<vmem>>, vector<32x384xbf16>
      tpu.vector_store %arg13[%c64_100, %c0_101], %122 {strides = array<i32>} : memref<576x384xbf16, #tpu.memory_space<vmem>>, vector<32x384xbf16>,
      %c1_i32_102 = arith.constant 1 : i32
      %124 = tpu.dynamic_rotate %114 by %c1_i32_102 dim 1 : vector<32x384xf32>, i32 -> vector<32x384xf32>
      %125 = arith.truncf %124 : vector<32x384xf32> to vector<32x384xbf16>
      %c96_103 = arith.constant 96 : index
      %c0_104 = arith.constant 0 : index
      %126 = vector.load %arg13[%c96_103, %c0_104] : memref<576x384xbf16, #tpu.memory_space<vmem>>, vector<32x384xbf16>
      tpu.vector_store %arg13[%c96_103, %c0_104], %125 {strides = array<i32>} : memref<576x384xbf16, #tpu.memory_space<vmem>>, vector<32x384xbf16>,
      %127 = arith.truncf %114 : vector<32x384xf32> to vector<32x384xbf16>
      %c128_105 = arith.constant 128 : index
      %c0_106 = arith.constant 0 : index
      %128 = vector.load %arg13[%c128_105, %c0_106] : memref<576x384xbf16, #tpu.memory_space<vmem>>, vector<32x384xbf16>
      tpu.vector_store %arg13[%c128_105, %c0_106], %127 {strides = array<i32>} : memref<576x384xbf16, #tpu.memory_space<vmem>>, vector<32x384xbf16>,
      %c383_i32_107 = arith.constant 383 : i32
      %129 = tpu.dynamic_rotate %114 by %c383_i32_107 dim 1 : vector<32x384xf32>, i32 -> vector<32x384xf32>
      %130 = arith.truncf %129 : vector<32x384xf32> to vector<32x384xbf16>
      %c160_108 = arith.constant 160 : index
      %c0_109 = arith.constant 0 : index
      %131 = vector.load %arg13[%c160_108, %c0_109] : memref<576x384xbf16, #tpu.memory_space<vmem>>, vector<32x384xbf16>
      tpu.vector_store %arg13[%c160_108, %c0_109], %130 {strides = array<i32>} : memref<576x384xbf16, #tpu.memory_space<vmem>>, vector<32x384xbf16>,
      %c367_i32_110 = arith.constant 367 : i32
      %132 = tpu.dynamic_rotate %114 by %c367_i32_110 dim 1 : vector<32x384xf32>, i32 -> vector<32x384xf32>
      %133 = arith.truncf %132 : vector<32x384xf32> to vector<32x384xbf16>
      %c192_111 = arith.constant 192 : index
      %c0_112 = arith.constant 0 : index
      %134 = vector.load %arg13[%c192_111, %c0_112] : memref<576x384xbf16, #tpu.memory_space<vmem>>, vector<32x384xbf16>
      tpu.vector_store %arg13[%c192_111, %c0_112], %133 {strides = array<i32>} : memref<576x384xbf16, #tpu.memory_space<vmem>>, vector<32x384xbf16>,
      %c366_i32_113 = arith.constant 366 : i32
      %135 = tpu.dynamic_rotate %114 by %c366_i32_113 dim 1 : vector<32x384xf32>, i32 -> vector<32x384xf32>
      %136 = arith.truncf %135 : vector<32x384xf32> to vector<32x384xbf16>
      %c224_114 = arith.constant 224 : index
      %c0_115 = arith.constant 0 : index
      %137 = vector.load %arg13[%c224_114, %c0_115] : memref<576x384xbf16, #tpu.memory_space<vmem>>, vector<32x384xbf16>
      tpu.vector_store %arg13[%c224_114, %c0_115], %136 {strides = array<i32>} : memref<576x384xbf16, #tpu.memory_space<vmem>>, vector<32x384xbf16>,
      %c365_i32_116 = arith.constant 365 : i32
      %138 = tpu.dynamic_rotate %114 by %c365_i32_116 dim 1 : vector<32x384xf32>, i32 -> vector<32x384xf32>
      %139 = arith.truncf %138 : vector<32x384xf32> to vector<32x384xbf16>
      %c256_117 = arith.constant 256 : index
      %c0_118 = arith.constant 0 : index
      %140 = vector.load %arg13[%c256_117, %c0_118] : memref<576x384xbf16, #tpu.memory_space<vmem>>, vector<32x384xbf16>
      tpu.vector_store %arg13[%c256_117, %c0_118], %139 {strides = array<i32>} : memref<576x384xbf16, #tpu.memory_space<vmem>>, vector<32x384xbf16>,
      %c2_i32 = arith.constant 2 : i32
      %141 = arith.muli %c2_i32, %arg14 : i32
      %142 = arith.index_cast %141 : i32 to index
      %c0_119 = arith.constant 0 : index
      %c0_120 = arith.constant 0 : index
      %143 = vector.load %arg9[%142, %c0_119, %c0_120] : memref<8x32x288xbf16, #tpu.memory_space<vmem>>, vector<1x32x288xbf16>
      %144 = vector.shape_cast %143 : vector<1x32x288xbf16> to vector<32x288xbf16>
      %c2_i32_121 = arith.constant 2 : i32
      %145 = arith.muli %c2_i32_121, %arg14 : i32
      %146 = arith.index_cast %145 : i32 to index
      %c0_122 = arith.constant 0 : index
      %c0_123 = arith.constant 0 : index
      %147 = vector.load %arg10[%146, %c0_122, %c0_123] : memref<8x32x1xf32, #tpu.memory_space<vmem>>, vector<1x32x1xf32>
      %148 = vector.shape_cast %147 : vector<1x32x1xf32> to vector<32x1xf32>
      %c0_124 = arith.constant 0 : index
      %c0_125 = arith.constant 0 : index
      %149 = vector.load %arg13[%c0_124, %c0_125] : memref<576x384xbf16, #tpu.memory_space<vmem>>, vector<288x384xbf16>
      %cst_126 = arith.constant dense<0.000000e+00> : vector<32x384xf32>
      %150 = tpu.matmul %144, %149, %cst_126 {dimension_numbers = #tpu.dot_dimension_numbers<[1], [0], [0], [1], [0, 0, 1, 1], [], []>} : vector<32x288xbf16>, vector<288x384xbf16>, vector<32x384xf32> -> vector<32x384xf32>
      %151 = vector.broadcast %148 : vector<32x1xf32> to vector<32x384xf32>
      %152 = arith.addf %150, %151 : vector<32x384xf32>
      %cst_127 = arith.constant 0.000000e+00 : f32
      %153 = vector.broadcast %cst_127 : f32 to vector<32x384xf32>
      %154 = arith.maximumf %152, %153 : vector<32x384xf32>
      %c0_128 = arith.constant 0 : index
      %c0_129 = arith.constant 0 : index
      %155 = vector.load %arg2[%c0_128, %c0_129] : memref<1x384xf32, #tpu.memory_space<vmem>>, vector<1x384xf32>
      %156 = vector.broadcast %155 : vector<1x384xf32> to vector<32x384xf32>
      %157 = arith.mulf %154, %156 : vector<32x384xf32>
      %c19_i32_130 = arith.constant 19 : i32
      %158 = tpu.dynamic_rotate %157 by %c19_i32_130 dim 1 : vector<32x384xf32>, i32 -> vector<32x384xf32>
      %159 = arith.truncf %158 : vector<32x384xf32> to vector<32x384xbf16>
      %c0_131 = arith.constant 0 : index
      %c0_132 = arith.constant 0 : index
      %160 = vector.load %arg13[%c0_131, %c0_132] : memref<576x384xbf16, #tpu.memory_space<vmem>>, vector<32x384xbf16>
      tpu.vector_store %arg13[%c0_131, %c0_132], %159 {strides = array<i32>} : memref<576x384xbf16, #tpu.memory_space<vmem>>, vector<32x384xbf16>,
      %c18_i32_133 = arith.constant 18 : i32
      %161 = tpu.dynamic_rotate %157 by %c18_i32_133 dim 1 : vector<32x384xf32>, i32 -> vector<32x384xf32>
      %162 = arith.truncf %161 : vector<32x384xf32> to vector<32x384xbf16>
      %c32_134 = arith.constant 32 : index
      %c0_135 = arith.constant 0 : index
      %163 = vector.load %arg13[%c32_134, %c0_135] : memref<576x384xbf16, #tpu.memory_space<vmem>>, vector<32x384xbf16>
      tpu.vector_store %arg13[%c32_134, %c0_135], %162 {strides = array<i32>} : memref<576x384xbf16, #tpu.memory_space<vmem>>, vector<32x384xbf16>,
      %c17_i32_136 = arith.constant 17 : i32
      %164 = tpu.dynamic_rotate %157 by %c17_i32_136 dim 1 : vector<32x384xf32>, i32 -> vector<32x384xf32>
      %165 = arith.truncf %164 : vector<32x384xf32> to vector<32x384xbf16>
      %c64_137 = arith.constant 64 : index
      %c0_138 = arith.constant 0 : index
      %166 = vector.load %arg13[%c64_137, %c0_138] : memref<576x384xbf16, #tpu.memory_space<vmem>>, vector<32x384xbf16>
      tpu.vector_store %arg13[%c64_137, %c0_138], %165 {strides = array<i32>} : memref<576x384xbf16, #tpu.memory_space<vmem>>, vector<32x384xbf16>,
      %c1_i32_139 = arith.constant 1 : i32
      %167 = tpu.dynamic_rotate %157 by %c1_i32_139 dim 1 : vector<32x384xf32>, i32 -> vector<32x384xf32>
      %168 = arith.truncf %167 : vector<32x384xf32> to vector<32x384xbf16>
      %c96_140 = arith.constant 96 : index
      %c0_141 = arith.constant 0 : index
      %169 = vector.load %arg13[%c96_140, %c0_141] : memref<576x384xbf16, #tpu.memory_space<vmem>>, vector<32x384xbf16>
      tpu.vector_store %arg13[%c96_140, %c0_141], %168 {strides = array<i32>} : memref<576x384xbf16, #tpu.memory_space<vmem>>, vector<32x384xbf16>,
      %170 = arith.truncf %157 : vector<32x384xf32> to vector<32x384xbf16>
      %c128_142 = arith.constant 128 : index
      %c0_143 = arith.constant 0 : index
      %171 = vector.load %arg13[%c128_142, %c0_143] : memref<576x384xbf16, #tpu.memory_space<vmem>>, vector<32x384xbf16>
      tpu.vector_store %arg13[%c128_142, %c0_143], %170 {strides = array<i32>} : memref<576x384xbf16, #tpu.memory_space<vmem>>, vector<32x384xbf16>,
      %c383_i32_144 = arith.constant 383 : i32
      %172 = tpu.dynamic_rotate %157 by %c383_i32_144 dim 1 : vector<32x384xf32>, i32 -> vector<32x384xf32>
      %173 = arith.truncf %172 : vector<32x384xf32> to vector<32x384xbf16>
      %c160_145 = arith.constant 160 : index
      %c0_146 = arith.constant 0 : index
      %174 = vector.load %arg13[%c160_145, %c0_146] : memref<576x384xbf16, #tpu.memory_space<vmem>>, vector<32x384xbf16>
      tpu.vector_store %arg13[%c160_145, %c0_146], %173 {strides = array<i32>} : memref<576x384xbf16, #tpu.memory_space<vmem>>, vector<32x384xbf16>,
      %c367_i32_147 = arith.constant 367 : i32
      %175 = tpu.dynamic_rotate %157 by %c367_i32_147 dim 1 : vector<32x384xf32>, i32 -> vector<32x384xf32>
      %176 = arith.truncf %175 : vector<32x384xf32> to vector<32x384xbf16>
      %c192_148 = arith.constant 192 : index
      %c0_149 = arith.constant 0 : index
      %177 = vector.load %arg13[%c192_148, %c0_149] : memref<576x384xbf16, #tpu.memory_space<vmem>>, vector<32x384xbf16>
      tpu.vector_store %arg13[%c192_148, %c0_149], %176 {strides = array<i32>} : memref<576x384xbf16, #tpu.memory_space<vmem>>, vector<32x384xbf16>,
      %c366_i32_150 = arith.constant 366 : i32
      %178 = tpu.dynamic_rotate %157 by %c366_i32_150 dim 1 : vector<32x384xf32>, i32 -> vector<32x384xf32>
      %179 = arith.truncf %178 : vector<32x384xf32> to vector<32x384xbf16>
      %c224_151 = arith.constant 224 : index
      %c0_152 = arith.constant 0 : index
      %180 = vector.load %arg13[%c224_151, %c0_152] : memref<576x384xbf16, #tpu.memory_space<vmem>>, vector<32x384xbf16>
      tpu.vector_store %arg13[%c224_151, %c0_152], %179 {strides = array<i32>} : memref<576x384xbf16, #tpu.memory_space<vmem>>, vector<32x384xbf16>,
      %c365_i32_153 = arith.constant 365 : i32
      %181 = tpu.dynamic_rotate %157 by %c365_i32_153 dim 1 : vector<32x384xf32>, i32 -> vector<32x384xf32>
      %182 = arith.truncf %181 : vector<32x384xf32> to vector<32x384xbf16>
      %c256_154 = arith.constant 256 : index
      %c0_155 = arith.constant 0 : index
      %183 = vector.load %arg13[%c256_154, %c0_155] : memref<576x384xbf16, #tpu.memory_space<vmem>>, vector<32x384xbf16>
      tpu.vector_store %arg13[%c256_154, %c0_155], %182 {strides = array<i32>} : memref<576x384xbf16, #tpu.memory_space<vmem>>, vector<32x384xbf16>,
      %c2_i32_156 = arith.constant 2 : i32
      %184 = arith.muli %c2_i32_156, %arg14 : i32
      %c1_i32_157 = arith.constant 1 : i32
      %185 = arith.addi %184, %c1_i32_157 : i32
      %186 = arith.index_cast %185 : i32 to index
      %c0_158 = arith.constant 0 : index
      %c0_159 = arith.constant 0 : index
      %187 = vector.load %arg9[%186, %c0_158, %c0_159] : memref<8x32x288xbf16, #tpu.memory_space<vmem>>, vector<1x32x288xbf16>
      %188 = vector.shape_cast %187 : vector<1x32x288xbf16> to vector<32x288xbf16>
      %c2_i32_160 = arith.constant 2 : i32
      %189 = arith.muli %c2_i32_160, %arg14 : i32
      %c1_i32_161 = arith.constant 1 : i32
      %190 = arith.addi %189, %c1_i32_161 : i32
      %191 = arith.index_cast %190 : i32 to index
      %c0_162 = arith.constant 0 : index
      %c0_163 = arith.constant 0 : index
      %192 = vector.load %arg10[%191, %c0_162, %c0_163] : memref<8x32x1xf32, #tpu.memory_space<vmem>>, vector<1x32x1xf32>
      %193 = vector.shape_cast %192 : vector<1x32x1xf32> to vector<32x1xf32>
      %c0_164 = arith.constant 0 : index
      %c0_165 = arith.constant 0 : index
      %194 = vector.load %arg12[%c0_164, %c0_165] : memref<32x384xf32, #tpu.memory_space<vmem>>, vector<32x384xf32>
      %c0_166 = arith.constant 0 : index
      %c0_167 = arith.constant 0 : index
      %195 = vector.load %arg13[%c0_166, %c0_167] : memref<576x384xbf16, #tpu.memory_space<vmem>>, vector<288x384xbf16>
      %cst_168 = arith.constant dense<0.000000e+00> : vector<32x384xf32>
      %196 = tpu.matmul %188, %195, %cst_168 {dimension_numbers = #tpu.dot_dimension_numbers<[1], [0], [0], [1], [0, 0, 1, 1], [], []>} : vector<32x288xbf16>, vector<288x384xbf16>, vector<32x384xf32> -> vector<32x384xf32>
      %197 = vector.broadcast %193 : vector<32x1xf32> to vector<32x384xf32>
      %198 = arith.addf %196, %197 : vector<32x384xf32>
      %199 = arith.addf %198, %194 : vector<32x384xf32>
      %c0_169 = arith.constant 0 : index
      %c0_170 = arith.constant 0 : index
      %200 = vector.load %arg2[%c0_169, %c0_170] : memref<1x384xf32, #tpu.memory_space<vmem>>, vector<1x384xf32>
      %201 = vector.broadcast %200 : vector<1x384xf32> to vector<32x384xf32>
      %202 = arith.mulf %199, %201 : vector<32x384xf32>
      %c0_171 = arith.constant 0 : index
      %c0_172 = arith.constant 0 : index
      %203 = vector.load %arg12[%c0_171, %c0_172] : memref<32x384xf32, #tpu.memory_space<vmem>>, vector<32x384xf32>
      tpu.vector_store %arg12[%c0_171, %c0_172], %202 {strides = array<i32>} : memref<32x384xf32, #tpu.memory_space<vmem>>, vector<32x384xf32>,
    }
    %c4_i32_85 = arith.constant 4 : i32
    %c0_86 = arith.constant 0 : index
    %c0_87 = arith.constant 0 : index
    %110 = vector.load %arg12[%c0_86, %c0_87] : memref<32x384xf32, #tpu.memory_space<vmem>>, vector<32x384xf32>
    %c0_88 = arith.constant 0 : index
    %c0_89 = arith.constant 0 : index
    %c0_90 = arith.constant 0 : index
    %111 = vector.load %arg11[%c0_88, %c0_89, %c0_90] : memref<1x32x384xf32, #tpu.memory_space<vmem>>, vector<1x32x384xf32>
    %112 = vector.shape_cast %111 : vector<1x32x384xf32> to vector<32x384xf32>
    %113 = vector.shape_cast %110 : vector<32x384xf32> to vector<1x32x384xf32>
    tpu.vector_store %arg11[%c0_88, %c0_89, %c0_90], %113 {strides = array<i32>} : memref<1x32x384xf32, #tpu.memory_space<vmem>>, vector<1x32x384xf32>,
    return
  }
  func.func @transform_0(%arg0: i32) -> (i32, i32, i32) {
    %c0_i32 = arith.constant 0 : i32
    %c0_i32_0 = arith.constant 0 : i32
    %c0_i32_1 = arith.constant 0 : i32
    return %arg0, %c0_i32, %c0_i32_0 : i32, i32, i32
  }
  func.func @transform_1(%arg0: i32) -> (i32, i32) {
    %c0_i32 = arith.constant 0 : i32
    %c0_i32_0 = arith.constant 0 : i32
    %c0_i32_1 = arith.constant 0 : i32
    return %c0_i32, %c0_i32_0 : i32, i32
  }
  func.func @transform_2(%arg0: i32) -> (i32, i32) {
    %c0_i32 = arith.constant 0 : i32
    %c0_i32_0 = arith.constant 0 : i32
    %c0_i32_1 = arith.constant 0 : i32
    return %c0_i32, %c0_i32_0 : i32, i32
  }
  func.func @transform_3(%arg0: i32) -> (i32, i32) {
    %c0_i32 = arith.constant 0 : i32
    %c0_i32_0 = arith.constant 0 : i32
    %c0_i32_1 = arith.constant 0 : i32
    return %c0_i32, %c0_i32_0 : i32, i32
  }
  func.func @transform_4(%arg0: i32) -> (i32, i32, i32) {
    %c0_i32 = arith.constant 0 : i32
    %c0_i32_0 = arith.constant 0 : i32
    %c0_i32_1 = arith.constant 0 : i32
    %c0_i32_2 = arith.constant 0 : i32
    return %c0_i32, %c0_i32_0, %c0_i32_1 : i32, i32, i32
  }
  func.func @transform_5(%arg0: i32) -> (i32, i32, i32) {
    %c0_i32 = arith.constant 0 : i32
    %c0_i32_0 = arith.constant 0 : i32
    %c0_i32_1 = arith.constant 0 : i32
    %c0_i32_2 = arith.constant 0 : i32
    return %c0_i32, %c0_i32_0, %c0_i32_1 : i32, i32, i32
  }
  func.func @transform_6(%arg0: i32) -> (i32, i32) {
    %c0_i32 = arith.constant 0 : i32
    %c0_i32_0 = arith.constant 0 : i32
    %c0_i32_1 = arith.constant 0 : i32
    return %c0_i32, %c0_i32_0 : i32, i32
  }
  func.func @transform_7(%arg0: i32) -> (i32, i32) {
    %c0_i32 = arith.constant 0 : i32
    %c0_i32_0 = arith.constant 0 : i32
    %c0_i32_1 = arith.constant 0 : i32
    return %c0_i32, %c0_i32_0 : i32, i32
  }
  func.func @transform_8(%arg0: i32) -> (i32, i32, i32) {
    %c0_i32 = arith.constant 0 : i32
    %c0_i32_0 = arith.constant 0 : i32
    %c0_i32_1 = arith.constant 0 : i32
    %c0_i32_2 = arith.constant 0 : i32
    return %c0_i32, %c0_i32_0, %c0_i32_1 : i32, i32, i32
  }
  func.func @transform_9(%arg0: i32) -> (i32, i32, i32) {
    %c0_i32 = arith.constant 0 : i32
    %c0_i32_0 = arith.constant 0 : i32
    %c0_i32_1 = arith.constant 0 : i32
    %c0_i32_2 = arith.constant 0 : i32
    return %c0_i32, %c0_i32_0, %c0_i32_1 : i32, i32, i32
  }
  func.func @transform_10(%arg0: i32) -> (i32, i32, i32) {
    %c0_i32 = arith.constant 0 : i32
    %c0_i32_0 = arith.constant 0 : i32
    %c0_i32_1 = arith.constant 0 : i32
    return %arg0, %c0_i32, %c0_i32_0 : i32, i32, i32
  }
}

</mosaic_0001>

<llo_original>
// kernel: dft_feature_extractor.1
$region0: #{dft_feature_extractor.1}
  #allocation0 [shape = 'u32[]', space=smem, size = 0x4, offset = 0x4, fixed_abs, tag = 'smem constant byte address 0x4 - core index']
  #allocation1 [shape = 'u32[144,128]{1,0:T(1,128)}', space=vmem, size = 0x12000, scoped, tag = 'internal scratch']
  #allocation2 [shape = 'f32[32,384]{1,0:T(8,128)}', space=vmem, size = 0xc000, scoped, tag = 'scratch operand']
  #allocation3 [shape = 'bf16[576,384]{1,0:T(16,128)(2,1)}', space=vmem, size = 0x6c000, scoped, tag = 'scratch operand']
  %s0 = inlined_call_operand.vmem [shape: f32[2,32,384], index: 0, kind: input, shape index: {}]
  %s1 = inlined_call_operand.vmem [shape: f32[1,384], index: 1, kind: input, shape index: {}]
  %s2 = inlined_call_operand.vmem [shape: bf16[32,288], index: 2, kind: input, shape index: {}]
  %s3 = inlined_call_operand.vmem [shape: f32[32,1], index: 3, kind: input, shape index: {}]
  %s4 = inlined_call_operand.vmem [shape: bf16[12,32,288], index: 4, kind: input, shape index: {}]
  %s5 = inlined_call_operand.vmem [shape: f32[12,32,1], index: 5, kind: input, shape index: {}]
  %s6 = inlined_call_operand.vmem [shape: bf16[32,576], index: 6, kind: input, shape index: {}]
  %s7 = inlined_call_operand.vmem [shape: f32[32,1], index: 7, kind: input, shape index: {}]
  %s8 = inlined_call_operand.vmem [shape: bf16[8,32,288], index: 8, kind: input, shape index: {}]
  %s9 = inlined_call_operand.vmem [shape: f32[8,32,1], index: 9, kind: input, shape index: {}]
  %s10 = inlined_call_operand.vmem [shape: f32[2,32,384], index: 10, kind: output, shape index: {}]
  %s11 = sld [smem:[#allocation0]]
  $region87: #{dft_feature_extractor.1} parent=0
    _
  %s13 = ssub.s32 1, %s11
  %s14 = scalar_select 0, %s13, %s11
  loop: start=0, step=1, limit=4
  $region2: #{dft_feature_extractor.1} parent=0 // loop_pre_header
    _
  $region3: #{dft_feature_extractor.1} parent=0 // loop_header
    %s16 = sphi 0, %s20
    %p17 = scmp.ge.s32.totalorder %s16, 4
    %s26 = sphi 0, %s28
    %s29 = sphi 0, %s26
    %s30 = sphi 0, %s29
    %s46 = sphi 0, %s30
    %s50 = sphi 0, %s50
    %s52 = sphi 0, %s50
    %s53 = sphi 0, %s52
    %s67 = sphi 0, %s53
    %s71 = sphi 0, %s71
    %s73 = sphi 0, %s71
    %s74 = sphi 0, %s73
    %s88 = sphi 0, %s74
    %s92 = sphi 0, %s92
    %s94 = sphi 0, %s92
    %s95 = sphi 0, %s94
    %s109 = sphi 0, %s95
    %s113 = sphi 0, %s113
    %s115 = sphi 0, %s113
    %s116 = sphi 0, %s115
    %s130 = sphi 0, %s116
    %s134 = sphi 0, %s134
    %s136 = sphi 0, %s134
    %s137 = sphi 0, %s136
    %s151 = sphi 0, %s137
    %s155 = sphi 0, %s155
    %s157 = sphi 0, %s155
    %s158 = sphi 0, %s157
    %s172 = sphi 0, %s158
    %s176 = sphi 0, %s176
    %s178 = sphi 0, %s176
    %s179 = sphi 0, %s178
    %s193 = sphi 0, %s179
    %s197 = sphi 0, %s197
    %s199 = sphi 0, %s197
    %s200 = sphi 0, %s199
    %s214 = sphi 0, %s200
    %s218 = sphi 0, %s218
    %s220 = sphi 0, %s218
    %s221 = sphi 0, %s220
    %s235 = sphi 0, %s221
    %s241 = sphi 0, %s243
    %s244 = sphi 0, %s241
    %s245 = sphi 0, %s244
    %s261 = sphi 0, %s245
  $region4: #{dft_feature_extractor.1} parent=0 // loop_header_branch
    %19 = sbr.rel (%p17) target = $region8
  $region5: #{dft_feature_extractor.1} parent=0 // loop_body
    %s21 = ssub.s32 %s16, 1
    %s22 = ssub.s32 %s16, 2
    %s23 = sadd.s32 %s16, 1
    %s24 = ssub.s32 %s16, %s23
    %p25 = scmp.eq.s32.totalorder %s24, 0
    %s27 = sadd.s32 %s26, 1
    %s28 = scalar_select %p25, %s26, %s27
    %p31 = pneg %p25
    %p32 = scmp.eq.s32.totalorder %s16, 1
    %p33 = por %p31, %p32
    %p34 = scmp.ne.s32.totalorder %s26, %s29
    %p35 = scmp.eq.s32.totalorder %s16, 0
    %p36 = por %p34, %p35
    %p37 = scmp.ne.s32.totalorder %s26, %s29
    %p38 = scmp.eq.s32.totalorder %s21, 1
    %p39 = por %p37, %p38
    %p40 = scmp.ne.s32.totalorder %s29, %s30
    %p41 = scmp.eq.s32.totalorder %s21, 0
    %p42 = por %p40, %p41
    %p43 = scmp.ne.s32.totalorder %s29, %s30
    %p44 = scmp.eq.s32.totalorder %s22, 1
    %p45 = por %p43, %p44
    %p47 = scmp.ne.s32.totalorder %s30, %s46
    %p48 = scmp.eq.s32.totalorder %s22, 0
    %p49 = por %p47, %p48
    %s51 = sadd.s32 %s50, 1
    %p54 = scmp.eq.s32.totalorder %s16, 1
    %p55 = scmp.ne.s32.totalorder %s50, %s52
    %p56 = scmp.eq.s32.totalorder %s16, 0
    %p57 = por %p55, %p56
    %p58 = scmp.ne.s32.totalorder %s50, %s52
    %p59 = scmp.eq.s32.totalorder %s21, 1
    %p60 = por %p58, %p59
    %p61 = scmp.ne.s32.totalorder %s52, %s53
    %p62 = scmp.eq.s32.totalorder %s21, 0
    %p63 = por %p61, %p62
    %p64 = scmp.ne.s32.totalorder %s52, %s53
    %p65 = scmp.eq.s32.totalorder %s22, 1
    %p66 = por %p64, %p65
    %p68 = scmp.ne.s32.totalorder %s53, %s67
    %p69 = scmp.eq.s32.totalorder %s22, 0
    %p70 = por %p68, %p69
    %s72 = sadd.s32 %s71, 1
    %p75 = scmp.eq.s32.totalorder %s16, 1
    %p76 = scmp.ne.s32.totalorder %s71, %s73
    %p77 = scmp.eq.s32.totalorder %s16, 0
    %p78 = por %p76, %p77
    %p79 = scmp.ne.s32.totalorder %s71, %s73
    %p80 = scmp.eq.s32.totalorder %s21, 1
    %p81 = por %p79, %p80
    %p82 = scmp.ne.s32.totalorder %s73, %s74
    %p83 = scmp.eq.s32.totalorder %s21, 0
    %p84 = por %p82, %p83
    %p85 = scmp.ne.s32.totalorder %s73, %s74
    %p86 = scmp.eq.s32.totalorder %s22, 1
    %p87 = por %p85, %p86
    %p89 = scmp.ne.s32.totalorder %s74, %s88
    %p90 = scmp.eq.s32.totalorder %s22, 0
    %p91 = por %p89, %p90
    %s93 = sadd.s32 %s92, 1
    %p96 = scmp.eq.s32.totalorder %s16, 1
    %p97 = scmp.ne.s32.totalorder %s92, %s94
    %p98 = scmp.eq.s32.totalorder %s16, 0
    %p99 = por %p97, %p98
    %p100 = scmp.ne.s32.totalorder %s92, %s94
    %p101 = scmp.eq.s32.totalorder %s21, 1
    %p102 = por %p100, %p101
    %p103 = scmp.ne.s32.totalorder %s94, %s95
    %p104 = scmp.eq.s32.totalorder %s21, 0
    %p105 = por %p103, %p104
    %p106 = scmp.ne.s32.totalorder %s94, %s95
    %p107 = scmp.eq.s32.totalorder %s22, 1
    %p108 = por %p106, %p107
    %p110 = scmp.ne.s32.totalorder %s95, %s109
    %p111 = scmp.eq.s32.totalorder %s22, 0
    %p112 = por %p110, %p111
    %s114 = sadd.s32 %s113, 1
    %p117 = scmp.eq.s32.totalorder %s16, 1
    %p118 = scmp.ne.s32.totalorder %s113, %s115
    %p119 = scmp.eq.s32.totalorder %s16, 0
    %p120 = por %p118, %p119
    %p121 = scmp.ne.s32.totalorder %s113, %s115
    %p122 = scmp.eq.s32.totalorder %s21, 1
    %p123 = por %p121, %p122
    %p124 = scmp.ne.s32.totalorder %s115, %s116
    %p125 = scmp.eq.s32.totalorder %s21, 0
    %p126 = por %p124, %p125
    %p127 = scmp.ne.s32.totalorder %s115, %s116
    %p128 = scmp.eq.s32.totalorder %s22, 1
    %p129 = por %p127, %p128
    %p131 = scmp.ne.s32.totalorder %s116, %s130
    %p132 = scmp.eq.s32.totalorder %s22, 0
    %p133 = por %p131, %p132
    %s135 = sadd.s32 %s134, 1
    %p138 = scmp.eq.s32.totalorder %s16, 1
    %p139 = scmp.ne.s32.totalorder %s134, %s136
    %p140 = scmp.eq.s32.totalorder %s16, 0
    %p141 = por %p139, %p140
    %p142 = scmp.ne.s32.totalorder %s134, %s136
    %p143 = scmp.eq.s32.totalorder %s21, 1
    %p144 = por %p142, %p143
    %p145 = scmp.ne.s32.totalorder %s136, %s137
    %p146 = scmp.eq.s32.totalorder %s21, 0
    %p147 = por %p145, %p146
    %p148 = scmp.ne.s32.totalorder %s136, %s137
    %p149 = scmp.eq.s32.totalorder %s22, 1
    %p150 = por %p148, %p149
    %p152 = scmp.ne.s32.totalorder %s137, %s151
    %p153 = scmp.eq.s32.totalorder %s22, 0
    %p154 = por %p152, %p153
    %s156 = sadd.s32 %s155, 1
    %p159 = scmp.eq.s32.totalorder %s16, 1
    %p160 = scmp.ne.s32.totalorder %s155, %s157
    %p161 = scmp.eq.s32.totalorder %s16, 0
    %p162 = por %p160, %p161
    %p163 = scmp.ne.s32.totalorder %s155, %s157
    %p164 = scmp.eq.s32.totalorder %s21, 1
    %p165 = por %p163, %p164
    %p166 = scmp.ne.s32.totalorder %s157, %s158
    %p167 = scmp.eq.s32.totalorder %s21, 0
    %p168 = por %p166, %p167
    %p169 = scmp.ne.s32.totalorder %s157, %s158
    %p170 = scmp.eq.s32.totalorder %s22, 1
    %p171 = por %p169, %p170
    %p173 = scmp.ne.s32.totalorder %s158, %s172
    %p174 = scmp.eq.s32.totalorder %s22, 0
    %p175 = por %p173, %p174
    %s177 = sadd.s32 %s176, 1
    %p180 = scmp.eq.s32.totalorder %s16, 1
    %p181 = scmp.ne.s32.totalorder %s176, %s178
    %p182 = scmp.eq.s32.totalorder %s16, 0
    %p183 = por %p181, %p182
    %p184 = scmp.ne.s32.totalorder %s176, %s178
    %p185 = scmp.eq.s32.totalorder %s21, 1
    %p186 = por %p184, %p185
    %p187 = scmp.ne.s32.totalorder %s178, %s179
    %p188 = scmp.eq.s32.totalorder %s21, 0
    %p189 = por %p187, %p188
    %p190 = scmp.ne.s32.totalorder %s178, %s179
    %p191 = scmp.eq.s32.totalorder %s22, 1
    %p192 = por %p190, %p191
    %p194 = scmp.ne.s32.totalorder %s179, %s193
    %p195 = scmp.eq.s32.totalorder %s22, 0
    %p196 = por %p194, %p195
    %s198 = sadd.s32 %s197, 1
    %p201 = scmp.eq.s32.totalorder %s16, 1
    %p202 = scmp.ne.s32.totalorder %s197, %s199
    %p203 = scmp.eq.s32.totalorder %s16, 0
    %p204 = por %p202, %p203
    %p205 = scmp.ne.s32.totalorder %s197, %s199
    %p206 = scmp.eq.s32.totalorder %s21, 1
    %p207 = por %p205, %p206
    %p208 = scmp.ne.s32.totalorder %s199, %s200
    %p209 = scmp.eq.s32.totalorder %s21, 0
    %p210 = por %p208, %p209
    %p211 = scmp.ne.s32.totalorder %s199, %s200
    %p212 = scmp.eq.s32.totalorder %s22, 1
    %p213 = por %p211, %p212
    %p215 = scmp.ne.s32.totalorder %s200, %s214
    %p216 = scmp.eq.s32.totalorder %s22, 0
    %p217 = por %p215, %p216
    %s219 = sadd.s32 %s218, 1
    %p222 = scmp.eq.s32.totalorder %s16, 1
    %p223 = scmp.ne.s32.totalorder %s218, %s220
    %p224 = scmp.eq.s32.totalorder %s16, 0
    %p225 = por %p223, %p224
    %p226 = scmp.ne.s32.totalorder %s218, %s220
    %p227 = scmp.eq.s32.totalorder %s21, 1
    %p228 = por %p226, %p227
    %p229 = scmp.ne.s32.totalorder %s220, %s221
    %p230 = scmp.eq.s32.totalorder %s21, 0
    %p231 = por %p229, %p230
    %p232 = scmp.ne.s32.totalorder %s220, %s221
    %p233 = scmp.eq.s32.totalorder %s22, 1
    %p234 = por %p232, %p233
    %p236 = scmp.ne.s32.totalorder %s221, %s235
    %p237 = scmp.eq.s32.totalorder %s22, 0
    %p238 = por %p236, %p237
    %s239 = ssub.s32 %s16, %s23
    %p240 = scmp.eq.s32.totalorder %s239, 0
    %s242 = sadd.s32 %s241, 1
    %s243 = scalar_select %p240, %s241, %s242
    %p246 = pneg %p240
    %p247 = scmp.eq.s32.totalorder %s16, 1
    %p248 = por %p246, %p247
    %p249 = scmp.ne.s32.totalorder %s241, %s244
    %p250 = scmp.eq.s32.totalorder %s16, 0
    %p251 = por %p249, %p250
    %p252 = scmp.ne.s32.totalorder %s241, %s244
    %p253 = scmp.eq.s32.totalorder %s21, 1
    %p254 = por %p252, %p253
    %p255 = scmp.ne.s32.totalorder %s244, %s245
    %p256 = scmp.eq.s32.totalorder %s21, 0
    %p257 = por %p255, %p256
    %p258 = scmp.ne.s32.totalorder %s244, %s245
    %p259 = scmp.eq.s32.totalorder %s22, 1
    %p260 = por %p258, %p259
    %p262 = scmp.ne.s32.totalorder %s245, %s261
    %p263 = scmp.eq.s32.totalorder %s22, 0
    %p264 = por %p262, %p263
    %p265 = scmp.le.s32.totalorder 1, %s16
    %p266 = scmp.lt.s32.totalorder %s16, 3
    %p267 = pnand %p265, %p266
    %p268 = pneg %p267
    // Predicated region
    $region9: #{dft_feature_extractor.1} parent=5 // pred_check
      _
    $region10: #{dft_feature_extractor.1} parent=5 // pred_check_branch
      %270 = sbr.rel (%p267) target = $region12
    $region11: #{dft_feature_extractor.1} parent=5 // pred_region
      %s271 = ssub.s32 %s16, 1
      // Predicated region
      $region13: #{dft_feature_extractor.1} parent=11 // pred_check
        %p272 = pneg %p63
      $region14: #{dft_feature_extractor.1} parent=11 // pred_check_branch
        %274 = sbr.rel (%p272) target = $region16
      $region15: #{dft_feature_extractor.1} parent=11 // pred_region
        _
      $region16: #{dft_feature_extractor.1} parent=11 // pred_fallthru
        _
      // Predicated region
      $region17: #{dft_feature_extractor.1} parent=11 // pred_check
        %p275 = pneg %p84
      $region18: #{dft_feature_extractor.1} parent=11 // pred_check_branch
        %277 = sbr.rel (%p275) target = $region20
      $region19: #{dft_feature_extractor.1} parent=11 // pred_region
        _
      $region20: #{dft_feature_extractor.1} parent=11 // pred_fallthru
        _
      // Predicated region
      $region21: #{dft_feature_extractor.1} parent=11 // pred_check
        %p278 = pneg %p105
      $region22: #{dft_feature_extractor.1} parent=11 // pred_check_branch
        %280 = sbr.rel (%p278) target = $region24
      $region23: #{dft_feature_extractor.1} parent=11 // pred_region
        _
      $region24: #{dft_feature_extractor.1} parent=11 // pred_fallthru
        _
      // Predicated region
      $region25: #{dft_feature_extractor.1} parent=11 // pred_check
        %p281 = pneg %p126
      $region26: #{dft_feature_extractor.1} parent=11 // pred_check_branch
        %283 = sbr.rel (%p281) target = $region28
      $region27: #{dft_feature_extractor.1} parent=11 // pred_region
        _
      $region28: #{dft_feature_extractor.1} parent=11 // pred_fallthru
        _
      // Predicated region
      $region29: #{dft_feature_extractor.1} parent=11 // pred_check
        %p284 = pneg %p147
      $region30: #{dft_feature_extractor.1} parent=11 // pred_check_branch
        %286 = sbr.rel (%p284) target = $region32
      $region31: #{dft_feature_extractor.1} parent=11 // pred_region
        _
      $region32: #{dft_feature_extractor.1} parent=11 // pred_fallthru
        _
      // Predicated region
      $region33: #{dft_feature_extractor.1} parent=11 // pred_check
        %p287 = pneg %p168
      $region34: #{dft_feature_extractor.1} parent=11 // pred_check_branch
        %289 = sbr.rel (%p287) target = $region36
      $region35: #{dft_feature_extractor.1} parent=11 // pred_region
        _
      $region36: #{dft_feature_extractor.1} parent=11 // pred_fallthru
        _
      // Predicated region
      $region37: #{dft_feature_extractor.1} parent=11 // pred_check
        %p290 = pneg %p189
      $region38: #{dft_feature_extractor.1} parent=11 // pred_check_branch
        %292 = sbr.rel (%p290) target = $region40
      $region39: #{dft_feature_extractor.1} parent=11 // pred_region
        _
      $region40: #{dft_feature_extractor.1} parent=11 // pred_fallthru
        _
      // Predicated region
      $region41: #{dft_feature_extractor.1} parent=11 // pred_check
        %p293 = pneg %p210
      $region42: #{dft_feature_extractor.1} parent=11 // pred_check_branch
        %295 = sbr.rel (%p293) target = $region44
      $region43: #{dft_feature_extractor.1} parent=11 // pred_region
        _
      $region44: #{dft_feature_extractor.1} parent=11 // pred_fallthru
        _
      // Predicated region
      $region45: #{dft_feature_extractor.1} parent=11 // pred_check
        %p296 = pneg %p231
      $region46: #{dft_feature_extractor.1} parent=11 // pred_check_branch
        %298 = sbr.rel (%p296) target = $region48
      $region47: #{dft_feature_extractor.1} parent=11 // pred_region
        _
      $region48: #{dft_feature_extractor.1} parent=11 // pred_fallthru
        _
    $region12: #{dft_feature_extractor.1} parent=5 // pred_fallthru
      _
    %p299 = scmp.lt.s32.totalorder %s16, 2
    // Predicated region
    $region49: #{dft_feature_extractor.1} parent=5 // pred_check
      %p300 = pneg %p299
    $region50: #{dft_feature_extractor.1} parent=5 // pred_check_branch
      %302 = sbr.rel (%p300) target = $region52
    $region51: #{dft_feature_extractor.1} parent=5 // pred_region
      // Predicated region
      $region53: #{dft_feature_extractor.1} parent=51 // pred_check
        %p303 = pneg %p36
      $region54: #{dft_feature_extractor.1} parent=51 // pred_check_branch
        %305 = sbr.rel (%p303) target = $region56
      $region55: #{dft_feature_extractor.1} parent=51 // pred_region
        %p306 = scmp.lt.s32.totalorder %s16, 1
        %s307 = scalar_select %p306, %s16, 1
        %s308 = smul.addr %s307, 12
        %s309 = smul.addr %s308, 8
        %s310 = scalar_lea.vmem %s0, %s309
      $region56: #{dft_feature_extractor.1} parent=51 // pred_fallthru
        _
    $region52: #{dft_feature_extractor.1} parent=5 // pred_fallthru
      _
    %p311 = scmp.le.s32.totalorder 1, %s16
    %p312 = scmp.lt.s32.totalorder %s16, 3
    %p313 = pnand %p311, %p312
    %p314 = pneg %p313
    // Predicated region
    $region57: #{dft_feature_extractor.1} parent=5 // pred_check
      _
    $region58: #{dft_feature_extractor.1} parent=5 // pred_check_branch
      %316 = sbr.rel (%p313) target = $region60
    $region59: #{dft_feature_extractor.1} parent=5 // pred_region
      %s317 = ssub.s32 %s16, 1
      %p318 = scmp.lt.s32.totalorder %s21, 1
      %s319 = scalar_select %p318, %s21, 1
      %s320 = smul.addr %s319, 12
      %s321 = smul.addr %s320, 8
      %s322 = scalar_lea.vmem %s0, %s321
      %p323 = pneg %p42
      %p324 = pneg %p39
      %p325 = pneg %p63
      %p326 = pneg %p60
      %p327 = pneg %p84
      %p328 = pneg %p81
      %p329 = pneg %p105
      %p330 = pneg %p102
      %p331 = pneg %p126
      %p332 = pneg %p123
      %p333 = pneg %p147
      %p334 = pneg %p144
      %p335 = pneg %p168
      %p336 = pneg %p165
      %p337 = pneg %p189
      %p338 = pneg %p186
      %p339 = pneg %p210
      %p340 = pneg %p207
      %p341 = pneg %p231
      %p342 = pneg %p228
      %p343 = pneg %p257
      %p344 = pneg %p254
      %p345 = scmp.lt.s32.totalorder %s21, 1
      %s346 = scalar_select %p345, %s21, 1
      %s347 = smul.addr %s346, 12
      %s348 = smul.addr %s347, 8
      %s349 = scalar_lea.vmem %s10, %s348
      %p350 = scmp.lt.s32.totalorder %s21, 1
      %s351 = scalar_select %p350, %s21, 1
      %s352 = smul.addr %s351, 12
      %s353 = smul.addr %s352, 8
      %s354 = scalar_lea.vmem %s0, %s353
      %p355 = scmp.lt.s32.totalorder %s21, 1
      %s356 = scalar_select %p355, %s21, 1
      %s357 = smul.addr %s356, 12
      %s358 = smul.addr %s357, 8
      %s359 = scalar_lea.vmem %s10, %s358
      %v361 = vld [vmem:[%s354] sm:$0xff]
      %v362 = vld [vmem:[%s354 + $0x8] sm:$0xff]
      %v363 = vld [vmem:[%s354 + $0x10] sm:$0xff]
      %v364 = vld [vmem:[%s354 + $0x18] sm:$0xff]
      %v365 = vld [vmem:[%s354 + $0x20] sm:$0xff]
      %v366 = vld [vmem:[%s354 + $0x28] sm:$0xff]
      %v367 = vld [vmem:[%s354 + $0x30] sm:$0xff]
      %v368 = vld [vmem:[%s354 + $0x38] sm:$0xff]
      %v369 = vld [vmem:[%s354 + $0x40] sm:$0xff]
      %v370 = vld [vmem:[%s354 + $0x48] sm:$0xff]
      %v371 = vld [vmem:[%s354 + $0x50] sm:$0xff]
      %v372 = vld [vmem:[%s354 + $0x58] sm:$0xff]
      %373 = vrot.lane.b32.xlu0 %v361, 19
      %v374 = vpop.permute.xlu0 %373
      %375 = vrot.lane.b32.xlu0 %v364, 19
      %v376 = vpop.permute.xlu0 %375
      %377 = vrot.lane.b32.xlu0 %v367, 19
      %v378 = vpop.permute.xlu0 %377
      %379 = vrot.lane.b32.xlu0 %v370, 19
      %v380 = vpop.permute.xlu0 %379
      %381 = vrot.lane.b32.xlu0 %v362, 19
      %v382 = vpop.permute.xlu0 %381
      %383 = vrot.lane.b32.xlu0 %v365, 19
      %v384 = vpop.permute.xlu0 %383
      %385 = vrot.lane.b32.xlu0 %v368, 19
      %v386 = vpop.permute.xlu0 %385
      %387 = vrot.lane.b32.xlu0 %v371, 19
      %v388 = vpop.permute.xlu0 %387
      %389 = vrot.lane.b32.xlu0 %v363, 19
      %v390 = vpop.permute.xlu0 %389
      %391 = vrot.lane.b32.xlu0 %v366, 19
      %v392 = vpop.permute.xlu0 %391
      %393 = vrot.lane.b32.xlu0 %v369, 19
      %v394 = vpop.permute.xlu0 %393
      %395 = vrot.lane.b32.xlu0 %v372, 19
      %v396 = vpop.permute.xlu0 %395
      %v397 = vlaneseq
      %v398 = vand.u32 %v397, 127
      %vm399 = vcmp.lt.s32.totalorder %v398, 19
      %v400 = vsel %vm399, %v382, %v390
      %v401 = vsel %vm399, %v384, %v392
      %v402 = vsel %vm399, %v386, %v394
      %v403 = vsel %vm399, %v388, %v396
      %v404 = vsel %vm399, %v374, %v382
      %v405 = vsel %vm399, %v376, %v384
      %v406 = vsel %vm399, %v378, %v386
      %v407 = vsel %vm399, %v380, %v388
      %v408 = vsel %vm399, %v390, %v374
      %v409 = vsel %vm399, %v392, %v376
      %v410 = vsel %vm399, %v394, %v378
      %v411 = vsel %vm399, %v396, %v380
      %v412 = vpack.c.bf16 %v409, %v408
      %v413 = vpack.c.bf16 %v405, %v404
      %v414 = vpack.c.bf16 %v401, %v400
      %v415 = vpack.c.bf16 %v411, %v410
      %v416 = vpack.c.bf16 %v407, %v406
      %v417 = vpack.c.bf16 %v403, %v402
      %418 = vst [vmem:[#allocation3] sm:$0xff] %v412
      %419 = vst [vmem:[#allocation3 + $0x8] sm:$0xff] %v413
      %420 = vst [vmem:[#allocation3 + $0x10] sm:$0xff] %v414
      %421 = vst [vmem:[#allocation3 + $0x18] sm:$0xff] %v415
      %422 = vst [vmem:[#allocation3 + $0x20] sm:$0xff] %v416
      %423 = vst [vmem:[#allocation3 + $0x28] sm:$0xff] %v417
      %424 = vrot.lane.b32.xlu0 %v361, 18
      %v425 = vpop.permute.xlu0 %424
      %426 = vrot.lane.b32.xlu0 %v364, 18
      %v427 = vpop.permute.xlu0 %426
      %428 = vrot.lane.b32.xlu0 %v367, 18
      %v429 = vpop.permute.xlu0 %428
      %430 = vrot.lane.b32.xlu0 %v370, 18
      %v431 = vpop.permute.xlu0 %430
      %432 = vrot.lane.b32.xlu0 %v362, 18
      %v433 = vpop.permute.xlu0 %432
      %434 = vrot.lane.b32.xlu0 %v365, 18
      %v435 = vpop.permute.xlu0 %434
      %436 = vrot.lane.b32.xlu0 %v368, 18
      %v437 = vpop.permute.xlu0 %436
      %438 = vrot.lane.b32.xlu0 %v371, 18
      %v439 = vpop.permute.xlu0 %438
      %440 = vrot.lane.b32.xlu0 %v363, 18
      %v441 = vpop.permute.xlu0 %440
      %442 = vrot.lane.b32.xlu0 %v366, 18
      %v443 = vpop.permute.xlu0 %442
      %444 = vrot.lane.b32.xlu0 %v369, 18
      %v445 = vpop.permute.xlu0 %444
      %446 = vrot.lane.b32.xlu0 %v372, 18
      %v447 = vpop.permute.xlu0 %446
      %vm448 = vcmp.lt.s32.totalorder %v398, 18
      %v449 = vsel %vm448, %v433, %v441
      %v450 = vsel %vm448, %v435, %v443
      %v451 = vsel %vm448, %v437, %v445
      %v452 = vsel %vm448, %v439, %v447
      %v453 = vsel %vm448, %v425, %v433
      %v454 = vsel %vm448, %v427, %v435
      %v455 = vsel %vm448, %v429, %v437
      %v456 = vsel %vm448, %v431, %v439
      %v457 = vsel %vm448, %v441, %v425
      %v458 = vsel %vm448, %v443, %v427
      %v459 = vsel %vm448, %v445, %v429
      %v460 = vsel %vm448, %v447, %v431
      %v461 = vpack.c.bf16 %v458, %v457
      %v462 = vpack.c.bf16 %v454, %v453
      %v463 = vpack.c.bf16 %v450, %v449
      %v464 = vpack.c.bf16 %v460, %v459
      %v465 = vpack.c.bf16 %v456, %v455
      %v466 = vpack.c.bf16 %v452, %v451
      %467 = vst [vmem:[#allocation3 + $0x30] sm:$0xff] %v461
      %468 = vst [vmem:[#allocation3 + $0x38] sm:$0xff] %v462
      %469 = vst [vmem:[#allocation3 + $0x40] sm:$0xff] %v463
      %470 = vst [vmem:[#allocation3 + $0x48] sm:$0xff] %v464
      %471 = vst [vmem:[#allocation3 + $0x50] sm:$0xff] %v465
      %472 = vst [vmem:[#allocation3 + $0x58] sm:$0xff] %v466
      %473 = vrot.lane.b32.xlu0 %v361, 17
      %v474 = vpop.permute.xlu0 %473
      %475 = vrot.lane.b32.xlu0 %v364, 17
      %v476 = vpop.permute.xlu0 %475
      %477 = vrot.lane.b32.xlu0 %v367, 17
      %v478 = vpop.permute.xlu0 %477
      %479 = vrot.lane.b32.xlu0 %v370, 17
      %v480 = vpop.permute.xlu0 %479
      %481 = vrot.lane.b32.xlu0 %v362, 17
      %v482 = vpop.permute.xlu0 %481
      %483 = vrot.lane.b32.xlu0 %v365, 17
      %v484 = vpop.permute.xlu0 %483
      %485 = vrot.lane.b32.xlu0 %v368, 17
      %v486 = vpop.permute.xlu0 %485
      %487 = vrot.lane.b32.xlu0 %v371, 17
      %v488 = vpop.permute.xlu0 %487
      %489 = vrot.lane.b32.xlu0 %v363, 17
      %v490 = vpop.permute.xlu0 %489
      %491 = vrot.lane.b32.xlu0 %v366, 17
      %v492 = vpop.permute.xlu0 %491
      %493 = vrot.lane.b32.xlu0 %v369, 17
      %v494 = vpop.permute.xlu0 %493
      %495 = vrot.lane.b32.xlu0 %v372, 17
      %v496 = vpop.permute.xlu0 %495
      %vm497 = vcmp.lt.s32.totalorder %v398, 17
      %v498 = vsel %vm497, %v482, %v490
      %v499 = vsel %vm497, %v484, %v492
      %v500 = vsel %vm497, %v486, %v494
      %v501 = vsel %vm497, %v488, %v496
      %v502 = vsel %vm497, %v474, %v482
      %v503 = vsel %vm497, %v476, %v484
      %v504 = vsel %vm497, %v478, %v486
      %v505 = vsel %vm497, %v480, %v488
      %v506 = vsel %vm497, %v490, %v474
      %v507 = vsel %vm497, %v492, %v476
      %v508 = vsel %vm497, %v494, %v478
      %v509 = vsel %vm497, %v496, %v480
      %v510 = vpack.c.bf16 %v507, %v506
      %v511 = vpack.c.bf16 %v503, %v502
      %v512 = vpack.c.bf16 %v499, %v498
      %v513 = vpack.c.bf16 %v509, %v508
      %v514 = vpack.c.bf16 %v505, %v504
      %v515 = vpack.c.bf16 %v501, %v500
      %516 = vst [vmem:[#allocation3 + $0x60] sm:$0xff] %v510
      %517 = vst [vmem:[#allocation3 + $0x68] sm:$0xff] %v511
      %518 = vst [vmem:[#allocation3 + $0x70] sm:$0xff] %v512
      %519 = vst [vmem:[#allocation3 + $0x78] sm:$0xff] %v513
      %520 = vst [vmem:[#allocation3 + $0x80] sm:$0xff] %v514
      %521 = vst [vmem:[#allocation3 + $0x88] sm:$0xff] %v515
      %522 = vrot.lane.b32.xlu0 %v361, 1
      %v523 = vpop.permute.xlu0 %522
      %524 = vrot.lane.b32.xlu0 %v364, 1
      %v525 = vpop.permute.xlu0 %524
      %526 = vrot.lane.b32.xlu0 %v367, 1
      %v527 = vpop.permute.xlu0 %526
      %528 = vrot.lane.b32.xlu0 %v370, 1
      %v529 = vpop.permute.xlu0 %528
      %530 = vrot.lane.b32.xlu0 %v362, 1
      %v531 = vpop.permute.xlu0 %530
      %532 = vrot.lane.b32.xlu0 %v365, 1
      %v533 = vpop.permute.xlu0 %532
      %534 = vrot.lane.b32.xlu0 %v368, 1
      %v535 = vpop.permute.xlu0 %534
      %536 = vrot.lane.b32.xlu0 %v371, 1
      %v537 = vpop.permute.xlu0 %536
      %538 = vrot.lane.b32.xlu0 %v363, 1
      %v539 = vpop.permute.xlu0 %538
      %540 = vrot.lane.b32.xlu0 %v366, 1
      %v541 = vpop.permute.xlu0 %540
      %542 = vrot.lane.b32.xlu0 %v369, 1
      %v543 = vpop.permute.xlu0 %542
      %544 = vrot.lane.b32.xlu0 %v372, 1
      %v545 = vpop.permute.xlu0 %544
      %vm546 = vcmp.lt.s32.totalorder %v398, 1
      %v547 = vsel %vm546, %v531, %v539
      %v548 = vsel %vm546, %v533, %v541
      %v549 = vsel %vm546, %v535, %v543
      %v550 = vsel %vm546, %v537, %v545
      %v551 = vsel %vm546, %v523, %v531
      %v552 = vsel %vm546, %v525, %v533
      %v553 = vsel %vm546, %v527, %v535
      %v554 = vsel %vm546, %v529, %v537
      %v555 = vsel %vm546, %v539, %v523
      %v556 = vsel %vm546, %v541, %v525
      %v557 = vsel %vm546, %v543, %v527
      %v558 = vsel %vm546, %v545, %v529
      %v559 = vpack.c.bf16 %v556, %v555
      %v560 = vpack.c.bf16 %v552, %v551
      %v561 = vpack.c.bf16 %v548, %v547
      %v562 = vpack.c.bf16 %v558, %v557
      %v563 = vpack.c.bf16 %v554, %v553
      %v564 = vpack.c.bf16 %v550, %v549
      %565 = vst [vmem:[#allocation3 + $0x90] sm:$0xff] %v559
      %566 = vst [vmem:[#allocation3 + $0x98] sm:$0xff] %v560
      %567 = vst [vmem:[#allocation3 + $0xa0] sm:$0xff] %v561
      %568 = vst [vmem:[#allocation3 + $0xa8] sm:$0xff] %v562
      %569 = vst [vmem:[#allocation3 + $0xb0] sm:$0xff] %v563
      %570 = vst [vmem:[#allocation3 + $0xb8] sm:$0xff] %v564
      %v571 = vpack.c.bf16 %v364, %v361
      %v572 = vpack.c.bf16 %v365, %v362
      %v573 = vpack.c.bf16 %v366, %v363
      %v574 = vpack.c.bf16 %v370, %v367
      %v575 = vpack.c.bf16 %v371, %v368
      %v576 = vpack.c.bf16 %v372, %v369
      %577 = vst [vmem:[#allocation3 + $0xc0] sm:$0xff] %v571
      %578 = vst [vmem:[#allocation3 + $0xc8] sm:$0xff] %v572
      %579 = vst [vmem:[#allocation3 + $0xd0] sm:$0xff] %v573
      %580 = vst [vmem:[#allocation3 + $0xd8] sm:$0xff] %v574
      %581 = vst [vmem:[#allocation3 + $0xe0] sm:$0xff] %v575
      %582 = vst [vmem:[#allocation3 + $0xe8] sm:$0xff] %v576
      %583 = vrot.lane.b32.xlu0 %v361, 127
      %v584 = vpop.permute.xlu0 %583
      %585 = vrot.lane.b32.xlu0 %v364, 127
      %v586 = vpop.permute.xlu0 %585
      %587 = vrot.lane.b32.xlu0 %v367, 127
      %v588 = vpop.permute.xlu0 %587
      %589 = vrot.lane.b32.xlu0 %v370, 127
      %v590 = vpop.permute.xlu0 %589
      %591 = vrot.lane.b32.xlu0 %v362, 127
      %v592 = vpop.permute.xlu0 %591
      %593 = vrot.lane.b32.xlu0 %v365, 127
      %v594 = vpop.permute.xlu0 %593
      %595 = vrot.lane.b32.xlu0 %v368, 127
      %v596 = vpop.permute.xlu0 %595
      %597 = vrot.lane.b32.xlu0 %v371, 127
      %v598 = vpop.permute.xlu0 %597
      %599 = vrot.lane.b32.xlu0 %v363, 127
      %v600 = vpop.permute.xlu0 %599
      %601 = vrot.lane.b32.xlu0 %v366, 127
      %v602 = vpop.permute.xlu0 %601
      %603 = vrot.lane.b32.xlu0 %v369, 127
      %v604 = vpop.permute.xlu0 %603
      %605 = vrot.lane.b32.xlu0 %v372, 127
      %v606 = vpop.permute.xlu0 %605
      %vm607 = vcmp.lt.s32.totalorder %v398, 127
      %v608 = vsel %vm607, %v592, %v600
      %v609 = vsel %vm607, %v594, %v602
      %v610 = vsel %vm607, %v596, %v604
      %v611 = vsel %vm607, %v598, %v606
      %v612 = vsel %vm607, %v584, %v592
      %v613 = vsel %vm607, %v586, %v594
      %v614 = vsel %vm607, %v588, %v596
      %v615 = vsel %vm607, %v590, %v598
      %v616 = vsel %vm607, %v600, %v584
      %v617 = vsel %vm607, %v602, %v586
      %v618 = vsel %vm607, %v604, %v588
      %v619 = vsel %vm607, %v606, %v590
      %v620 = vpack.c.bf16 %v613, %v612
      %v621 = vpack.c.bf16 %v609, %v608
      %v622 = vpack.c.bf16 %v617, %v616
      %v623 = vpack.c.bf16 %v615, %v614
      %v624 = vpack.c.bf16 %v611, %v610
      %v625 = vpack.c.bf16 %v619, %v618
      %626 = vst [vmem:[#allocation3 + $0xf0] sm:$0xff] %v620
      %627 = vst [vmem:[#allocation3 + $0xf8] sm:$0xff] %v621
      %628 = vst [vmem:[#allocation3 + $0x100] sm:$0xff] %v622
      %629 = vst [vmem:[#allocation3 + $0x108] sm:$0xff] %v623
      %630 = vst [vmem:[#allocation3 + $0x110] sm:$0xff] %v624
      %631 = vst [vmem:[#allocation3 + $0x118] sm:$0xff] %v625
      %632 = vrot.lane.b32.xlu0 %v361, 111
      %v633 = vpop.permute.xlu0 %632
      %634 = vrot.lane.b32.xlu0 %v364, 111
      %v635 = vpop.permute.xlu0 %634
      %636 = vrot.lane.b32.xlu0 %v367, 111
      %v637 = vpop.permute.xlu0 %636
      %638 = vrot.lane.b32.xlu0 %v370, 111
      %v639 = vpop.permute.xlu0 %638
      %640 = vrot.lane.b32.xlu0 %v362, 111
      %v641 = vpop.permute.xlu0 %640
      %642 = vrot.lane.b32.xlu0 %v365, 111
      %v643 = vpop.permute.xlu0 %642
      %644 = vrot.lane.b32.xlu0 %v368, 111
      %v645 = vpop.permute.xlu0 %644
      %646 = vrot.lane.b32.xlu0 %v371, 111
      %v647 = vpop.permute.xlu0 %646
      %648 = vrot.lane.b32.xlu0 %v363, 111
      %v649 = vpop.permute.xlu0 %648
      %650 = vrot.lane.b32.xlu0 %v366, 111
      %v651 = vpop.permute.xlu0 %650
      %652 = vrot.lane.b32.xlu0 %v369, 111
      %v653 = vpop.permute.xlu0 %652
      %654 = vrot.lane.b32.xlu0 %v372, 111
      %v655 = vpop.permute.xlu0 %654
      %vm656 = vcmp.lt.s32.totalorder %v398, 111
      %v657 = vsel %vm656, %v641, %v649
      %v658 = vsel %vm656, %v643, %v651
      %v659 = vsel %vm656, %v645, %v653
      %v660 = vsel %vm656, %v647, %v655
      %v661 = vsel %vm656, %v633, %v641
      %v662 = vsel %vm656, %v635, %v643
      %v663 = vsel %vm656, %v637, %v645
      %v664 = vsel %vm656, %v639, %v647
      %v665 = vsel %vm656, %v649, %v633
      %v666 = vsel %vm656, %v651, %v635
      %v667 = vsel %vm656, %v653, %v637
      %v668 = vsel %vm656, %v655, %v639
      %v669 = vpack.c.bf16 %v662, %v661
      %v670 = vpack.c.bf16 %v658, %v657
      %v671 = vpack.c.bf16 %v666, %v665
      %v672 = vpack.c.bf16 %v664, %v663
      %v673 = vpack.c.bf16 %v660, %v659
      %v674 = vpack.c.bf16 %v668, %v667
      %675 = vst [vmem:[#allocation3 + $0x120] sm:$0xff] %v669
      %676 = vst [vmem:[#allocation3 + $0x128] sm:$0xff] %v670
      %677 = vst [vmem:[#allocation3 + $0x130] sm:$0xff] %v671
      %678 = vst [vmem:[#allocation3 + $0x138] sm:$0xff] %v672
      %679 = vst [vmem:[#allocation3 + $0x140] sm:$0xff] %v673
      %680 = vst [vmem:[#allocation3 + $0x148] sm:$0xff] %v674
      %681 = vrot.lane.b32.xlu0 %v361, 110
      %v682 = vpop.permute.xlu0 %681
      %683 = vrot.lane.b32.xlu0 %v364, 110
      %v684 = vpop.permute.xlu0 %683
      %685 = vrot.lane.b32.xlu0 %v367, 110
      %v686 = vpop.permute.xlu0 %685
      %687 = vrot.lane.b32.xlu0 %v370, 110
      %v688 = vpop.permute.xlu0 %687
      %689 = vrot.lane.b32.xlu0 %v362, 110
      %v690 = vpop.permute.xlu0 %689
      %691 = vrot.lane.b32.xlu0 %v365, 110
      %v692 = vpop.permute.xlu0 %691
      %693 = vrot.lane.b32.xlu0 %v368, 110
      %v694 = vpop.permute.xlu0 %693
      %695 = vrot.lane.b32.xlu0 %v371, 110
      %v696 = vpop.permute.xlu0 %695
      %697 = vrot.lane.b32.xlu0 %v363, 110
      %v698 = vpop.permute.xlu0 %697
      %699 = vrot.lane.b32.xlu0 %v366, 110
      %v700 = vpop.permute.xlu0 %699
      %701 = vrot.lane.b32.xlu0 %v369, 110
      %v702 = vpop.permute.xlu0 %701
      %703 = vrot.lane.b32.xlu0 %v372, 110
      %v704 = vpop.permute.xlu0 %703
      %vm705 = vcmp.lt.s32.totalorder %v398, 110
      %v706 = vsel %vm705, %v690, %v698
      %v707 = vsel %vm705, %v692, %v700
      %v708 = vsel %vm705, %v694, %v702
      %v709 = vsel %vm705, %v696, %v704
      %v710 = vsel %vm705, %v682, %v690
      %v711 = vsel %vm705, %v684, %v692
      %v712 = vsel %vm705, %v686, %v694
      %v713 = vsel %vm705, %v688, %v696
      %v714 = vsel %vm705, %v698, %v682
      %v715 = vsel %vm705, %v700, %v684
      %v716 = vsel %vm705, %v702, %v686
      %v717 = vsel %vm705, %v704, %v688
      %v718 = vpack.c.bf16 %v711, %v710
      %v719 = vpack.c.bf16 %v707, %v706
      %v720 = vpack.c.bf16 %v715, %v714
      %v721 = vpack.c.bf16 %v713, %v712
      %v722 = vpack.c.bf16 %v709, %v708
      %v723 = vpack.c.bf16 %v717, %v716
      %724 = vst [vmem:[#allocation3 + $0x150] sm:$0xff] %v718
      %725 = vst [vmem:[#allocation3 + $0x158] sm:$0xff] %v719
      %726 = vst [vmem:[#allocation3 + $0x160] sm:$0xff] %v720
      %727 = vst [vmem:[#allocation3 + $0x168] sm:$0xff] %v721
      %728 = vst [vmem:[#allocation3 + $0x170] sm:$0xff] %v722
      %729 = vst [vmem:[#allocation3 + $0x178] sm:$0xff] %v723
      %730 = vrot.lane.b32.xlu0 %v361, 109
      %v731 = vpop.permute.xlu0 %730
      %732 = vrot.lane.b32.xlu0 %v364, 109
      %v733 = vpop.permute.xlu0 %732
      %734 = vrot.lane.b32.xlu0 %v367, 109
      %v735 = vpop.permute.xlu0 %734
      %736 = vrot.lane.b32.xlu0 %v370, 109
      %v737 = vpop.permute.xlu0 %736
      %738 = vrot.lane.b32.xlu0 %v362, 109
      %v739 = vpop.permute.xlu0 %738
      %740 = vrot.lane.b32.xlu0 %v365, 109
      %v741 = vpop.permute.xlu0 %740
      %742 = vrot.lane.b32.xlu0 %v368, 109
      %v743 = vpop.permute.xlu0 %742
      %744 = vrot.lane.b32.xlu0 %v371, 109
      %v745 = vpop.permute.xlu0 %744
      %746 = vrot.lane.b32.xlu0 %v363, 109
      %v747 = vpop.permute.xlu0 %746
      %748 = vrot.lane.b32.xlu0 %v366, 109
      %v749 = vpop.permute.xlu0 %748
      %750 = vrot.lane.b32.xlu0 %v369, 109
      %v751 = vpop.permute.xlu0 %750
      %752 = vrot.lane.b32.xlu0 %v372, 109
      %v753 = vpop.permute.xlu0 %752
      %vm754 = vcmp.lt.s32.totalorder %v398, 109
      %v755 = vsel %vm754, %v739, %v747
      %v756 = vsel %vm754, %v741, %v749
      %v757 = vsel %vm754, %v743, %v751
      %v758 = vsel %vm754, %v745, %v753
      %v759 = vsel %vm754, %v731, %v739
      %v760 = vsel %vm754, %v733, %v741
      %v761 = vsel %vm754, %v735, %v743
      %v762 = vsel %vm754, %v737, %v745
      %v763 = vsel %vm754, %v747, %v731
      %v764 = vsel %vm754, %v749, %v733
      %v765 = vsel %vm754, %v751, %v735
      %v766 = vsel %vm754, %v753, %v737
      %v767 = vpack.c.bf16 %v760, %v759
      %v768 = vpack.c.bf16 %v756, %v755
      %v769 = vpack.c.bf16 %v764, %v763
      %v770 = vpack.c.bf16 %v762, %v761
      %v771 = vpack.c.bf16 %v758, %v757
      %v772 = vpack.c.bf16 %v766, %v765
      %773 = vst [vmem:[#allocation3 + $0x180] sm:$0xff] %v767
      %774 = vst [vmem:[#allocation3 + $0x188] sm:$0xff] %v768
      %775 = vst [vmem:[#allocation3 + $0x190] sm:$0xff] %v769
      %776 = vst [vmem:[#allocation3 + $0x198] sm:$0xff] %v770
      %777 = vst [vmem:[#allocation3 + $0x1a0] sm:$0xff] %v771
      %778 = vst [vmem:[#allocation3 + $0x1a8] sm:$0xff] %v772
      %v779 = vld [vmem:[%s2] sm:$0xff]
      %v780 = vld [vmem:[%s2 + $0x8] sm:$0xf]
      %v781 = vld [vmem:[%s2 + $0xc] sm:$0xff]
      %v782 = vld [vmem:[%s2 + $0x14] sm:$0xf]
      %v783 = vld [vmem:[%s2 + $0x18] sm:$0xff]
      %v784 = vld [vmem:[%s2 + $0x20] sm:$0xf]
      %v785 = vld [vmem:[%s2 + $0x24] sm:$0xff]
      %v786 = vld [vmem:[%s2 + $0x2c] sm:$0xf]
      %v787 = vld [vmem:[%s3] sm:$0xff]
      %v788 = vld [vmem:[%s3 + $0x8] sm:$0xff]
      %v789 = vld [vmem:[%s3 + $0x10] sm:$0xff]
      %v790 = vld [vmem:[%s3 + $0x18] sm:$0xff]
      %v791 = vld [vmem:[#allocation3] sm:$0xff]
      %v792 = vld [vmem:[#allocation3 + $0x8] sm:$0xff]
      %v793 = vld [vmem:[#allocation3 + $0x10] sm:$0xff]
      %v794 = vld [vmem:[#allocation3 + $0x18] sm:$0xff]
      %v795 = vld [vmem:[#allocation3 + $0x20] sm:$0xff]
      %v796 = vld [vmem:[#allocation3 + $0x28] sm:$0xff]
      %v797 = vld [vmem:[#allocation3 + $0x30] sm:$0xff]
      %v798 = vld [vmem:[#allocation3 + $0x38] sm:$0xff]
      %v799 = vld [vmem:[#allocation3 + $0x40] sm:$0xff]
      %v800 = vld [vmem:[#allocation3 + $0x48] sm:$0xff]
      %v801 = vld [vmem:[#allocation3 + $0x50] sm:$0xff]
      %v802 = vld [vmem:[#allocation3 + $0x58] sm:$0xff]
      %v803 = vld [vmem:[#allocation3 + $0x60] sm:$0xff]
      %v804 = vld [vmem:[#allocation3 + $0x68] sm:$0xff]
      %v805 = vld [vmem:[#allocation3 + $0x70] sm:$0xff]
      %v806 = vld [vmem:[#allocation3 + $0x78] sm:$0xff]
      %v807 = vld [vmem:[#allocation3 + $0x80] sm:$0xff]
      %v808 = vld [vmem:[#allocation3 + $0x88] sm:$0xff]
      %v809 = vld [vmem:[#allocation3 + $0x90] sm:$0xff]
      %v810 = vld [vmem:[#allocation3 + $0x98] sm:$0xff]
      %v811 = vld [vmem:[#allocation3 + $0xa0] sm:$0xff]
      %v812 = vld [vmem:[#allocation3 + $0xa8] sm:$0xff]
      %v813 = vld [vmem:[#allocation3 + $0xb0] sm:$0xff]
      %v814 = vld [vmem:[#allocation3 + $0xb8] sm:$0xff]
      %v815 = vld [vmem:[#allocation3 + $0xc0] sm:$0xff]
      %v816 = vld [vmem:[#allocation3 + $0xc8] sm:$0xff]
      %v817 = vld [vmem:[#allocation3 + $0xd0] sm:$0xff]
      %v818 = vld [vmem:[#allocation3 + $0xd8] sm:$0xff]
      %v819 = vld [vmem:[#allocation3 + $0xe0] sm:$0xff]
      %v820 = vld [vmem:[#allocation3 + $0xe8] sm:$0xff]
      %v821 = vld [vmem:[#allocation3 + $0xf0] sm:$0xff]
      %v822 = vld [vmem:[#allocation3 + $0xf8] sm:$0xff]
      %v823 = vld [vmem:[#allocation3 + $0x100] sm:$0xff]
      %v824 = vld [vmem:[#allocation3 + $0x108] sm:$0xff]
      %v825 = vld [vmem:[#allocation3 + $0x110] sm:$0xff]
      %v826 = vld [vmem:[#allocation3 + $0x118] sm:$0xff]
      %v827 = vld [vmem:[#allocation3 + $0x120] sm:$0xff]
      %v828 = vld [vmem:[#allocation3 + $0x128] sm:$0xff]
      %v829 = vld [vmem:[#allocation3 + $0x130] sm:$0xff]
      %v830 = vld [vmem:[#allocation3 + $0x138] sm:$0xff]
      %v831 = vld [vmem:[#allocation3 + $0x140] sm:$0xff]
      %v832 = vld [vmem:[#allocation3 + $0x148] sm:$0xff]
      %v833 = vld [vmem:[#allocation3 + $0x150] sm:$0xff]
      %v834 = vld [vmem:[#allocation3 + $0x158] sm:$0xff]
      %v835 = vld [vmem:[#allocation3 + $0x160] sm:$0xff]
      %v836 = vld [vmem:[#allocation3 + $0x168] sm:$0xff]
      %v837 = vld [vmem:[#allocation3 + $0x170] sm:$0xff]
      %v838 = vld [vmem:[#allocation3 + $0x178] sm:$0xff]
      %v839 = vld [vmem:[#allocation3 + $0x180] sm:$0xff]
      %v840 = vld [vmem:[#allocation3 + $0x188] sm:$0xff]
      %v841 = vld [vmem:[#allocation3 + $0x190] sm:$0xff]
      %v842 = vld [vmem:[#allocation3 + $0x198] sm:$0xff]
      %v843 = vld [vmem:[#allocation3 + $0x1a0] sm:$0xff]
      %v844 = vld [vmem:[#allocation3 + $0x1a8] sm:$0xff]
      %846 = vset.pattern.permute.xlu0 0
      %847 = vperm.xlu0 %846, %v787
      %v848 = vpop.permute.xlu0 %847
      %851 = vset.pattern.permute.xlu0 0
      %852 = vperm.xlu0 %851, %v788
      %v853 = vpop.permute.xlu0 %852
      %856 = vset.pattern.permute.xlu0 0
      %857 = vperm.xlu0 %856, %v789
      %v858 = vpop.permute.xlu0 %857
      %861 = vset.pattern.permute.xlu0 0
      %862 = vperm.xlu0 %861, %v790
      %v863 = vpop.permute.xlu0 %862
      %v873 = vunpack.c.l.b16 %v779
      %v874 = vunpack.c.h.b16 %v779
      %v875 = vunpack.c.l.b16 %v780
      %v876 = vunpack.c.l.b16 %v781
      %v877 = vunpack.c.h.b16 %v781
      %v878 = vunpack.c.l.b16 %v782
      %v879 = vunpack.c.l.b16 %v783
      %v880 = vunpack.c.h.b16 %v783
      %v881 = vunpack.c.l.b16 %v784
      %v882 = vunpack.c.l.b16 %v785
      %v883 = vunpack.c.h.b16 %v785
      %v884 = vunpack.c.l.b16 %v786
      %v885 = vpack.c.b16 %v876, %v873
      %v886 = vpack.c.b16 %v877, %v874
      %v887 = vpack.c.b16 %v878, %v875
      %v888 = vpack.c.b16 %v882, %v879
      %v889 = vpack.c.b16 %v883, %v880
      %v890 = vpack.c.b16 %v884, %v881
      %vm895 = vcmask 261120
      %v897 = vsel %vm895, %v887, 0
      %v900 = vsel %vm895, %v890, 0
      %902 = vmatprep.subr.bf16.mxu0 %v792
      %903 = vmatpush1.bf16.msra.mxu0 %v791
      %904 = vmatprep.subr.bf16.mxu0 %v795
      %905 = vmatpush1.bf16.msra.mxu0 %v794
      %906 = vmatprep.subr.bf16.mxu0 %v798
      %907 = vmatpush1.bf16.msra.mxu0 %v797
      %908 = vmatprep.subr.bf16.mxu0 %v801
      %909 = vmatpush1.bf16.msra.mxu0 %v800
      %910 = vmatprep.subr.bf16.mxu0 %v804
      %911 = vmatpush1.bf16.msra.mxu0 %v803
      %912 = vmatprep.subr.bf16.mxu0 %v807
      %913 = vmatpush1.bf16.msra.mxu0 %v806
      %914 = vmatprep.subr.bf16.mxu0 %v810
      %915 = vmatpush1.bf16.msra.mxu0 %v809
      %916 = vmatprep.subr.bf16.mxu0 %v813
      %917 = vmatpush1.bf16.msra.mxu0 %v812
      %918 = vmatprep.subr.bf16.mxu0 %v816
      %919 = vmatpush1.bf16.msra.mxu0 %v815
      %920 = vmatprep.subr.bf16.mxu0 %v819
      %921 = vmatpush1.bf16.msra.mxu0 %v818
      %922 = vmatprep.subr.bf16.mxu0 %v822
      %923 = vmatpush1.bf16.msra.mxu0 %v821
      %924 = vmatprep.subr.bf16.mxu0 %v825
      %925 = vmatpush1.bf16.msra.mxu0 %v824
      %926 = vmatprep.subr.bf16.mxu0 %v828
      %927 = vmatpush1.bf16.msra.mxu0 %v827
      %928 = vmatprep.subr.bf16.mxu0 %v831
      %929 = vmatpush1.bf16.msra.mxu0 %v830
      %930 = vmatprep.subr.bf16.mxu0 %v834
      %931 = vmatpush1.bf16.msra.mxu0 %v833
      %932 = vmatprep.subr.bf16.mxu0 %v837
      %933 = vmatpush1.bf16.msra.mxu0 %v836
      %934 = vmatprep.mubr.bf16.mxu0 %v886
      %935 = vmatmul.mubr.bf16.gmra.mrb[0].mxu0 %v885
      %v936 = vpop.f32.mrb[0].mxu0
      %v937 = vadd.f32 %v848, %v936
      %v938 = vpop.f32.mrb[0].mxu0
      %v939 = vadd.f32 %v848, %v938
      %v940 = vpop.f32.mrb[0].mxu0
      %v941 = vadd.f32 %v853, %v940
      %v942 = vpop.f32.mrb[0].mxu0
      %v943 = vadd.f32 %v853, %v942
      %944 = vmatprep.mubr.bf16.mxu0 %v889
      %945 = vmatmul.mubr.bf16.gmra.mrb[0].mxu0 %v888
      %v946 = vpop.f32.mrb[0].mxu0
      %v947 = vadd.f32 %v858, %v946
      %v948 = vpop.f32.mrb[0].mxu0
      %v949 = vadd.f32 %v858, %v948
      %v950 = vpop.f32.mrb[0].mxu0
      %v951 = vadd.f32 %v863, %v950
      %v952 = vpop.f32.mrb[0].mxu0
      %v953 = vadd.f32 %v863, %v952
      %954 = vdwg.mxu0
      %955 = vmatprep.subr.bf16.mxu0 %v840
      %956 = vmatpush1.bf16.msra.mxu0 %v839
      %957 = vmatprep.subr.bf16.mxu0 %v843
      %958 = vmatpush1.bf16.msra.mxu0 %v842
      %959 = vmatprep.subr.bf16.mxu0 0
      %960 = vmatpush1.bf16.msra.mxu0 0
      %961 = vmatprep.subr.bf16.mxu0 0
      %962 = vmatpush1.bf16.msra.mxu0 0
      %963 = vmatprep.subr.bf16.mxu0 0
      %964 = vmatpush1.bf16.msra.mxu0 0
      %965 = vmatprep.subr.bf16.mxu0 0
      %966 = vmatpush1.bf16.msra.mxu0 0
      %967 = vmatprep.subr.bf16.mxu0 0
      %968 = vmatpush1.bf16.msra.mxu0 0
      %969 = vmatprep.subr.bf16.mxu0 0
      %970 = vmatpush1.bf16.msra.mxu0 0
      %971 = vmatprep.subr.bf16.mxu0 0
      %972 = vmatpush1.bf16.msra.mxu0 0
      %973 = vmatprep.subr.bf16.mxu0 0
      %974 = vmatpush1.bf16.msra.mxu0 0
      %975 = vmatprep.subr.bf16.mxu0 0
      %976 = vmatpush1.bf16.msra.mxu0 0
      %977 = vmatprep.subr.bf16.mxu0 0
      %978 = vmatpush1.bf16.msra.mxu0 0
      %979 = vmatprep.subr.bf16.mxu0 0
      %980 = vmatpush1.bf16.msra.mxu0 0
      %981 = vmatprep.subr.bf16.mxu0 0
      %982 = vmatpush1.bf16.msra.mxu0 0
      %983 = vmatprep.subr.bf16.mxu0 0
      %984 = vmatpush1.bf16.msra.mxu0 0
      %985 = vmatprep.subr.bf16.mxu0 0
      %986 = vmatpush1.bf16.msra.mxu0 0
      %987 = vmatprep.mubr.bf16.mxu0 0
      %988 = vmatmul.mubr.bf16.gmra.mrb[0].mxu0 %v897
      %v989 = vpop.f32.mrb[0].mxu0
      %v990 = vadd.f32 %v937, %v989
      %v991 = vpop.f32.mrb[0].mxu0
      %v992 = vadd.f32 %v939, %v991
      %v993 = vpop.f32.mrb[0].mxu0
      %v994 = vadd.f32 %v941, %v993
      %v995 = vpop.f32.mrb[0].mxu0
      %v996 = vadd.f32 %v943, %v995
      %997 = vmatprep.mubr.bf16.mxu0 0
      %998 = vmatmul.mubr.bf16.gmra.mrb[0].mxu0 %v900
      %v999 = vpop.f32.mrb[0].mxu0
      %v1000 = vadd.f32 %v947, %v999
      %v1001 = vpop.f32.mrb[0].mxu0
      %v1002 = vadd.f32 %v949, %v1001
      %v1003 = vpop.f32.mrb[0].mxu0
      %v1004 = vadd.f32 %v951, %v1003
      %v1005 = vpop.f32.mrb[0].mxu0
      %v1006 = vadd.f32 %v953, %v1005
      %1007 = vdwg.mxu0
      %1008 = vmatprep.subr.bf16.mxu0 0
      %1009 = vmatpush1.bf16.msra.mxu0 %v793
      %1010 = vmatprep.subr.bf16.mxu0 0
      %1011 = vmatpush1.bf16.msra.mxu0 %v796
      %1012 = vmatprep.subr.bf16.mxu0 0
      %1013 = vmatpush1.bf16.msra.mxu0 %v799
      %1014 = vmatprep.subr.bf16.mxu0 0
      %1015 = vmatpush1.bf16.msra.mxu0 %v802
      %1016 = vmatprep.subr.bf16.mxu0 0
      %1017 = vmatpush1.bf16.msra.mxu0 %v805
      %1018 = vmatprep.subr.bf16.mxu0 0
      %1019 = vmatpush1.bf16.msra.mxu0 %v808
      %1020 = vmatprep.subr.bf16.mxu0 0
      %1021 = vmatpush1.bf16.msra.mxu0 %v811
      %1022 = vmatprep.subr.bf16.mxu0 0
      %1023 = vmatpush1.bf16.msra.mxu0 %v814
      %1024 = vmatprep.subr.bf16.mxu0 0
      %1025 = vmatpush1.bf16.msra.mxu0 %v817
      %1026 = vmatprep.subr.bf16.mxu0 0
      %1027 = vmatpush1.bf16.msra.mxu0 %v820
      %1028 = vmatprep.subr.bf16.mxu0 0
      %1029 = vmatpush1.bf16.msra.mxu0 %v823
      %1030 = vmatprep.subr.bf16.mxu0 0
      %1031 = vmatpush1.bf16.msra.mxu0 %v826
      %1032 = vmatprep.subr.bf16.mxu0 0
      %1033 = vmatpush1.bf16.msra.mxu0 %v829
      %1034 = vmatprep.subr.bf16.mxu0 0
      %1035 = vmatpush1.bf16.msra.mxu0 %v832
      %1036 = vmatprep.subr.bf16.mxu0 0
      %1037 = vmatpush1.bf16.msra.mxu0 %v835
      %1038 = vmatprep.subr.bf16.mxu0 0
      %1039 = vmatpush1.bf16.msra.mxu0 %v838
      %1040 = vmatprep.mubr.bf16.mxu0 %v886
      %1041 = vmatmul.mubr.bf16.gmra.mrb[0].mxu0 %v885
      %v1042 = vpop.f32.mrb[0].mxu0
      %v1043 = vadd.f32 %v848, %v1042
      %v1044 = vpop.f32.mrb[0].mxu0
      %v1045 = vpop.f32.mrb[0].mxu0
      %v1046 = vadd.f32 %v853, %v1045
      %v1047 = vpop.f32.mrb[0].mxu0
      %1048 = vmatprep.mubr.bf16.mxu0 %v889
      %1049 = vmatmul.mubr.bf16.gmra.mrb[0].mxu0 %v888
      %v1050 = vpop.f32.mrb[0].mxu0
      %v1051 = vadd.f32 %v858, %v1050
      %v1052 = vpop.f32.mrb[0].mxu0
      %v1053 = vpop.f32.mrb[0].mxu0
      %v1054 = vadd.f32 %v863, %v1053
      %v1055 = vpop.f32.mrb[0].mxu0
      %1056 = vdwg.mxu0
      %1057 = vmatprep.subr.bf16.mxu0 0
      %1058 = vmatpush1.bf16.msra.mxu0 %v841
      %1059 = vmatprep.subr.bf16.mxu0 0
      %1060 = vmatpush1.bf16.msra.mxu0 %v844
      %1061 = vmatprep.subr.bf16.mxu0 0
      %1062 = vmatpush1.bf16.msra.mxu0 0
      %1063 = vmatprep.subr.bf16.mxu0 0
      %1064 = vmatpush1.bf16.msra.mxu0 0
      %1065 = vmatprep.subr.bf16.mxu0 0
      %1066 = vmatpush1.bf16.msra.mxu0 0
      %1067 = vmatprep.subr.bf16.mxu0 0
      %1068 = vmatpush1.bf16.msra.mxu0 0
      %1069 = vmatprep.subr.bf16.mxu0 0
      %1070 = vmatpush1.bf16.msra.mxu0 0
      %1071 = vmatprep.subr.bf16.mxu0 0
      %1072 = vmatpush1.bf16.msra.mxu0 0
      %1073 = vmatprep.subr.bf16.mxu0 0
      %1074 = vmatpush1.bf16.msra.mxu0 0
      %1075 = vmatprep.subr.bf16.mxu0 0
      %1076 = vmatpush1.bf16.msra.mxu0 0
      %1077 = vmatprep.subr.bf16.mxu0 0
      %1078 = vmatpush1.bf16.msra.mxu0 0
      %1079 = vmatprep.subr.bf16.mxu0 0
      %1080 = vmatpush1.bf16.msra.mxu0 0
      %1081 = vmatprep.subr.bf16.mxu0 0
      %1082 = vmatpush1.bf16.msra.mxu0 0
      %1083 = vmatprep.subr.bf16.mxu0 0
      %1084 = vmatpush1.bf16.msra.mxu0 0
      %1085 = vmatprep.subr.bf16.mxu0 0
      %1086 = vmatpush1.bf16.msra.mxu0 0
      %1087 = vmatprep.subr.bf16.mxu0 0
      %1088 = vmatpush1.bf16.msra.mxu0 0
      %1089 = vmatprep.mubr.bf16.mxu0 0
      %1090 = vmatmul.mubr.bf16.gmra.mrb[0].mxu0 %v897
      %v1091 = vpop.f32.mrb[0].mxu0
      %v1092 = vadd.f32 %v1043, %v1091
      %v1093 = vpop.f32.mrb[0].mxu0
      %v1094 = vpop.f32.mrb[0].mxu0
      %v1095 = vadd.f32 %v1046, %v1094
      %v1096 = vpop.f32.mrb[0].mxu0
      %1097 = vmatprep.mubr.bf16.mxu0 0
      %1098 = vmatmul.mubr.bf16.gmra.mrb[0].mxu0 %v900
      %v1099 = vpop.f32.mrb[0].mxu0
      %v1100 = vadd.f32 %v1051, %v1099
      %v1101 = vpop.f32.mrb[0].mxu0
      %v1102 = vpop.f32.mrb[0].mxu0
      %v1103 = vadd.f32 %v1054, %v1102
      %v1104 = vpop.f32.mrb[0].mxu0
      %1105 = vdwg.mxu0
      %v1106 = vld [vmem:[%s1] sm:$0x7]
      %v1108 = vlaneseq
      %v1109 = vshrl.u32 %v1108, 7
      %v1110 = vsub.s32 0, %v1109
      %v1111 = vrot.slane %v1106, %v1110
      %v1112 = vlaneseq
      %v1113 = vshrl.u32 %v1112, 7
      %v1114 = vsub.s32 1, %v1113
      %v1115 = vrot.slane %v1106, %v1114
      %v1116 = vlaneseq
      %v1117 = vshrl.u32 %v1116, 7
      %v1118 = vsub.s32 2, %v1117
      %v1119 = vrot.slane %v1106, %v1118
      %v1123 = vmul.f32 %v990, %v1111
      %v1124 = vmul.f32 %v992, %v1115
      %v1125 = vmul.f32 %v1092, %v1119
      %v1126 = vmul.f32 %v994, %v1111
      %v1127 = vmul.f32 %v996, %v1115
      %v1128 = vmul.f32 %v1095, %v1119
      %v1129 = vmul.f32 %v1000, %v1111
      %v1130 = vmul.f32 %v1002, %v1115
      %v1131 = vmul.f32 %v1100, %v1119
      %v1132 = vmul.f32 %v1004, %v1111
      %v1133 = vmul.f32 %v1006, %v1115
      %v1134 = vmul.f32 %v1103, %v1119
      %1135 = vst [vmem:[#allocation2] sm:$0xff] %v1123
      %1136 = vst [vmem:[#allocation2 + $0x8] sm:$0xff] %v1124
      %1137 = vst [vmem:[#allocation2 + $0x10] sm:$0xff] %v1125
      %1138 = vst [vmem:[#allocation2 + $0x18] sm:$0xff] %v1126
      %1139 = vst [vmem:[#allocation2 + $0x20] sm:$0xff] %v1127
      %1140 = vst [vmem:[#allocation2 + $0x28] sm:$0xff] %v1128
      %1141 = vst [vmem:[#allocation2 + $0x30] sm:$0xff] %v1129
      %1142 = vst [vmem:[#allocation2 + $0x38] sm:$0xff] %v1130
      %1143 = vst [vmem:[#allocation2 + $0x40] sm:$0xff] %v1131
      %1144 = vst [vmem:[#allocation2 + $0x48] sm:$0xff] %v1132
      %1145 = vst [vmem:[#allocation2 + $0x50] sm:$0xff] %v1133
      %1146 = vst [vmem:[#allocation2 + $0x58] sm:$0xff] %v1134
      loop: start=0, step=1, limit=6
      $region61: #{dft_feature_extractor.1} parent=59 // loop_pre_header
        _
      $region62: #{dft_feature_extractor.1} parent=59 // loop_header
        %s1148 = sphi 0, %s1152
        %p1149 = scmp.ge.s32.totalorder %s1148, 6
      $region63: #{dft_feature_extractor.1} parent=59 // loop_header_branch
        %1151 = sbr.rel (%p1149) target = $region67
      $region64: #{dft_feature_extractor.1} parent=59 // loop_body
        %v1153 = vld [vmem:[#allocation2] sm:$0xff]
        %v1154 = vld [vmem:[#allocation2 + $0x8] sm:$0xff]
        %v1155 = vld [vmem:[#allocation2 + $0x10] sm:$0xff]
        %v1156 = vld [vmem:[#allocation2 + $0x18] sm:$0xff]
        %v1157 = vld [vmem:[#allocation2 + $0x20] sm:$0xff]
        %v1158 = vld [vmem:[#allocation2 + $0x28] sm:$0xff]
        %v1159 = vld [vmem:[#allocation2 + $0x30] sm:$0xff]
        %v1160 = vld [vmem:[#allocation2 + $0x38] sm:$0xff]
        %v1161 = vld [vmem:[#allocation2 + $0x40] sm:$0xff]
        %v1162 = vld [vmem:[#allocation2 + $0x48] sm:$0xff]
        %v1163 = vld [vmem:[#allocation2 + $0x50] sm:$0xff]
        %v1164 = vld [vmem:[#allocation2 + $0x58] sm:$0xff]
        %1165 = vrot.lane.b32.xlu0 %v1153, 19
        %v1166 = vpop.permute.xlu0 %1165
        %1167 = vrot.lane.b32.xlu0 %v1156, 19
        %v1168 = vpop.permute.xlu0 %1167
        %1169 = vrot.lane.b32.xlu0 %v1159, 19
        %v1170 = vpop.permute.xlu0 %1169
        %1171 = vrot.lane.b32.xlu0 %v1162, 19
        %v1172 = vpop.permute.xlu0 %1171
        %1173 = vrot.lane.b32.xlu0 %v1154, 19
        %v1174 = vpop.permute.xlu0 %1173
        %1175 = vrot.lane.b32.xlu0 %v1157, 19
        %v1176 = vpop.permute.xlu0 %1175
        %1177 = vrot.lane.b32.xlu0 %v1160, 19
        %v1178 = vpop.permute.xlu0 %1177
        %1179 = vrot.lane.b32.xlu0 %v1163, 19
        %v1180 = vpop.permute.xlu0 %1179
        %1181 = vrot.lane.b32.xlu0 %v1155, 19
        %v1182 = vpop.permute.xlu0 %1181
        %1183 = vrot.lane.b32.xlu0 %v1158, 19
        %v1184 = vpop.permute.xlu0 %1183
        %1185 = vrot.lane.b32.xlu0 %v1161, 19
        %v1186 = vpop.permute.xlu0 %1185
        %1187 = vrot.lane.b32.xlu0 %v1164, 19
        %v1188 = vpop.permute.xlu0 %1187
        %v1189 = vsel %vm399, %v1174, %v1182
        %v1190 = vsel %vm399, %v1176, %v1184
        %v1191 = vsel %vm399, %v1178, %v1186
        %v1192 = vsel %vm399, %v1180, %v1188
        %v1193 = vsel %vm399, %v1166, %v1174
        %v1194 = vsel %vm399, %v1168, %v1176
        %v1195 = vsel %vm399, %v1170, %v1178
        %v1196 = vsel %vm399, %v1172, %v1180
        %v1197 = vsel %vm399, %v1182, %v1166
        %v1198 = vsel %vm399, %v1184, %v1168
        %v1199 = vsel %vm399, %v1186, %v1170
        %v1200 = vsel %vm399, %v1188, %v1172
        %v1201 = vpack.c.bf16 %v1198, %v1197
        %v1202 = vpack.c.bf16 %v1194, %v1193
        %v1203 = vpack.c.bf16 %v1190, %v1189
        %v1204 = vpack.c.bf16 %v1200, %v1199
        %v1205 = vpack.c.bf16 %v1196, %v1195
        %v1206 = vpack.c.bf16 %v1192, %v1191
        %1207 = vst [vmem:[#allocation3] sm:$0xff] %v1201
        %1208 = vst [vmem:[#allocation3 + $0x8] sm:$0xff] %v1202
        %1209 = vst [vmem:[#allocation3 + $0x10] sm:$0xff] %v1203
        %1210 = vst [vmem:[#allocation3 + $0x18] sm:$0xff] %v1204
        %1211 = vst [vmem:[#allocation3 + $0x20] sm:$0xff] %v1205
        %1212 = vst [vmem:[#allocation3 + $0x28] sm:$0xff] %v1206
        %1213 = vrot.lane.b32.xlu0 %v1153, 18
        %v1214 = vpop.permute.xlu0 %1213
        %1215 = vrot.lane.b32.xlu0 %v1156, 18
        %v1216 = vpop.permute.xlu0 %1215
        %1217 = vrot.lane.b32.xlu0 %v1159, 18
        %v1218 = vpop.permute.xlu0 %1217
        %1219 = vrot.lane.b32.xlu0 %v1162, 18
        %v1220 = vpop.permute.xlu0 %1219
        %1221 = vrot.lane.b32.xlu0 %v1154, 18
        %v1222 = vpop.permute.xlu0 %1221
        %1223 = vrot.lane.b32.xlu0 %v1157, 18
        %v1224 = vpop.permute.xlu0 %1223
        %1225 = vrot.lane.b32.xlu0 %v1160, 18
        %v1226 = vpop.permute.xlu0 %1225
        %1227 = vrot.lane.b32.xlu0 %v1163, 18
        %v1228 = vpop.permute.xlu0 %1227
        %1229 = vrot.lane.b32.xlu0 %v1155, 18
        %v1230 = vpop.permute.xlu0 %1229
        %1231 = vrot.lane.b32.xlu0 %v1158, 18
        %v1232 = vpop.permute.xlu0 %1231
        %1233 = vrot.lane.b32.xlu0 %v1161, 18
        %v1234 = vpop.permute.xlu0 %1233
        %1235 = vrot.lane.b32.xlu0 %v1164, 18
        %v1236 = vpop.permute.xlu0 %1235
        %v1237 = vsel %vm448, %v1222, %v1230
        %v1238 = vsel %vm448, %v1224, %v1232
        %v1239 = vsel %vm448, %v1226, %v1234
        %v1240 = vsel %vm448, %v1228, %v1236
        %v1241 = vsel %vm448, %v1214, %v1222
        %v1242 = vsel %vm448, %v1216, %v1224
        %v1243 = vsel %vm448, %v1218, %v1226
        %v1244 = vsel %vm448, %v1220, %v1228
        %v1245 = vsel %vm448, %v1230, %v1214
        %v1246 = vsel %vm448, %v1232, %v1216
        %v1247 = vsel %vm448, %v1234, %v1218
        %v1248 = vsel %vm448, %v1236, %v1220
        %v1249 = vpack.c.bf16 %v1246, %v1245
        %v1250 = vpack.c.bf16 %v1242, %v1241
        %v1251 = vpack.c.bf16 %v1238, %v1237
        %v1252 = vpack.c.bf16 %v1248, %v1247
        %v1253 = vpack.c.bf16 %v1244, %v1243
        %v1254 = vpack.c.bf16 %v1240, %v1239
        %1255 = vst [vmem:[#allocation3 + $0x30] sm:$0xff] %v1249
        %1256 = vst [vmem:[#allocation3 + $0x38] sm:$0xff] %v1250
        %1257 = vst [vmem:[#allocation3 + $0x40] sm:$0xff] %v1251
        %1258 = vst [vmem:[#allocation3 + $0x48] sm:$0xff] %v1252
        %1259 = vst [vmem:[#allocation3 + $0x50] sm:$0xff] %v1253
        %1260 = vst [vmem:[#allocation3 + $0x58] sm:$0xff] %v1254
        %1261 = vrot.lane.b32.xlu0 %v1153, 17
        %v1262 = vpop.permute.xlu0 %1261
        %1263 = vrot.lane.b32.xlu0 %v1156, 17
        %v1264 = vpop.permute.xlu0 %1263
        %1265 = vrot.lane.b32.xlu0 %v1159, 17
        %v1266 = vpop.permute.xlu0 %1265
        %1267 = vrot.lane.b32.xlu0 %v1162, 17
        %v1268 = vpop.permute.xlu0 %1267
        %1269 = vrot.lane.b32.xlu0 %v1154, 17
        %v1270 = vpop.permute.xlu0 %1269
        %1271 = vrot.lane.b32.xlu0 %v1157, 17
        %v1272 = vpop.permute.xlu0 %1271
        %1273 = vrot.lane.b32.xlu0 %v1160, 17
        %v1274 = vpop.permute.xlu0 %1273
        %1275 = vrot.lane.b32.xlu0 %v1163, 17
        %v1276 = vpop.permute.xlu0 %1275
        %1277 = vrot.lane.b32.xlu0 %v1155, 17
        %v1278 = vpop.permute.xlu0 %1277
        %1279 = vrot.lane.b32.xlu0 %v1158, 17
        %v1280 = vpop.permute.xlu0 %1279
        %1281 = vrot.lane.b32.xlu0 %v1161, 17
        %v1282 = vpop.permute.xlu0 %1281
        %1283 = vrot.lane.b32.xlu0 %v1164, 17
        %v1284 = vpop.permute.xlu0 %1283
        %v1285 = vsel %vm497, %v1270, %v1278
        %v1286 = vsel %vm497, %v1272, %v1280
        %v1287 = vsel %vm497, %v1274, %v1282
        %v1288 = vsel %vm497, %v1276, %v1284
        %v1289 = vsel %vm497, %v1262, %v1270
        %v1290 = vsel %vm497, %v1264, %v1272
        %v1291 = vsel %vm497, %v1266, %v1274
        %v1292 = vsel %vm497, %v1268, %v1276
        %v1293 = vsel %vm497, %v1278, %v1262
        %v1294 = vsel %vm497, %v1280, %v1264
        %v1295 = vsel %vm497, %v1282, %v1266
        %v1296 = vsel %vm497, %v1284, %v1268
        %v1297 = vpack.c.bf16 %v1294, %v1293
        %v1298 = vpack.c.bf16 %v1290, %v1289
        %v1299 = vpack.c.bf16 %v1286, %v1285
        %v1300 = vpack.c.bf16 %v1296, %v1295
        %v1301 = vpack.c.bf16 %v1292, %v1291
        %v1302 = vpack.c.bf16 %v1288, %v1287
        %1303 = vst [vmem:[#allocation3 + $0x60] sm:$0xff] %v1297
        %1304 = vst [vmem:[#allocation3 + $0x68] sm:$0xff] %v1298
        %1305 = vst [vmem:[#allocation3 + $0x70] sm:$0xff] %v1299
        %1306 = vst [vmem:[#allocation3 + $0x78] sm:$0xff] %v1300
        %1307 = vst [vmem:[#allocation3 + $0x80] sm:$0xff] %v1301
        %1308 = vst [vmem:[#allocation3 + $0x88] sm:$0xff] %v1302
        %1309 = vrot.lane.b32.xlu0 %v1153, 1
        %v1310 = vpop.permute.xlu0 %1309
        %1311 = vrot.lane.b32.xlu0 %v1156, 1
        %v1312 = vpop.permute.xlu0 %1311
        %1313 = vrot.lane.b32.xlu0 %v1159, 1
        %v1314 = vpop.permute.xlu0 %1313
        %1315 = vrot.lane.b32.xlu0 %v1162, 1
        %v1316 = vpop.permute.xlu0 %1315
        %1317 = vrot.lane.b32.xlu0 %v1154, 1
        %v1318 = vpop.permute.xlu0 %1317
        %1319 = vrot.lane.b32.xlu0 %v1157, 1
        %v1320 = vpop.permute.xlu0 %1319
        %1321 = vrot.lane.b32.xlu0 %v1160, 1
        %v1322 = vpop.permute.xlu0 %1321
        %1323 = vrot.lane.b32.xlu0 %v1163, 1
        %v1324 = vpop.permute.xlu0 %1323
        %1325 = vrot.lane.b32.xlu0 %v1155, 1
        %v1326 = vpop.permute.xlu0 %1325
        %1327 = vrot.lane.b32.xlu0 %v1158, 1
        %v1328 = vpop.permute.xlu0 %1327
        %1329 = vrot.lane.b32.xlu0 %v1161, 1
        %v1330 = vpop.permute.xlu0 %1329
        %1331 = vrot.lane.b32.xlu0 %v1164, 1
        %v1332 = vpop.permute.xlu0 %1331
        %v1333 = vsel %vm546, %v1318, %v1326
        %v1334 = vsel %vm546, %v1320, %v1328
        %v1335 = vsel %vm546, %v1322, %v1330
        %v1336 = vsel %vm546, %v1324, %v1332
        %v1337 = vsel %vm546, %v1310, %v1318
        %v1338 = vsel %vm546, %v1312, %v1320
        %v1339 = vsel %vm546, %v1314, %v1322
        %v1340 = vsel %vm546, %v1316, %v1324
        %v1341 = vsel %vm546, %v1326, %v1310
        %v1342 = vsel %vm546, %v1328, %v1312
        %v1343 = vsel %vm546, %v1330, %v1314
        %v1344 = vsel %vm546, %v1332, %v1316
        %v1345 = vpack.c.bf16 %v1342, %v1341
        %v1346 = vpack.c.bf16 %v1338, %v1337
        %v1347 = vpack.c.bf16 %v1334, %v1333
        %v1348 = vpack.c.bf16 %v1344, %v1343
        %v1349 = vpack.c.bf16 %v1340, %v1339
        %v1350 = vpack.c.bf16 %v1336, %v1335
        %1351 = vst [vmem:[#allocation3 + $0x90] sm:$0xff] %v1345
        %1352 = vst [vmem:[#allocation3 + $0x98] sm:$0xff] %v1346
        %1353 = vst [vmem:[#allocation3 + $0xa0] sm:$0xff] %v1347
        %1354 = vst [vmem:[#allocation3 + $0xa8] sm:$0xff] %v1348
        %1355 = vst [vmem:[#allocation3 + $0xb0] sm:$0xff] %v1349
        %1356 = vst [vmem:[#allocation3 + $0xb8] sm:$0xff] %v1350
        %v1357 = vpack.c.bf16 %v1156, %v1153
        %v1358 = vpack.c.bf16 %v1157, %v1154
        %v1359 = vpack.c.bf16 %v1158, %v1155
        %v1360 = vpack.c.bf16 %v1162, %v1159
        %v1361 = vpack.c.bf16 %v1163, %v1160
        %v1362 = vpack.c.bf16 %v1164, %v1161
        %1363 = vst [vmem:[#allocation3 + $0xc0] sm:$0xff] %v1357
        %1364 = vst [vmem:[#allocation3 + $0xc8] sm:$0xff] %v1358
        %1365 = vst [vmem:[#allocation3 + $0xd0] sm:$0xff] %v1359
        %1366 = vst [vmem:[#allocation3 + $0xd8] sm:$0xff] %v1360
        %1367 = vst [vmem:[#allocation3 + $0xe0] sm:$0xff] %v1361
        %1368 = vst [vmem:[#allocation3 + $0xe8] sm:$0xff] %v1362
        %1369 = vrot.lane.b32.xlu0 %v1153, 127
        %v1370 = vpop.permute.xlu0 %1369
        %1371 = vrot.lane.b32.xlu0 %v1156, 127
        %v1372 = vpop.permute.xlu0 %1371
        %1373 = vrot.lane.b32.xlu0 %v1159, 127
        %v1374 = vpop.permute.xlu0 %1373
        %1375 = vrot.lane.b32.xlu0 %v1162, 127
        %v1376 = vpop.permute.xlu0 %1375
        %1377 = vrot.lane.b32.xlu0 %v1154, 127
        %v1378 = vpop.permute.xlu0 %1377
        %1379 = vrot.lane.b32.xlu0 %v1157, 127
        %v1380 = vpop.permute.xlu0 %1379
        %1381 = vrot.lane.b32.xlu0 %v1160, 127
        %v1382 = vpop.permute.xlu0 %1381
        %1383 = vrot.lane.b32.xlu0 %v1163, 127
        %v1384 = vpop.permute.xlu0 %1383
        %1385 = vrot.lane.b32.xlu0 %v1155, 127
        %v1386 = vpop.permute.xlu0 %1385
        %1387 = vrot.lane.b32.xlu0 %v1158, 127
        %v1388 = vpop.permute.xlu0 %1387
        %1389 = vrot.lane.b32.xlu0 %v1161, 127
        %v1390 = vpop.permute.xlu0 %1389
        %1391 = vrot.lane.b32.xlu0 %v1164, 127
        %v1392 = vpop.permute.xlu0 %1391
        %v1393 = vsel %vm607, %v1378, %v1386
        %v1394 = vsel %vm607, %v1380, %v1388
        %v1395 = vsel %vm607, %v1382, %v1390
        %v1396 = vsel %vm607, %v1384, %v1392
        %v1397 = vsel %vm607, %v1370, %v1378
        %v1398 = vsel %vm607, %v1372, %v1380
        %v1399 = vsel %vm607, %v1374, %v1382
        %v1400 = vsel %vm607, %v1376, %v1384
        %v1401 = vsel %vm607, %v1386, %v1370
        %v1402 = vsel %vm607, %v1388, %v1372
        %v1403 = vsel %vm607, %v1390, %v1374
        %v1404 = vsel %vm607, %v1392, %v1376
        %v1405 = vpack.c.bf16 %v1398, %v1397
        %v1406 = vpack.c.bf16 %v1394, %v1393
        %v1407 = vpack.c.bf16 %v1402, %v1401
        %v1408 = vpack.c.bf16 %v1400, %v1399
        %v1409 = vpack.c.bf16 %v1396, %v1395
        %v1410 = vpack.c.bf16 %v1404, %v1403
        %1411 = vst [vmem:[#allocation3 + $0xf0] sm:$0xff] %v1405
        %1412 = vst [vmem:[#allocation3 + $0xf8] sm:$0xff] %v1406
        %1413 = vst [vmem:[#allocation3 + $0x100] sm:$0xff] %v1407
        %1414 = vst [vmem:[#allocation3 + $0x108] sm:$0xff] %v1408
        %1415 = vst [vmem:[#allocation3 + $0x110] sm:$0xff] %v1409
        %1416 = vst [vmem:[#allocation3 + $0x118] sm:$0xff] %v1410
        %1417 = vrot.lane.b32.xlu0 %v1153, 111
        %v1418 = vpop.permute.xlu0 %1417
        %1419 = vrot.lane.b32.xlu0 %v1156, 111
        %v1420 = vpop.permute.xlu0 %1419
        %1421 = vrot.lane.b32.xlu0 %v1159, 111
        %v1422 = vpop.permute.xlu0 %1421
        %1423 = vrot.lane.b32.xlu0 %v1162, 111
        %v1424 = vpop.permute.xlu0 %1423
        %1425 = vrot.lane.b32.xlu0 %v1154, 111
        %v1426 = vpop.permute.xlu0 %1425
        %1427 = vrot.lane.b32.xlu0 %v1157, 111
        %v1428 = vpop.permute.xlu0 %1427
        %1429 = vrot.lane.b32.xlu0 %v1160, 111
        %v1430 = vpop.permute.xlu0 %1429
        %1431 = vrot.lane.b32.xlu0 %v1163, 111
        %v1432 = vpop.permute.xlu0 %1431
        %1433 = vrot.lane.b32.xlu0 %v1155, 111
        %v1434 = vpop.permute.xlu0 %1433
        %1435 = vrot.lane.b32.xlu0 %v1158, 111
        %v1436 = vpop.permute.xlu0 %1435
        %1437 = vrot.lane.b32.xlu0 %v1161, 111
        %v1438 = vpop.permute.xlu0 %1437
        %1439 = vrot.lane.b32.xlu0 %v1164, 111
        %v1440 = vpop.permute.xlu0 %1439
        %v1441 = vsel %vm656, %v1426, %v1434
        %v1442 = vsel %vm656, %v1428, %v1436
        %v1443 = vsel %vm656, %v1430, %v1438
        %v1444 = vsel %vm656, %v1432, %v1440
        %v1445 = vsel %vm656, %v1418, %v1426
        %v1446 = vsel %vm656, %v1420, %v1428
        %v1447 = vsel %vm656, %v1422, %v1430
        %v1448 = vsel %vm656, %v1424, %v1432
        %v1449 = vsel %vm656, %v1434, %v1418
        %v1450 = vsel %vm656, %v1436, %v1420
        %v1451 = vsel %vm656, %v1438, %v1422
        %v1452 = vsel %vm656, %v1440, %v1424
        %v1453 = vpack.c.bf16 %v1446, %v1445
        %v1454 = vpack.c.bf16 %v1442, %v1441
        %v1455 = vpack.c.bf16 %v1450, %v1449
        %v1456 = vpack.c.bf16 %v1448, %v1447
        %v1457 = vpack.c.bf16 %v1444, %v1443
        %v1458 = vpack.c.bf16 %v1452, %v1451
        %1459 = vst [vmem:[#allocation3 + $0x120] sm:$0xff] %v1453
        %1460 = vst [vmem:[#allocation3 + $0x128] sm:$0xff] %v1454
        %1461 = vst [vmem:[#allocation3 + $0x130] sm:$0xff] %v1455
        %1462 = vst [vmem:[#allocation3 + $0x138] sm:$0xff] %v1456
        %1463 = vst [vmem:[#allocation3 + $0x140] sm:$0xff] %v1457
        %1464 = vst [vmem:[#allocation3 + $0x148] sm:$0xff] %v1458
        %1465 = vrot.lane.b32.xlu0 %v1153, 110
        %v1466 = vpop.permute.xlu0 %1465
        %1467 = vrot.lane.b32.xlu0 %v1156, 110
        %v1468 = vpop.permute.xlu0 %1467
        %1469 = vrot.lane.b32.xlu0 %v1159, 110
        %v1470 = vpop.permute.xlu0 %1469
        %1471 = vrot.lane.b32.xlu0 %v1162, 110
        %v1472 = vpop.permute.xlu0 %1471
        %1473 = vrot.lane.b32.xlu0 %v1154, 110
        %v1474 = vpop.permute.xlu0 %1473
        %1475 = vrot.lane.b32.xlu0 %v1157, 110
        %v1476 = vpop.permute.xlu0 %1475
        %1477 = vrot.lane.b32.xlu0 %v1160, 110
        %v1478 = vpop.permute.xlu0 %1477
        %1479 = vrot.lane.b32.xlu0 %v1163, 110
        %v1480 = vpop.permute.xlu0 %1479
        %1481 = vrot.lane.b32.xlu0 %v1155, 110
        %v1482 = vpop.permute.xlu0 %1481
        %1483 = vrot.lane.b32.xlu0 %v1158, 110
        %v1484 = vpop.permute.xlu0 %1483
        %1485 = vrot.lane.b32.xlu0 %v1161, 110
        %v1486 = vpop.permute.xlu0 %1485
        %1487 = vrot.lane.b32.xlu0 %v1164, 110
        %v1488 = vpop.permute.xlu0 %1487
        %v1489 = vsel %vm705, %v1474, %v1482
        %v1490 = vsel %vm705, %v1476, %v1484
        %v1491 = vsel %vm705, %v1478, %v1486
        %v1492 = vsel %vm705, %v1480, %v1488
        %v1493 = vsel %vm705, %v1466, %v1474
        %v1494 = vsel %vm705, %v1468, %v1476
        %v1495 = vsel %vm705, %v1470, %v1478
        %v1496 = vsel %vm705, %v1472, %v1480
        %v1497 = vsel %vm705, %v1482, %v1466
        %v1498 = vsel %vm705, %v1484, %v1468
        %v1499 = vsel %vm705, %v1486, %v1470
        %v1500 = vsel %vm705, %v1488, %v1472
        %v1501 = vpack.c.bf16 %v1494, %v1493
        %v1502 = vpack.c.bf16 %v1490, %v1489
        %v1503 = vpack.c.bf16 %v1498, %v1497
        %v1504 = vpack.c.bf16 %v1496, %v1495
        %v1505 = vpack.c.bf16 %v1492, %v1491
        %v1506 = vpack.c.bf16 %v1500, %v1499
        %1507 = vst [vmem:[#allocation3 + $0x150] sm:$0xff] %v1501
        %1508 = vst [vmem:[#allocation3 + $0x158] sm:$0xff] %v1502
        %1509 = vst [vmem:[#allocation3 + $0x160] sm:$0xff] %v1503
        %1510 = vst [vmem:[#allocation3 + $0x168] sm:$0xff] %v1504
        %1511 = vst [vmem:[#allocation3 + $0x170] sm:$0xff] %v1505
        %1512 = vst [vmem:[#allocation3 + $0x178] sm:$0xff] %v1506
        %1513 = vrot.lane.b32.xlu0 %v1153, 109
        %v1514 = vpop.permute.xlu0 %1513
        %1515 = vrot.lane.b32.xlu0 %v1156, 109
        %v1516 = vpop.permute.xlu0 %1515
        %1517 = vrot.lane.b32.xlu0 %v1159, 109
        %v1518 = vpop.permute.xlu0 %1517
        %1519 = vrot.lane.b32.xlu0 %v1162, 109
        %v1520 = vpop.permute.xlu0 %1519
        %1521 = vrot.lane.b32.xlu0 %v1154, 109
        %v1522 = vpop.permute.xlu0 %1521
        %1523 = vrot.lane.b32.xlu0 %v1157, 109
        %v1524 = vpop.permute.xlu0 %1523
        %1525 = vrot.lane.b32.xlu0 %v1160, 109
        %v1526 = vpop.permute.xlu0 %1525
        %1527 = vrot.lane.b32.xlu0 %v1163, 109
        %v1528 = vpop.permute.xlu0 %1527
        %1529 = vrot.lane.b32.xlu0 %v1155, 109
        %v1530 = vpop.permute.xlu0 %1529
        %1531 = vrot.lane.b32.xlu0 %v1158, 109
        %v1532 = vpop.permute.xlu0 %1531
        %1533 = vrot.lane.b32.xlu0 %v1161, 109
        %v1534 = vpop.permute.xlu0 %1533
        %1535 = vrot.lane.b32.xlu0 %v1164, 109
        %v1536 = vpop.permute.xlu0 %1535
        %v1537 = vsel %vm754, %v1522, %v1530
        %v1538 = vsel %vm754, %v1524, %v1532
        %v1539 = vsel %vm754, %v1526, %v1534
        %v1540 = vsel %vm754, %v1528, %v1536
        %v1541 = vsel %vm754, %v1514, %v1522
        %v1542 = vsel %vm754, %v1516, %v1524
        %v1543 = vsel %vm754, %v1518, %v1526
        %v1544 = vsel %vm754, %v1520, %v1528
        %v1545 = vsel %vm754, %v1530, %v1514
        %v1546 = vsel %vm754, %v1532, %v1516
        %v1547 = vsel %vm754, %v1534, %v1518
        %v1548 = vsel %vm754, %v1536, %v1520
        %v1549 = vpack.c.bf16 %v1542, %v1541
        %v1550 = vpack.c.bf16 %v1538, %v1537
        %v1551 = vpack.c.bf16 %v1546, %v1545
        %v1552 = vpack.c.bf16 %v1544, %v1543
        %v1553 = vpack.c.bf16 %v1540, %v1539
        %v1554 = vpack.c.bf16 %v1548, %v1547
        %1555 = vst [vmem:[#allocation3 + $0x180] sm:$0xff] %v1549
        %1556 = vst [vmem:[#allocation3 + $0x188] sm:$0xff] %v1550
        %1557 = vst [vmem:[#allocation3 + $0x190] sm:$0xff] %v1551
        %1558 = vst [vmem:[#allocation3 + $0x198] sm:$0xff] %v1552
        %1559 = vst [vmem:[#allocation3 + $0x1a0] sm:$0xff] %v1553
        %1560 = vst [vmem:[#allocation3 + $0x1a8] sm:$0xff] %v1554
        %s1561 = smul.u32 %s1148, 2
        %s1562 = smul.u32 %s1561, 12
        %s1563 = smul.addr %s1562, 4
        %s1564 = scalar_lea.vmem %s4, %s1563
        %v1565 = vld [vmem:[%s1564] sm:$0xff]
        %v1566 = vld [vmem:[%s1564 + $0x8] sm:$0xf]
        %v1567 = vld [vmem:[%s1564 + $0xc] sm:$0xff]
        %v1568 = vld [vmem:[%s1564 + $0x14] sm:$0xf]
        %v1569 = vld [vmem:[%s1564 + $0x18] sm:$0xff]
        %v1570 = vld [vmem:[%s1564 + $0x20] sm:$0xf]
        %v1571 = vld [vmem:[%s1564 + $0x24] sm:$0xff]
        %v1572 = vld [vmem:[%s1564 + $0x2c] sm:$0xf]
        %s1573 = smul.u32 %s1561, 32
        %s1574 = scalar_lea.vmem %s5, %s1573
        %v1575 = vld [vmem:[%s1574] sm:$0xff]
        %v1576 = vld [vmem:[%s1574 + $0x8] sm:$0xff]
        %v1577 = vld [vmem:[%s1574 + $0x10] sm:$0xff]
        %v1578 = vld [vmem:[%s1574 + $0x18] sm:$0xff]
        %v1579 = vld [vmem:[#allocation3] sm:$0xff]
        %v1580 = vld [vmem:[#allocation3 + $0x8] sm:$0xff]
        %v1581 = vld [vmem:[#allocation3 + $0x10] sm:$0xff]
        %v1582 = vld [vmem:[#allocation3 + $0x18] sm:$0xff]
        %v1583 = vld [vmem:[#allocation3 + $0x20] sm:$0xff]
        %v1584 = vld [vmem:[#allocation3 + $0x28] sm:$0xff]
        %v1585 = vld [vmem:[#allocation3 + $0x30] sm:$0xff]
        %v1586 = vld [vmem:[#allocation3 + $0x38] sm:$0xff]
        %v1587 = vld [vmem:[#allocation3 + $0x40] sm:$0xff]
        %v1588 = vld [vmem:[#allocation3 + $0x48] sm:$0xff]
        %v1589 = vld [vmem:[#allocation3 + $0x50] sm:$0xff]
        %v1590 = vld [vmem:[#allocation3 + $0x58] sm:$0xff]
        %v1591 = vld [vmem:[#allocation3 + $0x60] sm:$0xff]
        %v1592 = vld [vmem:[#allocation3 + $0x68] sm:$0xff]
        %v1593 = vld [vmem:[#allocation3 + $0x70] sm:$0xff]
        %v1594 = vld [vmem:[#allocation3 + $0x78] sm:$0xff]
        %v1595 = vld [vmem:[#allocation3 + $0x80] sm:$0xff]
        %v1596 = vld [vmem:[#allocation3 + $0x88] sm:$0xff]
        %v1597 = vld [vmem:[#allocation3 + $0x90] sm:$0xff]
        %v1598 = vld [vmem:[#allocation3 + $0x98] sm:$0xff]
        %v1599 = vld [vmem:[#allocation3 + $0xa0] sm:$0xff]
        %v1600 = vld [vmem:[#allocation3 + $0xa8] sm:$0xff]
        %v1601 = vld [vmem:[#allocation3 + $0xb0] sm:$0xff]
        %v1602 = vld [vmem:[#allocation3 + $0xb8] sm:$0xff]
        %v1603 = vld [vmem:[#allocation3 + $0xc0] sm:$0xff]
        %v1604 = vld [vmem:[#allocation3 + $0xc8] sm:$0xff]
        %v1605 = vld [vmem:[#allocation3 + $0xd0] sm:$0xff]
        %v1606 = vld [vmem:[#allocation3 + $0xd8] sm:$0xff]
        %v1607 = vld [vmem:[#allocation3 + $0xe0] sm:$0xff]
        %v1608 = vld [vmem:[#allocation3 + $0xe8] sm:$0xff]
        %v1609 = vld [vmem:[#allocation3 + $0xf0] sm:$0xff]
        %v1610 = vld [vmem:[#allocation3 + $0xf8] sm:$0xff]
        %v1611 = vld [vmem:[#allocation3 + $0x100] sm:$0xff]
        %v1612 = vld [vmem:[#allocation3 + $0x108] sm:$0xff]
        %v1613 = vld [vmem:[#allocation3 + $0x110] sm:$0xff]
        %v1614 = vld [vmem:[#allocation3 + $0x118] sm:$0xff]
        %v1615 = vld [vmem:[#allocation3 + $0x120] sm:$0xff]
        %v1616 = vld [vmem:[#allocation3 + $0x128] sm:$0xff]
        %v1617 = vld [vmem:[#allocation3 + $0x130] sm:$0xff]
        %v1618 = vld [vmem:[#allocation3 + $0x138] sm:$0xff]
        %v1619 = vld [vmem:[#allocation3 + $0x140] sm:$0xff]
        %v1620 = vld [vmem:[#allocation3 + $0x148] sm:$0xff]
        %v1621 = vld [vmem:[#allocation3 + $0x150] sm:$0xff]
        %v1622 = vld [vmem:[#allocation3 + $0x158] sm:$0xff]
        %v1623 = vld [vmem:[#allocation3 + $0x160] sm:$0xff]
        %v1624 = vld [vmem:[#allocation3 + $0x168] sm:$0xff]
        %v1625 = vld [vmem:[#allocation3 + $0x170] sm:$0xff]
        %v1626 = vld [vmem:[#allocation3 + $0x178] sm:$0xff]
        %v1627 = vld [vmem:[#allocation3 + $0x180] sm:$0xff]
        %v1628 = vld [vmem:[#allocation3 + $0x188] sm:$0xff]
        %v1629 = vld [vmem:[#allocation3 + $0x190] sm:$0xff]
        %v1630 = vld [vmem:[#allocation3 + $0x198] sm:$0xff]
        %v1631 = vld [vmem:[#allocation3 + $0x1a0] sm:$0xff]
        %v1632 = vld [vmem:[#allocation3 + $0x1a8] sm:$0xff]
        %1634 = vset.pattern.permute.xlu0 0
        %1635 = vperm.xlu0 %1634, %v1575
        %v1636 = vpop.permute.xlu0 %1635
        %1639 = vset.pattern.permute.xlu0 0
        %1640 = vperm.xlu0 %1639, %v1576
        %v1641 = vpop.permute.xlu0 %1640
        %1644 = vset.pattern.permute.xlu0 0
        %1645 = vperm.xlu0 %1644, %v1577
        %v1646 = vpop.permute.xlu0 %1645
        %1649 = vset.pattern.permute.xlu0 0
        %1650 = vperm.xlu0 %1649, %v1578
        %v1651 = vpop.permute.xlu0 %1650
        %v1661 = vunpack.c.l.b16 %v1565
        %v1662 = vunpack.c.h.b16 %v1565
        %v1663 = vunpack.c.l.b16 %v1566
        %v1664 = vunpack.c.l.b16 %v1567
        %v1665 = vunpack.c.h.b16 %v1567
        %v1666 = vunpack.c.l.b16 %v1568
        %v1667 = vunpack.c.l.b16 %v1569
        %v1668 = vunpack.c.h.b16 %v1569
        %v1669 = vunpack.c.l.b16 %v1570
        %v1670 = vunpack.c.l.b16 %v1571
        %v1671 = vunpack.c.h.b16 %v1571
        %v1672 = vunpack.c.l.b16 %v1572
        %v1673 = vpack.c.b16 %v1664, %v1661
        %v1674 = vpack.c.b16 %v1665, %v1662
        %v1675 = vpack.c.b16 %v1666, %v1663
        %v1676 = vpack.c.b16 %v1670, %v1667
        %v1677 = vpack.c.b16 %v1671, %v1668
        %v1678 = vpack.c.b16 %v1672, %v1669
        %v1684 = vsel %vm895, %v1675, 0
        %v1687 = vsel %vm895, %v1678, 0
        %1689 = vmatprep.subr.bf16.mxu0 %v1580
        %1690 = vmatpush1.bf16.msra.mxu0 %v1579
        %1691 = vmatprep.subr.bf16.mxu0 %v1583
        %1692 = vmatpush1.bf16.msra.mxu0 %v1582
        %1693 = vmatprep.subr.bf16.mxu0 %v1586
        %1694 = vmatpush1.bf16.msra.mxu0 %v1585
        %1695 = vmatprep.subr.bf16.mxu0 %v1589
        %1696 = vmatpush1.bf16.msra.mxu0 %v1588
        %1697 = vmatprep.subr.bf16.mxu0 %v1592
        %1698 = vmatpush1.bf16.msra.mxu0 %v1591
        %1699 = vmatprep.subr.bf16.mxu0 %v1595
        %1700 = vmatpush1.bf16.msra.mxu0 %v1594
        %1701 = vmatprep.subr.bf16.mxu0 %v1598
        %1702 = vmatpush1.bf16.msra.mxu0 %v1597
        %1703 = vmatprep.subr.bf16.mxu0 %v1601
        %1704 = vmatpush1.bf16.msra.mxu0 %v1600
        %1705 = vmatprep.subr.bf16.mxu0 %v1604
        %1706 = vmatpush1.bf16.msra.mxu0 %v1603
        %1707 = vmatprep.subr.bf16.mxu0 %v1607
        %1708 = vmatpush1.bf16.msra.mxu0 %v1606
        %1709 = vmatprep.subr.bf16.mxu0 %v1610
        %1710 = vmatpush1.bf16.msra.mxu0 %v1609
        %1711 = vmatprep.subr.bf16.mxu0 %v1613
        %1712 = vmatpush1.bf16.msra.mxu0 %v1612
        %1713 = vmatprep.subr.bf16.mxu0 %v1616
        %1714 = vmatpush1.bf16.msra.mxu0 %v1615
        %1715 = vmatprep.subr.bf16.mxu0 %v1619
        %1716 = vmatpush1.bf16.msra.mxu0 %v1618
        %1717 = vmatprep.subr.bf16.mxu0 %v1622
        %1718 = vmatpush1.bf16.msra.mxu0 %v1621
        %1719 = vmatprep.subr.bf16.mxu0 %v1625
        %1720 = vmatpush1.bf16.msra.mxu0 %v1624
        %1721 = vmatprep.mubr.bf16.mxu0 %v1674
        %1722 = vmatmul.mubr.bf16.gmra.mrb[0].mxu0 %v1673
        %v1723 = vpop.f32.mrb[0].mxu0
        %v1724 = vadd.f32 %v1636, %v1723
        %v1725 = vpop.f32.mrb[0].mxu0
        %v1726 = vadd.f32 %v1636, %v1725
        %v1727 = vpop.f32.mrb[0].mxu0
        %v1728 = vadd.f32 %v1641, %v1727
        %v1729 = vpop.f32.mrb[0].mxu0
        %v1730 = vadd.f32 %v1641, %v1729
        %1731 = vmatprep.mubr.bf16.mxu0 %v1677
        %1732 = vmatmul.mubr.bf16.gmra.mrb[0].mxu0 %v1676
        %v1733 = vpop.f32.mrb[0].mxu0
        %v1734 = vadd.f32 %v1646, %v1733
        %v1735 = vpop.f32.mrb[0].mxu0
        %v1736 = vadd.f32 %v1646, %v1735
        %v1737 = vpop.f32.mrb[0].mxu0
        %v1738 = vadd.f32 %v1651, %v1737
        %v1739 = vpop.f32.mrb[0].mxu0
        %v1740 = vadd.f32 %v1651, %v1739
        %1741 = vdwg.mxu0
        %1742 = vmatprep.subr.bf16.mxu0 %v1628
        %1743 = vmatpush1.bf16.msra.mxu0 %v1627
        %1744 = vmatprep.subr.bf16.mxu0 %v1631
        %1745 = vmatpush1.bf16.msra.mxu0 %v1630
        %1746 = vmatprep.subr.bf16.mxu0 0
        %1747 = vmatpush1.bf16.msra.mxu0 0
        %1748 = vmatprep.subr.bf16.mxu0 0
        %1749 = vmatpush1.bf16.msra.mxu0 0
        %1750 = vmatprep.subr.bf16.mxu0 0
        %1751 = vmatpush1.bf16.msra.mxu0 0
        %1752 = vmatprep.subr.bf16.mxu0 0
        %1753 = vmatpush1.bf16.msra.mxu0 0
        %1754 = vmatprep.subr.bf16.mxu0 0
        %1755 = vmatpush1.bf16.msra.mxu0 0
        %1756 = vmatprep.subr.bf16.mxu0 0
        %1757 = vmatpush1.bf16.msra.mxu0 0
        %1758 = vmatprep.subr.bf16.mxu0 0
        %1759 = vmatpush1.bf16.msra.mxu0 0
        %1760 = vmatprep.subr.bf16.mxu0 0
        %1761 = vmatpush1.bf16.msra.mxu0 0
        %1762 = vmatprep.subr.bf16.mxu0 0
        %1763 = vmatpush1.bf16.msra.mxu0 0
        %1764 = vmatprep.subr.bf16.mxu0 0
        %1765 = vmatpush1.bf16.msra.mxu0 0
        %1766 = vmatprep.subr.bf16.mxu0 0
        %1767 = vmatpush1.bf16.msra.mxu0 0
        %1768 = vmatprep.subr.bf16.mxu0 0
        %1769 = vmatpush1.bf16.msra.mxu0 0
        %1770 = vmatprep.subr.bf16.mxu0 0
        %1771 = vmatpush1.bf16.msra.mxu0 0
        %1772 = vmatprep.subr.bf16.mxu0 0
        %1773 = vmatpush1.bf16.msra.mxu0 0
        %1774 = vmatprep.mubr.bf16.mxu0 0
        %1775 = vmatmul.mubr.bf16.gmra.mrb[0].mxu0 %v1684
        %v1776 = vpop.f32.mrb[0].mxu0
        %v1777 = vadd.f32 %v1724, %v1776
        %v1778 = vpop.f32.mrb[0].mxu0
        %v1779 = vadd.f32 %v1726, %v1778
        %v1780 = vpop.f32.mrb[0].mxu0
        %v1781 = vadd.f32 %v1728, %v1780
        %v1782 = vpop.f32.mrb[0].mxu0
        %v1783 = vadd.f32 %v1730, %v1782
        %1784 = vmatprep.mubr.bf16.mxu0 0
        %1785 = vmatmul.mubr.bf16.gmra.mrb[0].mxu0 %v1687
        %v1786 = vpop.f32.mrb[0].mxu0
        %v1787 = vadd.f32 %v1734, %v1786
        %v1788 = vpop.f32.mrb[0].mxu0
        %v1789 = vadd.f32 %v1736, %v1788
        %v1790 = vpop.f32.mrb[0].mxu0
        %v1791 = vadd.f32 %v1738, %v1790
        %v1792 = vpop.f32.mrb[0].mxu0
        %v1793 = vadd.f32 %v1740, %v1792
        %1794 = vdwg.mxu0
        %1795 = vmatprep.subr.bf16.mxu0 0
        %1796 = vmatpush1.bf16.msra.mxu0 %v1581
        %1797 = vmatprep.subr.bf16.mxu0 0
        %1798 = vmatpush1.bf16.msra.mxu0 %v1584
        %1799 = vmatprep.subr.bf16.mxu0 0
        %1800 = vmatpush1.bf16.msra.mxu0 %v1587
        %1801 = vmatprep.subr.bf16.mxu0 0
        %1802 = vmatpush1.bf16.msra.mxu0 %v1590
        %1803 = vmatprep.subr.bf16.mxu0 0
        %1804 = vmatpush1.bf16.msra.mxu0 %v1593
        %1805 = vmatprep.subr.bf16.mxu0 0
        %1806 = vmatpush1.bf16.msra.mxu0 %v1596
        %1807 = vmatprep.subr.bf16.mxu0 0
        %1808 = vmatpush1.bf16.msra.mxu0 %v1599
        %1809 = vmatprep.subr.bf16.mxu0 0
        %1810 = vmatpush1.bf16.msra.mxu0 %v1602
        %1811 = vmatprep.subr.bf16.mxu0 0
        %1812 = vmatpush1.bf16.msra.mxu0 %v1605
        %1813 = vmatprep.subr.bf16.mxu0 0
        %1814 = vmatpush1.bf16.msra.mxu0 %v1608
        %1815 = vmatprep.subr.bf16.mxu0 0
        %1816 = vmatpush1.bf16.msra.mxu0 %v1611
        %1817 = vmatprep.subr.bf16.mxu0 0
        %1818 = vmatpush1.bf16.msra.mxu0 %v1614
        %1819 = vmatprep.subr.bf16.mxu0 0
        %1820 = vmatpush1.bf16.msra.mxu0 %v1617
        %1821 = vmatprep.subr.bf16.mxu0 0
        %1822 = vmatpush1.bf16.msra.mxu0 %v1620
        %1823 = vmatprep.subr.bf16.mxu0 0
        %1824 = vmatpush1.bf16.msra.mxu0 %v1623
        %1825 = vmatprep.subr.bf16.mxu0 0
        %1826 = vmatpush1.bf16.msra.mxu0 %v1626
        %1827 = vmatprep.mubr.bf16.mxu0 %v1674
        %1828 = vmatmul.mubr.bf16.gmra.mrb[0].mxu0 %v1673
        %v1829 = vpop.f32.mrb[0].mxu0
        %v1830 = vadd.f32 %v1636, %v1829
        %v1831 = vpop.f32.mrb[0].mxu0
        %v1832 = vpop.f32.mrb[0].mxu0
        %v1833 = vadd.f32 %v1641, %v1832
        %v1834 = vpop.f32.mrb[0].mxu0
        %1835 = vmatprep.mubr.bf16.mxu0 %v1677
        %1836 = vmatmul.mubr.bf16.gmra.mrb[0].mxu0 %v1676
        %v1837 = vpop.f32.mrb[0].mxu0
        %v1838 = vadd.f32 %v1646, %v1837
        %v1839 = vpop.f32.mrb[0].mxu0
        %v1840 = vpop.f32.mrb[0].mxu0
        %v1841 = vadd.f32 %v1651, %v1840
        %v1842 = vpop.f32.mrb[0].mxu0
        %1843 = vdwg.mxu0
        %1844 = vmatprep.subr.bf16.mxu0 0
        %1845 = vmatpush1.bf16.msra.mxu0 %v1629
        %1846 = vmatprep.subr.bf16.mxu0 0
        %1847 = vmatpush1.bf16.msra.mxu0 %v1632
        %1848 = vmatprep.subr.bf16.mxu0 0
        %1849 = vmatpush1.bf16.msra.mxu0 0
        %1850 = vmatprep.subr.bf16.mxu0 0
        %1851 = vmatpush1.bf16.msra.mxu0 0
        %1852 = vmatprep.subr.bf16.mxu0 0
        %1853 = vmatpush1.bf16.msra.mxu0 0
        %1854 = vmatprep.subr.bf16.mxu0 0
        %1855 = vmatpush1.bf16.msra.mxu0 0
        %1856 = vmatprep.subr.bf16.mxu0 0
        %1857 = vmatpush1.bf16.msra.mxu0 0
        %1858 = vmatprep.subr.bf16.mxu0 0
        %1859 = vmatpush1.bf16.msra.mxu0 0
        %1860 = vmatprep.subr.bf16.mxu0 0
        %1861 = vmatpush1.bf16.msra.mxu0 0
        %1862 = vmatprep.subr.bf16.mxu0 0
        %1863 = vmatpush1.bf16.msra.mxu0 0
        %1864 = vmatprep.subr.bf16.mxu0 0
        %1865 = vmatpush1.bf16.msra.mxu0 0
        %1866 = vmatprep.subr.bf16.mxu0 0
        %1867 = vmatpush1.bf16.msra.mxu0 0
        %1868 = vmatprep.subr.bf16.mxu0 0
        %1869 = vmatpush1.bf16.msra.mxu0 0
        %1870 = vmatprep.subr.bf16.mxu0 0
        %1871 = vmatpush1.bf16.msra.mxu0 0
        %1872 = vmatprep.subr.bf16.mxu0 0
        %1873 = vmatpush1.bf16.msra.mxu0 0
        %1874 = vmatprep.subr.bf16.mxu0 0
        %1875 = vmatpush1.bf16.msra.mxu0 0
        %1876 = vmatprep.mubr.bf16.mxu0 0
        %1877 = vmatmul.mubr.bf16.gmra.mrb[0].mxu0 %v1684
        %v1878 = vpop.f32.mrb[0].mxu0
        %v1879 = vadd.f32 %v1830, %v1878
        %v1880 = vpop.f32.mrb[0].mxu0
        %v1881 = vpop.f32.mrb[0].mxu0
        %v1882 = vadd.f32 %v1833, %v1881
        %v1883 = vpop.f32.mrb[0].mxu0
        %1884 = vmatprep.mubr.bf16.mxu0 0
        %1885 = vmatmul.mubr.bf16.gmra.mrb[0].mxu0 %v1687
        %v1886 = vpop.f32.mrb[0].mxu0
        %v1887 = vadd.f32 %v1838, %v1886
        %v1888 = vpop.f32.mrb[0].mxu0
        %v1889 = vpop.f32.mrb[0].mxu0
        %v1890 = vadd.f32 %v1841, %v1889
        %v1891 = vpop.f32.mrb[0].mxu0
        %1892 = vdwg.mxu0
        %v1893 = vmax.f32 %v1777, 0.0
        %v1894 = vmax.f32 %v1779, 0.0
        %v1895 = vmax.f32 %v1879, 0.0
        %v1896 = vmax.f32 %v1781, 0.0
        %v1897 = vmax.f32 %v1783, 0.0
        %v1898 = vmax.f32 %v1882, 0.0
        %v1899 = vmax.f32 %v1787, 0.0
        %v1900 = vmax.f32 %v1789, 0.0
        %v1901 = vmax.f32 %v1887, 0.0
        %v1902 = vmax.f32 %v1791, 0.0
        %v1903 = vmax.f32 %v1793, 0.0
        %v1904 = vmax.f32 %v1890, 0.0
        %v1905 = vld [vmem:[%s1] sm:$0x7]
        %v1907 = vlaneseq
        %v1908 = vshrl.u32 %v1907, 7
        %v1909 = vsub.s32 0, %v1908
        %v1910 = vrot.slane %v1905, %v1909
        %v1911 = vlaneseq
        %v1912 = vshrl.u32 %v1911, 7
        %v1913 = vsub.s32 1, %v1912
        %v1914 = vrot.slane %v1905, %v1913
        %v1915 = vlaneseq
        %v1916 = vshrl.u32 %v1915, 7
        %v1917 = vsub.s32 2, %v1916
        %v1918 = vrot.slane %v1905, %v1917
        %v1922 = vmul.f32 %v1893, %v1910
        %v1923 = vmul.f32 %v1894, %v1914
        %v1924 = vmul.f32 %v1895, %v1918
        %v1925 = vmul.f32 %v1896, %v1910
        %v1926 = vmul.f32 %v1897, %v1914
        %v1927 = vmul.f32 %v1898, %v1918
        %v1928 = vmul.f32 %v1899, %v1910
        %v1929 = vmul.f32 %v1900, %v1914
        %v1930 = vmul.f32 %v1901, %v1918
        %v1931 = vmul.f32 %v1902, %v1910
        %v1932 = vmul.f32 %v1903, %v1914
        %v1933 = vmul.f32 %v1904, %v1918
        %1934 = vrot.lane.b32.xlu0 %v1922, 19
        %v1935 = vpop.permute.xlu0 %1934
        %1936 = vrot.lane.b32.xlu0 %v1925, 19
        %v1937 = vpop.permute.xlu0 %1936
        %1938 = vrot.lane.b32.xlu0 %v1928, 19
        %v1939 = vpop.permute.xlu0 %1938
        %1940 = vrot.lane.b32.xlu0 %v1931, 19
        %v1941 = vpop.permute.xlu0 %1940
        %1942 = vrot.lane.b32.xlu0 %v1923, 19
        %v1943 = vpop.permute.xlu0 %1942
        %1944 = vrot.lane.b32.xlu0 %v1926, 19
        %v1945 = vpop.permute.xlu0 %1944
        %1946 = vrot.lane.b32.xlu0 %v1929, 19
        %v1947 = vpop.permute.xlu0 %1946
        %1948 = vrot.lane.b32.xlu0 %v1932, 19
        %v1949 = vpop.permute.xlu0 %1948
        %1950 = vrot.lane.b32.xlu0 %v1924, 19
        %v1951 = vpop.permute.xlu0 %1950
        %1952 = vrot.lane.b32.xlu0 %v1927, 19
        %v1953 = vpop.permute.xlu0 %1952
        %1954 = vrot.lane.b32.xlu0 %v1930, 19
        %v1955 = vpop.permute.xlu0 %1954
        %1956 = vrot.lane.b32.xlu0 %v1933, 19
        %v1957 = vpop.permute.xlu0 %1956
        %v1958 = vsel %vm399, %v1943, %v1951
        %v1959 = vsel %vm399, %v1945, %v1953
        %v1960 = vsel %vm399, %v1947, %v1955
        %v1961 = vsel %vm399, %v1949, %v1957
        %v1962 = vsel %vm399, %v1935, %v1943
        %v1963 = vsel %vm399, %v1937, %v1945
        %v1964 = vsel %vm399, %v1939, %v1947
        %v1965 = vsel %vm399, %v1941, %v1949
        %v1966 = vsel %vm399, %v1951, %v1935
        %v1967 = vsel %vm399, %v1953, %v1937
        %v1968 = vsel %vm399, %v1955, %v1939
        %v1969 = vsel %vm399, %v1957, %v1941
        %v1970 = vpack.c.bf16 %v1967, %v1966
        %v1971 = vpack.c.bf16 %v1963, %v1962
        %v1972 = vpack.c.bf16 %v1959, %v1958
        %v1973 = vpack.c.bf16 %v1969, %v1968
        %v1974 = vpack.c.bf16 %v1965, %v1964
        %v1975 = vpack.c.bf16 %v1961, %v1960
        %1976 = vst [vmem:[#allocation3] sm:$0xff] %v1970
        %1977 = vst [vmem:[#allocation3 + $0x8] sm:$0xff] %v1971
        %1978 = vst [vmem:[#allocation3 + $0x10] sm:$0xff] %v1972
        %1979 = vst [vmem:[#allocation3 + $0x18] sm:$0xff] %v1973
        %1980 = vst [vmem:[#allocation3 + $0x20] sm:$0xff] %v1974
        %1981 = vst [vmem:[#allocation3 + $0x28] sm:$0xff] %v1975
        %1982 = vrot.lane.b32.xlu0 %v1922, 18
        %v1983 = vpop.permute.xlu0 %1982
        %1984 = vrot.lane.b32.xlu0 %v1925, 18
        %v1985 = vpop.permute.xlu0 %1984
        %1986 = vrot.lane.b32.xlu0 %v1928, 18
        %v1987 = vpop.permute.xlu0 %1986
        %1988 = vrot.lane.b32.xlu0 %v1931, 18
        %v1989 = vpop.permute.xlu0 %1988
        %1990 = vrot.lane.b32.xlu0 %v1923, 18
        %v1991 = vpop.permute.xlu0 %1990
        %1992 = vrot.lane.b32.xlu0 %v1926, 18
        %v1993 = vpop.permute.xlu0 %1992
        %1994 = vrot.lane.b32.xlu0 %v1929, 18
        %v1995 = vpop.permute.xlu0 %1994
        %1996 = vrot.lane.b32.xlu0 %v1932, 18
        %v1997 = vpop.permute.xlu0 %1996
        %1998 = vrot.lane.b32.xlu0 %v1924, 18
        %v1999 = vpop.permute.xlu0 %1998
        %2000 = vrot.lane.b32.xlu0 %v1927, 18
        %v2001 = vpop.permute.xlu0 %2000
        %2002 = vrot.lane.b32.xlu0 %v1930, 18
        %v2003 = vpop.permute.xlu0 %2002
        %2004 = vrot.lane.b32.xlu0 %v1933, 18
        %v2005 = vpop.permute.xlu0 %2004
        %v2006 = vsel %vm448, %v1991, %v1999
        %v2007 = vsel %vm448, %v1993, %v2001
        %v2008 = vsel %vm448, %v1995, %v2003
        %v2009 = vsel %vm448, %v1997, %v2005
        %v2010 = vsel %vm448, %v1983, %v1991
        %v2011 = vsel %vm448, %v1985, %v1993
        %v2012 = vsel %vm448, %v1987, %v1995
        %v2013 = vsel %vm448, %v1989, %v1997
        %v2014 = vsel %vm448, %v1999, %v1983
        %v2015 = vsel %vm448, %v2001, %v1985
        %v2016 = vsel %vm448, %v2003, %v1987
        %v2017 = vsel %vm448, %v2005, %v1989
        %v2018 = vpack.c.bf16 %v2015, %v2014
        %v2019 = vpack.c.bf16 %v2011, %v2010
        %v2020 = vpack.c.bf16 %v2007, %v2006
        %v2021 = vpack.c.bf16 %v2017, %v2016
        %v2022 = vpack.c.bf16 %v2013, %v2012
        %v2023 = vpack.c.bf16 %v2009, %v2008
        %2024 = vst [vmem:[#allocation3 + $0x30] sm:$0xff] %v2018
        %2025 = vst [vmem:[#allocation3 + $0x38] sm:$0xff] %v2019
        %2026 = vst [vmem:[#allocation3 + $0x40] sm:$0xff] %v2020
        %2027 = vst [vmem:[#allocation3 + $0x48] sm:$0xff] %v2021
        %2028 = vst [vmem:[#allocation3 + $0x50] sm:$0xff] %v2022
        %2029 = vst [vmem:[#allocation3 + $0x58] sm:$0xff] %v2023
        %2030 = vrot.lane.b32.xlu0 %v1922, 17
        %v2031 = vpop.permute.xlu0 %2030
        %2032 = vrot.lane.b32.xlu0 %v1925, 17
        %v2033 = vpop.permute.xlu0 %2032
        %2034 = vrot.lane.b32.xlu0 %v1928, 17
        %v2035 = vpop.permute.xlu0 %2034
        %2036 = vrot.lane.b32.xlu0 %v1931, 17
        %v2037 = vpop.permute.xlu0 %2036
        %2038 = vrot.lane.b32.xlu0 %v1923, 17
        %v2039 = vpop.permute.xlu0 %2038
        %2040 = vrot.lane.b32.xlu0 %v1926, 17
        %v2041 = vpop.permute.xlu0 %2040
        %2042 = vrot.lane.b32.xlu0 %v1929, 17
        %v2043 = vpop.permute.xlu0 %2042
        %2044 = vrot.lane.b32.xlu0 %v1932, 17
        %v2045 = vpop.permute.xlu0 %2044
        %2046 = vrot.lane.b32.xlu0 %v1924, 17
        %v2047 = vpop.permute.xlu0 %2046
        %2048 = vrot.lane.b32.xlu0 %v1927, 17
        %v2049 = vpop.permute.xlu0 %2048
        %2050 = vrot.lane.b32.xlu0 %v1930, 17
        %v2051 = vpop.permute.xlu0 %2050
        %2052 = vrot.lane.b32.xlu0 %v1933, 17
        %v2053 = vpop.permute.xlu0 %2052
        %v2054 = vsel %vm497, %v2039, %v2047
        %v2055 = vsel %vm497, %v2041, %v2049
        %v2056 = vsel %vm497, %v2043, %v2051
        %v2057 = vsel %vm497, %v2045, %v2053
        %v2058 = vsel %vm497, %v2031, %v2039
        %v2059 = vsel %vm497, %v2033, %v2041
        %v2060 = vsel %vm497, %v2035, %v2043
        %v2061 = vsel %vm497, %v2037, %v2045
        %v2062 = vsel %vm497, %v2047, %v2031
        %v2063 = vsel %vm497, %v2049, %v2033
        %v2064 = vsel %vm497, %v2051, %v2035
        %v2065 = vsel %vm497, %v2053, %v2037
        %v2066 = vpack.c.bf16 %v2063, %v2062
        %v2067 = vpack.c.bf16 %v2059, %v2058
        %v2068 = vpack.c.bf16 %v2055, %v2054
        %v2069 = vpack.c.bf16 %v2065, %v2064
        %v2070 = vpack.c.bf16 %v2061, %v2060
        %v2071 = vpack.c.bf16 %v2057, %v2056
        %2072 = vst [vmem:[#allocation3 + $0x60] sm:$0xff] %v2066
        %2073 = vst [vmem:[#allocation3 + $0x68] sm:$0xff] %v2067
        %2074 = vst [vmem:[#allocation3 + $0x70] sm:$0xff] %v2068
        %2075 = vst [vmem:[#allocation3 + $0x78] sm:$0xff] %v2069
        %2076 = vst [vmem:[#allocation3 + $0x80] sm:$0xff] %v2070
        %2077 = vst [vmem:[#allocation3 + $0x88] sm:$0xff] %v2071
        %2078 = vrot.lane.b32.xlu0 %v1922, 1
        %v2079 = vpop.permute.xlu0 %2078
        %2080 = vrot.lane.b32.xlu0 %v1925, 1
        %v2081 = vpop.permute.xlu0 %2080
        %2082 = vrot.lane.b32.xlu0 %v1928, 1
        %v2083 = vpop.permute.xlu0 %2082
        %2084 = vrot.lane.b32.xlu0 %v1931, 1
        %v2085 = vpop.permute.xlu0 %2084
        %2086 = vrot.lane.b32.xlu0 %v1923, 1
        %v2087 = vpop.permute.xlu0 %2086
        %2088 = vrot.lane.b32.xlu0 %v1926, 1
        %v2089 = vpop.permute.xlu0 %2088
        %2090 = vrot.lane.b32.xlu0 %v1929, 1
        %v2091 = vpop.permute.xlu0 %2090
        %2092 = vrot.lane.b32.xlu0 %v1932, 1
        %v2093 = vpop.permute.xlu0 %2092
        %2094 = vrot.lane.b32.xlu0 %v1924, 1
        %v2095 = vpop.permute.xlu0 %2094
        %2096 = vrot.lane.b32.xlu0 %v1927, 1
        %v2097 = vpop.permute.xlu0 %2096
        %2098 = vrot.lane.b32.xlu0 %v1930, 1
        %v2099 = vpop.permute.xlu0 %2098
        %2100 = vrot.lane.b32.xlu0 %v1933, 1
        %v2101 = vpop.permute.xlu0 %2100
        %v2102 = vsel %vm546, %v2087, %v2095
        %v2103 = vsel %vm546, %v2089, %v2097
        %v2104 = vsel %vm546, %v2091, %v2099
        %v2105 = vsel %vm546, %v2093, %v2101
        %v2106 = vsel %vm546, %v2079, %v2087
        %v2107 = vsel %vm546, %v2081, %v2089
        %v2108 = vsel %vm546, %v2083, %v2091
        %v2109 = vsel %vm546, %v2085, %v2093
        %v2110 = vsel %vm546, %v2095, %v2079
        %v2111 = vsel %vm546, %v2097, %v2081
        %v2112 = vsel %vm546, %v2099, %v2083
        %v2113 = vsel %vm546, %v2101, %v2085
        %v2114 = vpack.c.bf16 %v2111, %v2110
        %v2115 = vpack.c.bf16 %v2107, %v2106
        %v2116 = vpack.c.bf16 %v2103, %v2102
        %v2117 = vpack.c.bf16 %v2113, %v2112
        %v2118 = vpack.c.bf16 %v2109, %v2108
        %v2119 = vpack.c.bf16 %v2105, %v2104
        %2120 = vst [vmem:[#allocation3 + $0x90] sm:$0xff] %v2114
        %2121 = vst [vmem:[#allocation3 + $0x98] sm:$0xff] %v2115
        %2122 = vst [vmem:[#allocation3 + $0xa0] sm:$0xff] %v2116
        %2123 = vst [vmem:[#allocation3 + $0xa8] sm:$0xff] %v2117
        %2124 = vst [vmem:[#allocation3 + $0xb0] sm:$0xff] %v2118
        %2125 = vst [vmem:[#allocation3 + $0xb8] sm:$0xff] %v2119
        %v2126 = vpack.c.bf16 %v1925, %v1922
        %v2127 = vpack.c.bf16 %v1926, %v1923
        %v2128 = vpack.c.bf16 %v1927, %v1924
        %v2129 = vpack.c.bf16 %v1931, %v1928
        %v2130 = vpack.c.bf16 %v1932, %v1929
        %v2131 = vpack.c.bf16 %v1933, %v1930
        %2132 = vst [vmem:[#allocation3 + $0xc0] sm:$0xff] %v2126
        %2133 = vst [vmem:[#allocation3 + $0xc8] sm:$0xff] %v2127
        %2134 = vst [vmem:[#allocation3 + $0xd0] sm:$0xff] %v2128
        %2135 = vst [vmem:[#allocation3 + $0xd8] sm:$0xff] %v2129
        %2136 = vst [vmem:[#allocation3 + $0xe0] sm:$0xff] %v2130
        %2137 = vst [vmem:[#allocation3 + $0xe8] sm:$0xff] %v2131
        %2138 = vrot.lane.b32.xlu0 %v1922, 127
        %v2139 = vpop.permute.xlu0 %2138
        %2140 = vrot.lane.b32.xlu0 %v1925, 127
        %v2141 = vpop.permute.xlu0 %2140
        %2142 = vrot.lane.b32.xlu0 %v1928, 127
        %v2143 = vpop.permute.xlu0 %2142
        %2144 = vrot.lane.b32.xlu0 %v1931, 127
        %v2145 = vpop.permute.xlu0 %2144
        %2146 = vrot.lane.b32.xlu0 %v1923, 127
        %v2147 = vpop.permute.xlu0 %2146
        %2148 = vrot.lane.b32.xlu0 %v1926, 127
        %v2149 = vpop.permute.xlu0 %2148
        %2150 = vrot.lane.b32.xlu0 %v1929, 127
        %v2151 = vpop.permute.xlu0 %2150
        %2152 = vrot.lane.b32.xlu0 %v1932, 127
        %v2153 = vpop.permute.xlu0 %2152
        %2154 = vrot.lane.b32.xlu0 %v1924, 127
        %v2155 = vpop.permute.xlu0 %2154
        %2156 = vrot.lane.b32.xlu0 %v1927, 127
        %v2157 = vpop.permute.xlu0 %2156
        %2158 = vrot.lane.b32.xlu0 %v1930, 127
        %v2159 = vpop.permute.xlu0 %2158
        %2160 = vrot.lane.b32.xlu0 %v1933, 127
        %v2161 = vpop.permute.xlu0 %2160
        %v2162 = vsel %vm607, %v2147, %v2155
        %v2163 = vsel %vm607, %v2149, %v2157
        %v2164 = vsel %vm607, %v2151, %v2159
        %v2165 = vsel %vm607, %v2153, %v2161
        %v2166 = vsel %vm607, %v2139, %v2147
        %v2167 = vsel %vm607, %v2141, %v2149
        %v2168 = vsel %vm607, %v2143, %v2151
        %v2169 = vsel %vm607, %v2145, %v2153
        %v2170 = vsel %vm607, %v2155, %v2139
        %v2171 = vsel %vm607, %v2157, %v2141
        %v2172 = vsel %vm607, %v2159, %v2143
        %v2173 = vsel %vm607, %v2161, %v2145
        %v2174 = vpack.c.bf16 %v2167, %v2166
        %v2175 = vpack.c.bf16 %v2163, %v2162
        %v2176 = vpack.c.bf16 %v2171, %v2170
        %v2177 = vpack.c.bf16 %v2169, %v2168
        %v2178 = vpack.c.bf16 %v2165, %v2164
        %v2179 = vpack.c.bf16 %v2173, %v2172
        %2180 = vst [vmem:[#allocation3 + $0xf0] sm:$0xff] %v2174
        %2181 = vst [vmem:[#allocation3 + $0xf8] sm:$0xff] %v2175
        %2182 = vst [vmem:[#allocation3 + $0x100] sm:$0xff] %v2176
        %2183 = vst [vmem:[#allocation3 + $0x108] sm:$0xff] %v2177
        %2184 = vst [vmem:[#allocation3 + $0x110] sm:$0xff] %v2178
        %2185 = vst [vmem:[#allocation3 + $0x118] sm:$0xff] %v2179
        %2186 = vrot.lane.b32.xlu0 %v1922, 111
        %v2187 = vpop.permute.xlu0 %2186
        %2188 = vrot.lane.b32.xlu0 %v1925, 111
        %v2189 = vpop.permute.xlu0 %2188
        %2190 = vrot.lane.b32.xlu0 %v1928, 111
        %v2191 = vpop.permute.xlu0 %2190
        %2192 = vrot.lane.b32.xlu0 %v1931, 111
        %v2193 = vpop.permute.xlu0 %2192
        %2194 = vrot.lane.b32.xlu0 %v1923, 111
        %v2195 = vpop.permute.xlu0 %2194
        %2196 = vrot.lane.b32.xlu0 %v1926, 111
        %v2197 = vpop.permute.xlu0 %2196
        %2198 = vrot.lane.b32.xlu0 %v1929, 111
        %v2199 = vpop.permute.xlu0 %2198
        %2200 = vrot.lane.b32.xlu0 %v1932, 111
        %v2201 = vpop.permute.xlu0 %2200
        %2202 = vrot.lane.b32.xlu0 %v1924, 111
        %v2203 = vpop.permute.xlu0 %2202
        %2204 = vrot.lane.b32.xlu0 %v1927, 111
        %v2205 = vpop.permute.xlu0 %2204
        %2206 = vrot.lane.b32.xlu0 %v1930, 111
        %v2207 = vpop.permute.xlu0 %2206
        %2208 = vrot.lane.b32.xlu0 %v1933, 111
        %v2209 = vpop.permute.xlu0 %2208
        %v2210 = vsel %vm656, %v2195, %v2203
        %v2211 = vsel %vm656, %v2197, %v2205
        %v2212 = vsel %vm656, %v2199, %v2207
        %v2213 = vsel %vm656, %v2201, %v2209
        %v2214 = vsel %vm656, %v2187, %v2195
        %v2215 = vsel %vm656, %v2189, %v2197
        %v2216 = vsel %vm656, %v2191, %v2199
        %v2217 = vsel %vm656, %v2193, %v2201
        %v2218 = vsel %vm656, %v2203, %v2187
        %v2219 = vsel %vm656, %v2205, %v2189
        %v2220 = vsel %vm656, %v2207, %v2191
        %v2221 = vsel %vm656, %v2209, %v2193
        %v2222 = vpack.c.bf16 %v2215, %v2214
        %v2223 = vpack.c.bf16 %v2211, %v2210
        %v2224 = vpack.c.bf16 %v2219, %v2218
        %v2225 = vpack.c.bf16 %v2217, %v2216
        %v2226 = vpack.c.bf16 %v2213, %v2212
        %v2227 = vpack.c.bf16 %v2221, %v2220
        %2228 = vst [vmem:[#allocation3 + $0x120] sm:$0xff] %v2222
        %2229 = vst [vmem:[#allocation3 + $0x128] sm:$0xff] %v2223
        %2230 = vst [vmem:[#allocation3 + $0x130] sm:$0xff] %v2224
        %2231 = vst [vmem:[#allocation3 + $0x138] sm:$0xff] %v2225
        %2232 = vst [vmem:[#allocation3 + $0x140] sm:$0xff] %v2226
        %2233 = vst [vmem:[#allocation3 + $0x148] sm:$0xff] %v2227
        %2234 = vrot.lane.b32.xlu0 %v1922, 110
        %v2235 = vpop.permute.xlu0 %2234
        %2236 = vrot.lane.b32.xlu0 %v1925, 110
        %v2237 = vpop.permute.xlu0 %2236
        %2238 = vrot.lane.b32.xlu0 %v1928, 110
        %v2239 = vpop.permute.xlu0 %2238
        %2240 = vrot.lane.b32.xlu0 %v1931, 110
        %v2241 = vpop.permute.xlu0 %2240
        %2242 = vrot.lane.b32.xlu0 %v1923, 110
        %v2243 = vpop.permute.xlu0 %2242
        %2244 = vrot.lane.b32.xlu0 %v1926, 110
        %v2245 = vpop.permute.xlu0 %2244
        %2246 = vrot.lane.b32.xlu0 %v1929, 110
        %v2247 = vpop.permute.xlu0 %2246
        %2248 = vrot.lane.b32.xlu0 %v1932, 110
        %v2249 = vpop.permute.xlu0 %2248
        %2250 = vrot.lane.b32.xlu0 %v1924, 110
        %v2251 = vpop.permute.xlu0 %2250
        %2252 = vrot.lane.b32.xlu0 %v1927, 110
        %v2253 = vpop.permute.xlu0 %2252
        %2254 = vrot.lane.b32.xlu0 %v1930, 110
        %v2255 = vpop.permute.xlu0 %2254
        %2256 = vrot.lane.b32.xlu0 %v1933, 110
        %v2257 = vpop.permute.xlu0 %2256
        %v2258 = vsel %vm705, %v2243, %v2251
        %v2259 = vsel %vm705, %v2245, %v2253
        %v2260 = vsel %vm705, %v2247, %v2255
        %v2261 = vsel %vm705, %v2249, %v2257
        %v2262 = vsel %vm705, %v2235, %v2243
        %v2263 = vsel %vm705, %v2237, %v2245
        %v2264 = vsel %vm705, %v2239, %v2247
        %v2265 = vsel %vm705, %v2241, %v2249
        %v2266 = vsel %vm705, %v2251, %v2235
        %v2267 = vsel %vm705, %v2253, %v2237
        %v2268 = vsel %vm705, %v2255, %v2239
        %v2269 = vsel %vm705, %v2257, %v2241
        %v2270 = vpack.c.bf16 %v2263, %v2262
        %v2271 = vpack.c.bf16 %v2259, %v2258
        %v2272 = vpack.c.bf16 %v2267, %v2266
        %v2273 = vpack.c.bf16 %v2265, %v2264
        %v2274 = vpack.c.bf16 %v2261, %v2260
        %v2275 = vpack.c.bf16 %v2269, %v2268
        %2276 = vst [vmem:[#allocation3 + $0x150] sm:$0xff] %v2270
        %2277 = vst [vmem:[#allocation3 + $0x158] sm:$0xff] %v2271
        %2278 = vst [vmem:[#allocation3 + $0x160] sm:$0xff] %v2272
        %2279 = vst [vmem:[#allocation3 + $0x168] sm:$0xff] %v2273
        %2280 = vst [vmem:[#allocation3 + $0x170] sm:$0xff] %v2274
        %2281 = vst [vmem:[#allocation3 + $0x178] sm:$0xff] %v2275
        %2282 = vrot.lane.b32.xlu0 %v1922, 109
        %v2283 = vpop.permute.xlu0 %2282
        %2284 = vrot.lane.b32.xlu0 %v1925, 109
        %v2285 = vpop.permute.xlu0 %2284
        %2286 = vrot.lane.b32.xlu0 %v1928, 109
        %v2287 = vpop.permute.xlu0 %2286
        %2288 = vrot.lane.b32.xlu0 %v1931, 109
        %v2289 = vpop.permute.xlu0 %2288
        %2290 = vrot.lane.b32.xlu0 %v1923, 109
        %v2291 = vpop.permute.xlu0 %2290
        %2292 = vrot.lane.b32.xlu0 %v1926, 109
        %v2293 = vpop.permute.xlu0 %2292
        %2294 = vrot.lane.b32.xlu0 %v1929, 109
        %v2295 = vpop.permute.xlu0 %2294
        %2296 = vrot.lane.b32.xlu0 %v1932, 109
        %v2297 = vpop.permute.xlu0 %2296
        %2298 = vrot.lane.b32.xlu0 %v1924, 109
        %v2299 = vpop.permute.xlu0 %2298
        %2300 = vrot.lane.b32.xlu0 %v1927, 109
        %v2301 = vpop.permute.xlu0 %2300
        %2302 = vrot.lane.b32.xlu0 %v1930, 109
        %v2303 = vpop.permute.xlu0 %2302
        %2304 = vrot.lane.b32.xlu0 %v1933, 109
        %v2305 = vpop.permute.xlu0 %2304
        %v2306 = vsel %vm754, %v2291, %v2299
        %v2307 = vsel %vm754, %v2293, %v2301
        %v2308 = vsel %vm754, %v2295, %v2303
        %v2309 = vsel %vm754, %v2297, %v2305
        %v2310 = vsel %vm754, %v2283, %v2291
        %v2311 = vsel %vm754, %v2285, %v2293
        %v2312 = vsel %vm754, %v2287, %v2295
        %v2313 = vsel %vm754, %v2289, %v2297
        %v2314 = vsel %vm754, %v2299, %v2283
        %v2315 = vsel %vm754, %v2301, %v2285
        %v2316 = vsel %vm754, %v2303, %v2287
        %v2317 = vsel %vm754, %v2305, %v2289
        %v2318 = vpack.c.bf16 %v2311, %v2310
        %v2319 = vpack.c.bf16 %v2307, %v2306
        %v2320 = vpack.c.bf16 %v2315, %v2314
        %v2321 = vpack.c.bf16 %v2313, %v2312
        %v2322 = vpack.c.bf16 %v2309, %v2308
        %v2323 = vpack.c.bf16 %v2317, %v2316
        %2324 = vst [vmem:[#allocation3 + $0x180] sm:$0xff] %v2318
        %2325 = vst [vmem:[#allocation3 + $0x188] sm:$0xff] %v2319
        %2326 = vst [vmem:[#allocation3 + $0x190] sm:$0xff] %v2320
        %2327 = vst [vmem:[#allocation3 + $0x198] sm:$0xff] %v2321
        %2328 = vst [vmem:[#allocation3 + $0x1a0] sm:$0xff] %v2322
        %2329 = vst [vmem:[#allocation3 + $0x1a8] sm:$0xff] %v2323
        %s2330 = sadd.s32 %s1561, 1
        %s2331 = smul.u32 %s2330, 12
        %s2332 = smul.addr %s2331, 4
        %s2333 = scalar_lea.vmem %s4, %s2332
        %v2334 = vld [vmem:[%s2333] sm:$0xff]
        %v2335 = vld [vmem:[%s2333 + $0x8] sm:$0xf]
        %v2336 = vld [vmem:[%s2333 + $0xc] sm:$0xff]
        %v2337 = vld [vmem:[%s2333 + $0x14] sm:$0xf]
        %v2338 = vld [vmem:[%s2333 + $0x18] sm:$0xff]
        %v2339 = vld [vmem:[%s2333 + $0x20] sm:$0xf]
        %v2340 = vld [vmem:[%s2333 + $0x24] sm:$0xff]
        %v2341 = vld [vmem:[%s2333 + $0x2c] sm:$0xf]
        %s2342 = smul.u32 %s2330, 32
        %s2343 = scalar_lea.vmem %s5, %s2342
        %v2344 = vld [vmem:[%s2343] sm:$0xff]
        %v2345 = vld [vmem:[%s2343 + $0x8] sm:$0xff]
        %v2346 = vld [vmem:[%s2343 + $0x10] sm:$0xff]
        %v2347 = vld [vmem:[%s2343 + $0x18] sm:$0xff]
        %v2348 = vld [vmem:[#allocation2] sm:$0xff]
        %v2349 = vld [vmem:[#allocation2 + $0x8] sm:$0xff]
        %v2350 = vld [vmem:[#allocation2 + $0x10] sm:$0xff]
        %v2351 = vld [vmem:[#allocation2 + $0x18] sm:$0xff]
        %v2352 = vld [vmem:[#allocation2 + $0x20] sm:$0xff]
        %v2353 = vld [vmem:[#allocation2 + $0x28] sm:$0xff]
        %v2354 = vld [vmem:[#allocation2 + $0x30] sm:$0xff]
        %v2355 = vld [vmem:[#allocation2 + $0x38] sm:$0xff]
        %v2356 = vld [vmem:[#allocation2 + $0x40] sm:$0xff]
        %v2357 = vld [vmem:[#allocation2 + $0x48] sm:$0xff]
        %v2358 = vld [vmem:[#allocation2 + $0x50] sm:$0xff]
        %v2359 = vld [vmem:[#allocation2 + $0x58] sm:$0xff]
        %v2360 = vld [vmem:[#allocation3] sm:$0xff]
        %v2361 = vld [vmem:[#allocation3 + $0x8] sm:$0xff]
        %v2362 = vld [vmem:[#allocation3 + $0x10] sm:$0xff]
        %v2363 = vld [vmem:[#allocation3 + $0x18] sm:$0xff]
        %v2364 = vld [vmem:[#allocation3 + $0x20] sm:$0xff]
        %v2365 = vld [vmem:[#allocation3 + $0x28] sm:$0xff]
        %v2366 = vld [vmem:[#allocation3 + $0x30] sm:$0xff]
        %v2367 = vld [vmem:[#allocation3 + $0x38] sm:$0xff]
        %v2368 = vld [vmem:[#allocation3 + $0x40] sm:$0xff]
        %v2369 = vld [vmem:[#allocation3 + $0x48] sm:$0xff]
        %v2370 = vld [vmem:[#allocation3 + $0x50] sm:$0xff]
        %v2371 = vld [vmem:[#allocation3 + $0x58] sm:$0xff]
        %v2372 = vld [vmem:[#allocation3 + $0x60] sm:$0xff]
        %v2373 = vld [vmem:[#allocation3 + $0x68] sm:$0xff]
        %v2374 = vld [vmem:[#allocation3 + $0x70] sm:$0xff]
        %v2375 = vld [vmem:[#allocation3 + $0x78] sm:$0xff]
        %v2376 = vld [vmem:[#allocation3 + $0x80] sm:$0xff]
        %v2377 = vld [vmem:[#allocation3 + $0x88] sm:$0xff]
        %v2378 = vld [vmem:[#allocation3 + $0x90] sm:$0xff]
        %v2379 = vld [vmem:[#allocation3 + $0x98] sm:$0xff]
        %v2380 = vld [vmem:[#allocation3 + $0xa0] sm:$0xff]
        %v2381 = vld [vmem:[#allocation3 + $0xa8] sm:$0xff]
        %v2382 = vld [vmem:[#allocation3 + $0xb0] sm:$0xff]
        %v2383 = vld [vmem:[#allocation3 + $0xb8] sm:$0xff]
        %v2384 = vld [vmem:[#allocation3 + $0xc0] sm:$0xff]
        %v2385 = vld [vmem:[#allocation3 + $0xc8] sm:$0xff]
        %v2386 = vld [vmem:[#allocation3 + $0xd0] sm:$0xff]
        %v2387 = vld [vmem:[#allocation3 + $0xd8] sm:$0xff]
        %v2388 = vld [vmem:[#allocation3 + $0xe0] sm:$0xff]
        %v2389 = vld [vmem:[#allocation3 + $0xe8] sm:$0xff]
        %v2390 = vld [vmem:[#allocation3 + $0xf0] sm:$0xff]
        %v2391 = vld [vmem:[#allocation3 + $0xf8] sm:$0xff]
        %v2392 = vld [vmem:[#allocation3 + $0x100] sm:$0xff]
        %v2393 = vld [vmem:[#allocation3 + $0x108] sm:$0xff]
        %v2394 = vld [vmem:[#allocation3 + $0x110] sm:$0xff]
        %v2395 = vld [vmem:[#allocation3 + $0x118] sm:$0xff]
        %v2396 = vld [vmem:[#allocation3 + $0x120] sm:$0xff]
        %v2397 = vld [vmem:[#allocation3 + $0x128] sm:$0xff]
        %v2398 = vld [vmem:[#allocation3 + $0x130] sm:$0xff]
        %v2399 = vld [vmem:[#allocation3 + $0x138] sm:$0xff]
        %v2400 = vld [vmem:[#allocation3 + $0x140] sm:$0xff]
        %v2401 = vld [vmem:[#allocation3 + $0x148] sm:$0xff]
        %v2402 = vld [vmem:[#allocation3 + $0x150] sm:$0xff]
        %v2403 = vld [vmem:[#allocation3 + $0x158] sm:$0xff]
        %v2404 = vld [vmem:[#allocation3 + $0x160] sm:$0xff]
        %v2405 = vld [vmem:[#allocation3 + $0x168] sm:$0xff]
        %v2406 = vld [vmem:[#allocation3 + $0x170] sm:$0xff]
        %v2407 = vld [vmem:[#allocation3 + $0x178] sm:$0xff]
        %v2408 = vld [vmem:[#allocation3 + $0x180] sm:$0xff]
        %v2409 = vld [vmem:[#allocation3 + $0x188] sm:$0xff]
        %v2410 = vld [vmem:[#allocation3 + $0x190] sm:$0xff]
        %v2411 = vld [vmem:[#allocation3 + $0x198] sm:$0xff]
        %v2412 = vld [vmem:[#allocation3 + $0x1a0] sm:$0xff]
        %v2413 = vld [vmem:[#allocation3 + $0x1a8] sm:$0xff]
        %2415 = vset.pattern.permute.xlu0 0
        %2416 = vperm.xlu0 %2415, %v2344
        %v2417 = vpop.permute.xlu0 %2416
        %2420 = vset.pattern.permute.xlu0 0
        %2421 = vperm.xlu0 %2420, %v2345
        %v2422 = vpop.permute.xlu0 %2421
        %2425 = vset.pattern.permute.xlu0 0
        %2426 = vperm.xlu0 %2425, %v2346
        %v2427 = vpop.permute.xlu0 %2426
        %2430 = vset.pattern.permute.xlu0 0
        %2431 = vperm.xlu0 %2430, %v2347
        %v2432 = vpop.permute.xlu0 %2431
        %v2442 = vunpack.c.l.b16 %v2334
        %v2443 = vunpack.c.h.b16 %v2334
        %v2444 = vunpack.c.l.b16 %v2335
        %v2445 = vunpack.c.l.b16 %v2336
        %v2446 = vunpack.c.h.b16 %v2336
        %v2447 = vunpack.c.l.b16 %v2337
        %v2448 = vunpack.c.l.b16 %v2338
        %v2449 = vunpack.c.h.b16 %v2338
        %v2450 = vunpack.c.l.b16 %v2339
        %v2451 = vunpack.c.l.b16 %v2340
        %v2452 = vunpack.c.h.b16 %v2340
        %v2453 = vunpack.c.l.b16 %v2341
        %v2454 = vpack.c.b16 %v2445, %v2442
        %v2455 = vpack.c.b16 %v2446, %v2443
        %v2456 = vpack.c.b16 %v2447, %v2444
        %v2457 = vpack.c.b16 %v2451, %v2448
        %v2458 = vpack.c.b16 %v2452, %v2449
        %v2459 = vpack.c.b16 %v2453, %v2450
        %v2465 = vsel %vm895, %v2456, 0
        %v2468 = vsel %vm895, %v2459, 0
        %2470 = vmatprep.subr.bf16.mxu0 %v2361
        %2471 = vmatpush1.bf16.msra.mxu0 %v2360
        %2472 = vmatprep.subr.bf16.mxu0 %v2364
        %2473 = vmatpush1.bf16.msra.mxu0 %v2363
        %2474 = vmatprep.subr.bf16.mxu0 %v2367
        %2475 = vmatpush1.bf16.msra.mxu0 %v2366
        %2476 = vmatprep.subr.bf16.mxu0 %v2370
        %2477 = vmatpush1.bf16.msra.mxu0 %v2369
        %2478 = vmatprep.subr.bf16.mxu0 %v2373
        %2479 = vmatpush1.bf16.msra.mxu0 %v2372
        %2480 = vmatprep.subr.bf16.mxu0 %v2376
        %2481 = vmatpush1.bf16.msra.mxu0 %v2375
        %2482 = vmatprep.subr.bf16.mxu0 %v2379
        %2483 = vmatpush1.bf16.msra.mxu0 %v2378
        %2484 = vmatprep.subr.bf16.mxu0 %v2382
        %2485 = vmatpush1.bf16.msra.mxu0 %v2381
        %2486 = vmatprep.subr.bf16.mxu0 %v2385
        %2487 = vmatpush1.bf16.msra.mxu0 %v2384
        %2488 = vmatprep.subr.bf16.mxu0 %v2388
        %2489 = vmatpush1.bf16.msra.mxu0 %v2387
        %2490 = vmatprep.subr.bf16.mxu0 %v2391
        %2491 = vmatpush1.bf16.msra.mxu0 %v2390
        %2492 = vmatprep.subr.bf16.mxu0 %v2394
        %2493 = vmatpush1.bf16.msra.mxu0 %v2393
        %2494 = vmatprep.subr.bf16.mxu0 %v2397
        %2495 = vmatpush1.bf16.msra.mxu0 %v2396
        %2496 = vmatprep.subr.bf16.mxu0 %v2400
        %2497 = vmatpush1.bf16.msra.mxu0 %v2399
        %2498 = vmatprep.subr.bf16.mxu0 %v2403
        %2499 = vmatpush1.bf16.msra.mxu0 %v2402
        %2500 = vmatprep.subr.bf16.mxu0 %v2406
        %2501 = vmatpush1.bf16.msra.mxu0 %v2405
        %2502 = vmatprep.mubr.bf16.mxu0 %v2455
        %2503 = vmatmul.mubr.bf16.gmra.mrb[0].mxu0 %v2454
        %v2504 = vpop.f32.mrb[0].mxu0
        %v2505 = vadd.f32 %v2417, %v2504
        %v2506 = vpop.f32.mrb[0].mxu0
        %v2507 = vadd.f32 %v2417, %v2506
        %v2508 = vpop.f32.mrb[0].mxu0
        %v2509 = vadd.f32 %v2422, %v2508
        %v2510 = vpop.f32.mrb[0].mxu0
        %v2511 = vadd.f32 %v2422, %v2510
        %2512 = vmatprep.mubr.bf16.mxu0 %v2458
        %2513 = vmatmul.mubr.bf16.gmra.mrb[0].mxu0 %v2457
        %v2514 = vpop.f32.mrb[0].mxu0
        %v2515 = vadd.f32 %v2427, %v2514
        %v2516 = vpop.f32.mrb[0].mxu0
        %v2517 = vadd.f32 %v2427, %v2516
        %v2518 = vpop.f32.mrb[0].mxu0
        %v2519 = vadd.f32 %v2432, %v2518
        %v2520 = vpop.f32.mrb[0].mxu0
        %v2521 = vadd.f32 %v2432, %v2520
        %2522 = vdwg.mxu0
        %2523 = vmatprep.subr.bf16.mxu0 %v2409
        %2524 = vmatpush1.bf16.msra.mxu0 %v2408
        %2525 = vmatprep.subr.bf16.mxu0 %v2412
        %2526 = vmatpush1.bf16.msra.mxu0 %v2411
        %2527 = vmatprep.subr.bf16.mxu0 0
        %2528 = vmatpush1.bf16.msra.mxu0 0
        %2529 = vmatprep.subr.bf16.mxu0 0
        %2530 = vmatpush1.bf16.msra.mxu0 0
        %2531 = vmatprep.subr.bf16.mxu0 0
        %2532 = vmatpush1.bf16.msra.mxu0 0
        %2533 = vmatprep.subr.bf16.mxu0 0
        %2534 = vmatpush1.bf16.msra.mxu0 0
        %2535 = vmatprep.subr.bf16.mxu0 0
        %2536 = vmatpush1.bf16.msra.mxu0 0
        %2537 = vmatprep.subr.bf16.mxu0 0
        %2538 = vmatpush1.bf16.msra.mxu0 0
        %2539 = vmatprep.subr.bf16.mxu0 0
        %2540 = vmatpush1.bf16.msra.mxu0 0
        %2541 = vmatprep.subr.bf16.mxu0 0
        %2542 = vmatpush1.bf16.msra.mxu0 0
        %2543 = vmatprep.subr.bf16.mxu0 0
        %2544 = vmatpush1.bf16.msra.mxu0 0
        %2545 = vmatprep.subr.bf16.mxu0 0
        %2546 = vmatpush1.bf16.msra.mxu0 0
        %2547 = vmatprep.subr.bf16.mxu0 0
        %2548 = vmatpush1.bf16.msra.mxu0 0
        %2549 = vmatprep.subr.bf16.mxu0 0
        %2550 = vmatpush1.bf16.msra.mxu0 0
        %2551 = vmatprep.subr.bf16.mxu0 0
        %2552 = vmatpush1.bf16.msra.mxu0 0
        %2553 = vmatprep.subr.bf16.mxu0 0
        %2554 = vmatpush1.bf16.msra.mxu0 0
        %2555 = vmatprep.mubr.bf16.mxu0 0
        %2556 = vmatmul.mubr.bf16.gmra.mrb[0].mxu0 %v2465
        %v2557 = vpop.f32.mrb[0].mxu0
        %v2558 = vadd.f32 %v2505, %v2557
        %v2559 = vpop.f32.mrb[0].mxu0
        %v2560 = vadd.f32 %v2507, %v2559
        %v2561 = vpop.f32.mrb[0].mxu0
        %v2562 = vadd.f32 %v2509, %v2561
        %v2563 = vpop.f32.mrb[0].mxu0
        %v2564 = vadd.f32 %v2511, %v2563
        %2565 = vmatprep.mubr.bf16.mxu0 0
        %2566 = vmatmul.mubr.bf16.gmra.mrb[0].mxu0 %v2468
        %v2567 = vpop.f32.mrb[0].mxu0
        %v2568 = vadd.f32 %v2515, %v2567
        %v2569 = vpop.f32.mrb[0].mxu0
        %v2570 = vadd.f32 %v2517, %v2569
        %v2571 = vpop.f32.mrb[0].mxu0
        %v2572 = vadd.f32 %v2519, %v2571
        %v2573 = vpop.f32.mrb[0].mxu0
        %v2574 = vadd.f32 %v2521, %v2573
        %2575 = vdwg.mxu0
        %2576 = vmatprep.subr.bf16.mxu0 0
        %2577 = vmatpush1.bf16.msra.mxu0 %v2362
        %2578 = vmatprep.subr.bf16.mxu0 0
        %2579 = vmatpush1.bf16.msra.mxu0 %v2365
        %2580 = vmatprep.subr.bf16.mxu0 0
        %2581 = vmatpush1.bf16.msra.mxu0 %v2368
        %2582 = vmatprep.subr.bf16.mxu0 0
        %2583 = vmatpush1.bf16.msra.mxu0 %v2371
        %2584 = vmatprep.subr.bf16.mxu0 0
        %2585 = vmatpush1.bf16.msra.mxu0 %v2374
        %2586 = vmatprep.subr.bf16.mxu0 0
        %2587 = vmatpush1.bf16.msra.mxu0 %v2377
        %2588 = vmatprep.subr.bf16.mxu0 0
        %2589 = vmatpush1.bf16.msra.mxu0 %v2380
        %2590 = vmatprep.subr.bf16.mxu0 0
        %2591 = vmatpush1.bf16.msra.mxu0 %v2383
        %2592 = vmatprep.subr.bf16.mxu0 0
        %2593 = vmatpush1.bf16.msra.mxu0 %v2386
        %2594 = vmatprep.subr.bf16.mxu0 0
        %2595 = vmatpush1.bf16.msra.mxu0 %v2389
        %2596 = vmatprep.subr.bf16.mxu0 0
        %2597 = vmatpush1.bf16.msra.mxu0 %v2392
        %2598 = vmatprep.subr.bf16.mxu0 0
        %2599 = vmatpush1.bf16.msra.mxu0 %v2395
        %2600 = vmatprep.subr.bf16.mxu0 0
        %2601 = vmatpush1.bf16.msra.mxu0 %v2398
        %2602 = vmatprep.subr.bf16.mxu0 0
        %2603 = vmatpush1.bf16.msra.mxu0 %v2401
        %2604 = vmatprep.subr.bf16.mxu0 0
        %2605 = vmatpush1.bf16.msra.mxu0 %v2404
        %2606 = vmatprep.subr.bf16.mxu0 0
        %2607 = vmatpush1.bf16.msra.mxu0 %v2407
        %2608 = vmatprep.mubr.bf16.mxu0 %v2455
        %2609 = vmatmul.mubr.bf16.gmra.mrb[0].mxu0 %v2454
        %v2610 = vpop.f32.mrb[0].mxu0
        %v2611 = vadd.f32 %v2417, %v2610
        %v2612 = vpop.f32.mrb[0].mxu0
        %v2613 = vpop.f32.mrb[0].mxu0
        %v2614 = vadd.f32 %v2422, %v2613
        %v2615 = vpop.f32.mrb[0].mxu0
        %2616 = vmatprep.mubr.bf16.mxu0 %v2458
        %2617 = vmatmul.mubr.bf16.gmra.mrb[0].mxu0 %v2457
        %v2618 = vpop.f32.mrb[0].mxu0
        %v2619 = vadd.f32 %v2427, %v2618
        %v2620 = vpop.f32.mrb[0].mxu0
        %v2621 = vpop.f32.mrb[0].mxu0
        %v2622 = vadd.f32 %v2432, %v2621
        %v2623 = vpop.f32.mrb[0].mxu0
        %2624 = vdwg.mxu0
        %2625 = vmatprep.subr.bf16.mxu0 0
        %2626 = vmatpush1.bf16.msra.mxu0 %v2410
        %2627 = vmatprep.subr.bf16.mxu0 0
        %2628 = vmatpush1.bf16.msra.mxu0 %v2413
        %2629 = vmatprep.subr.bf16.mxu0 0
        %2630 = vmatpush1.bf16.msra.mxu0 0
        %2631 = vmatprep.subr.bf16.mxu0 0
        %2632 = vmatpush1.bf16.msra.mxu0 0
        %2633 = vmatprep.subr.bf16.mxu0 0
        %2634 = vmatpush1.bf16.msra.mxu0 0
        %2635 = vmatprep.subr.bf16.mxu0 0
        %2636 = vmatpush1.bf16.msra.mxu0 0
        %2637 = vmatprep.subr.bf16.mxu0 0
        %2638 = vmatpush1.bf16.msra.mxu0 0
        %2639 = vmatprep.subr.bf16.mxu0 0
        %2640 = vmatpush1.bf16.msra.mxu0 0
        %2641 = vmatprep.subr.bf16.mxu0 0
        %2642 = vmatpush1.bf16.msra.mxu0 0
        %2643 = vmatprep.subr.bf16.mxu0 0
        %2644 = vmatpush1.bf16.msra.mxu0 0
        %2645 = vmatprep.subr.bf16.mxu0 0
        %2646 = vmatpush1.bf16.msra.mxu0 0
        %2647 = vmatprep.subr.bf16.mxu0 0
        %2648 = vmatpush1.bf16.msra.mxu0 0
        %2649 = vmatprep.subr.bf16.mxu0 0
        %2650 = vmatpush1.bf16.msra.mxu0 0
        %2651 = vmatprep.subr.bf16.mxu0 0
        %2652 = vmatpush1.bf16.msra.mxu0 0
        %2653 = vmatprep.subr.bf16.mxu0 0
        %2654 = vmatpush1.bf16.msra.mxu0 0
        %2655 = vmatprep.subr.bf16.mxu0 0
        %2656 = vmatpush1.bf16.msra.mxu0 0
        %2657 = vmatprep.mubr.bf16.mxu0 0
        %2658 = vmatmul.mubr.bf16.gmra.mrb[0].mxu0 %v2465
        %v2659 = vpop.f32.mrb[0].mxu0
        %v2660 = vadd.f32 %v2611, %v2659
        %v2661 = vpop.f32.mrb[0].mxu0
        %v2662 = vpop.f32.mrb[0].mxu0
        %v2663 = vadd.f32 %v2614, %v2662
        %v2664 = vpop.f32.mrb[0].mxu0
        %2665 = vmatprep.mubr.bf16.mxu0 0
        %2666 = vmatmul.mubr.bf16.gmra.mrb[0].mxu0 %v2468
        %v2667 = vpop.f32.mrb[0].mxu0
        %v2668 = vadd.f32 %v2619, %v2667
        %v2669 = vpop.f32.mrb[0].mxu0
        %v2670 = vpop.f32.mrb[0].mxu0
        %v2671 = vadd.f32 %v2622, %v2670
        %v2672 = vpop.f32.mrb[0].mxu0
        %2673 = vdwg.mxu0
        %v2674 = vadd.f32 %v2558, %v2348
        %v2675 = vadd.f32 %v2560, %v2349
        %v2676 = vadd.f32 %v2660, %v2350
        %v2677 = vadd.f32 %v2562, %v2351
        %v2678 = vadd.f32 %v2564, %v2352
        %v2679 = vadd.f32 %v2663, %v2353
        %v2680 = vadd.f32 %v2568, %v2354
        %v2681 = vadd.f32 %v2570, %v2355
        %v2682 = vadd.f32 %v2668, %v2356
        %v2683 = vadd.f32 %v2572, %v2357
        %v2684 = vadd.f32 %v2574, %v2358
        %v2685 = vadd.f32 %v2671, %v2359
        %v2686 = vld [vmem:[%s1] sm:$0x7]
        %v2688 = vlaneseq
        %v2689 = vshrl.u32 %v2688, 7
        %v2690 = vsub.s32 0, %v2689
        %v2691 = vrot.slane %v2686, %v2690
        %v2692 = vlaneseq
        %v2693 = vshrl.u32 %v2692, 7
        %v2694 = vsub.s32 1, %v2693
        %v2695 = vrot.slane %v2686, %v2694
        %v2696 = vlaneseq
        %v2697 = vshrl.u32 %v2696, 7
        %v2698 = vsub.s32 2, %v2697
        %v2699 = vrot.slane %v2686, %v2698
        %v2703 = vmul.f32 %v2674, %v2691
        %v2704 = vmul.f32 %v2675, %v2695
        %v2705 = vmul.f32 %v2676, %v2699
        %v2706 = vmul.f32 %v2677, %v2691
        %v2707 = vmul.f32 %v2678, %v2695
        %v2708 = vmul.f32 %v2679, %v2699
        %v2709 = vmul.f32 %v2680, %v2691
        %v2710 = vmul.f32 %v2681, %v2695
        %v2711 = vmul.f32 %v2682, %v2699
        %v2712 = vmul.f32 %v2683, %v2691
        %v2713 = vmul.f32 %v2684, %v2695
        %v2714 = vmul.f32 %v2685, %v2699
        %2715 = vst [vmem:[#allocation2] sm:$0xff] %v2703
        %2716 = vst [vmem:[#allocation2 + $0x8] sm:$0xff] %v2704
        %2717 = vst [vmem:[#allocation2 + $0x10] sm:$0xff] %v2705
        %2718 = vst [vmem:[#allocation2 + $0x18] sm:$0xff] %v2706
        %2719 = vst [vmem:[#allocation2 + $0x20] sm:$0xff] %v2707
        %2720 = vst [vmem:[#allocation2 + $0x28] sm:$0xff] %v2708
        %2721 = vst [vmem:[#allocation2 + $0x30] sm:$0xff] %v2709
        %2722 = vst [vmem:[#allocation2 + $0x38] sm:$0xff] %v2710
        %2723 = vst [vmem:[#allocation2 + $0x40] sm:$0xff] %v2711
        %2724 = vst [vmem:[#allocation2 + $0x48] sm:$0xff] %v2712
        %2725 = vst [vmem:[#allocation2 + $0x50] sm:$0xff] %v2713
        %2726 = vst [vmem:[#allocation2 + $0x58] sm:$0xff] %v2714
      $region65: #{dft_feature_extractor.1} parent=59 // loop_footer
        %s1152 = sadd.s32 1, %s1148
      $region66: #{dft_feature_extractor.1} parent=59 // loop_footer_branch
        %1147 = sbr.rel target = $region62
      $region67: #{dft_feature_extractor.1} parent=59 // loop_exit
        _
      %v2727 = vld [vmem:[#allocation2] sm:$0xff]
      %v2728 = vld [vmem:[#allocation2 + $0x8] sm:$0xff]
      %v2729 = vld [vmem:[#allocation2 + $0x10] sm:$0xff]
      %v2730 = vld [vmem:[#allocation2 + $0x18] sm:$0xff]
      %v2731 = vld [vmem:[#allocation2 + $0x20] sm:$0xff]
      %v2732 = vld [vmem:[#allocation2 + $0x28] sm:$0xff]
      %v2733 = vld [vmem:[#allocation2 + $0x30] sm:$0xff]
      %v2734 = vld [vmem:[#allocation2 + $0x38] sm:$0xff]
      %v2735 = vld [vmem:[#allocation2 + $0x40] sm:$0xff]
      %v2736 = vld [vmem:[#allocation2 + $0x48] sm:$0xff]
      %v2737 = vld [vmem:[#allocation2 + $0x50] sm:$0xff]
      %v2738 = vld [vmem:[#allocation2 + $0x58] sm:$0xff]
      %v2739 = vmul.f32 %v2727, 6.2831855
      %v2740 = vmul.f32 %v2728, 6.2831855
      %v2741 = vmul.f32 %v2729, 6.2831855
      %v2742 = vmul.f32 %v2730, 6.2831855
      %v2743 = vmul.f32 %v2731, 6.2831855
      %v2744 = vmul.f32 %v2732, 6.2831855
      %v2745 = vmul.f32 %v2733, 6.2831855
      %v2746 = vmul.f32 %v2734, 6.2831855
      %v2747 = vmul.f32 %v2735, 6.2831855
      %v2748 = vmul.f32 %v2736, 6.2831855
      %v2749 = vmul.f32 %v2737, 6.2831855
      %v2750 = vmul.f32 %v2738, 6.2831855
      %v2751 = vand.u32 2147483647, %v2739
      %vm2752 = vcmp.le.f32.partialorder %v2751, 0.7853982
      %vm2753 = vcmp.lt.s32.totalorder %v2739, 0
      %v2754 = vand.u32 %v2739, 2139095040
      %v2755 = vshrl.u32 %v2754, 23
      %v2756 = vsub.s32 %v2755, 127
      %v2757 = vand.u32 2147483647, %v2739
      %v2758 = vand.u32 %v2757, 8388607
      %v2759 = vor.u32 %v2758, 8388608
      %v2760 = vsub.s32 0, %v2759
      %v2761 = vadd.s32 %v2756, 1
      %vm2762 = vcmp.gt.s32.totalorder %v2761, 0
      %v2763 = vsel %vm2762, %v2761, 0
      %v2764 = vshrl.u32 %v2763, 5
      %v2765 = vand.u32 %v2763, 31
      %v2766 = vsub.s32 32, %v2765
      %v2767 = vshrl.u32 683565275, %v2766
      %v2768 = vshll.u32 683565275, %v2765
      %v2769 = vshrl.u32 2475754826, %v2766
      %v2770 = vor.u32 %v2768, %v2769
      %v2771 = vshll.u32 2475754826, %v2765
      %v2772 = vshrl.u32 2131351028, %v2766
      %v2773 = vor.u32 %v2771, %v2772
      %v2774 = vshll.u32 2131351028, %v2765
      %v2775 = vshrl.u32 2102212464, %v2766
      %v2776 = vor.u32 %v2774, %v2775
      %v2777 = vshll.u32 2102212464, %v2765
      %v2778 = vshrl.u32 920167782, %v2766
      %v2779 = vor.u32 %v2777, %v2778
      %v2780 = vshll.u32 920167782, %v2765
      %v2781 = vshrl.u32 1326507024, %v2766
      %v2782 = vor.u32 %v2780, %v2781
      %vm2783 = vcmp.lt.s32.totalorder %v2764, 1
      %vm2784 = vcmp.lt.s32.totalorder %v2764, 2
      %vm2785 = vcmp.lt.s32.totalorder %v2764, 3
      %vm2786 = vcmp.lt.s32.totalorder %v2764, 4
      %v2787 = vsel %vm2783, %v2767, %v2770
      %v2788 = vsel %vm2786, %v2776, 2102212464
      %v2789 = vsel %vm2785, %v2773, %v2788
      %v2790 = vsel %vm2784, %v2787, %v2789
      %v2791 = vsel %vm2783, %v2770, %v2773
      %v2792 = vsel %vm2786, %v2779, 920167782
      %v2793 = vsel %vm2785, %v2776, %v2792
      %v2794 = vsel %vm2784, %v2791, %v2793
      %v2795 = vsel %vm2783, %v2773, %v2776
      %v2796 = vsel %vm2786, %v2782, 1326507024
      %v2797 = vsel %vm2785, %v2779, %v2796
      %v2798 = vsel %vm2784, %v2795, %v2797
      %v2799 = vshll.u32 %v2759, 8
      %v2800 = vmul.u32.u64.compose %v2799, %v2798
      %v2801 = vextract.low.u32 %v2800
      %v2802 = vextract.high.u32 %v2800
      %v2803 = vmul.u32.u64.compose %v2799, %v2794
      %v2804 = vextract.low.u32 %v2803
      %v2805 = vextract.high.u32 %v2803
      %v2806 = vmul.u32 %v2799, %v2790
      %v2807 = vadd.s32 %v2802, %v2804
      %vm2808 = vc.u32 %v2802, %v2804
      %v2809 = vadd.s32 %v2805, 1
      %v2810 = vsel %vm2808, %v2809, %v2805
      %v2811 = vadd.s32 %v2806, %v2810
      %v2812 = vadd.s32 %v2811, 536870912
      %v2813 = vshrl.u32 %v2812, 30
      %v2814 = vshll.u32 %v2813, 30
      %v2815 = vsub.s32 %v2811, %v2814
      %vm2816 = vcmp.lt.s32.totalorder %v2815, 0
      %v2817 = vsub.s32 0, %v2815
      %v2818 = vsel %vm2816, %v2817, %v2815
      %v2819 = vclz %v2818
      %v2820 = vsub.s32 %v2819, 2
      %vm2821 = vcmp.gt.s32.totalorder 0, %v2820
      %v2822 = vsel %vm2821, 0, %v2820
      %v2823 = vsub.s32 32, %v2822
      %v2824 = vshll.u32 %v2815, %v2822
      %v2825 = vshrl.u32 %v2807, %v2823
      %v2826 = vor.u32 %v2824, %v2825
      %v2827 = vsub.s32 4294967266, %v2822
      %v2828 = vadd.s32 %v2827, 127
      %v2829 = vshll.u32 %v2828, 23
      %v2830 = vor.u32 4788187, %v2829
      %v2831 = vand.u32 2147483647, %v2830
      %v2833 = vcvt.s32.f32 %v2826
      %v2834 = vmul.f32 %v2833, %v2831
      %v2835 = vxor.u32 %v2834, 2147483648
      %v2836 = vsel %vm2753, %v2835, %v2834
      %v2837 = vsub.s32 4, %v2813
      %v2838 = vsel %vm2753, %v2837, %v2813
      %v2839 = vsel %vm2752, %v2739, %v2836
      %v2840 = vsel %vm2752, 0, %v2838
      %v2841 = vcosq.f32.pop %v2839
      %v2842 = vsinq.f32.pop %v2839
      %vm2843 = vweird.f32 %v2739
      %v2844 = vadd.s32 %v2840, 3
      %v2845 = vand.u32 %v2844, 3
      %vm2846 = vcmp.lt.s32.totalorder %v2845, 2
      %vm2847 = vcmp.eq.s32.totalorder %v2845, 0
      %v2848 = vxor.u32 %v2842, 2147483648
      %v2849 = vsel %vm2847, %v2841, %v2848
      %vm2850 = vcmp.eq.s32.totalorder %v2845, 2
      %v2851 = vxor.u32 %v2841, 2147483648
      %v2852 = vsel %vm2850, %v2851, %v2842
      %v2853 = vsel %vm2846, %v2849, %v2852
      %v2854 = vsel %vm2843, nan, %v2853
      %v2855 = vand.u32 2147483647, %v2740
      %vm2856 = vcmp.le.f32.partialorder %v2855, 0.7853982
      %vm2857 = vcmp.lt.s32.totalorder %v2740, 0
      %v2858 = vand.u32 %v2740, 2139095040
      %v2859 = vshrl.u32 %v2858, 23
      %v2860 = vsub.s32 %v2859, 127
      %v2861 = vand.u32 2147483647, %v2740
      %v2862 = vand.u32 %v2861, 8388607
      %v2863 = vor.u32 %v2862, 8388608
      %v2864 = vsub.s32 0, %v2863
      %v2865 = vadd.s32 %v2860, 1
      %vm2866 = vcmp.gt.s32.totalorder %v2865, 0
      %v2867 = vsel %vm2866, %v2865, 0
      %v2868 = vshrl.u32 %v2867, 5
      %v2869 = vand.u32 %v2867, 31
      %v2870 = vsub.s32 32, %v2869
      %v2871 = vshrl.u32 683565275, %v2870
      %v2872 = vshll.u32 683565275, %v2869
      %v2873 = vshrl.u32 2475754826, %v2870
      %v2874 = vor.u32 %v2872, %v2873
      %v2875 = vshll.u32 2475754826, %v2869
      %v2876 = vshrl.u32 2131351028, %v2870
      %v2877 = vor.u32 %v2875, %v2876
      %v2878 = vshll.u32 2131351028, %v2869
      %v2879 = vshrl.u32 2102212464, %v2870
      %v2880 = vor.u32 %v2878, %v2879
      %v2881 = vshll.u32 2102212464, %v2869
      %v2882 = vshrl.u32 920167782, %v2870
      %v2883 = vor.u32 %v2881, %v2882
      %v2884 = vshll.u32 920167782, %v2869
      %v2885 = vshrl.u32 1326507024, %v2870
      %v2886 = vor.u32 %v2884, %v2885
      %vm2887 = vcmp.lt.s32.totalorder %v2868, 1
      %vm2888 = vcmp.lt.s32.totalorder %v2868, 2
      %vm2889 = vcmp.lt.s32.totalorder %v2868, 3
      %vm2890 = vcmp.lt.s32.totalorder %v2868, 4
      %v2891 = vsel %vm2887, %v2871, %v2874
      %v2892 = vsel %vm2890, %v2880, 2102212464
      %v2893 = vsel %vm2889, %v2877, %v2892
      %v2894 = vsel %vm2888, %v2891, %v2893
      %v2895 = vsel %vm2887, %v2874, %v2877
      %v2896 = vsel %vm2890, %v2883, 920167782
      %v2897 = vsel %vm2889, %v2880, %v2896
      %v2898 = vsel %vm2888, %v2895, %v2897
      %v2899 = vsel %vm2887, %v2877, %v2880
      %v2900 = vsel %vm2890, %v2886, 1326507024
      %v2901 = vsel %vm2889, %v2883, %v2900
      %v2902 = vsel %vm2888, %v2899, %v2901
      %v2903 = vshll.u32 %v2863, 8
      %v2904 = vmul.u32.u64.compose %v2903, %v2902
      %v2905 = vextract.low.u32 %v2904
      %v2906 = vextract.high.u32 %v2904
      %v2907 = vmul.u32.u64.compose %v2903, %v2898
      %v2908 = vextract.low.u32 %v2907
      %v2909 = vextract.high.u32 %v2907
      %v2910 = vmul.u32 %v2903, %v2894
      %v2911 = vadd.s32 %v2906, %v2908
      %vm2912 = vc.u32 %v2906, %v2908
      %v2913 = vadd.s32 %v2909, 1
      %v2914 = vsel %vm2912, %v2913, %v2909
      %v2915 = vadd.s32 %v2910, %v2914
      %v2916 = vadd.s32 %v2915, 536870912
      %v2917 = vshrl.u32 %v2916, 30
      %v2918 = vshll.u32 %v2917, 30
      %v2919 = vsub.s32 %v2915, %v2918
      %vm2920 = vcmp.lt.s32.totalorder %v2919, 0
      %v2921 = vsub.s32 0, %v2919
      %v2922 = vsel %vm2920, %v2921, %v2919
      %v2923 = vclz %v2922
      %v2924 = vsub.s32 %v2923, 2
      %vm2925 = vcmp.gt.s32.totalorder 0, %v2924
      %v2926 = vsel %vm2925, 0, %v2924
      %v2927 = vsub.s32 32, %v2926
      %v2928 = vshll.u32 %v2919, %v2926
      %v2929 = vshrl.u32 %v2911, %v2927
      %v2930 = vor.u32 %v2928, %v2929
      %v2931 = vsub.s32 4294967266, %v2926
      %v2932 = vadd.s32 %v2931, 127
      %v2933 = vshll.u32 %v2932, 23
      %v2934 = vor.u32 4788187, %v2933
      %v2935 = vand.u32 2147483647, %v2934
      %v2937 = vcvt.s32.f32 %v2930
      %v2938 = vmul.f32 %v2937, %v2935
      %v2939 = vxor.u32 %v2938, 2147483648
      %v2940 = vsel %vm2857, %v2939, %v2938
      %v2941 = vsub.s32 4, %v2917
      %v2942 = vsel %vm2857, %v2941, %v2917
      %v2943 = vsel %vm2856, %v2740, %v2940
      %v2944 = vsel %vm2856, 0, %v2942
      %v2945 = vcosq.f32.pop %v2943
      %v2946 = vsinq.f32.pop %v2943
      %vm2947 = vweird.f32 %v2740
      %v2948 = vadd.s32 %v2944, 3
      %v2949 = vand.u32 %v2948, 3
      %vm2950 = vcmp.lt.s32.totalorder %v2949, 2
      %vm2951 = vcmp.eq.s32.totalorder %v2949, 0
      %v2952 = vxor.u32 %v2946, 2147483648
      %v2953 = vsel %vm2951, %v2945, %v2952
      %vm2954 = vcmp.eq.s32.totalorder %v2949, 2
      %v2955 = vxor.u32 %v2945, 2147483648
      %v2956 = vsel %vm2954, %v2955, %v2946
      %v2957 = vsel %vm2950, %v2953, %v2956
      %v2958 = vsel %vm2947, nan, %v2957
      %v2959 = vand.u32 2147483647, %v2741
      %vm2960 = vcmp.le.f32.partialorder %v2959, 0.7853982
      %vm2961 = vcmp.lt.s32.totalorder %v2741, 0
      %v2962 = vand.u32 %v2741, 2139095040
      %v2963 = vshrl.u32 %v2962, 23
      %v2964 = vsub.s32 %v2963, 127
      %v2965 = vand.u32 2147483647, %v2741
      %v2966 = vand.u32 %v2965, 8388607
      %v2967 = vor.u32 %v2966, 8388608
      %v2968 = vsub.s32 0, %v2967
      %v2969 = vadd.s32 %v2964, 1
      %vm2970 = vcmp.gt.s32.totalorder %v2969, 0
      %v2971 = vsel %vm2970, %v2969, 0
      %v2972 = vshrl.u32 %v2971, 5
      %v2973 = vand.u32 %v2971, 31
      %v2974 = vsub.s32 32, %v2973
      %v2975 = vshrl.u32 683565275, %v2974
      %v2976 = vshll.u32 683565275, %v2973
      %v2977 = vshrl.u32 2475754826, %v2974
      %v2978 = vor.u32 %v2976, %v2977
      %v2979 = vshll.u32 2475754826, %v2973
      %v2980 = vshrl.u32 2131351028, %v2974
      %v2981 = vor.u32 %v2979, %v2980
      %v2982 = vshll.u32 2131351028, %v2973
      %v2983 = vshrl.u32 2102212464, %v2974
      %v2984 = vor.u32 %v2982, %v2983
      %v2985 = vshll.u32 2102212464, %v2973
      %v2986 = vshrl.u32 920167782, %v2974
      %v2987 = vor.u32 %v2985, %v2986
      %v2988 = vshll.u32 920167782, %v2973
      %v2989 = vshrl.u32 1326507024, %v2974
      %v2990 = vor.u32 %v2988, %v2989
      %vm2991 = vcmp.lt.s32.totalorder %v2972, 1
      %vm2992 = vcmp.lt.s32.totalorder %v2972, 2
      %vm2993 = vcmp.lt.s32.totalorder %v2972, 3
      %vm2994 = vcmp.lt.s32.totalorder %v2972, 4
      %v2995 = vsel %vm2991, %v2975, %v2978
      %v2996 = vsel %vm2994, %v2984, 2102212464
      %v2997 = vsel %vm2993, %v2981, %v2996
      %v2998 = vsel %vm2992, %v2995, %v2997
      %v2999 = vsel %vm2991, %v2978, %v2981
      %v3000 = vsel %vm2994, %v2987, 920167782
      %v3001 = vsel %vm2993, %v2984, %v3000
      %v3002 = vsel %vm2992, %v2999, %v3001
      %v3003 = vsel %vm2991, %v2981, %v2984
      %v3004 = vsel %vm2994, %v2990, 1326507024
      %v3005 = vsel %vm2993, %v2987, %v3004
      %v3006 = vsel %vm2992, %v3003, %v3005
      %v3007 = vshll.u32 %v2967, 8
      %v3008 = vmul.u32.u64.compose %v3007, %v3006
      %v3009 = vextract.low.u32 %v3008
      %v3010 = vextract.high.u32 %v3008
      %v3011 = vmul.u32.u64.compose %v3007, %v3002
      %v3012 = vextract.low.u32 %v3011
      %v3013 = vextract.high.u32 %v3011
      %v3014 = vmul.u32 %v3007, %v2998
      %v3015 = vadd.s32 %v3010, %v3012
      %vm3016 = vc.u32 %v3010, %v3012
      %v3017 = vadd.s32 %v3013, 1
      %v3018 = vsel %vm3016, %v3017, %v3013
      %v3019 = vadd.s32 %v3014, %v3018
      %v3020 = vadd.s32 %v3019, 536870912
      %v3021 = vshrl.u32 %v3020, 30
      %v3022 = vshll.u32 %v3021, 30
      %v3023 = vsub.s32 %v3019, %v3022
      %vm3024 = vcmp.lt.s32.totalorder %v3023, 0
      %v3025 = vsub.s32 0, %v3023
      %v3026 = vsel %vm3024, %v3025, %v3023
      %v3027 = vclz %v3026
      %v3028 = vsub.s32 %v3027, 2
      %vm3029 = vcmp.gt.s32.totalorder 0, %v3028
      %v3030 = vsel %vm3029, 0, %v3028
      %v3031 = vsub.s32 32, %v3030
      %v3032 = vshll.u32 %v3023, %v3030
      %v3033 = vshrl.u32 %v3015, %v3031
      %v3034 = vor.u32 %v3032, %v3033
      %v3035 = vsub.s32 4294967266, %v3030
      %v3036 = vadd.s32 %v3035, 127
      %v3037 = vshll.u32 %v3036, 23
      %v3038 = vor.u32 4788187, %v3037
      %v3039 = vand.u32 2147483647, %v3038
      %v3041 = vcvt.s32.f32 %v3034
      %v3042 = vmul.f32 %v3041, %v3039
      %v3043 = vxor.u32 %v3042, 2147483648
      %v3044 = vsel %vm2961, %v3043, %v3042
      %v3045 = vsub.s32 4, %v3021
      %v3046 = vsel %vm2961, %v3045, %v3021
      %v3047 = vsel %vm2960, %v2741, %v3044
      %v3048 = vsel %vm2960, 0, %v3046
      %v3049 = vcosq.f32.pop %v3047
      %v3050 = vsinq.f32.pop %v3047
      %vm3051 = vweird.f32 %v2741
      %v3052 = vadd.s32 %v3048, 3
      %v3053 = vand.u32 %v3052, 3
      %vm3054 = vcmp.lt.s32.totalorder %v3053, 2
      %vm3055 = vcmp.eq.s32.totalorder %v3053, 0
      %v3056 = vxor.u32 %v3050, 2147483648
      %v3057 = vsel %vm3055, %v3049, %v3056
      %vm3058 = vcmp.eq.s32.totalorder %v3053, 2
      %v3059 = vxor.u32 %v3049, 2147483648
      %v3060 = vsel %vm3058, %v3059, %v3050
      %v3061 = vsel %vm3054, %v3057, %v3060
      %v3062 = vsel %vm3051, nan, %v3061
      %v3063 = vand.u32 2147483647, %v2742
      %vm3064 = vcmp.le.f32.partialorder %v3063, 0.7853982
      %vm3065 = vcmp.lt.s32.totalorder %v2742, 0
      %v3066 = vand.u32 %v2742, 2139095040
      %v3067 = vshrl.u32 %v3066, 23
      %v3068 = vsub.s32 %v3067, 127
      %v3069 = vand.u32 2147483647, %v2742
      %v3070 = vand.u32 %v3069, 8388607
      %v3071 = vor.u32 %v3070, 8388608
      %v3072 = vsub.s32 0, %v3071
      %v3073 = vadd.s32 %v3068, 1
      %vm3074 = vcmp.gt.s32.totalorder %v3073, 0
      %v3075 = vsel %vm3074, %v3073, 0
      %v3076 = vshrl.u32 %v3075, 5
      %v3077 = vand.u32 %v3075, 31
      %v3078 = vsub.s32 32, %v3077
      %v3079 = vshrl.u32 683565275, %v3078
      %v3080 = vshll.u32 683565275, %v3077
      %v3081 = vshrl.u32 2475754826, %v3078
      %v3082 = vor.u32 %v3080, %v3081
      %v3083 = vshll.u32 2475754826, %v3077
      %v3084 = vshrl.u32 2131351028, %v3078
      %v3085 = vor.u32 %v3083, %v3084
      %v3086 = vshll.u32 2131351028, %v3077
      %v3087 = vshrl.u32 2102212464, %v3078
      %v3088 = vor.u32 %v3086, %v3087
      %v3089 = vshll.u32 2102212464, %v3077
      %v3090 = vshrl.u32 920167782, %v3078
      %v3091 = vor.u32 %v3089, %v3090
      %v3092 = vshll.u32 920167782, %v3077
      %v3093 = vshrl.u32 1326507024, %v3078
      %v3094 = vor.u32 %v3092, %v3093
      %vm3095 = vcmp.lt.s32.totalorder %v3076, 1
      %vm3096 = vcmp.lt.s32.totalorder %v3076, 2
      %vm3097 = vcmp.lt.s32.totalorder %v3076, 3
      %vm3098 = vcmp.lt.s32.totalorder %v3076, 4
      %v3099 = vsel %vm3095, %v3079, %v3082
      %v3100 = vsel %vm3098, %v3088, 2102212464
      %v3101 = vsel %vm3097, %v3085, %v3100
      %v3102 = vsel %vm3096, %v3099, %v3101
      %v3103 = vsel %vm3095, %v3082, %v3085
      %v3104 = vsel %vm3098, %v3091, 920167782
      %v3105 = vsel %vm3097, %v3088, %v3104
      %v3106 = vsel %vm3096, %v3103, %v3105
      %v3107 = vsel %vm3095, %v3085, %v3088
      %v3108 = vsel %vm3098, %v3094, 1326507024
      %v3109 = vsel %vm3097, %v3091, %v3108
      %v3110 = vsel %vm3096, %v3107, %v3109
      %v3111 = vshll.u32 %v3071, 8
      %v3112 = vmul.u32.u64.compose %v3111, %v3110
      %v3113 = vextract.low.u32 %v3112
      %v3114 = vextract.high.u32 %v3112
      %v3115 = vmul.u32.u64.compose %v3111, %v3106
      %v3116 = vextract.low.u32 %v3115
      %v3117 = vextract.high.u32 %v3115
      %v3118 = vmul.u32 %v3111, %v3102
      %v3119 = vadd.s32 %v3114, %v3116
      %vm3120 = vc.u32 %v3114, %v3116
      %v3121 = vadd.s32 %v3117, 1
      %v3122 = vsel %vm3120, %v3121, %v3117
      %v3123 = vadd.s32 %v3118, %v3122
      %v3124 = vadd.s32 %v3123, 536870912
      %v3125 = vshrl.u32 %v3124, 30
      %v3126 = vshll.u32 %v3125, 30
      %v3127 = vsub.s32 %v3123, %v3126
      %vm3128 = vcmp.lt.s32.totalorder %v3127, 0
      %v3129 = vsub.s32 0, %v3127
      %v3130 = vsel %vm3128, %v3129, %v3127
      %v3131 = vclz %v3130
      %v3132 = vsub.s32 %v3131, 2
      %vm3133 = vcmp.gt.s32.totalorder 0, %v3132
      %v3134 = vsel %vm3133, 0, %v3132
      %v3135 = vsub.s32 32, %v3134
      %v3136 = vshll.u32 %v3127, %v3134
      %v3137 = vshrl.u32 %v3119, %v3135
      %v3138 = vor.u32 %v3136, %v3137
      %v3139 = vsub.s32 4294967266, %v3134
      %v3140 = vadd.s32 %v3139, 127
      %v3141 = vshll.u32 %v3140, 23
      %v3142 = vor.u32 4788187, %v3141
      %v3143 = vand.u32 2147483647, %v3142
      %v3145 = vcvt.s32.f32 %v3138
      %v3146 = vmul.f32 %v3145, %v3143
      %v3147 = vxor.u32 %v3146, 2147483648
      %v3148 = vsel %vm3065, %v3147, %v3146
      %v3149 = vsub.s32 4, %v3125
      %v3150 = vsel %vm3065, %v3149, %v3125
      %v3151 = vsel %vm3064, %v2742, %v3148
      %v3152 = vsel %vm3064, 0, %v3150
      %v3153 = vcosq.f32.pop %v3151
      %v3154 = vsinq.f32.pop %v3151
      %vm3155 = vweird.f32 %v2742
      %v3156 = vadd.s32 %v3152, 3
      %v3157 = vand.u32 %v3156, 3
      %vm3158 = vcmp.lt.s32.totalorder %v3157, 2
      %vm3159 = vcmp.eq.s32.totalorder %v3157, 0
      %v3160 = vxor.u32 %v3154, 2147483648
      %v3161 = vsel %vm3159, %v3153, %v3160
      %vm3162 = vcmp.eq.s32.totalorder %v3157, 2
      %v3163 = vxor.u32 %v3153, 2147483648
      %v3164 = vsel %vm3162, %v3163, %v3154
      %v3165 = vsel %vm3158, %v3161, %v3164
      %v3166 = vsel %vm3155, nan, %v3165
      %v3167 = vand.u32 2147483647, %v2743
      %vm3168 = vcmp.le.f32.partialorder %v3167, 0.7853982
      %vm3169 = vcmp.lt.s32.totalorder %v2743, 0
      %v3170 = vand.u32 %v2743, 2139095040
      %v3171 = vshrl.u32 %v3170, 23
      %v3172 = vsub.s32 %v3171, 127
      %v3173 = vand.u32 2147483647, %v2743
      %v3174 = vand.u32 %v3173, 8388607
      %v3175 = vor.u32 %v3174, 8388608
      %v3176 = vsub.s32 0, %v3175
      %v3177 = vadd.s32 %v3172, 1
      %vm3178 = vcmp.gt.s32.totalorder %v3177, 0
      %v3179 = vsel %vm3178, %v3177, 0
      %v3180 = vshrl.u32 %v3179, 5
      %v3181 = vand.u32 %v3179, 31
      %v3182 = vsub.s32 32, %v3181
      %v3183 = vshrl.u32 683565275, %v3182
      %v3184 = vshll.u32 683565275, %v3181
      %v3185 = vshrl.u32 2475754826, %v3182
      %v3186 = vor.u32 %v3184, %v3185
      %v3187 = vshll.u32 2475754826, %v3181
      %v3188 = vshrl.u32 2131351028, %v3182
      %v3189 = vor.u32 %v3187, %v3188
      %v3190 = vshll.u32 2131351028, %v3181
      %v3191 = vshrl.u32 2102212464, %v3182
      %v3192 = vor.u32 %v3190, %v3191
      %v3193 = vshll.u32 2102212464, %v3181
      %v3194 = vshrl.u32 920167782, %v3182
      %v3195 = vor.u32 %v3193, %v3194
      %v3196 = vshll.u32 920167782, %v3181
      %v3197 = vshrl.u32 1326507024, %v3182
      %v3198 = vor.u32 %v3196, %v3197
      %vm3199 = vcmp.lt.s32.totalorder %v3180, 1
      %vm3200 = vcmp.lt.s32.totalorder %v3180, 2
      %vm3201 = vcmp.lt.s32.totalorder %v3180, 3
      %vm3202 = vcmp.lt.s32.totalorder %v3180, 4
      %v3203 = vsel %vm3199, %v3183, %v3186
      %v3204 = vsel %vm3202, %v3192, 2102212464
      %v3205 = vsel %vm3201, %v3189, %v3204
      %v3206 = vsel %vm3200, %v3203, %v3205
      %v3207 = vsel %vm3199, %v3186, %v3189
      %v3208 = vsel %vm3202, %v3195, 920167782
      %v3209 = vsel %vm3201, %v3192, %v3208
      %v3210 = vsel %vm3200, %v3207, %v3209
      %v3211 = vsel %vm3199, %v3189, %v3192
      %v3212 = vsel %vm3202, %v3198, 1326507024
      %v3213 = vsel %vm3201, %v3195, %v3212
      %v3214 = vsel %vm3200, %v3211, %v3213
      %v3215 = vshll.u32 %v3175, 8
      %v3216 = vmul.u32.u64.compose %v3215, %v3214
      %v3217 = vextract.low.u32 %v3216
      %v3218 = vextract.high.u32 %v3216
      %v3219 = vmul.u32.u64.compose %v3215, %v3210
      %v3220 = vextract.low.u32 %v3219
      %v3221 = vextract.high.u32 %v3219
      %v3222 = vmul.u32 %v3215, %v3206
      %v3223 = vadd.s32 %v3218, %v3220
      %vm3224 = vc.u32 %v3218, %v3220
      %v3225 = vadd.s32 %v3221, 1
      %v3226 = vsel %vm3224, %v3225, %v3221
      %v3227 = vadd.s32 %v3222, %v3226
      %v3228 = vadd.s32 %v3227, 536870912
      %v3229 = vshrl.u32 %v3228, 30
      %v3230 = vshll.u32 %v3229, 30
      %v3231 = vsub.s32 %v3227, %v3230
      %vm3232 = vcmp.lt.s32.totalorder %v3231, 0
      %v3233 = vsub.s32 0, %v3231
      %v3234 = vsel %vm3232, %v3233, %v3231
      %v3235 = vclz %v3234
      %v3236 = vsub.s32 %v3235, 2
      %vm3237 = vcmp.gt.s32.totalorder 0, %v3236
      %v3238 = vsel %vm3237, 0, %v3236
      %v3239 = vsub.s32 32, %v3238
      %v3240 = vshll.u32 %v3231, %v3238
      %v3241 = vshrl.u32 %v3223, %v3239
      %v3242 = vor.u32 %v3240, %v3241
      %v3243 = vsub.s32 4294967266, %v3238
      %v3244 = vadd.s32 %v3243, 127
      %v3245 = vshll.u32 %v3244, 23
      %v3246 = vor.u32 4788187, %v3245
      %v3247 = vand.u32 2147483647, %v3246
      %v3249 = vcvt.s32.f32 %v3242
      %v3250 = vmul.f32 %v3249, %v3247
      %v3251 = vxor.u32 %v3250, 2147483648
      %v3252 = vsel %vm3169, %v3251, %v3250
      %v3253 = vsub.s32 4, %v3229
      %v3254 = vsel %vm3169, %v3253, %v3229
      %v3255 = vsel %vm3168, %v2743, %v3252
      %v3256 = vsel %vm3168, 0, %v3254
      %v3257 = vcosq.f32.pop %v3255
      %v3258 = vsinq.f32.pop %v3255
      %vm3259 = vweird.f32 %v2743
      %v3260 = vadd.s32 %v3256, 3
      %v3261 = vand.u32 %v3260, 3
      %vm3262 = vcmp.lt.s32.totalorder %v3261, 2
      %vm3263 = vcmp.eq.s32.totalorder %v3261, 0
      %v3264 = vxor.u32 %v3258, 2147483648
      %v3265 = vsel %vm3263, %v3257, %v3264
      %vm3266 = vcmp.eq.s32.totalorder %v3261, 2
      %v3267 = vxor.u32 %v3257, 2147483648
      %v3268 = vsel %vm3266, %v3267, %v3258
      %v3269 = vsel %vm3262, %v3265, %v3268
      %v3270 = vsel %vm3259, nan, %v3269
      %v3271 = vand.u32 2147483647, %v2744
      %vm3272 = vcmp.le.f32.partialorder %v3271, 0.7853982
      %vm3273 = vcmp.lt.s32.totalorder %v2744, 0
      %v3274 = vand.u32 %v2744, 2139095040
      %v3275 = vshrl.u32 %v3274, 23
      %v3276 = vsub.s32 %v3275, 127
      %v3277 = vand.u32 2147483647, %v2744
      %v3278 = vand.u32 %v3277, 8388607
      %v3279 = vor.u32 %v3278, 8388608
      %v3280 = vsub.s32 0, %v3279
      %v3281 = vadd.s32 %v3276, 1
      %vm3282 = vcmp.gt.s32.totalorder %v3281, 0
      %v3283 = vsel %vm3282, %v3281, 0
      %v3284 = vshrl.u32 %v3283, 5
      %v3285 = vand.u32 %v3283, 31
      %v3286 = vsub.s32 32, %v3285
      %v3287 = vshrl.u32 683565275, %v3286
      %v3288 = vshll.u32 683565275, %v3285
      %v3289 = vshrl.u32 2475754826, %v3286
      %v3290 = vor.u32 %v3288, %v3289
      %v3291 = vshll.u32 2475754826, %v3285
      %v3292 = vshrl.u32 2131351028, %v3286
      %v3293 = vor.u32 %v3291, %v3292
      %v3294 = vshll.u32 2131351028, %v3285
      %v3295 = vshrl.u32 2102212464, %v3286
      %v3296 = vor.u32 %v3294, %v3295
      %v3297 = vshll.u32 2102212464, %v3285
      %v3298 = vshrl.u32 920167782, %v3286
      %v3299 = vor.u32 %v3297, %v3298
      %v3300 = vshll.u32 920167782, %v3285
      %v3301 = vshrl.u32 1326507024, %v3286
      %v3302 = vor.u32 %v3300, %v3301
      %vm3303 = vcmp.lt.s32.totalorder %v3284, 1
      %vm3304 = vcmp.lt.s32.totalorder %v3284, 2
      %vm3305 = vcmp.lt.s32.totalorder %v3284, 3
      %vm3306 = vcmp.lt.s32.totalorder %v3284, 4
      %v3307 = vsel %vm3303, %v3287, %v3290
      %v3308 = vsel %vm3306, %v3296, 2102212464
      %v3309 = vsel %vm3305, %v3293, %v3308
      %v3310 = vsel %vm3304, %v3307, %v3309
      %v3311 = vsel %vm3303, %v3290, %v3293
      %v3312 = vsel %vm3306, %v3299, 920167782
      %v3313 = vsel %vm3305, %v3296, %v3312
      %v3314 = vsel %vm3304, %v3311, %v3313
      %v3315 = vsel %vm3303, %v3293, %v3296
      %v3316 = vsel %vm3306, %v3302, 1326507024
      %v3317 = vsel %vm3305, %v3299, %v3316
      %v3318 = vsel %vm3304, %v3315, %v3317
      %v3319 = vshll.u32 %v3279, 8
      %v3320 = vmul.u32.u64.compose %v3319, %v3318
      %v3321 = vextract.low.u32 %v3320
      %v3322 = vextract.high.u32 %v3320
      %v3323 = vmul.u32.u64.compose %v3319, %v3314
      %v3324 = vextract.low.u32 %v3323
      %v3325 = vextract.high.u32 %v3323
      %v3326 = vmul.u32 %v3319, %v3310
      %v3327 = vadd.s32 %v3322, %v3324
      %vm3328 = vc.u32 %v3322, %v3324
      %v3329 = vadd.s32 %v3325, 1
      %v3330 = vsel %vm3328, %v3329, %v3325
      %v3331 = vadd.s32 %v3326, %v3330
      %v3332 = vadd.s32 %v3331, 536870912
      %v3333 = vshrl.u32 %v3332, 30
      %v3334 = vshll.u32 %v3333, 30
      %v3335 = vsub.s32 %v3331, %v3334
      %vm3336 = vcmp.lt.s32.totalorder %v3335, 0
      %v3337 = vsub.s32 0, %v3335
      %v3338 = vsel %vm3336, %v3337, %v3335
      %v3339 = vclz %v3338
      %v3340 = vsub.s32 %v3339, 2
      %vm3341 = vcmp.gt.s32.totalorder 0, %v3340
      %v3342 = vsel %vm3341, 0, %v3340
      %v3343 = vsub.s32 32, %v3342
      %v3344 = vshll.u32 %v3335, %v3342
      %v3345 = vshrl.u32 %v3327, %v3343
      %v3346 = vor.u32 %v3344, %v3345
      %v3347 = vsub.s32 4294967266, %v3342
      %v3348 = vadd.s32 %v3347, 127
      %v3349 = vshll.u32 %v3348, 23
      %v3350 = vor.u32 4788187, %v3349
      %v3351 = vand.u32 2147483647, %v3350
      %v3353 = vcvt.s32.f32 %v3346
      %v3354 = vmul.f32 %v3353, %v3351
      %v3355 = vxor.u32 %v3354, 2147483648
      %v3356 = vsel %vm3273, %v3355, %v3354
      %v3357 = vsub.s32 4, %v3333
      %v3358 = vsel %vm3273, %v3357, %v3333
      %v3359 = vsel %vm3272, %v2744, %v3356
      %v3360 = vsel %vm3272, 0, %v3358
      %v3361 = vcosq.f32.pop %v3359
      %v3362 = vsinq.f32.pop %v3359
      %vm3363 = vweird.f32 %v2744
      %v3364 = vadd.s32 %v3360, 3
      %v3365 = vand.u32 %v3364, 3
      %vm3366 = vcmp.lt.s32.totalorder %v3365, 2
      %vm3367 = vcmp.eq.s32.totalorder %v3365, 0
      %v3368 = vxor.u32 %v3362, 2147483648
      %v3369 = vsel %vm3367, %v3361, %v3368
      %vm3370 = vcmp.eq.s32.totalorder %v3365, 2
      %v3371 = vxor.u32 %v3361, 2147483648
      %v3372 = vsel %vm3370, %v3371, %v3362
      %v3373 = vsel %vm3366, %v3369, %v3372
      %v3374 = vsel %vm3363, nan, %v3373
      %v3375 = vand.u32 2147483647, %v2745
      %vm3376 = vcmp.le.f32.partialorder %v3375, 0.7853982
      %vm3377 = vcmp.lt.s32.totalorder %v2745, 0
      %v3378 = vand.u32 %v2745, 2139095040
      %v3379 = vshrl.u32 %v3378, 23
      %v3380 = vsub.s32 %v3379, 127
      %v3381 = vand.u32 2147483647, %v2745
      %v3382 = vand.u32 %v3381, 8388607
      %v3383 = vor.u32 %v3382, 8388608
      %v3384 = vsub.s32 0, %v3383
      %v3385 = vadd.s32 %v3380, 1
      %vm3386 = vcmp.gt.s32.totalorder %v3385, 0
      %v3387 = vsel %vm3386, %v3385, 0
      %v3388 = vshrl.u32 %v3387, 5
      %v3389 = vand.u32 %v3387, 31
      %v3390 = vsub.s32 32, %v3389
      %v3391 = vshrl.u32 683565275, %v3390
      %v3392 = vshll.u32 683565275, %v3389
      %v3393 = vshrl.u32 2475754826, %v3390
      %v3394 = vor.u32 %v3392, %v3393
      %v3395 = vshll.u32 2475754826, %v3389
      %v3396 = vshrl.u32 2131351028, %v3390
      %v3397 = vor.u32 %v3395, %v3396
      %v3398 = vshll.u32 2131351028, %v3389
      %v3399 = vshrl.u32 2102212464, %v3390
      %v3400 = vor.u32 %v3398, %v3399
      %v3401 = vshll.u32 2102212464, %v3389
      %v3402 = vshrl.u32 920167782, %v3390
      %v3403 = vor.u32 %v3401, %v3402
      %v3404 = vshll.u32 920167782, %v3389
      %v3405 = vshrl.u32 1326507024, %v3390
      %v3406 = vor.u32 %v3404, %v3405
      %vm3407 = vcmp.lt.s32.totalorder %v3388, 1
      %vm3408 = vcmp.lt.s32.totalorder %v3388, 2
      %vm3409 = vcmp.lt.s32.totalorder %v3388, 3
      %vm3410 = vcmp.lt.s32.totalorder %v3388, 4
      %v3411 = vsel %vm3407, %v3391, %v3394
      %v3412 = vsel %vm3410, %v3400, 2102212464
      %v3413 = vsel %vm3409, %v3397, %v3412
      %v3414 = vsel %vm3408, %v3411, %v3413
      %v3415 = vsel %vm3407, %v3394, %v3397
      %v3416 = vsel %vm3410, %v3403, 920167782
      %v3417 = vsel %vm3409, %v3400, %v3416
      %v3418 = vsel %vm3408, %v3415, %v3417
      %v3419 = vsel %vm3407, %v3397, %v3400
      %v3420 = vsel %vm3410, %v3406, 1326507024
      %v3421 = vsel %vm3409, %v3403, %v3420
      %v3422 = vsel %vm3408, %v3419, %v3421
      %v3423 = vshll.u32 %v3383, 8
      %v3424 = vmul.u32.u64.compose %v3423, %v3422
      %v3425 = vextract.low.u32 %v3424
      %v3426 = vextract.high.u32 %v3424
      %v3427 = vmul.u32.u64.compose %v3423, %v3418
      %v3428 = vextract.low.u32 %v3427
      %v3429 = vextract.high.u32 %v3427
      %v3430 = vmul.u32 %v3423, %v3414
      %v3431 = vadd.s32 %v3426, %v3428
      %vm3432 = vc.u32 %v3426, %v3428
      %v3433 = vadd.s32 %v3429, 1
      %v3434 = vsel %vm3432, %v3433, %v3429
      %v3435 = vadd.s32 %v3430, %v3434
      %v3436 = vadd.s32 %v3435, 536870912
      %v3437 = vshrl.u32 %v3436, 30
      %v3438 = vshll.u32 %v3437, 30
      %v3439 = vsub.s32 %v3435, %v3438
      %vm3440 = vcmp.lt.s32.totalorder %v3439, 0
      %v3441 = vsub.s32 0, %v3439
      %v3442 = vsel %vm3440, %v3441, %v3439
      %v3443 = vclz %v3442
      %v3444 = vsub.s32 %v3443, 2
      %vm3445 = vcmp.gt.s32.totalorder 0, %v3444
      %v3446 = vsel %vm3445, 0, %v3444
      %v3447 = vsub.s32 32, %v3446
      %v3448 = vshll.u32 %v3439, %v3446
      %v3449 = vshrl.u32 %v3431, %v3447
      %v3450 = vor.u32 %v3448, %v3449
      %v3451 = vsub.s32 4294967266, %v3446
      %v3452 = vadd.s32 %v3451, 127
      %v3453 = vshll.u32 %v3452, 23
      %v3454 = vor.u32 4788187, %v3453
      %v3455 = vand.u32 2147483647, %v3454
      %v3457 = vcvt.s32.f32 %v3450
      %v3458 = vmul.f32 %v3457, %v3455
      %v3459 = vxor.u32 %v3458, 2147483648
      %v3460 = vsel %vm3377, %v3459, %v3458
      %v3461 = vsub.s32 4, %v3437
      %v3462 = vsel %vm3377, %v3461, %v3437
      %v3463 = vsel %vm3376, %v2745, %v3460
      %v3464 = vsel %vm3376, 0, %v3462
      %v3465 = vcosq.f32.pop %v3463
      %v3466 = vsinq.f32.pop %v3463
      %vm3467 = vweird.f32 %v2745
      %v3468 = vadd.s32 %v3464, 3
      %v3469 = vand.u32 %v3468, 3
      %vm3470 = vcmp.lt.s32.totalorder %v3469, 2
      %vm3471 = vcmp.eq.s32.totalorder %v3469, 0
      %v3472 = vxor.u32 %v3466, 2147483648
      %v3473 = vsel %vm3471, %v3465, %v3472
      %vm3474 = vcmp.eq.s32.totalorder %v3469, 2
      %v3475 = vxor.u32 %v3465, 2147483648
      %v3476 = vsel %vm3474, %v3475, %v3466
      %v3477 = vsel %vm3470, %v3473, %v3476
      %v3478 = vsel %vm3467, nan, %v3477
      %v3479 = vand.u32 2147483647, %v2746
      %vm3480 = vcmp.le.f32.partialorder %v3479, 0.7853982
      %vm3481 = vcmp.lt.s32.totalorder %v2746, 0
      %v3482 = vand.u32 %v2746, 2139095040
      %v3483 = vshrl.u32 %v3482, 23
      %v3484 = vsub.s32 %v3483, 127
      %v3485 = vand.u32 2147483647, %v2746
      %v3486 = vand.u32 %v3485, 8388607
      %v3487 = vor.u32 %v3486, 8388608
      %v3488 = vsub.s32 0, %v3487
      %v3489 = vadd.s32 %v3484, 1
      %vm3490 = vcmp.gt.s32.totalorder %v3489, 0
      %v3491 = vsel %vm3490, %v3489, 0
      %v3492 = vshrl.u32 %v3491, 5
      %v3493 = vand.u32 %v3491, 31
      %v3494 = vsub.s32 32, %v3493
      %v3495 = vshrl.u32 683565275, %v3494
      %v3496 = vshll.u32 683565275, %v3493
      %v3497 = vshrl.u32 2475754826, %v3494
      %v3498 = vor.u32 %v3496, %v3497
      %v3499 = vshll.u32 2475754826, %v3493
      %v3500 = vshrl.u32 2131351028, %v3494
      %v3501 = vor.u32 %v3499, %v3500
      %v3502 = vshll.u32 2131351028, %v3493
      %v3503 = vshrl.u32 2102212464, %v3494
      %v3504 = vor.u32 %v3502, %v3503
      %v3505 = vshll.u32 2102212464, %v3493
      %v3506 = vshrl.u32 920167782, %v3494
      %v3507 = vor.u32 %v3505, %v3506
      %v3508 = vshll.u32 920167782, %v3493
      %v3509 = vshrl.u32 1326507024, %v3494
      %v3510 = vor.u32 %v3508, %v3509
      %vm3511 = vcmp.lt.s32.totalorder %v3492, 1
      %vm3512 = vcmp.lt.s32.totalorder %v3492, 2
      %vm3513 = vcmp.lt.s32.totalorder %v3492, 3
      %vm3514 = vcmp.lt.s32.totalorder %v3492, 4
      %v3515 = vsel %vm3511, %v3495, %v3498
      %v3516 = vsel %vm3514, %v3504, 2102212464
      %v3517 = vsel %vm3513, %v3501, %v3516
      %v3518 = vsel %vm3512, %v3515, %v3517
      %v3519 = vsel %vm3511, %v3498, %v3501
      %v3520 = vsel %vm3514, %v3507, 920167782
      %v3521 = vsel %vm3513, %v3504, %v3520
      %v3522 = vsel %vm3512, %v3519, %v3521
      %v3523 = vsel %vm3511, %v3501, %v3504
      %v3524 = vsel %vm3514, %v3510, 1326507024
      %v3525 = vsel %vm3513, %v3507, %v3524
      %v3526 = vsel %vm3512, %v3523, %v3525
      %v3527 = vshll.u32 %v3487, 8
      %v3528 = vmul.u32.u64.compose %v3527, %v3526
      %v3529 = vextract.low.u32 %v3528
      %v3530 = vextract.high.u32 %v3528
      %v3531 = vmul.u32.u64.compose %v3527, %v3522
      %v3532 = vextract.low.u32 %v3531
      %v3533 = vextract.high.u32 %v3531
      %v3534 = vmul.u32 %v3527, %v3518
      %v3535 = vadd.s32 %v3530, %v3532
      %vm3536 = vc.u32 %v3530, %v3532
      %v3537 = vadd.s32 %v3533, 1
      %v3538 = vsel %vm3536, %v3537, %v3533
      %v3539 = vadd.s32 %v3534, %v3538
      %v3540 = vadd.s32 %v3539, 536870912
      %v3541 = vshrl.u32 %v3540, 30
      %v3542 = vshll.u32 %v3541, 30
      %v3543 = vsub.s32 %v3539, %v3542
      %vm3544 = vcmp.lt.s32.totalorder %v3543, 0
      %v3545 = vsub.s32 0, %v3543
      %v3546 = vsel %vm3544, %v3545, %v3543
      %v3547 = vclz %v3546
      %v3548 = vsub.s32 %v3547, 2
      %vm3549 = vcmp.gt.s32.totalorder 0, %v3548
      %v3550 = vsel %vm3549, 0, %v3548
      %v3551 = vsub.s32 32, %v3550
      %v3552 = vshll.u32 %v3543, %v3550
      %v3553 = vshrl.u32 %v3535, %v3551
      %v3554 = vor.u32 %v3552, %v3553
      %v3555 = vsub.s32 4294967266, %v3550
      %v3556 = vadd.s32 %v3555, 127
      %v3557 = vshll.u32 %v3556, 23
      %v3558 = vor.u32 4788187, %v3557
      %v3559 = vand.u32 2147483647, %v3558
      %v3561 = vcvt.s32.f32 %v3554
      %v3562 = vmul.f32 %v3561, %v3559
      %v3563 = vxor.u32 %v3562, 2147483648
      %v3564 = vsel %vm3481, %v3563, %v3562
      %v3565 = vsub.s32 4, %v3541
      %v3566 = vsel %vm3481, %v3565, %v3541
      %v3567 = vsel %vm3480, %v2746, %v3564
      %v3568 = vsel %vm3480, 0, %v3566
      %v3569 = vcosq.f32.pop %v3567
      %v3570 = vsinq.f32.pop %v3567
      %vm3571 = vweird.f32 %v2746
      %v3572 = vadd.s32 %v3568, 3
      %v3573 = vand.u32 %v3572, 3
      %vm3574 = vcmp.lt.s32.totalorder %v3573, 2
      %vm3575 = vcmp.eq.s32.totalorder %v3573, 0
      %v3576 = vxor.u32 %v3570, 2147483648
      %v3577 = vsel %vm3575, %v3569, %v3576
      %vm3578 = vcmp.eq.s32.totalorder %v3573, 2
      %v3579 = vxor.u32 %v3569, 2147483648
      %v3580 = vsel %vm3578, %v3579, %v3570
      %v3581 = vsel %vm3574, %v3577, %v3580
      %v3582 = vsel %vm3571, nan, %v3581
      %v3583 = vand.u32 2147483647, %v2747
      %vm3584 = vcmp.le.f32.partialorder %v3583, 0.7853982
      %vm3585 = vcmp.lt.s32.totalorder %v2747, 0
      %v3586 = vand.u32 %v2747, 2139095040
      %v3587 = vshrl.u32 %v3586, 23
      %v3588 = vsub.s32 %v3587, 127
      %v3589 = vand.u32 2147483647, %v2747
      %v3590 = vand.u32 %v3589, 8388607
      %v3591 = vor.u32 %v3590, 8388608
      %v3592 = vsub.s32 0, %v3591
      %v3593 = vadd.s32 %v3588, 1
      %vm3594 = vcmp.gt.s32.totalorder %v3593, 0
      %v3595 = vsel %vm3594, %v3593, 0
      %v3596 = vshrl.u32 %v3595, 5
      %v3597 = vand.u32 %v3595, 31
      %v3598 = vsub.s32 32, %v3597
      %v3599 = vshrl.u32 683565275, %v3598
      %v3600 = vshll.u32 683565275, %v3597
      %v3601 = vshrl.u32 2475754826, %v3598
      %v3602 = vor.u32 %v3600, %v3601
      %v3603 = vshll.u32 2475754826, %v3597
      %v3604 = vshrl.u32 2131351028, %v3598
      %v3605 = vor.u32 %v3603, %v3604
      %v3606 = vshll.u32 2131351028, %v3597
      %v3607 = vshrl.u32 2102212464, %v3598
      %v3608 = vor.u32 %v3606, %v3607
      %v3609 = vshll.u32 2102212464, %v3597
      %v3610 = vshrl.u32 920167782, %v3598
      %v3611 = vor.u32 %v3609, %v3610
      %v3612 = vshll.u32 920167782, %v3597
      %v3613 = vshrl.u32 1326507024, %v3598
      %v3614 = vor.u32 %v3612, %v3613
      %vm3615 = vcmp.lt.s32.totalorder %v3596, 1
      %vm3616 = vcmp.lt.s32.totalorder %v3596, 2
      %vm3617 = vcmp.lt.s32.totalorder %v3596, 3
      %vm3618 = vcmp.lt.s32.totalorder %v3596, 4
      %v3619 = vsel %vm3615, %v3599, %v3602
      %v3620 = vsel %vm3618, %v3608, 2102212464
      %v3621 = vsel %vm3617, %v3605, %v3620
      %v3622 = vsel %vm3616, %v3619, %v3621
      %v3623 = vsel %vm3615, %v3602, %v3605
      %v3624 = vsel %vm3618, %v3611, 920167782
      %v3625 = vsel %vm3617, %v3608, %v3624
      %v3626 = vsel %vm3616, %v3623, %v3625
      %v3627 = vsel %vm3615, %v3605, %v3608
      %v3628 = vsel %vm3618, %v3614, 1326507024
      %v3629 = vsel %vm3617, %v3611, %v3628
      %v3630 = vsel %vm3616, %v3627, %v3629
      %v3631 = vshll.u32 %v3591, 8
      %v3632 = vmul.u32.u64.compose %v3631, %v3630
      %v3633 = vextract.low.u32 %v3632
      %v3634 = vextract.high.u32 %v3632
      %v3635 = vmul.u32.u64.compose %v3631, %v3626
      %v3636 = vextract.low.u32 %v3635
      %v3637 = vextract.high.u32 %v3635
      %v3638 = vmul.u32 %v3631, %v3622
      %v3639 = vadd.s32 %v3634, %v3636
      %vm3640 = vc.u32 %v3634, %v3636
      %v3641 = vadd.s32 %v3637, 1
      %v3642 = vsel %vm3640, %v3641, %v3637
      %v3643 = vadd.s32 %v3638, %v3642
      %v3644 = vadd.s32 %v3643, 536870912
      %v3645 = vshrl.u32 %v3644, 30
      %v3646 = vshll.u32 %v3645, 30
      %v3647 = vsub.s32 %v3643, %v3646
      %vm3648 = vcmp.lt.s32.totalorder %v3647, 0
      %v3649 = vsub.s32 0, %v3647
      %v3650 = vsel %vm3648, %v3649, %v3647
      %v3651 = vclz %v3650
      %v3652 = vsub.s32 %v3651, 2
      %vm3653 = vcmp.gt.s32.totalorder 0, %v3652
      %v3654 = vsel %vm3653, 0, %v3652
      %v3655 = vsub.s32 32, %v3654
      %v3656 = vshll.u32 %v3647, %v3654
      %v3657 = vshrl.u32 %v3639, %v3655
      %v3658 = vor.u32 %v3656, %v3657
      %v3659 = vsub.s32 4294967266, %v3654
      %v3660 = vadd.s32 %v3659, 127
      %v3661 = vshll.u32 %v3660, 23
      %v3662 = vor.u32 4788187, %v3661
      %v3663 = vand.u32 2147483647, %v3662
      %v3665 = vcvt.s32.f32 %v3658
      %v3666 = vmul.f32 %v3665, %v3663
      %v3667 = vxor.u32 %v3666, 2147483648
      %v3668 = vsel %vm3585, %v3667, %v3666
      %v3669 = vsub.s32 4, %v3645
      %v3670 = vsel %vm3585, %v3669, %v3645
      %v3671 = vsel %vm3584, %v2747, %v3668
      %v3672 = vsel %vm3584, 0, %v3670
      %v3673 = vcosq.f32.pop %v3671
      %v3674 = vsinq.f32.pop %v3671
      %vm3675 = vweird.f32 %v2747
      %v3676 = vadd.s32 %v3672, 3
      %v3677 = vand.u32 %v3676, 3
      %vm3678 = vcmp.lt.s32.totalorder %v3677, 2
      %vm3679 = vcmp.eq.s32.totalorder %v3677, 0
      %v3680 = vxor.u32 %v3674, 2147483648
      %v3681 = vsel %vm3679, %v3673, %v3680
      %vm3682 = vcmp.eq.s32.totalorder %v3677, 2
      %v3683 = vxor.u32 %v3673, 2147483648
      %v3684 = vsel %vm3682, %v3683, %v3674
      %v3685 = vsel %vm3678, %v3681, %v3684
      %v3686 = vsel %vm3675, nan, %v3685
      %v3687 = vand.u32 2147483647, %v2748
      %vm3688 = vcmp.le.f32.partialorder %v3687, 0.7853982
      %vm3689 = vcmp.lt.s32.totalorder %v2748, 0
      %v3690 = vand.u32 %v2748, 2139095040
      %v3691 = vshrl.u32 %v3690, 23
      %v3692 = vsub.s32 %v3691, 127
      %v3693 = vand.u32 2147483647, %v2748
      %v3694 = vand.u32 %v3693, 8388607
      %v3695 = vor.u32 %v3694, 8388608
      %v3696 = vsub.s32 0, %v3695
      %v3697 = vadd.s32 %v3692, 1
      %vm3698 = vcmp.gt.s32.totalorder %v3697, 0
      %v3699 = vsel %vm3698, %v3697, 0
      %v3700 = vshrl.u32 %v3699, 5
      %v3701 = vand.u32 %v3699, 31
      %v3702 = vsub.s32 32, %v3701
      %v3703 = vshrl.u32 683565275, %v3702
      %v3704 = vshll.u32 683565275, %v3701
      %v3705 = vshrl.u32 2475754826, %v3702
      %v3706 = vor.u32 %v3704, %v3705
      %v3707 = vshll.u32 2475754826, %v3701
      %v3708 = vshrl.u32 2131351028, %v3702
      %v3709 = vor.u32 %v3707, %v3708
      %v3710 = vshll.u32 2131351028, %v3701
      %v3711 = vshrl.u32 2102212464, %v3702
      %v3712 = vor.u32 %v3710, %v3711
      %v3713 = vshll.u32 2102212464, %v3701
      %v3714 = vshrl.u32 920167782, %v3702
      %v3715 = vor.u32 %v3713, %v3714
      %v3716 = vshll.u32 920167782, %v3701
      %v3717 = vshrl.u32 1326507024, %v3702
      %v3718 = vor.u32 %v3716, %v3717
      %vm3719 = vcmp.lt.s32.totalorder %v3700, 1
      %vm3720 = vcmp.lt.s32.totalorder %v3700, 2
      %vm3721 = vcmp.lt.s32.totalorder %v3700, 3
      %vm3722 = vcmp.lt.s32.totalorder %v3700, 4
      %v3723 = vsel %vm3719, %v3703, %v3706
      %v3724 = vsel %vm3722, %v3712, 2102212464
      %v3725 = vsel %vm3721, %v3709, %v3724
      %v3726 = vsel %vm3720, %v3723, %v3725
      %v3727 = vsel %vm3719, %v3706, %v3709
      %v3728 = vsel %vm3722, %v3715, 920167782
      %v3729 = vsel %vm3721, %v3712, %v3728
      %v3730 = vsel %vm3720, %v3727, %v3729
      %v3731 = vsel %vm3719, %v3709, %v3712
      %v3732 = vsel %vm3722, %v3718, 1326507024
      %v3733 = vsel %vm3721, %v3715, %v3732
      %v3734 = vsel %vm3720, %v3731, %v3733
      %v3735 = vshll.u32 %v3695, 8
      %v3736 = vmul.u32.u64.compose %v3735, %v3734
      %v3737 = vextract.low.u32 %v3736
      %v3738 = vextract.high.u32 %v3736
      %v3739 = vmul.u32.u64.compose %v3735, %v3730
      %v3740 = vextract.low.u32 %v3739
      %v3741 = vextract.high.u32 %v3739
      %v3742 = vmul.u32 %v3735, %v3726
      %v3743 = vadd.s32 %v3738, %v3740
      %vm3744 = vc.u32 %v3738, %v3740
      %v3745 = vadd.s32 %v3741, 1
      %v3746 = vsel %vm3744, %v3745, %v3741
      %v3747 = vadd.s32 %v3742, %v3746
      %v3748 = vadd.s32 %v3747, 536870912
      %v3749 = vshrl.u32 %v3748, 30
      %v3750 = vshll.u32 %v3749, 30
      %v3751 = vsub.s32 %v3747, %v3750
      %vm3752 = vcmp.lt.s32.totalorder %v3751, 0
      %v3753 = vsub.s32 0, %v3751
      %v3754 = vsel %vm3752, %v3753, %v3751
      %v3755 = vclz %v3754
      %v3756 = vsub.s32 %v3755, 2
      %vm3757 = vcmp.gt.s32.totalorder 0, %v3756
      %v3758 = vsel %vm3757, 0, %v3756
      %v3759 = vsub.s32 32, %v3758
      %v3760 = vshll.u32 %v3751, %v3758
      %v3761 = vshrl.u32 %v3743, %v3759
      %v3762 = vor.u32 %v3760, %v3761
      %v3763 = vsub.s32 4294967266, %v3758
      %v3764 = vadd.s32 %v3763, 127
      %v3765 = vshll.u32 %v3764, 23
      %v3766 = vor.u32 4788187, %v3765
      %v3767 = vand.u32 2147483647, %v3766
      %v3769 = vcvt.s32.f32 %v3762
      %v3770 = vmul.f32 %v3769, %v3767
      %v3771 = vxor.u32 %v3770, 2147483648
      %v3772 = vsel %vm3689, %v3771, %v3770
      %v3773 = vsub.s32 4, %v3749
      %v3774 = vsel %vm3689, %v3773, %v3749
      %v3775 = vsel %vm3688, %v2748, %v3772
      %v3776 = vsel %vm3688, 0, %v3774
      %v3777 = vcosq.f32.pop %v3775
      %v3778 = vsinq.f32.pop %v3775
      %vm3779 = vweird.f32 %v2748
      %v3780 = vadd.s32 %v3776, 3
      %v3781 = vand.u32 %v3780, 3
      %vm3782 = vcmp.lt.s32.totalorder %v3781, 2
      %vm3783 = vcmp.eq.s32.totalorder %v3781, 0
      %v3784 = vxor.u32 %v3778, 2147483648
      %v3785 = vsel %vm3783, %v3777, %v3784
      %vm3786 = vcmp.eq.s32.totalorder %v3781, 2
      %v3787 = vxor.u32 %v3777, 2147483648
      %v3788 = vsel %vm3786, %v3787, %v3778
      %v3789 = vsel %vm3782, %v3785, %v3788
      %v3790 = vsel %vm3779, nan, %v3789
      %v3791 = vand.u32 2147483647, %v2749
      %vm3792 = vcmp.le.f32.partialorder %v3791, 0.7853982
      %vm3793 = vcmp.lt.s32.totalorder %v2749, 0
      %v3794 = vand.u32 %v2749, 2139095040
      %v3795 = vshrl.u32 %v3794, 23
      %v3796 = vsub.s32 %v3795, 127
      %v3797 = vand.u32 2147483647, %v2749
      %v3798 = vand.u32 %v3797, 8388607
      %v3799 = vor.u32 %v3798, 8388608
      %v3800 = vsub.s32 0, %v3799
      %v3801 = vadd.s32 %v3796, 1
      %vm3802 = vcmp.gt.s32.totalorder %v3801, 0
      %v3803 = vsel %vm3802, %v3801, 0
      %v3804 = vshrl.u32 %v3803, 5
      %v3805 = vand.u32 %v3803, 31
      %v3806 = vsub.s32 32, %v3805
      %v3807 = vshrl.u32 683565275, %v3806
      %v3808 = vshll.u32 683565275, %v3805
      %v3809 = vshrl.u32 2475754826, %v3806
      %v3810 = vor.u32 %v3808, %v3809
      %v3811 = vshll.u32 2475754826, %v3805
      %v3812 = vshrl.u32 2131351028, %v3806
      %v3813 = vor.u32 %v3811, %v3812
      %v3814 = vshll.u32 2131351028, %v3805
      %v3815 = vshrl.u32 2102212464, %v3806
      %v3816 = vor.u32 %v3814, %v3815
      %v3817 = vshll.u32 2102212464, %v3805
      %v3818 = vshrl.u32 920167782, %v3806
      %v3819 = vor.u32 %v3817, %v3818
      %v3820 = vshll.u32 920167782, %v3805
      %v3821 = vshrl.u32 1326507024, %v3806
      %v3822 = vor.u32 %v3820, %v3821
      %vm3823 = vcmp.lt.s32.totalorder %v3804, 1
      %vm3824 = vcmp.lt.s32.totalorder %v3804, 2
      %vm3825 = vcmp.lt.s32.totalorder %v3804, 3
      %vm3826 = vcmp.lt.s32.totalorder %v3804, 4
      %v3827 = vsel %vm3823, %v3807, %v3810
      %v3828 = vsel %vm3826, %v3816, 2102212464
      %v3829 = vsel %vm3825, %v3813, %v3828
      %v3830 = vsel %vm3824, %v3827, %v3829
      %v3831 = vsel %vm3823, %v3810, %v3813
      %v3832 = vsel %vm3826, %v3819, 920167782
      %v3833 = vsel %vm3825, %v3816, %v3832
      %v3834 = vsel %vm3824, %v3831, %v3833
      %v3835 = vsel %vm3823, %v3813, %v3816
      %v3836 = vsel %vm3826, %v3822, 1326507024
      %v3837 = vsel %vm3825, %v3819, %v3836
      %v3838 = vsel %vm3824, %v3835, %v3837
      %v3839 = vshll.u32 %v3799, 8
      %v3840 = vmul.u32.u64.compose %v3839, %v3838
      %v3841 = vextract.low.u32 %v3840
      %v3842 = vextract.high.u32 %v3840
      %v3843 = vmul.u32.u64.compose %v3839, %v3834
      %v3844 = vextract.low.u32 %v3843
      %v3845 = vextract.high.u32 %v3843
      %v3846 = vmul.u32 %v3839, %v3830
      %v3847 = vadd.s32 %v3842, %v3844
      %vm3848 = vc.u32 %v3842, %v3844
      %v3849 = vadd.s32 %v3845, 1
      %v3850 = vsel %vm3848, %v3849, %v3845
      %v3851 = vadd.s32 %v3846, %v3850
      %v3852 = vadd.s32 %v3851, 536870912
      %v3853 = vshrl.u32 %v3852, 30
      %v3854 = vshll.u32 %v3853, 30
      %v3855 = vsub.s32 %v3851, %v3854
      %vm3856 = vcmp.lt.s32.totalorder %v3855, 0
      %v3857 = vsub.s32 0, %v3855
      %v3858 = vsel %vm3856, %v3857, %v3855
      %v3859 = vclz %v3858
      %v3860 = vsub.s32 %v3859, 2
      %vm3861 = vcmp.gt.s32.totalorder 0, %v3860
      %v3862 = vsel %vm3861, 0, %v3860
      %v3863 = vsub.s32 32, %v3862
      %v3864 = vshll.u32 %v3855, %v3862
      %v3865 = vshrl.u32 %v3847, %v3863
      %v3866 = vor.u32 %v3864, %v3865
      %v3867 = vsub.s32 4294967266, %v3862
      %v3868 = vadd.s32 %v3867, 127
      %v3869 = vshll.u32 %v3868, 23
      %v3870 = vor.u32 4788187, %v3869
      %v3871 = vand.u32 2147483647, %v3870
      %v3873 = vcvt.s32.f32 %v3866
      %v3874 = vmul.f32 %v3873, %v3871
      %v3875 = vxor.u32 %v3874, 2147483648
      %v3876 = vsel %vm3793, %v3875, %v3874
      %v3877 = vsub.s32 4, %v3853
      %v3878 = vsel %vm3793, %v3877, %v3853
      %v3879 = vsel %vm3792, %v2749, %v3876
      %v3880 = vsel %vm3792, 0, %v3878
      %v3881 = vcosq.f32.pop %v3879
      %v3882 = vsinq.f32.pop %v3879
      %vm3883 = vweird.f32 %v2749
      %v3884 = vadd.s32 %v3880, 3
      %v3885 = vand.u32 %v3884, 3
      %vm3886 = vcmp.lt.s32.totalorder %v3885, 2
      %vm3887 = vcmp.eq.s32.totalorder %v3885, 0
      %v3888 = vxor.u32 %v3882, 2147483648
      %v3889 = vsel %vm3887, %v3881, %v3888
      %vm3890 = vcmp.eq.s32.totalorder %v3885, 2
      %v3891 = vxor.u32 %v3881, 2147483648
      %v3892 = vsel %vm3890, %v3891, %v3882
      %v3893 = vsel %vm3886, %v3889, %v3892
      %v3894 = vsel %vm3883, nan, %v3893
      %v3895 = vand.u32 2147483647, %v2750
      %vm3896 = vcmp.le.f32.partialorder %v3895, 0.7853982
      %vm3897 = vcmp.lt.s32.totalorder %v2750, 0
      %v3898 = vand.u32 %v2750, 2139095040
      %v3899 = vshrl.u32 %v3898, 23
      %v3900 = vsub.s32 %v3899, 127
      %v3901 = vand.u32 2147483647, %v2750
      %v3902 = vand.u32 %v3901, 8388607
      %v3903 = vor.u32 %v3902, 8388608
      %v3904 = vsub.s32 0, %v3903
      %v3905 = vadd.s32 %v3900, 1
      %vm3906 = vcmp.gt.s32.totalorder %v3905, 0
      %v3907 = vsel %vm3906, %v3905, 0
      %v3908 = vshrl.u32 %v3907, 5
      %v3909 = vand.u32 %v3907, 31
      %v3910 = vsub.s32 32, %v3909
      %v3911 = vshrl.u32 683565275, %v3910
      %v3912 = vshll.u32 683565275, %v3909
      %v3913 = vshrl.u32 2475754826, %v3910
      %v3914 = vor.u32 %v3912, %v3913
      %v3915 = vshll.u32 2475754826, %v3909
      %v3916 = vshrl.u32 2131351028, %v3910
      %v3917 = vor.u32 %v3915, %v3916
      %v3918 = vshll.u32 2131351028, %v3909
      %v3919 = vshrl.u32 2102212464, %v3910
      %v3920 = vor.u32 %v3918, %v3919
      %v3921 = vshll.u32 2102212464, %v3909
      %v3922 = vshrl.u32 920167782, %v3910
      %v3923 = vor.u32 %v3921, %v3922
      %v3924 = vshll.u32 920167782, %v3909
      %v3925 = vshrl.u32 1326507024, %v3910
      %v3926 = vor.u32 %v3924, %v3925
      %vm3927 = vcmp.lt.s32.totalorder %v3908, 1
      %vm3928 = vcmp.lt.s32.totalorder %v3908, 2
      %vm3929 = vcmp.lt.s32.totalorder %v3908, 3
      %vm3930 = vcmp.lt.s32.totalorder %v3908, 4
      %v3931 = vsel %vm3927, %v3911, %v3914
      %v3932 = vsel %vm3930, %v3920, 2102212464
      %v3933 = vsel %vm3929, %v3917, %v3932
      %v3934 = vsel %vm3928, %v3931, %v3933
      %v3935 = vsel %vm3927, %v3914, %v3917
      %v3936 = vsel %vm3930, %v3923, 920167782
      %v3937 = vsel %vm3929, %v3920, %v3936
      %v3938 = vsel %vm3928, %v3935, %v3937
      %v3939 = vsel %vm3927, %v3917, %v3920
      %v3940 = vsel %vm3930, %v3926, 1326507024
      %v3941 = vsel %vm3929, %v3923, %v3940
      %v3942 = vsel %vm3928, %v3939, %v3941
      %v3943 = vshll.u32 %v3903, 8
      %v3944 = vmul.u32.u64.compose %v3943, %v3942
      %v3945 = vextract.low.u32 %v3944
      %v3946 = vextract.high.u32 %v3944
      %v3947 = vmul.u32.u64.compose %v3943, %v3938
      %v3948 = vextract.low.u32 %v3947
      %v3949 = vextract.high.u32 %v3947
      %v3950 = vmul.u32 %v3943, %v3934
      %v3951 = vadd.s32 %v3946, %v3948
      %vm3952 = vc.u32 %v3946, %v3948
      %v3953 = vadd.s32 %v3949, 1
      %v3954 = vsel %vm3952, %v3953, %v3949
      %v3955 = vadd.s32 %v3950, %v3954
      %v3956 = vadd.s32 %v3955, 536870912
      %v3957 = vshrl.u32 %v3956, 30
      %v3958 = vshll.u32 %v3957, 30
      %v3959 = vsub.s32 %v3955, %v3958
      %vm3960 = vcmp.lt.s32.totalorder %v3959, 0
      %v3961 = vsub.s32 0, %v3959
      %v3962 = vsel %vm3960, %v3961, %v3959
      %v3963 = vclz %v3962
      %v3964 = vsub.s32 %v3963, 2
      %vm3965 = vcmp.gt.s32.totalorder 0, %v3964
      %v3966 = vsel %vm3965, 0, %v3964
      %v3967 = vsub.s32 32, %v3966
      %v3968 = vshll.u32 %v3959, %v3966
      %v3969 = vshrl.u32 %v3951, %v3967
      %v3970 = vor.u32 %v3968, %v3969
      %v3971 = vsub.s32 4294967266, %v3966
      %v3972 = vadd.s32 %v3971, 127
      %v3973 = vshll.u32 %v3972, 23
      %v3974 = vor.u32 4788187, %v3973
      %v3975 = vand.u32 2147483647, %v3974
      %v3977 = vcvt.s32.f32 %v3970
      %v3978 = vmul.f32 %v3977, %v3975
      %v3979 = vxor.u32 %v3978, 2147483648
      %v3980 = vsel %vm3897, %v3979, %v3978
      %v3981 = vsub.s32 4, %v3957
      %v3982 = vsel %vm3897, %v3981, %v3957
      %v3983 = vsel %vm3896, %v2750, %v3980
      %v3984 = vsel %vm3896, 0, %v3982
      %v3985 = vcosq.f32.pop %v3983
      %v3986 = vsinq.f32.pop %v3983
      %vm3987 = vweird.f32 %v2750
      %v3988 = vadd.s32 %v3984, 3
      %v3989 = vand.u32 %v3988, 3
      %vm3990 = vcmp.lt.s32.totalorder %v3989, 2
      %vm3991 = vcmp.eq.s32.totalorder %v3989, 0
      %v3992 = vxor.u32 %v3986, 2147483648
      %v3993 = vsel %vm3991, %v3985, %v3992
      %vm3994 = vcmp.eq.s32.totalorder %v3989, 2
      %v3995 = vxor.u32 %v3985, 2147483648
      %v3996 = vsel %vm3994, %v3995, %v3986
      %v3997 = vsel %vm3990, %v3993, %v3996
      %v3998 = vsel %vm3987, nan, %v3997
      %3999 = vrot.lane.b32.xlu0 %v2854, 19
      %v4000 = vpop.permute.xlu0 %3999
      %4001 = vrot.lane.b32.xlu0 %v3166, 19
      %v4002 = vpop.permute.xlu0 %4001
      %4003 = vrot.lane.b32.xlu0 %v3478, 19
      %v4004 = vpop.permute.xlu0 %4003
      %4005 = vrot.lane.b32.xlu0 %v3790, 19
      %v4006 = vpop.permute.xlu0 %4005
      %4007 = vrot.lane.b32.xlu0 %v2958, 19
      %v4008 = vpop.permute.xlu0 %4007
      %4009 = vrot.lane.b32.xlu0 %v3270, 19
      %v4010 = vpop.permute.xlu0 %4009
      %4011 = vrot.lane.b32.xlu0 %v3582, 19
      %v4012 = vpop.permute.xlu0 %4011
      %4013 = vrot.lane.b32.xlu0 %v3894, 19
      %v4014 = vpop.permute.xlu0 %4013
      %4015 = vrot.lane.b32.xlu0 %v3062, 19
      %v4016 = vpop.permute.xlu0 %4015
      %4017 = vrot.lane.b32.xlu0 %v3374, 19
      %v4018 = vpop.permute.xlu0 %4017
      %4019 = vrot.lane.b32.xlu0 %v3686, 19
      %v4020 = vpop.permute.xlu0 %4019
      %4021 = vrot.lane.b32.xlu0 %v3998, 19
      %v4022 = vpop.permute.xlu0 %4021
      %v4023 = vsel %vm399, %v4008, %v4016
      %v4024 = vsel %vm399, %v4010, %v4018
      %v4025 = vsel %vm399, %v4012, %v4020
      %v4026 = vsel %vm399, %v4014, %v4022
      %v4027 = vsel %vm399, %v4000, %v4008
      %v4028 = vsel %vm399, %v4002, %v4010
      %v4029 = vsel %vm399, %v4004, %v4012
      %v4030 = vsel %vm399, %v4006, %v4014
      %v4031 = vsel %vm399, %v4016, %v4000
      %v4032 = vsel %vm399, %v4018, %v4002
      %v4033 = vsel %vm399, %v4020, %v4004
      %v4034 = vsel %vm399, %v4022, %v4006
      %v4035 = vpack.c.bf16 %v4032, %v4031
      %v4036 = vpack.c.bf16 %v4028, %v4027
      %v4037 = vpack.c.bf16 %v4024, %v4023
      %v4038 = vpack.c.bf16 %v4034, %v4033
      %v4039 = vpack.c.bf16 %v4030, %v4029
      %v4040 = vpack.c.bf16 %v4026, %v4025
      %4041 = vst [vmem:[#allocation3] sm:$0xff] %v4035
      %4042 = vst [vmem:[#allocation3 + $0x8] sm:$0xff] %v4036
      %4043 = vst [vmem:[#allocation3 + $0x10] sm:$0xff] %v4037
      %4044 = vst [vmem:[#allocation3 + $0x18] sm:$0xff] %v4038
      %4045 = vst [vmem:[#allocation3 + $0x20] sm:$0xff] %v4039
      %4046 = vst [vmem:[#allocation3 + $0x28] sm:$0xff] %v4040
      %4047 = vrot.lane.b32.xlu0 %v2854, 18
      %v4048 = vpop.permute.xlu0 %4047
      %4049 = vrot.lane.b32.xlu0 %v3166, 18
      %v4050 = vpop.permute.xlu0 %4049
      %4051 = vrot.lane.b32.xlu0 %v3478, 18
      %v4052 = vpop.permute.xlu0 %4051
      %4053 = vrot.lane.b32.xlu0 %v3790, 18
      %v4054 = vpop.permute.xlu0 %4053
      %4055 = vrot.lane.b32.xlu0 %v2958, 18
      %v4056 = vpop.permute.xlu0 %4055
      %4057 = vrot.lane.b32.xlu0 %v3270, 18
      %v4058 = vpop.permute.xlu0 %4057
      %4059 = vrot.lane.b32.xlu0 %v3582, 18
      %v4060 = vpop.permute.xlu0 %4059
      %4061 = vrot.lane.b32.xlu0 %v3894, 18
      %v4062 = vpop.permute.xlu0 %4061
      %4063 = vrot.lane.b32.xlu0 %v3062, 18
      %v4064 = vpop.permute.xlu0 %4063
      %4065 = vrot.lane.b32.xlu0 %v3374, 18
      %v4066 = vpop.permute.xlu0 %4065
      %4067 = vrot.lane.b32.xlu0 %v3686, 18
      %v4068 = vpop.permute.xlu0 %4067
      %4069 = vrot.lane.b32.xlu0 %v3998, 18
      %v4070 = vpop.permute.xlu0 %4069
      %v4071 = vsel %vm448, %v4056, %v4064
      %v4072 = vsel %vm448, %v4058, %v4066
      %v4073 = vsel %vm448, %v4060, %v4068
      %v4074 = vsel %vm448, %v4062, %v4070
      %v4075 = vsel %vm448, %v4048, %v4056
      %v4076 = vsel %vm448, %v4050, %v4058
      %v4077 = vsel %vm448, %v4052, %v4060
      %v4078 = vsel %vm448, %v4054, %v4062
      %v4079 = vsel %vm448, %v4064, %v4048
      %v4080 = vsel %vm448, %v4066, %v4050
      %v4081 = vsel %vm448, %v4068, %v4052
      %v4082 = vsel %vm448, %v4070, %v4054
      %v4083 = vpack.c.bf16 %v4080, %v4079
      %v4084 = vpack.c.bf16 %v4076, %v4075
      %v4085 = vpack.c.bf16 %v4072, %v4071
      %v4086 = vpack.c.bf16 %v4082, %v4081
      %v4087 = vpack.c.bf16 %v4078, %v4077
      %v4088 = vpack.c.bf16 %v4074, %v4073
      %4089 = vst [vmem:[#allocation3 + $0x30] sm:$0xff] %v4083
      %4090 = vst [vmem:[#allocation3 + $0x38] sm:$0xff] %v4084
      %4091 = vst [vmem:[#allocation3 + $0x40] sm:$0xff] %v4085
      %4092 = vst [vmem:[#allocation3 + $0x48] sm:$0xff] %v4086
      %4093 = vst [vmem:[#allocation3 + $0x50] sm:$0xff] %v4087
      %4094 = vst [vmem:[#allocation3 + $0x58] sm:$0xff] %v4088
      %4095 = vrot.lane.b32.xlu0 %v2854, 17
      %v4096 = vpop.permute.xlu0 %4095
      %4097 = vrot.lane.b32.xlu0 %v3166, 17
      %v4098 = vpop.permute.xlu0 %4097
      %4099 = vrot.lane.b32.xlu0 %v3478, 17
      %v4100 = vpop.permute.xlu0 %4099
      %4101 = vrot.lane.b32.xlu0 %v3790, 17
      %v4102 = vpop.permute.xlu0 %4101
      %4103 = vrot.lane.b32.xlu0 %v2958, 17
      %v4104 = vpop.permute.xlu0 %4103
      %4105 = vrot.lane.b32.xlu0 %v3270, 17
      %v4106 = vpop.permute.xlu0 %4105
      %4107 = vrot.lane.b32.xlu0 %v3582, 17
      %v4108 = vpop.permute.xlu0 %4107
      %4109 = vrot.lane.b32.xlu0 %v3894, 17
      %v4110 = vpop.permute.xlu0 %4109
      %4111 = vrot.lane.b32.xlu0 %v3062, 17
      %v4112 = vpop.permute.xlu0 %4111
      %4113 = vrot.lane.b32.xlu0 %v3374, 17
      %v4114 = vpop.permute.xlu0 %4113
      %4115 = vrot.lane.b32.xlu0 %v3686, 17
      %v4116 = vpop.permute.xlu0 %4115
      %4117 = vrot.lane.b32.xlu0 %v3998, 17
      %v4118 = vpop.permute.xlu0 %4117
      %v4119 = vsel %vm497, %v4104, %v4112
      %v4120 = vsel %vm497, %v4106, %v4114
      %v4121 = vsel %vm497, %v4108, %v4116
      %v4122 = vsel %vm497, %v4110, %v4118
      %v4123 = vsel %vm497, %v4096, %v4104
      %v4124 = vsel %vm497, %v4098, %v4106
      %v4125 = vsel %vm497, %v4100, %v4108
      %v4126 = vsel %vm497, %v4102, %v4110
      %v4127 = vsel %vm497, %v4112, %v4096
      %v4128 = vsel %vm497, %v4114, %v4098
      %v4129 = vsel %vm497, %v4116, %v4100
      %v4130 = vsel %vm497, %v4118, %v4102
      %v4131 = vpack.c.bf16 %v4128, %v4127
      %v4132 = vpack.c.bf16 %v4124, %v4123
      %v4133 = vpack.c.bf16 %v4120, %v4119
      %v4134 = vpack.c.bf16 %v4130, %v4129
      %v4135 = vpack.c.bf16 %v4126, %v4125
      %v4136 = vpack.c.bf16 %v4122, %v4121
      %4137 = vst [vmem:[#allocation3 + $0x60] sm:$0xff] %v4131
      %4138 = vst [vmem:[#allocation3 + $0x68] sm:$0xff] %v4132
      %4139 = vst [vmem:[#allocation3 + $0x70] sm:$0xff] %v4133
      %4140 = vst [vmem:[#allocation3 + $0x78] sm:$0xff] %v4134
      %4141 = vst [vmem:[#allocation3 + $0x80] sm:$0xff] %v4135
      %4142 = vst [vmem:[#allocation3 + $0x88] sm:$0xff] %v4136
      %4143 = vrot.lane.b32.xlu0 %v2854, 1
      %v4144 = vpop.permute.xlu0 %4143
      %4145 = vrot.lane.b32.xlu0 %v3166, 1
      %v4146 = vpop.permute.xlu0 %4145
      %4147 = vrot.lane.b32.xlu0 %v3478, 1
      %v4148 = vpop.permute.xlu0 %4147
      %4149 = vrot.lane.b32.xlu0 %v3790, 1
      %v4150 = vpop.permute.xlu0 %4149
      %4151 = vrot.lane.b32.xlu0 %v2958, 1
      %v4152 = vpop.permute.xlu0 %4151
      %4153 = vrot.lane.b32.xlu0 %v3270, 1
      %v4154 = vpop.permute.xlu0 %4153
      %4155 = vrot.lane.b32.xlu0 %v3582, 1
      %v4156 = vpop.permute.xlu0 %4155
      %4157 = vrot.lane.b32.xlu0 %v3894, 1
      %v4158 = vpop.permute.xlu0 %4157
      %4159 = vrot.lane.b32.xlu0 %v3062, 1
      %v4160 = vpop.permute.xlu0 %4159
      %4161 = vrot.lane.b32.xlu0 %v3374, 1
      %v4162 = vpop.permute.xlu0 %4161
      %4163 = vrot.lane.b32.xlu0 %v3686, 1
      %v4164 = vpop.permute.xlu0 %4163
      %4165 = vrot.lane.b32.xlu0 %v3998, 1
      %v4166 = vpop.permute.xlu0 %4165
      %v4167 = vsel %vm546, %v4152, %v4160
      %v4168 = vsel %vm546, %v4154, %v4162
      %v4169 = vsel %vm546, %v4156, %v4164
      %v4170 = vsel %vm546, %v4158, %v4166
      %v4171 = vsel %vm546, %v4144, %v4152
      %v4172 = vsel %vm546, %v4146, %v4154
      %v4173 = vsel %vm546, %v4148, %v4156
      %v4174 = vsel %vm546, %v4150, %v4158
      %v4175 = vsel %vm546, %v4160, %v4144
      %v4176 = vsel %vm546, %v4162, %v4146
      %v4177 = vsel %vm546, %v4164, %v4148
      %v4178 = vsel %vm546, %v4166, %v4150
      %v4179 = vpack.c.bf16 %v4176, %v4175
      %v4180 = vpack.c.bf16 %v4172, %v4171
      %v4181 = vpack.c.bf16 %v4168, %v4167
      %v4182 = vpack.c.bf16 %v4178, %v4177
      %v4183 = vpack.c.bf16 %v4174, %v4173
      %v4184 = vpack.c.bf16 %v4170, %v4169
      %4185 = vst [vmem:[#allocation3 + $0x90] sm:$0xff] %v4179
      %4186 = vst [vmem:[#allocation3 + $0x98] sm:$0xff] %v4180
      %4187 = vst [vmem:[#allocation3 + $0xa0] sm:$0xff] %v4181
      %4188 = vst [vmem:[#allocation3 + $0xa8] sm:$0xff] %v4182
      %4189 = vst [vmem:[#allocation3 + $0xb0] sm:$0xff] %v4183
      %4190 = vst [vmem:[#allocation3 + $0xb8] sm:$0xff] %v4184
      %v4191 = vpack.c.bf16 %v3166, %v2854
      %v4192 = vpack.c.bf16 %v3270, %v2958
      %v4193 = vpack.c.bf16 %v3374, %v3062
      %v4194 = vpack.c.bf16 %v3790, %v3478
      %v4195 = vpack.c.bf16 %v3894, %v3582
      %v4196 = vpack.c.bf16 %v3998, %v3686
      %4197 = vst [vmem:[#allocation3 + $0xc0] sm:$0xff] %v4191
      %4198 = vst [vmem:[#allocation3 + $0xc8] sm:$0xff] %v4192
      %4199 = vst [vmem:[#allocation3 + $0xd0] sm:$0xff] %v4193
      %4200 = vst [vmem:[#allocation3 + $0xd8] sm:$0xff] %v4194
      %4201 = vst [vmem:[#allocation3 + $0xe0] sm:$0xff] %v4195
      %4202 = vst [vmem:[#allocation3 + $0xe8] sm:$0xff] %v4196
      %4203 = vrot.lane.b32.xlu0 %v2854, 127
      %v4204 = vpop.permute.xlu0 %4203
      %4205 = vrot.lane.b32.xlu0 %v3166, 127
      %v4206 = vpop.permute.xlu0 %4205
      %4207 = vrot.lane.b32.xlu0 %v3478, 127
      %v4208 = vpop.permute.xlu0 %4207
      %4209 = vrot.lane.b32.xlu0 %v3790, 127
      %v4210 = vpop.permute.xlu0 %4209
      %4211 = vrot.lane.b32.xlu0 %v2958, 127
      %v4212 = vpop.permute.xlu0 %4211
      %4213 = vrot.lane.b32.xlu0 %v3270, 127
      %v4214 = vpop.permute.xlu0 %4213
      %4215 = vrot.lane.b32.xlu0 %v3582, 127
      %v4216 = vpop.permute.xlu0 %4215
      %4217 = vrot.lane.b32.xlu0 %v3894, 127
      %v4218 = vpop.permute.xlu0 %4217
      %4219 = vrot.lane.b32.xlu0 %v3062, 127
      %v4220 = vpop.permute.xlu0 %4219
      %4221 = vrot.lane.b32.xlu0 %v3374, 127
      %v4222 = vpop.permute.xlu0 %4221
      %4223 = vrot.lane.b32.xlu0 %v3686, 127
      %v4224 = vpop.permute.xlu0 %4223
      %4225 = vrot.lane.b32.xlu0 %v3998, 127
      %v4226 = vpop.permute.xlu0 %4225
      %v4227 = vsel %vm607, %v4212, %v4220
      %v4228 = vsel %vm607, %v4214, %v4222
      %v4229 = vsel %vm607, %v4216, %v4224
      %v4230 = vsel %vm607, %v4218, %v4226
      %v4231 = vsel %vm607, %v4204, %v4212
      %v4232 = vsel %vm607, %v4206, %v4214
      %v4233 = vsel %vm607, %v4208, %v4216
      %v4234 = vsel %vm607, %v4210, %v4218
      %v4235 = vsel %vm607, %v4220, %v4204
      %v4236 = vsel %vm607, %v4222, %v4206
      %v4237 = vsel %vm607, %v4224, %v4208
      %v4238 = vsel %vm607, %v4226, %v4210
      %v4239 = vpack.c.bf16 %v4232, %v4231
      %v4240 = vpack.c.bf16 %v4228, %v4227
      %v4241 = vpack.c.bf16 %v4236, %v4235
      %v4242 = vpack.c.bf16 %v4234, %v4233
      %v4243 = vpack.c.bf16 %v4230, %v4229
      %v4244 = vpack.c.bf16 %v4238, %v4237
      %4245 = vst [vmem:[#allocation3 + $0xf0] sm:$0xff] %v4239
      %4246 = vst [vmem:[#allocation3 + $0xf8] sm:$0xff] %v4240
      %4247 = vst [vmem:[#allocation3 + $0x100] sm:$0xff] %v4241
      %4248 = vst [vmem:[#allocation3 + $0x108] sm:$0xff] %v4242
      %4249 = vst [vmem:[#allocation3 + $0x110] sm:$0xff] %v4243
      %4250 = vst [vmem:[#allocation3 + $0x118] sm:$0xff] %v4244
      %4251 = vrot.lane.b32.xlu0 %v2854, 111
      %v4252 = vpop.permute.xlu0 %4251
      %4253 = vrot.lane.b32.xlu0 %v3166, 111
      %v4254 = vpop.permute.xlu0 %4253
      %4255 = vrot.lane.b32.xlu0 %v3478, 111
      %v4256 = vpop.permute.xlu0 %4255
      %4257 = vrot.lane.b32.xlu0 %v3790, 111
      %v4258 = vpop.permute.xlu0 %4257
      %4259 = vrot.lane.b32.xlu0 %v2958, 111
      %v4260 = vpop.permute.xlu0 %4259
      %4261 = vrot.lane.b32.xlu0 %v3270, 111
      %v4262 = vpop.permute.xlu0 %4261
      %4263 = vrot.lane.b32.xlu0 %v3582, 111
      %v4264 = vpop.permute.xlu0 %4263
      %4265 = vrot.lane.b32.xlu0 %v3894, 111
      %v4266 = vpop.permute.xlu0 %4265
      %4267 = vrot.lane.b32.xlu0 %v3062, 111
      %v4268 = vpop.permute.xlu0 %4267
      %4269 = vrot.lane.b32.xlu0 %v3374, 111
      %v4270 = vpop.permute.xlu0 %4269
      %4271 = vrot.lane.b32.xlu0 %v3686, 111
      %v4272 = vpop.permute.xlu0 %4271
      %4273 = vrot.lane.b32.xlu0 %v3998, 111
      %v4274 = vpop.permute.xlu0 %4273
      %v4275 = vsel %vm656, %v4260, %v4268
      %v4276 = vsel %vm656, %v4262, %v4270
      %v4277 = vsel %vm656, %v4264, %v4272
      %v4278 = vsel %vm656, %v4266, %v4274
      %v4279 = vsel %vm656, %v4252, %v4260
      %v4280 = vsel %vm656, %v4254, %v4262
      %v4281 = vsel %vm656, %v4256, %v4264
      %v4282 = vsel %vm656, %v4258, %v4266
      %v4283 = vsel %vm656, %v4268, %v4252
      %v4284 = vsel %vm656, %v4270, %v4254
      %v4285 = vsel %vm656, %v4272, %v4256
      %v4286 = vsel %vm656, %v4274, %v4258
      %v4287 = vpack.c.bf16 %v4280, %v4279
      %v4288 = vpack.c.bf16 %v4276, %v4275
      %v4289 = vpack.c.bf16 %v4284, %v4283
      %v4290 = vpack.c.bf16 %v4282, %v4281
      %v4291 = vpack.c.bf16 %v4278, %v4277
      %v4292 = vpack.c.bf16 %v4286, %v4285
      %4293 = vst [vmem:[#allocation3 + $0x120] sm:$0xff] %v4287
      %4294 = vst [vmem:[#allocation3 + $0x128] sm:$0xff] %v4288
      %4295 = vst [vmem:[#allocation3 + $0x130] sm:$0xff] %v4289
      %4296 = vst [vmem:[#allocation3 + $0x138] sm:$0xff] %v4290
      %4297 = vst [vmem:[#allocation3 + $0x140] sm:$0xff] %v4291
      %4298 = vst [vmem:[#allocation3 + $0x148] sm:$0xff] %v4292
      %4299 = vrot.lane.b32.xlu0 %v2854, 110
      %v4300 = vpop.permute.xlu0 %4299
      %4301 = vrot.lane.b32.xlu0 %v3166, 110
      %v4302 = vpop.permute.xlu0 %4301
      %4303 = vrot.lane.b32.xlu0 %v3478, 110
      %v4304 = vpop.permute.xlu0 %4303
      %4305 = vrot.lane.b32.xlu0 %v3790, 110
      %v4306 = vpop.permute.xlu0 %4305
      %4307 = vrot.lane.b32.xlu0 %v2958, 110
      %v4308 = vpop.permute.xlu0 %4307
      %4309 = vrot.lane.b32.xlu0 %v3270, 110
      %v4310 = vpop.permute.xlu0 %4309
      %4311 = vrot.lane.b32.xlu0 %v3582, 110
      %v4312 = vpop.permute.xlu0 %4311
      %4313 = vrot.lane.b32.xlu0 %v3894, 110
      %v4314 = vpop.permute.xlu0 %4313
      %4315 = vrot.lane.b32.xlu0 %v3062, 110
      %v4316 = vpop.permute.xlu0 %4315
      %4317 = vrot.lane.b32.xlu0 %v3374, 110
      %v4318 = vpop.permute.xlu0 %4317
      %4319 = vrot.lane.b32.xlu0 %v3686, 110
      %v4320 = vpop.permute.xlu0 %4319
      %4321 = vrot.lane.b32.xlu0 %v3998, 110
      %v4322 = vpop.permute.xlu0 %4321
      %v4323 = vsel %vm705, %v4308, %v4316
      %v4324 = vsel %vm705, %v4310, %v4318
      %v4325 = vsel %vm705, %v4312, %v4320
      %v4326 = vsel %vm705, %v4314, %v4322
      %v4327 = vsel %vm705, %v4300, %v4308
      %v4328 = vsel %vm705, %v4302, %v4310
      %v4329 = vsel %vm705, %v4304, %v4312
      %v4330 = vsel %vm705, %v4306, %v4314
      %v4331 = vsel %vm705, %v4316, %v4300
      %v4332 = vsel %vm705, %v4318, %v4302
      %v4333 = vsel %vm705, %v4320, %v4304
      %v4334 = vsel %vm705, %v4322, %v4306
      %v4335 = vpack.c.bf16 %v4328, %v4327
      %v4336 = vpack.c.bf16 %v4324, %v4323
      %v4337 = vpack.c.bf16 %v4332, %v4331
      %v4338 = vpack.c.bf16 %v4330, %v4329
      %v4339 = vpack.c.bf16 %v4326, %v4325
      %v4340 = vpack.c.bf16 %v4334, %v4333
      %4341 = vst [vmem:[#allocation3 + $0x150] sm:$0xff] %v4335
      %4342 = vst [vmem:[#allocation3 + $0x158] sm:$0xff] %v4336
      %4343 = vst [vmem:[#allocation3 + $0x160] sm:$0xff] %v4337
      %4344 = vst [vmem:[#allocation3 + $0x168] sm:$0xff] %v4338
      %4345 = vst [vmem:[#allocation3 + $0x170] sm:$0xff] %v4339
      %4346 = vst [vmem:[#allocation3 + $0x178] sm:$0xff] %v4340
      %4347 = vrot.lane.b32.xlu0 %v2854, 109
      %v4348 = vpop.permute.xlu0 %4347
      %4349 = vrot.lane.b32.xlu0 %v3166, 109
      %v4350 = vpop.permute.xlu0 %4349
      %4351 = vrot.lane.b32.xlu0 %v3478, 109
      %v4352 = vpop.permute.xlu0 %4351
      %4353 = vrot.lane.b32.xlu0 %v3790, 109
      %v4354 = vpop.permute.xlu0 %4353
      %4355 = vrot.lane.b32.xlu0 %v2958, 109
      %v4356 = vpop.permute.xlu0 %4355
      %4357 = vrot.lane.b32.xlu0 %v3270, 109
      %v4358 = vpop.permute.xlu0 %4357
      %4359 = vrot.lane.b32.xlu0 %v3582, 109
      %v4360 = vpop.permute.xlu0 %4359
      %4361 = vrot.lane.b32.xlu0 %v3894, 109
      %v4362 = vpop.permute.xlu0 %4361
      %4363 = vrot.lane.b32.xlu0 %v3062, 109
      %v4364 = vpop.permute.xlu0 %4363
      %4365 = vrot.lane.b32.xlu0 %v3374, 109
      %v4366 = vpop.permute.xlu0 %4365
      %4367 = vrot.lane.b32.xlu0 %v3686, 109
      %v4368 = vpop.permute.xlu0 %4367
      %4369 = vrot.lane.b32.xlu0 %v3998, 109
      %v4370 = vpop.permute.xlu0 %4369
      %v4371 = vsel %vm754, %v4356, %v4364
      %v4372 = vsel %vm754, %v4358, %v4366
      %v4373 = vsel %vm754, %v4360, %v4368
      %v4374 = vsel %vm754, %v4362, %v4370
      %v4375 = vsel %vm754, %v4348, %v4356
      %v4376 = vsel %vm754, %v4350, %v4358
      %v4377 = vsel %vm754, %v4352, %v4360
      %v4378 = vsel %vm754, %v4354, %v4362
      %v4379 = vsel %vm754, %v4364, %v4348
      %v4380 = vsel %vm754, %v4366, %v4350
      %v4381 = vsel %vm754, %v4368, %v4352
      %v4382 = vsel %vm754, %v4370, %v4354
      %v4383 = vpack.c.bf16 %v4376, %v4375
      %v4384 = vpack.c.bf16 %v4372, %v4371
      %v4385 = vpack.c.bf16 %v4380, %v4379
      %v4386 = vpack.c.bf16 %v4378, %v4377
      %v4387 = vpack.c.bf16 %v4374, %v4373
      %v4388 = vpack.c.bf16 %v4382, %v4381
      %4389 = vst [vmem:[#allocation3 + $0x180] sm:$0xff] %v4383
      %4390 = vst [vmem:[#allocation3 + $0x188] sm:$0xff] %v4384
      %4391 = vst [vmem:[#allocation3 + $0x190] sm:$0xff] %v4385
      %4392 = vst [vmem:[#allocation3 + $0x198] sm:$0xff] %v4386
      %4393 = vst [vmem:[#allocation3 + $0x1a0] sm:$0xff] %v4387
      %4394 = vst [vmem:[#allocation3 + $0x1a8] sm:$0xff] %v4388
      %v4395 = vand.u32 2147483647, %v2739
      %vm4396 = vcmp.le.f32.partialorder %v4395, 0.7853982
      %vm4397 = vcmp.lt.s32.totalorder %v2739, 0
      %v4398 = vand.u32 %v2739, 2139095040
      %v4399 = vshrl.u32 %v4398, 23
      %v4400 = vsub.s32 %v4399, 127
      %v4401 = vand.u32 2147483647, %v2739
      %v4402 = vand.u32 %v4401, 8388607
      %v4403 = vor.u32 %v4402, 8388608
      %v4404 = vsub.s32 0, %v4403
      %v4405 = vadd.s32 %v4400, 1
      %vm4406 = vcmp.gt.s32.totalorder %v4405, 0
      %v4407 = vsel %vm4406, %v4405, 0
      %v4408 = vshrl.u32 %v4407, 5
      %v4409 = vand.u32 %v4407, 31
      %v4410 = vsub.s32 32, %v4409
      %v4411 = vshrl.u32 683565275, %v4410
      %v4412 = vshll.u32 683565275, %v4409
      %v4413 = vshrl.u32 2475754826, %v4410
      %v4414 = vor.u32 %v4412, %v4413
      %v4415 = vshll.u32 2475754826, %v4409
      %v4416 = vshrl.u32 2131351028, %v4410
      %v4417 = vor.u32 %v4415, %v4416
      %v4418 = vshll.u32 2131351028, %v4409
      %v4419 = vshrl.u32 2102212464, %v4410
      %v4420 = vor.u32 %v4418, %v4419
      %v4421 = vshll.u32 2102212464, %v4409
      %v4422 = vshrl.u32 920167782, %v4410
      %v4423 = vor.u32 %v4421, %v4422
      %v4424 = vshll.u32 920167782, %v4409
      %v4425 = vshrl.u32 1326507024, %v4410
      %v4426 = vor.u32 %v4424, %v4425
      %vm4427 = vcmp.lt.s32.totalorder %v4408, 1
      %vm4428 = vcmp.lt.s32.totalorder %v4408, 2
      %vm4429 = vcmp.lt.s32.totalorder %v4408, 3
      %vm4430 = vcmp.lt.s32.totalorder %v4408, 4
      %v4431 = vsel %vm4427, %v4411, %v4414
      %v4432 = vsel %vm4430, %v4420, 2102212464
      %v4433 = vsel %vm4429, %v4417, %v4432
      %v4434 = vsel %vm4428, %v4431, %v4433
      %v4435 = vsel %vm4427, %v4414, %v4417
      %v4436 = vsel %vm4430, %v4423, 920167782
      %v4437 = vsel %vm4429, %v4420, %v4436
      %v4438 = vsel %vm4428, %v4435, %v4437
      %v4439 = vsel %vm4427, %v4417, %v4420
      %v4440 = vsel %vm4430, %v4426, 1326507024
      %v4441 = vsel %vm4429, %v4423, %v4440
      %v4442 = vsel %vm4428, %v4439, %v4441
      %v4443 = vshll.u32 %v4403, 8
      %v4444 = vmul.u32.u64.compose %v4443, %v4442
      %v4445 = vextract.low.u32 %v4444
      %v4446 = vextract.high.u32 %v4444
      %v4447 = vmul.u32.u64.compose %v4443, %v4438
      %v4448 = vextract.low.u32 %v4447
      %v4449 = vextract.high.u32 %v4447
      %v4450 = vmul.u32 %v4443, %v4434
      %v4451 = vadd.s32 %v4446, %v4448
      %vm4452 = vc.u32 %v4446, %v4448
      %v4453 = vadd.s32 %v4449, 1
      %v4454 = vsel %vm4452, %v4453, %v4449
      %v4455 = vadd.s32 %v4450, %v4454
      %v4456 = vadd.s32 %v4455, 536870912
      %v4457 = vshrl.u32 %v4456, 30
      %v4458 = vshll.u32 %v4457, 30
      %v4459 = vsub.s32 %v4455, %v4458
      %vm4460 = vcmp.lt.s32.totalorder %v4459, 0
      %v4461 = vsub.s32 0, %v4459
      %v4462 = vsel %vm4460, %v4461, %v4459
      %v4463 = vclz %v4462
      %v4464 = vsub.s32 %v4463, 2
      %vm4465 = vcmp.gt.s32.totalorder 0, %v4464
      %v4466 = vsel %vm4465, 0, %v4464
      %v4467 = vsub.s32 32, %v4466
      %v4468 = vshll.u32 %v4459, %v4466
      %v4469 = vshrl.u32 %v4451, %v4467
      %v4470 = vor.u32 %v4468, %v4469
      %v4471 = vsub.s32 4294967266, %v4466
      %v4472 = vadd.s32 %v4471, 127
      %v4473 = vshll.u32 %v4472, 23
      %v4474 = vor.u32 4788187, %v4473
      %v4475 = vand.u32 2147483647, %v4474
      %v4477 = vcvt.s32.f32 %v4470
      %v4478 = vmul.f32 %v4477, %v4475
      %v4479 = vxor.u32 %v4478, 2147483648
      %v4480 = vsel %vm4397, %v4479, %v4478
      %v4481 = vsub.s32 4, %v4457
      %v4482 = vsel %vm4397, %v4481, %v4457
      %v4483 = vsel %vm4396, %v2739, %v4480
      %v4484 = vsel %vm4396, 0, %v4482
      %v4485 = vcosq.f32.pop %v4483
      %v4486 = vsinq.f32.pop %v4483
      %vm4487 = vweird.f32 %v2739
      %v4488 = vand.u32 %v4484, 3
      %vm4489 = vcmp.lt.s32.totalorder %v4488, 2
      %vm4490 = vcmp.eq.s32.totalorder %v4488, 0
      %v4491 = vxor.u32 %v4486, 2147483648
      %v4492 = vsel %vm4490, %v4485, %v4491
      %vm4493 = vcmp.eq.s32.totalorder %v4488, 2
      %v4494 = vxor.u32 %v4485, 2147483648
      %v4495 = vsel %vm4493, %v4494, %v4486
      %v4496 = vsel %vm4489, %v4492, %v4495
      %v4497 = vsel %vm4487, nan, %v4496
      %v4498 = vand.u32 2147483647, %v2740
      %vm4499 = vcmp.le.f32.partialorder %v4498, 0.7853982
      %vm4500 = vcmp.lt.s32.totalorder %v2740, 0
      %v4501 = vand.u32 %v2740, 2139095040
      %v4502 = vshrl.u32 %v4501, 23
      %v4503 = vsub.s32 %v4502, 127
      %v4504 = vand.u32 2147483647, %v2740
      %v4505 = vand.u32 %v4504, 8388607
      %v4506 = vor.u32 %v4505, 8388608
      %v4507 = vsub.s32 0, %v4506
      %v4508 = vadd.s32 %v4503, 1
      %vm4509 = vcmp.gt.s32.totalorder %v4508, 0
      %v4510 = vsel %vm4509, %v4508, 0
      %v4511 = vshrl.u32 %v4510, 5
      %v4512 = vand.u32 %v4510, 31
      %v4513 = vsub.s32 32, %v4512
      %v4514 = vshrl.u32 683565275, %v4513
      %v4515 = vshll.u32 683565275, %v4512
      %v4516 = vshrl.u32 2475754826, %v4513
      %v4517 = vor.u32 %v4515, %v4516
      %v4518 = vshll.u32 2475754826, %v4512
      %v4519 = vshrl.u32 2131351028, %v4513
      %v4520 = vor.u32 %v4518, %v4519
      %v4521 = vshll.u32 2131351028, %v4512
      %v4522 = vshrl.u32 2102212464, %v4513
      %v4523 = vor.u32 %v4521, %v4522
      %v4524 = vshll.u32 2102212464, %v4512
      %v4525 = vshrl.u32 920167782, %v4513
      %v4526 = vor.u32 %v4524, %v4525
      %v4527 = vshll.u32 920167782, %v4512
      %v4528 = vshrl.u32 1326507024, %v4513
      %v4529 = vor.u32 %v4527, %v4528
      %vm4530 = vcmp.lt.s32.totalorder %v4511, 1
      %vm4531 = vcmp.lt.s32.totalorder %v4511, 2
      %vm4532 = vcmp.lt.s32.totalorder %v4511, 3
      %vm4533 = vcmp.lt.s32.totalorder %v4511, 4
      %v4534 = vsel %vm4530, %v4514, %v4517
      %v4535 = vsel %vm4533, %v4523, 2102212464
      %v4536 = vsel %vm4532, %v4520, %v4535
      %v4537 = vsel %vm4531, %v4534, %v4536
      %v4538 = vsel %vm4530, %v4517, %v4520
      %v4539 = vsel %vm4533, %v4526, 920167782
      %v4540 = vsel %vm4532, %v4523, %v4539
      %v4541 = vsel %vm4531, %v4538, %v4540
      %v4542 = vsel %vm4530, %v4520, %v4523
      %v4543 = vsel %vm4533, %v4529, 1326507024
      %v4544 = vsel %vm4532, %v4526, %v4543
      %v4545 = vsel %vm4531, %v4542, %v4544
      %v4546 = vshll.u32 %v4506, 8
      %v4547 = vmul.u32.u64.compose %v4546, %v4545
      %v4548 = vextract.low.u32 %v4547
      %v4549 = vextract.high.u32 %v4547
      %v4550 = vmul.u32.u64.compose %v4546, %v4541
      %v4551 = vextract.low.u32 %v4550
      %v4552 = vextract.high.u32 %v4550
      %v4553 = vmul.u32 %v4546, %v4537
      %v4554 = vadd.s32 %v4549, %v4551
      %vm4555 = vc.u32 %v4549, %v4551
      %v4556 = vadd.s32 %v4552, 1
      %v4557 = vsel %vm4555, %v4556, %v4552
      %v4558 = vadd.s32 %v4553, %v4557
      %v4559 = vadd.s32 %v4558, 536870912
      %v4560 = vshrl.u32 %v4559, 30
      %v4561 = vshll.u32 %v4560, 30
      %v4562 = vsub.s32 %v4558, %v4561
      %vm4563 = vcmp.lt.s32.totalorder %v4562, 0
      %v4564 = vsub.s32 0, %v4562
      %v4565 = vsel %vm4563, %v4564, %v4562
      %v4566 = vclz %v4565
      %v4567 = vsub.s32 %v4566, 2
      %vm4568 = vcmp.gt.s32.totalorder 0, %v4567
      %v4569 = vsel %vm4568, 0, %v4567
      %v4570 = vsub.s32 32, %v4569
      %v4571 = vshll.u32 %v4562, %v4569
      %v4572 = vshrl.u32 %v4554, %v4570
      %v4573 = vor.u32 %v4571, %v4572
      %v4574 = vsub.s32 4294967266, %v4569
      %v4575 = vadd.s32 %v4574, 127
      %v4576 = vshll.u32 %v4575, 23
      %v4577 = vor.u32 4788187, %v4576
      %v4578 = vand.u32 2147483647, %v4577
      %v4580 = vcvt.s32.f32 %v4573
      %v4581 = vmul.f32 %v4580, %v4578
      %v4582 = vxor.u32 %v4581, 2147483648
      %v4583 = vsel %vm4500, %v4582, %v4581
      %v4584 = vsub.s32 4, %v4560
      %v4585 = vsel %vm4500, %v4584, %v4560
      %v4586 = vsel %vm4499, %v2740, %v4583
      %v4587 = vsel %vm4499, 0, %v4585
      %v4588 = vcosq.f32.pop %v4586
      %v4589 = vsinq.f32.pop %v4586
      %vm4590 = vweird.f32 %v2740
      %v4591 = vand.u32 %v4587, 3
      %vm4592 = vcmp.lt.s32.totalorder %v4591, 2
      %vm4593 = vcmp.eq.s32.totalorder %v4591, 0
      %v4594 = vxor.u32 %v4589, 2147483648
      %v4595 = vsel %vm4593, %v4588, %v4594
      %vm4596 = vcmp.eq.s32.totalorder %v4591, 2
      %v4597 = vxor.u32 %v4588, 2147483648
      %v4598 = vsel %vm4596, %v4597, %v4589
      %v4599 = vsel %vm4592, %v4595, %v4598
      %v4600 = vsel %vm4590, nan, %v4599
      %v4601 = vand.u32 2147483647, %v2741
      %vm4602 = vcmp.le.f32.partialorder %v4601, 0.7853982
      %vm4603 = vcmp.lt.s32.totalorder %v2741, 0
      %v4604 = vand.u32 %v2741, 2139095040
      %v4605 = vshrl.u32 %v4604, 23
      %v4606 = vsub.s32 %v4605, 127
      %v4607 = vand.u32 2147483647, %v2741
      %v4608 = vand.u32 %v4607, 8388607
      %v4609 = vor.u32 %v4608, 8388608
      %v4610 = vsub.s32 0, %v4609
      %v4611 = vadd.s32 %v4606, 1
      %vm4612 = vcmp.gt.s32.totalorder %v4611, 0
      %v4613 = vsel %vm4612, %v4611, 0
      %v4614 = vshrl.u32 %v4613, 5
      %v4615 = vand.u32 %v4613, 31
      %v4616 = vsub.s32 32, %v4615
      %v4617 = vshrl.u32 683565275, %v4616
      %v4618 = vshll.u32 683565275, %v4615
      %v4619 = vshrl.u32 2475754826, %v4616
      %v4620 = vor.u32 %v4618, %v4619
      %v4621 = vshll.u32 2475754826, %v4615
      %v4622 = vshrl.u32 2131351028, %v4616
      %v4623 = vor.u32 %v4621, %v4622
      %v4624 = vshll.u32 2131351028, %v4615
      %v4625 = vshrl.u32 2102212464, %v4616
      %v4626 = vor.u32 %v4624, %v4625
      %v4627 = vshll.u32 2102212464, %v4615
      %v4628 = vshrl.u32 920167782, %v4616
      %v4629 = vor.u32 %v4627, %v4628
      %v4630 = vshll.u32 920167782, %v4615
      %v4631 = vshrl.u32 1326507024, %v4616
      %v4632 = vor.u32 %v4630, %v4631
      %vm4633 = vcmp.lt.s32.totalorder %v4614, 1
      %vm4634 = vcmp.lt.s32.totalorder %v4614, 2
      %vm4635 = vcmp.lt.s32.totalorder %v4614, 3
      %vm4636 = vcmp.lt.s32.totalorder %v4614, 4
      %v4637 = vsel %vm4633, %v4617, %v4620
      %v4638 = vsel %vm4636, %v4626, 2102212464
      %v4639 = vsel %vm4635, %v4623, %v4638
      %v4640 = vsel %vm4634, %v4637, %v4639
      %v4641 = vsel %vm4633, %v4620, %v4623
      %v4642 = vsel %vm4636, %v4629, 920167782
      %v4643 = vsel %vm4635, %v4626, %v4642
      %v4644 = vsel %vm4634, %v4641, %v4643
      %v4645 = vsel %vm4633, %v4623, %v4626
      %v4646 = vsel %vm4636, %v4632, 1326507024
      %v4647 = vsel %vm4635, %v4629, %v4646
      %v4648 = vsel %vm4634, %v4645, %v4647
      %v4649 = vshll.u32 %v4609, 8
      %v4650 = vmul.u32.u64.compose %v4649, %v4648
      %v4651 = vextract.low.u32 %v4650
      %v4652 = vextract.high.u32 %v4650
      %v4653 = vmul.u32.u64.compose %v4649, %v4644
      %v4654 = vextract.low.u32 %v4653
      %v4655 = vextract.high.u32 %v4653
      %v4656 = vmul.u32 %v4649, %v4640
      %v4657 = vadd.s32 %v4652, %v4654
      %vm4658 = vc.u32 %v4652, %v4654
      %v4659 = vadd.s32 %v4655, 1
      %v4660 = vsel %vm4658, %v4659, %v4655
      %v4661 = vadd.s32 %v4656, %v4660
      %v4662 = vadd.s32 %v4661, 536870912
      %v4663 = vshrl.u32 %v4662, 30
      %v4664 = vshll.u32 %v4663, 30
      %v4665 = vsub.s32 %v4661, %v4664
      %vm4666 = vcmp.lt.s32.totalorder %v4665, 0
      %v4667 = vsub.s32 0, %v4665
      %v4668 = vsel %vm4666, %v4667, %v4665
      %v4669 = vclz %v4668
      %v4670 = vsub.s32 %v4669, 2
      %vm4671 = vcmp.gt.s32.totalorder 0, %v4670
      %v4672 = vsel %vm4671, 0, %v4670
      %v4673 = vsub.s32 32, %v4672
      %v4674 = vshll.u32 %v4665, %v4672
      %v4675 = vshrl.u32 %v4657, %v4673
      %v4676 = vor.u32 %v4674, %v4675
      %v4677 = vsub.s32 4294967266, %v4672
      %v4678 = vadd.s32 %v4677, 127
      %v4679 = vshll.u32 %v4678, 23
      %v4680 = vor.u32 4788187, %v4679
      %v4681 = vand.u32 2147483647, %v4680
      %v4683 = vcvt.s32.f32 %v4676
      %v4684 = vmul.f32 %v4683, %v4681
      %v4685 = vxor.u32 %v4684, 2147483648
      %v4686 = vsel %vm4603, %v4685, %v4684
      %v4687 = vsub.s32 4, %v4663
      %v4688 = vsel %vm4603, %v4687, %v4663
      %v4689 = vsel %vm4602, %v2741, %v4686
      %v4690 = vsel %vm4602, 0, %v4688
      %v4691 = vcosq.f32.pop %v4689
      %v4692 = vsinq.f32.pop %v4689
      %vm4693 = vweird.f32 %v2741
      %v4694 = vand.u32 %v4690, 3
      %vm4695 = vcmp.lt.s32.totalorder %v4694, 2
      %vm4696 = vcmp.eq.s32.totalorder %v4694, 0
      %v4697 = vxor.u32 %v4692, 2147483648
      %v4698 = vsel %vm4696, %v4691, %v4697
      %vm4699 = vcmp.eq.s32.totalorder %v4694, 2
      %v4700 = vxor.u32 %v4691, 2147483648
      %v4701 = vsel %vm4699, %v4700, %v4692
      %v4702 = vsel %vm4695, %v4698, %v4701
      %v4703 = vsel %vm4693, nan, %v4702
      %v4704 = vand.u32 2147483647, %v2742
      %vm4705 = vcmp.le.f32.partialorder %v4704, 0.7853982
      %vm4706 = vcmp.lt.s32.totalorder %v2742, 0
      %v4707 = vand.u32 %v2742, 2139095040
      %v4708 = vshrl.u32 %v4707, 23
      %v4709 = vsub.s32 %v4708, 127
      %v4710 = vand.u32 2147483647, %v2742
      %v4711 = vand.u32 %v4710, 8388607
      %v4712 = vor.u32 %v4711, 8388608
      %v4713 = vsub.s32 0, %v4712
      %v4714 = vadd.s32 %v4709, 1
      %vm4715 = vcmp.gt.s32.totalorder %v4714, 0
      %v4716 = vsel %vm4715, %v4714, 0
      %v4717 = vshrl.u32 %v4716, 5
      %v4718 = vand.u32 %v4716, 31
      %v4719 = vsub.s32 32, %v4718
      %v4720 = vshrl.u32 683565275, %v4719
      %v4721 = vshll.u32 683565275, %v4718
      %v4722 = vshrl.u32 2475754826, %v4719
      %v4723 = vor.u32 %v4721, %v4722
      %v4724 = vshll.u32 2475754826, %v4718
      %v4725 = vshrl.u32 2131351028, %v4719
      %v4726 = vor.u32 %v4724, %v4725
      %v4727 = vshll.u32 2131351028, %v4718
      %v4728 = vshrl.u32 2102212464, %v4719
      %v4729 = vor.u32 %v4727, %v4728
      %v4730 = vshll.u32 2102212464, %v4718
      %v4731 = vshrl.u32 920167782, %v4719
      %v4732 = vor.u32 %v4730, %v4731
      %v4733 = vshll.u32 920167782, %v4718
      %v4734 = vshrl.u32 1326507024, %v4719
      %v4735 = vor.u32 %v4733, %v4734
      %vm4736 = vcmp.lt.s32.totalorder %v4717, 1
      %vm4737 = vcmp.lt.s32.totalorder %v4717, 2
      %vm4738 = vcmp.lt.s32.totalorder %v4717, 3
      %vm4739 = vcmp.lt.s32.totalorder %v4717, 4
      %v4740 = vsel %vm4736, %v4720, %v4723
      %v4741 = vsel %vm4739, %v4729, 2102212464
      %v4742 = vsel %vm4738, %v4726, %v4741
      %v4743 = vsel %vm4737, %v4740, %v4742
      %v4744 = vsel %vm4736, %v4723, %v4726
      %v4745 = vsel %vm4739, %v4732, 920167782
      %v4746 = vsel %vm4738, %v4729, %v4745
      %v4747 = vsel %vm4737, %v4744, %v4746
      %v4748 = vsel %vm4736, %v4726, %v4729
      %v4749 = vsel %vm4739, %v4735, 1326507024
      %v4750 = vsel %vm4738, %v4732, %v4749
      %v4751 = vsel %vm4737, %v4748, %v4750
      %v4752 = vshll.u32 %v4712, 8
      %v4753 = vmul.u32.u64.compose %v4752, %v4751
      %v4754 = vextract.low.u32 %v4753
      %v4755 = vextract.high.u32 %v4753
      %v4756 = vmul.u32.u64.compose %v4752, %v4747
      %v4757 = vextract.low.u32 %v4756
      %v4758 = vextract.high.u32 %v4756
      %v4759 = vmul.u32 %v4752, %v4743
      %v4760 = vadd.s32 %v4755, %v4757
      %vm4761 = vc.u32 %v4755, %v4757
      %v4762 = vadd.s32 %v4758, 1
      %v4763 = vsel %vm4761, %v4762, %v4758
      %v4764 = vadd.s32 %v4759, %v4763
      %v4765 = vadd.s32 %v4764, 536870912
      %v4766 = vshrl.u32 %v4765, 30
      %v4767 = vshll.u32 %v4766, 30
      %v4768 = vsub.s32 %v4764, %v4767
      %vm4769 = vcmp.lt.s32.totalorder %v4768, 0
      %v4770 = vsub.s32 0, %v4768
      %v4771 = vsel %vm4769, %v4770, %v4768
      %v4772 = vclz %v4771
      %v4773 = vsub.s32 %v4772, 2
      %vm4774 = vcmp.gt.s32.totalorder 0, %v4773
      %v4775 = vsel %vm4774, 0, %v4773
      %v4776 = vsub.s32 32, %v4775
      %v4777 = vshll.u32 %v4768, %v4775
      %v4778 = vshrl.u32 %v4760, %v4776
      %v4779 = vor.u32 %v4777, %v4778
      %v4780 = vsub.s32 4294967266, %v4775
      %v4781 = vadd.s32 %v4780, 127
      %v4782 = vshll.u32 %v4781, 23
      %v4783 = vor.u32 4788187, %v4782
      %v4784 = vand.u32 2147483647, %v4783
      %v4786 = vcvt.s32.f32 %v4779
      %v4787 = vmul.f32 %v4786, %v4784
      %v4788 = vxor.u32 %v4787, 2147483648
      %v4789 = vsel %vm4706, %v4788, %v4787
      %v4790 = vsub.s32 4, %v4766
      %v4791 = vsel %vm4706, %v4790, %v4766
      %v4792 = vsel %vm4705, %v2742, %v4789
      %v4793 = vsel %vm4705, 0, %v4791
      %v4794 = vcosq.f32.pop %v4792
      %v4795 = vsinq.f32.pop %v4792
      %vm4796 = vweird.f32 %v2742
      %v4797 = vand.u32 %v4793, 3
      %vm4798 = vcmp.lt.s32.totalorder %v4797, 2
      %vm4799 = vcmp.eq.s32.totalorder %v4797, 0
      %v4800 = vxor.u32 %v4795, 2147483648
      %v4801 = vsel %vm4799, %v4794, %v4800
      %vm4802 = vcmp.eq.s32.totalorder %v4797, 2
      %v4803 = vxor.u32 %v4794, 2147483648
      %v4804 = vsel %vm4802, %v4803, %v4795
      %v4805 = vsel %vm4798, %v4801, %v4804
      %v4806 = vsel %vm4796, nan, %v4805
      %v4807 = vand.u32 2147483647, %v2743
      %vm4808 = vcmp.le.f32.partialorder %v4807, 0.7853982
      %vm4809 = vcmp.lt.s32.totalorder %v2743, 0
      %v4810 = vand.u32 %v2743, 2139095040
      %v4811 = vshrl.u32 %v4810, 23
      %v4812 = vsub.s32 %v4811, 127
      %v4813 = vand.u32 2147483647, %v2743
      %v4814 = vand.u32 %v4813, 8388607
      %v4815 = vor.u32 %v4814, 8388608
      %v4816 = vsub.s32 0, %v4815
      %v4817 = vadd.s32 %v4812, 1
      %vm4818 = vcmp.gt.s32.totalorder %v4817, 0
      %v4819 = vsel %vm4818, %v4817, 0
      %v4820 = vshrl.u32 %v4819, 5
      %v4821 = vand.u32 %v4819, 31
      %v4822 = vsub.s32 32, %v4821
      %v4823 = vshrl.u32 683565275, %v4822
      %v4824 = vshll.u32 683565275, %v4821
      %v4825 = vshrl.u32 2475754826, %v4822
      %v4826 = vor.u32 %v4824, %v4825
      %v4827 = vshll.u32 2475754826, %v4821
      %v4828 = vshrl.u32 2131351028, %v4822
      %v4829 = vor.u32 %v4827, %v4828
      %v4830 = vshll.u32 2131351028, %v4821
      %v4831 = vshrl.u32 2102212464, %v4822
      %v4832 = vor.u32 %v4830, %v4831
      %v4833 = vshll.u32 2102212464, %v4821
      %v4834 = vshrl.u32 920167782, %v4822
      %v4835 = vor.u32 %v4833, %v4834
      %v4836 = vshll.u32 920167782, %v4821
      %v4837 = vshrl.u32 1326507024, %v4822
      %v4838 = vor.u32 %v4836, %v4837
      %vm4839 = vcmp.lt.s32.totalorder %v4820, 1
      %vm4840 = vcmp.lt.s32.totalorder %v4820, 2
      %vm4841 = vcmp.lt.s32.totalorder %v4820, 3
      %vm4842 = vcmp.lt.s32.totalorder %v4820, 4
      %v4843 = vsel %vm4839, %v4823, %v4826
      %v4844 = vsel %vm4842, %v4832, 2102212464
      %v4845 = vsel %vm4841, %v4829, %v4844
      %v4846 = vsel %vm4840, %v4843, %v4845
      %v4847 = vsel %vm4839, %v4826, %v4829
      %v4848 = vsel %vm4842, %v4835, 920167782
      %v4849 = vsel %vm4841, %v4832, %v4848
      %v4850 = vsel %vm4840, %v4847, %v4849
      %v4851 = vsel %vm4839, %v4829, %v4832
      %v4852 = vsel %vm4842, %v4838, 1326507024
      %v4853 = vsel %vm4841, %v4835, %v4852
      %v4854 = vsel %vm4840, %v4851, %v4853
      %v4855 = vshll.u32 %v4815, 8
      %v4856 = vmul.u32.u64.compose %v4855, %v4854
      %v4857 = vextract.low.u32 %v4856
      %v4858 = vextract.high.u32 %v4856
      %v4859 = vmul.u32.u64.compose %v4855, %v4850
      %v4860 = vextract.low.u32 %v4859
      %v4861 = vextract.high.u32 %v4859
      %v4862 = vmul.u32 %v4855, %v4846
      %v4863 = vadd.s32 %v4858, %v4860
      %vm4864 = vc.u32 %v4858, %v4860
      %v4865 = vadd.s32 %v4861, 1
      %v4866 = vsel %vm4864, %v4865, %v4861
      %v4867 = vadd.s32 %v4862, %v4866
      %v4868 = vadd.s32 %v4867, 536870912
      %v4869 = vshrl.u32 %v4868, 30
      %v4870 = vshll.u32 %v4869, 30
      %v4871 = vsub.s32 %v4867, %v4870
      %vm4872 = vcmp.lt.s32.totalorder %v4871, 0
      %v4873 = vsub.s32 0, %v4871
      %v4874 = vsel %vm4872, %v4873, %v4871
      %v4875 = vclz %v4874
      %v4876 = vsub.s32 %v4875, 2
      %vm4877 = vcmp.gt.s32.totalorder 0, %v4876
      %v4878 = vsel %vm4877, 0, %v4876
      %v4879 = vsub.s32 32, %v4878
      %v4880 = vshll.u32 %v4871, %v4878
      %v4881 = vshrl.u32 %v4863, %v4879
      %v4882 = vor.u32 %v4880, %v4881
      %v4883 = vsub.s32 4294967266, %v4878
      %v4884 = vadd.s32 %v4883, 127
      %v4885 = vshll.u32 %v4884, 23
      %v4886 = vor.u32 4788187, %v4885
      %v4887 = vand.u32 2147483647, %v4886
      %v4889 = vcvt.s32.f32 %v4882
      %v4890 = vmul.f32 %v4889, %v4887
      %v4891 = vxor.u32 %v4890, 2147483648
      %v4892 = vsel %vm4809, %v4891, %v4890
      %v4893 = vsub.s32 4, %v4869
      %v4894 = vsel %vm4809, %v4893, %v4869
      %v4895 = vsel %vm4808, %v2743, %v4892
      %v4896 = vsel %vm4808, 0, %v4894
      %v4897 = vcosq.f32.pop %v4895
      %v4898 = vsinq.f32.pop %v4895
      %vm4899 = vweird.f32 %v2743
      %v4900 = vand.u32 %v4896, 3
      %vm4901 = vcmp.lt.s32.totalorder %v4900, 2
      %vm4902 = vcmp.eq.s32.totalorder %v4900, 0
      %v4903 = vxor.u32 %v4898, 2147483648
      %v4904 = vsel %vm4902, %v4897, %v4903
      %vm4905 = vcmp.eq.s32.totalorder %v4900, 2
      %v4906 = vxor.u32 %v4897, 2147483648
      %v4907 = vsel %vm4905, %v4906, %v4898
      %v4908 = vsel %vm4901, %v4904, %v4907
      %v4909 = vsel %vm4899, nan, %v4908
      %v4910 = vand.u32 2147483647, %v2744
      %vm4911 = vcmp.le.f32.partialorder %v4910, 0.7853982
      %vm4912 = vcmp.lt.s32.totalorder %v2744, 0
      %v4913 = vand.u32 %v2744, 2139095040
      %v4914 = vshrl.u32 %v4913, 23
      %v4915 = vsub.s32 %v4914, 127
      %v4916 = vand.u32 2147483647, %v2744
      %v4917 = vand.u32 %v4916, 8388607
      %v4918 = vor.u32 %v4917, 8388608
      %v4919 = vsub.s32 0, %v4918
      %v4920 = vadd.s32 %v4915, 1
      %vm4921 = vcmp.gt.s32.totalorder %v4920, 0
      %v4922 = vsel %vm4921, %v4920, 0
      %v4923 = vshrl.u32 %v4922, 5
      %v4924 = vand.u32 %v4922, 31
      %v4925 = vsub.s32 32, %v4924
      %v4926 = vshrl.u32 683565275, %v4925
      %v4927 = vshll.u32 683565275, %v4924
      %v4928 = vshrl.u32 2475754826, %v4925
      %v4929 = vor.u32 %v4927, %v4928
      %v4930 = vshll.u32 2475754826, %v4924
      %v4931 = vshrl.u32 2131351028, %v4925
      %v4932 = vor.u32 %v4930, %v4931
      %v4933 = vshll.u32 2131351028, %v4924
      %v4934 = vshrl.u32 2102212464, %v4925
      %v4935 = vor.u32 %v4933, %v4934
      %v4936 = vshll.u32 2102212464, %v4924
      %v4937 = vshrl.u32 920167782, %v4925
      %v4938 = vor.u32 %v4936, %v4937
      %v4939 = vshll.u32 920167782, %v4924
      %v4940 = vshrl.u32 1326507024, %v4925
      %v4941 = vor.u32 %v4939, %v4940
      %vm4942 = vcmp.lt.s32.totalorder %v4923, 1
      %vm4943 = vcmp.lt.s32.totalorder %v4923, 2
      %vm4944 = vcmp.lt.s32.totalorder %v4923, 3
      %vm4945 = vcmp.lt.s32.totalorder %v4923, 4
      %v4946 = vsel %vm4942, %v4926, %v4929
      %v4947 = vsel %vm4945, %v4935, 2102212464
      %v4948 = vsel %vm4944, %v4932, %v4947
      %v4949 = vsel %vm4943, %v4946, %v4948
      %v4950 = vsel %vm4942, %v4929, %v4932
      %v4951 = vsel %vm4945, %v4938, 920167782
      %v4952 = vsel %vm4944, %v4935, %v4951
      %v4953 = vsel %vm4943, %v4950, %v4952
      %v4954 = vsel %vm4942, %v4932, %v4935
      %v4955 = vsel %vm4945, %v4941, 1326507024
      %v4956 = vsel %vm4944, %v4938, %v4955
      %v4957 = vsel %vm4943, %v4954, %v4956
      %v4958 = vshll.u32 %v4918, 8
      %v4959 = vmul.u32.u64.compose %v4958, %v4957
      %v4960 = vextract.low.u32 %v4959
      %v4961 = vextract.high.u32 %v4959
      %v4962 = vmul.u32.u64.compose %v4958, %v4953
      %v4963 = vextract.low.u32 %v4962
      %v4964 = vextract.high.u32 %v4962
      %v4965 = vmul.u32 %v4958, %v4949
      %v4966 = vadd.s32 %v4961, %v4963
      %vm4967 = vc.u32 %v4961, %v4963
      %v4968 = vadd.s32 %v4964, 1
      %v4969 = vsel %vm4967, %v4968, %v4964
      %v4970 = vadd.s32 %v4965, %v4969
      %v4971 = vadd.s32 %v4970, 536870912
      %v4972 = vshrl.u32 %v4971, 30
      %v4973 = vshll.u32 %v4972, 30
      %v4974 = vsub.s32 %v4970, %v4973
      %vm4975 = vcmp.lt.s32.totalorder %v4974, 0
      %v4976 = vsub.s32 0, %v4974
      %v4977 = vsel %vm4975, %v4976, %v4974
      %v4978 = vclz %v4977
      %v4979 = vsub.s32 %v4978, 2
      %vm4980 = vcmp.gt.s32.totalorder 0, %v4979
      %v4981 = vsel %vm4980, 0, %v4979
      %v4982 = vsub.s32 32, %v4981
      %v4983 = vshll.u32 %v4974, %v4981
      %v4984 = vshrl.u32 %v4966, %v4982
      %v4985 = vor.u32 %v4983, %v4984
      %v4986 = vsub.s32 4294967266, %v4981
      %v4987 = vadd.s32 %v4986, 127
      %v4988 = vshll.u32 %v4987, 23
      %v4989 = vor.u32 4788187, %v4988
      %v4990 = vand.u32 2147483647, %v4989
      %v4992 = vcvt.s32.f32 %v4985
      %v4993 = vmul.f32 %v4992, %v4990
      %v4994 = vxor.u32 %v4993, 2147483648
      %v4995 = vsel %vm4912, %v4994, %v4993
      %v4996 = vsub.s32 4, %v4972
      %v4997 = vsel %vm4912, %v4996, %v4972
      %v4998 = vsel %vm4911, %v2744, %v4995
      %v4999 = vsel %vm4911, 0, %v4997
      %v5000 = vcosq.f32.pop %v4998
      %v5001 = vsinq.f32.pop %v4998
      %vm5002 = vweird.f32 %v2744
      %v5003 = vand.u32 %v4999, 3
      %vm5004 = vcmp.lt.s32.totalorder %v5003, 2
      %vm5005 = vcmp.eq.s32.totalorder %v5003, 0
      %v5006 = vxor.u32 %v5001, 2147483648
      %v5007 = vsel %vm5005, %v5000, %v5006
      %vm5008 = vcmp.eq.s32.totalorder %v5003, 2
      %v5009 = vxor.u32 %v5000, 2147483648
      %v5010 = vsel %vm5008, %v5009, %v5001
      %v5011 = vsel %vm5004, %v5007, %v5010
      %v5012 = vsel %vm5002, nan, %v5011
      %v5013 = vand.u32 2147483647, %v2745
      %vm5014 = vcmp.le.f32.partialorder %v5013, 0.7853982
      %vm5015 = vcmp.lt.s32.totalorder %v2745, 0
      %v5016 = vand.u32 %v2745, 2139095040
      %v5017 = vshrl.u32 %v5016, 23
      %v5018 = vsub.s32 %v5017, 127
      %v5019 = vand.u32 2147483647, %v2745
      %v5020 = vand.u32 %v5019, 8388607
      %v5021 = vor.u32 %v5020, 8388608
      %v5022 = vsub.s32 0, %v5021
      %v5023 = vadd.s32 %v5018, 1
      %vm5024 = vcmp.gt.s32.totalorder %v5023, 0
      %v5025 = vsel %vm5024, %v5023, 0
      %v5026 = vshrl.u32 %v5025, 5
      %v5027 = vand.u32 %v5025, 31
      %v5028 = vsub.s32 32, %v5027
      %v5029 = vshrl.u32 683565275, %v5028
      %v5030 = vshll.u32 683565275, %v5027
      %v5031 = vshrl.u32 2475754826, %v5028
      %v5032 = vor.u32 %v5030, %v5031
      %v5033 = vshll.u32 2475754826, %v5027
      %v5034 = vshrl.u32 2131351028, %v5028
      %v5035 = vor.u32 %v5033, %v5034
      %v5036 = vshll.u32 2131351028, %v5027
      %v5037 = vshrl.u32 2102212464, %v5028
      %v5038 = vor.u32 %v5036, %v5037
      %v5039 = vshll.u32 2102212464, %v5027
      %v5040 = vshrl.u32 920167782, %v5028
      %v5041 = vor.u32 %v5039, %v5040
      %v5042 = vshll.u32 920167782, %v5027
      %v5043 = vshrl.u32 1326507024, %v5028
      %v5044 = vor.u32 %v5042, %v5043
      %vm5045 = vcmp.lt.s32.totalorder %v5026, 1
      %vm5046 = vcmp.lt.s32.totalorder %v5026, 2
      %vm5047 = vcmp.lt.s32.totalorder %v5026, 3
      %vm5048 = vcmp.lt.s32.totalorder %v5026, 4
      %v5049 = vsel %vm5045, %v5029, %v5032
      %v5050 = vsel %vm5048, %v5038, 2102212464
      %v5051 = vsel %vm5047, %v5035, %v5050
      %v5052 = vsel %vm5046, %v5049, %v5051
      %v5053 = vsel %vm5045, %v5032, %v5035
      %v5054 = vsel %vm5048, %v5041, 920167782
      %v5055 = vsel %vm5047, %v5038, %v5054
      %v5056 = vsel %vm5046, %v5053, %v5055
      %v5057 = vsel %vm5045, %v5035, %v5038
      %v5058 = vsel %vm5048, %v5044, 1326507024
      %v5059 = vsel %vm5047, %v5041, %v5058
      %v5060 = vsel %vm5046, %v5057, %v5059
      %v5061 = vshll.u32 %v5021, 8
      %v5062 = vmul.u32.u64.compose %v5061, %v5060
      %v5063 = vextract.low.u32 %v5062
      %v5064 = vextract.high.u32 %v5062
      %v5065 = vmul.u32.u64.compose %v5061, %v5056
      %v5066 = vextract.low.u32 %v5065
      %v5067 = vextract.high.u32 %v5065
      %v5068 = vmul.u32 %v5061, %v5052
      %v5069 = vadd.s32 %v5064, %v5066
      %vm5070 = vc.u32 %v5064, %v5066
      %v5071 = vadd.s32 %v5067, 1
      %v5072 = vsel %vm5070, %v5071, %v5067
      %v5073 = vadd.s32 %v5068, %v5072
      %v5074 = vadd.s32 %v5073, 536870912
      %v5075 = vshrl.u32 %v5074, 30
      %v5076 = vshll.u32 %v5075, 30
      %v5077 = vsub.s32 %v5073, %v5076
      %vm5078 = vcmp.lt.s32.totalorder %v5077, 0
      %v5079 = vsub.s32 0, %v5077
      %v5080 = vsel %vm5078, %v5079, %v5077
      %v5081 = vclz %v5080
      %v5082 = vsub.s32 %v5081, 2
      %vm5083 = vcmp.gt.s32.totalorder 0, %v5082
      %v5084 = vsel %vm5083, 0, %v5082
      %v5085 = vsub.s32 32, %v5084
      %v5086 = vshll.u32 %v5077, %v5084
      %v5087 = vshrl.u32 %v5069, %v5085
      %v5088 = vor.u32 %v5086, %v5087
      %v5089 = vsub.s32 4294967266, %v5084
      %v5090 = vadd.s32 %v5089, 127
      %v5091 = vshll.u32 %v5090, 23
      %v5092 = vor.u32 4788187, %v5091
      %v5093 = vand.u32 2147483647, %v5092
      %v5095 = vcvt.s32.f32 %v5088
      %v5096 = vmul.f32 %v5095, %v5093
      %v5097 = vxor.u32 %v5096, 2147483648
      %v5098 = vsel %vm5015, %v5097, %v5096
      %v5099 = vsub.s32 4, %v5075
      %v5100 = vsel %vm5015, %v5099, %v5075
      %v5101 = vsel %vm5014, %v2745, %v5098
      %v5102 = vsel %vm5014, 0, %v5100
      %v5103 = vcosq.f32.pop %v5101
      %v5104 = vsinq.f32.pop %v5101
      %vm5105 = vweird.f32 %v2745
      %v5106 = vand.u32 %v5102, 3
      %vm5107 = vcmp.lt.s32.totalorder %v5106, 2
      %vm5108 = vcmp.eq.s32.totalorder %v5106, 0
      %v5109 = vxor.u32 %v5104, 2147483648
      %v5110 = vsel %vm5108, %v5103, %v5109
      %vm5111 = vcmp.eq.s32.totalorder %v5106, 2
      %v5112 = vxor.u32 %v5103, 2147483648
      %v5113 = vsel %vm5111, %v5112, %v5104
      %v5114 = vsel %vm5107, %v5110, %v5113
      %v5115 = vsel %vm5105, nan, %v5114
      %v5116 = vand.u32 2147483647, %v2746
      %vm5117 = vcmp.le.f32.partialorder %v5116, 0.7853982
      %vm5118 = vcmp.lt.s32.totalorder %v2746, 0
      %v5119 = vand.u32 %v2746, 2139095040
      %v5120 = vshrl.u32 %v5119, 23
      %v5121 = vsub.s32 %v5120, 127
      %v5122 = vand.u32 2147483647, %v2746
      %v5123 = vand.u32 %v5122, 8388607
      %v5124 = vor.u32 %v5123, 8388608
      %v5125 = vsub.s32 0, %v5124
      %v5126 = vadd.s32 %v5121, 1
      %vm5127 = vcmp.gt.s32.totalorder %v5126, 0
      %v5128 = vsel %vm5127, %v5126, 0
      %v5129 = vshrl.u32 %v5128, 5
      %v5130 = vand.u32 %v5128, 31
      %v5131 = vsub.s32 32, %v5130
      %v5132 = vshrl.u32 683565275, %v5131
      %v5133 = vshll.u32 683565275, %v5130
      %v5134 = vshrl.u32 2475754826, %v5131
      %v5135 = vor.u32 %v5133, %v5134
      %v5136 = vshll.u32 2475754826, %v5130
      %v5137 = vshrl.u32 2131351028, %v5131
      %v5138 = vor.u32 %v5136, %v5137
      %v5139 = vshll.u32 2131351028, %v5130
      %v5140 = vshrl.u32 2102212464, %v5131
      %v5141 = vor.u32 %v5139, %v5140
      %v5142 = vshll.u32 2102212464, %v5130
      %v5143 = vshrl.u32 920167782, %v5131
      %v5144 = vor.u32 %v5142, %v5143
      %v5145 = vshll.u32 920167782, %v5130
      %v5146 = vshrl.u32 1326507024, %v5131
      %v5147 = vor.u32 %v5145, %v5146
      %vm5148 = vcmp.lt.s32.totalorder %v5129, 1
      %vm5149 = vcmp.lt.s32.totalorder %v5129, 2
      %vm5150 = vcmp.lt.s32.totalorder %v5129, 3
      %vm5151 = vcmp.lt.s32.totalorder %v5129, 4
      %v5152 = vsel %vm5148, %v5132, %v5135
      %v5153 = vsel %vm5151, %v5141, 2102212464
      %v5154 = vsel %vm5150, %v5138, %v5153
      %v5155 = vsel %vm5149, %v5152, %v5154
      %v5156 = vsel %vm5148, %v5135, %v5138
      %v5157 = vsel %vm5151, %v5144, 920167782
      %v5158 = vsel %vm5150, %v5141, %v5157
      %v5159 = vsel %vm5149, %v5156, %v5158
      %v5160 = vsel %vm5148, %v5138, %v5141
      %v5161 = vsel %vm5151, %v5147, 1326507024
      %v5162 = vsel %vm5150, %v5144, %v5161
      %v5163 = vsel %vm5149, %v5160, %v5162
      %v5164 = vshll.u32 %v5124, 8
      %v5165 = vmul.u32.u64.compose %v5164, %v5163
      %v5166 = vextract.low.u32 %v5165
      %v5167 = vextract.high.u32 %v5165
      %v5168 = vmul.u32.u64.compose %v5164, %v5159
      %v5169 = vextract.low.u32 %v5168
      %v5170 = vextract.high.u32 %v5168
      %v5171 = vmul.u32 %v5164, %v5155
      %v5172 = vadd.s32 %v5167, %v5169
      %vm5173 = vc.u32 %v5167, %v5169
      %v5174 = vadd.s32 %v5170, 1
      %v5175 = vsel %vm5173, %v5174, %v5170
      %v5176 = vadd.s32 %v5171, %v5175
      %v5177 = vadd.s32 %v5176, 536870912
      %v5178 = vshrl.u32 %v5177, 30
      %v5179 = vshll.u32 %v5178, 30
      %v5180 = vsub.s32 %v5176, %v5179
      %vm5181 = vcmp.lt.s32.totalorder %v5180, 0
      %v5182 = vsub.s32 0, %v5180
      %v5183 = vsel %vm5181, %v5182, %v5180
      %v5184 = vclz %v5183
      %v5185 = vsub.s32 %v5184, 2
      %vm5186 = vcmp.gt.s32.totalorder 0, %v5185
      %v5187 = vsel %vm5186, 0, %v5185
      %v5188 = vsub.s32 32, %v5187
      %v5189 = vshll.u32 %v5180, %v5187
      %v5190 = vshrl.u32 %v5172, %v5188
      %v5191 = vor.u32 %v5189, %v5190
      %v5192 = vsub.s32 4294967266, %v5187
      %v5193 = vadd.s32 %v5192, 127
      %v5194 = vshll.u32 %v5193, 23
      %v5195 = vor.u32 4788187, %v5194
      %v5196 = vand.u32 2147483647, %v5195
      %v5198 = vcvt.s32.f32 %v5191
      %v5199 = vmul.f32 %v5198, %v5196
      %v5200 = vxor.u32 %v5199, 2147483648
      %v5201 = vsel %vm5118, %v5200, %v5199
      %v5202 = vsub.s32 4, %v5178
      %v5203 = vsel %vm5118, %v5202, %v5178
      %v5204 = vsel %vm5117, %v2746, %v5201
      %v5205 = vsel %vm5117, 0, %v5203
      %v5206 = vcosq.f32.pop %v5204
      %v5207 = vsinq.f32.pop %v5204
      %vm5208 = vweird.f32 %v2746
      %v5209 = vand.u32 %v5205, 3
      %vm5210 = vcmp.lt.s32.totalorder %v5209, 2
      %vm5211 = vcmp.eq.s32.totalorder %v5209, 0
      %v5212 = vxor.u32 %v5207, 2147483648
      %v5213 = vsel %vm5211, %v5206, %v5212
      %vm5214 = vcmp.eq.s32.totalorder %v5209, 2
      %v5215 = vxor.u32 %v5206, 2147483648
      %v5216 = vsel %vm5214, %v5215, %v5207
      %v5217 = vsel %vm5210, %v5213, %v5216
      %v5218 = vsel %vm5208, nan, %v5217
      %v5219 = vand.u32 2147483647, %v2747
      %vm5220 = vcmp.le.f32.partialorder %v5219, 0.7853982
      %vm5221 = vcmp.lt.s32.totalorder %v2747, 0
      %v5222 = vand.u32 %v2747, 2139095040
      %v5223 = vshrl.u32 %v5222, 23
      %v5224 = vsub.s32 %v5223, 127
      %v5225 = vand.u32 2147483647, %v2747
      %v5226 = vand.u32 %v5225, 8388607
      %v5227 = vor.u32 %v5226, 8388608
      %v5228 = vsub.s32 0, %v5227
      %v5229 = vadd.s32 %v5224, 1
      %vm5230 = vcmp.gt.s32.totalorder %v5229, 0
      %v5231 = vsel %vm5230, %v5229, 0
      %v5232 = vshrl.u32 %v5231, 5
      %v5233 = vand.u32 %v5231, 31
      %v5234 = vsub.s32 32, %v5233
      %v5235 = vshrl.u32 683565275, %v5234
      %v5236 = vshll.u32 683565275, %v5233
      %v5237 = vshrl.u32 2475754826, %v5234
      %v5238 = vor.u32 %v5236, %v5237
      %v5239 = vshll.u32 2475754826, %v5233
      %v5240 = vshrl.u32 2131351028, %v5234
      %v5241 = vor.u32 %v5239, %v5240
      %v5242 = vshll.u32 2131351028, %v5233
      %v5243 = vshrl.u32 2102212464, %v5234
      %v5244 = vor.u32 %v5242, %v5243
      %v5245 = vshll.u32 2102212464, %v5233
      %v5246 = vshrl.u32 920167782, %v5234
      %v5247 = vor.u32 %v5245, %v5246
      %v5248 = vshll.u32 920167782, %v5233
      %v5249 = vshrl.u32 1326507024, %v5234
      %v5250 = vor.u32 %v5248, %v5249
      %vm5251 = vcmp.lt.s32.totalorder %v5232, 1
      %vm5252 = vcmp.lt.s32.totalorder %v5232, 2
      %vm5253 = vcmp.lt.s32.totalorder %v5232, 3
      %vm5254 = vcmp.lt.s32.totalorder %v5232, 4
      %v5255 = vsel %vm5251, %v5235, %v5238
      %v5256 = vsel %vm5254, %v5244, 2102212464
      %v5257 = vsel %vm5253, %v5241, %v5256
      %v5258 = vsel %vm5252, %v5255, %v5257
      %v5259 = vsel %vm5251, %v5238, %v5241
      %v5260 = vsel %vm5254, %v5247, 920167782
      %v5261 = vsel %vm5253, %v5244, %v5260
      %v5262 = vsel %vm5252, %v5259, %v5261
      %v5263 = vsel %vm5251, %v5241, %v5244
      %v5264 = vsel %vm5254, %v5250, 1326507024
      %v5265 = vsel %vm5253, %v5247, %v5264
      %v5266 = vsel %vm5252, %v5263, %v5265
      %v5267 = vshll.u32 %v5227, 8
      %v5268 = vmul.u32.u64.compose %v5267, %v5266
      %v5269 = vextract.low.u32 %v5268
      %v5270 = vextract.high.u32 %v5268
      %v5271 = vmul.u32.u64.compose %v5267, %v5262
      %v5272 = vextract.low.u32 %v5271
      %v5273 = vextract.high.u32 %v5271
      %v5274 = vmul.u32 %v5267, %v5258
      %v5275 = vadd.s32 %v5270, %v5272
      %vm5276 = vc.u32 %v5270, %v5272
      %v5277 = vadd.s32 %v5273, 1
      %v5278 = vsel %vm5276, %v5277, %v5273
      %v5279 = vadd.s32 %v5274, %v5278
      %v5280 = vadd.s32 %v5279, 536870912
      %v5281 = vshrl.u32 %v5280, 30
      %v5282 = vshll.u32 %v5281, 30
      %v5283 = vsub.s32 %v5279, %v5282
      %vm5284 = vcmp.lt.s32.totalorder %v5283, 0
      %v5285 = vsub.s32 0, %v5283
      %v5286 = vsel %vm5284, %v5285, %v5283
      %v5287 = vclz %v5286
      %v5288 = vsub.s32 %v5287, 2
      %vm5289 = vcmp.gt.s32.totalorder 0, %v5288
      %v5290 = vsel %vm5289, 0, %v5288
      %v5291 = vsub.s32 32, %v5290
      %v5292 = vshll.u32 %v5283, %v5290
      %v5293 = vshrl.u32 %v5275, %v5291
      %v5294 = vor.u32 %v5292, %v5293
      %v5295 = vsub.s32 4294967266, %v5290
      %v5296 = vadd.s32 %v5295, 127
      %v5297 = vshll.u32 %v5296, 23
      %v5298 = vor.u32 4788187, %v5297
      %v5299 = vand.u32 2147483647, %v5298
      %v5301 = vcvt.s32.f32 %v5294
      %v5302 = vmul.f32 %v5301, %v5299
      %v5303 = vxor.u32 %v5302, 2147483648
      %v5304 = vsel %vm5221, %v5303, %v5302
      %v5305 = vsub.s32 4, %v5281
      %v5306 = vsel %vm5221, %v5305, %v5281
      %v5307 = vsel %vm5220, %v2747, %v5304
      %v5308 = vsel %vm5220, 0, %v5306
      %v5309 = vcosq.f32.pop %v5307
      %v5310 = vsinq.f32.pop %v5307
      %vm5311 = vweird.f32 %v2747
      %v5312 = vand.u32 %v5308, 3
      %vm5313 = vcmp.lt.s32.totalorder %v5312, 2
      %vm5314 = vcmp.eq.s32.totalorder %v5312, 0
      %v5315 = vxor.u32 %v5310, 2147483648
      %v5316 = vsel %vm5314, %v5309, %v5315
      %vm5317 = vcmp.eq.s32.totalorder %v5312, 2
      %v5318 = vxor.u32 %v5309, 2147483648
      %v5319 = vsel %vm5317, %v5318, %v5310
      %v5320 = vsel %vm5313, %v5316, %v5319
      %v5321 = vsel %vm5311, nan, %v5320
      %v5322 = vand.u32 2147483647, %v2748
      %vm5323 = vcmp.le.f32.partialorder %v5322, 0.7853982
      %vm5324 = vcmp.lt.s32.totalorder %v2748, 0
      %v5325 = vand.u32 %v2748, 2139095040
      %v5326 = vshrl.u32 %v5325, 23
      %v5327 = vsub.s32 %v5326, 127
      %v5328 = vand.u32 2147483647, %v2748
      %v5329 = vand.u32 %v5328, 8388607
      %v5330 = vor.u32 %v5329, 8388608
      %v5331 = vsub.s32 0, %v5330
      %v5332 = vadd.s32 %v5327, 1
      %vm5333 = vcmp.gt.s32.totalorder %v5332, 0
      %v5334 = vsel %vm5333, %v5332, 0
      %v5335 = vshrl.u32 %v5334, 5
      %v5336 = vand.u32 %v5334, 31
      %v5337 = vsub.s32 32, %v5336
      %v5338 = vshrl.u32 683565275, %v5337
      %v5339 = vshll.u32 683565275, %v5336
      %v5340 = vshrl.u32 2475754826, %v5337
      %v5341 = vor.u32 %v5339, %v5340
      %v5342 = vshll.u32 2475754826, %v5336
      %v5343 = vshrl.u32 2131351028, %v5337
      %v5344 = vor.u32 %v5342, %v5343
      %v5345 = vshll.u32 2131351028, %v5336
      %v5346 = vshrl.u32 2102212464, %v5337
      %v5347 = vor.u32 %v5345, %v5346
      %v5348 = vshll.u32 2102212464, %v5336
      %v5349 = vshrl.u32 920167782, %v5337
      %v5350 = vor.u32 %v5348, %v5349
      %v5351 = vshll.u32 920167782, %v5336
      %v5352 = vshrl.u32 1326507024, %v5337
      %v5353 = vor.u32 %v5351, %v5352
      %vm5354 = vcmp.lt.s32.totalorder %v5335, 1
      %vm5355 = vcmp.lt.s32.totalorder %v5335, 2
      %vm5356 = vcmp.lt.s32.totalorder %v5335, 3
      %vm5357 = vcmp.lt.s32.totalorder %v5335, 4
      %v5358 = vsel %vm5354, %v5338, %v5341
      %v5359 = vsel %vm5357, %v5347, 2102212464
      %v5360 = vsel %vm5356, %v5344, %v5359
      %v5361 = vsel %vm5355, %v5358, %v5360
      %v5362 = vsel %vm5354, %v5341, %v5344
      %v5363 = vsel %vm5357, %v5350, 920167782
      %v5364 = vsel %vm5356, %v5347, %v5363
      %v5365 = vsel %vm5355, %v5362, %v5364
      %v5366 = vsel %vm5354, %v5344, %v5347
      %v5367 = vsel %vm5357, %v5353, 1326507024
      %v5368 = vsel %vm5356, %v5350, %v5367
      %v5369 = vsel %vm5355, %v5366, %v5368
      %v5370 = vshll.u32 %v5330, 8
      %v5371 = vmul.u32.u64.compose %v5370, %v5369
      %v5372 = vextract.low.u32 %v5371
      %v5373 = vextract.high.u32 %v5371
      %v5374 = vmul.u32.u64.compose %v5370, %v5365
      %v5375 = vextract.low.u32 %v5374
      %v5376 = vextract.high.u32 %v5374
      %v5377 = vmul.u32 %v5370, %v5361
      %v5378 = vadd.s32 %v5373, %v5375
      %vm5379 = vc.u32 %v5373, %v5375
      %v5380 = vadd.s32 %v5376, 1
      %v5381 = vsel %vm5379, %v5380, %v5376
      %v5382 = vadd.s32 %v5377, %v5381
      %v5383 = vadd.s32 %v5382, 536870912
      %v5384 = vshrl.u32 %v5383, 30
      %v5385 = vshll.u32 %v5384, 30
      %v5386 = vsub.s32 %v5382, %v5385
      %vm5387 = vcmp.lt.s32.totalorder %v5386, 0
      %v5388 = vsub.s32 0, %v5386
      %v5389 = vsel %vm5387, %v5388, %v5386
      %v5390 = vclz %v5389
      %v5391 = vsub.s32 %v5390, 2
      %vm5392 = vcmp.gt.s32.totalorder 0, %v5391
      %v5393 = vsel %vm5392, 0, %v5391
      %v5394 = vsub.s32 32, %v5393
      %v5395 = vshll.u32 %v5386, %v5393
      %v5396 = vshrl.u32 %v5378, %v5394
      %v5397 = vor.u32 %v5395, %v5396
      %v5398 = vsub.s32 4294967266, %v5393
      %v5399 = vadd.s32 %v5398, 127
      %v5400 = vshll.u32 %v5399, 23
      %v5401 = vor.u32 4788187, %v5400
      %v5402 = vand.u32 2147483647, %v5401
      %v5404 = vcvt.s32.f32 %v5397
      %v5405 = vmul.f32 %v5404, %v5402
      %v5406 = vxor.u32 %v5405, 2147483648
      %v5407 = vsel %vm5324, %v5406, %v5405
      %v5408 = vsub.s32 4, %v5384
      %v5409 = vsel %vm5324, %v5408, %v5384
      %v5410 = vsel %vm5323, %v2748, %v5407
      %v5411 = vsel %vm5323, 0, %v5409
      %v5412 = vcosq.f32.pop %v5410
      %v5413 = vsinq.f32.pop %v5410
      %vm5414 = vweird.f32 %v2748
      %v5415 = vand.u32 %v5411, 3
      %vm5416 = vcmp.lt.s32.totalorder %v5415, 2
      %vm5417 = vcmp.eq.s32.totalorder %v5415, 0
      %v5418 = vxor.u32 %v5413, 2147483648
      %v5419 = vsel %vm5417, %v5412, %v5418
      %vm5420 = vcmp.eq.s32.totalorder %v5415, 2
      %v5421 = vxor.u32 %v5412, 2147483648
      %v5422 = vsel %vm5420, %v5421, %v5413
      %v5423 = vsel %vm5416, %v5419, %v5422
      %v5424 = vsel %vm5414, nan, %v5423
      %v5425 = vand.u32 2147483647, %v2749
      %vm5426 = vcmp.le.f32.partialorder %v5425, 0.7853982
      %vm5427 = vcmp.lt.s32.totalorder %v2749, 0
      %v5428 = vand.u32 %v2749, 2139095040
      %v5429 = vshrl.u32 %v5428, 23
      %v5430 = vsub.s32 %v5429, 127
      %v5431 = vand.u32 2147483647, %v2749
      %v5432 = vand.u32 %v5431, 8388607
      %v5433 = vor.u32 %v5432, 8388608
      %v5434 = vsub.s32 0, %v5433
      %v5435 = vadd.s32 %v5430, 1
      %vm5436 = vcmp.gt.s32.totalorder %v5435, 0
      %v5437 = vsel %vm5436, %v5435, 0
      %v5438 = vshrl.u32 %v5437, 5
      %v5439 = vand.u32 %v5437, 31
      %v5440 = vsub.s32 32, %v5439
      %v5441 = vshrl.u32 683565275, %v5440
      %v5442 = vshll.u32 683565275, %v5439
      %v5443 = vshrl.u32 2475754826, %v5440
      %v5444 = vor.u32 %v5442, %v5443
      %v5445 = vshll.u32 2475754826, %v5439
      %v5446 = vshrl.u32 2131351028, %v5440
      %v5447 = vor.u32 %v5445, %v5446
      %v5448 = vshll.u32 2131351028, %v5439
      %v5449 = vshrl.u32 2102212464, %v5440
      %v5450 = vor.u32 %v5448, %v5449
      %v5451 = vshll.u32 2102212464, %v5439
      %v5452 = vshrl.u32 920167782, %v5440
      %v5453 = vor.u32 %v5451, %v5452
      %v5454 = vshll.u32 920167782, %v5439
      %v5455 = vshrl.u32 1326507024, %v5440
      %v5456 = vor.u32 %v5454, %v5455
      %vm5457 = vcmp.lt.s32.totalorder %v5438, 1
      %vm5458 = vcmp.lt.s32.totalorder %v5438, 2
      %vm5459 = vcmp.lt.s32.totalorder %v5438, 3
      %vm5460 = vcmp.lt.s32.totalorder %v5438, 4
      %v5461 = vsel %vm5457, %v5441, %v5444
      %v5462 = vsel %vm5460, %v5450, 2102212464
      %v5463 = vsel %vm5459, %v5447, %v5462
      %v5464 = vsel %vm5458, %v5461, %v5463
      %v5465 = vsel %vm5457, %v5444, %v5447
      %v5466 = vsel %vm5460, %v5453, 920167782
      %v5467 = vsel %vm5459, %v5450, %v5466
      %v5468 = vsel %vm5458, %v5465, %v5467
      %v5469 = vsel %vm5457, %v5447, %v5450
      %v5470 = vsel %vm5460, %v5456, 1326507024
      %v5471 = vsel %vm5459, %v5453, %v5470
      %v5472 = vsel %vm5458, %v5469, %v5471
      %v5473 = vshll.u32 %v5433, 8
      %v5474 = vmul.u32.u64.compose %v5473, %v5472
      %v5475 = vextract.low.u32 %v5474
      %v5476 = vextract.high.u32 %v5474
      %v5477 = vmul.u32.u64.compose %v5473, %v5468
      %v5478 = vextract.low.u32 %v5477
      %v5479 = vextract.high.u32 %v5477
      %v5480 = vmul.u32 %v5473, %v5464
      %v5481 = vadd.s32 %v5476, %v5478
      %vm5482 = vc.u32 %v5476, %v5478
      %v5483 = vadd.s32 %v5479, 1
      %v5484 = vsel %vm5482, %v5483, %v5479
      %v5485 = vadd.s32 %v5480, %v5484
      %v5486 = vadd.s32 %v5485, 536870912
      %v5487 = vshrl.u32 %v5486, 30
      %v5488 = vshll.u32 %v5487, 30
      %v5489 = vsub.s32 %v5485, %v5488
      %vm5490 = vcmp.lt.s32.totalorder %v5489, 0
      %v5491 = vsub.s32 0, %v5489
      %v5492 = vsel %vm5490, %v5491, %v5489
      %v5493 = vclz %v5492
      %v5494 = vsub.s32 %v5493, 2
      %vm5495 = vcmp.gt.s32.totalorder 0, %v5494
      %v5496 = vsel %vm5495, 0, %v5494
      %v5497 = vsub.s32 32, %v5496
      %v5498 = vshll.u32 %v5489, %v5496
      %v5499 = vshrl.u32 %v5481, %v5497
      %v5500 = vor.u32 %v5498, %v5499
      %v5501 = vsub.s32 4294967266, %v5496
      %v5502 = vadd.s32 %v5501, 127
      %v5503 = vshll.u32 %v5502, 23
      %v5504 = vor.u32 4788187, %v5503
      %v5505 = vand.u32 2147483647, %v5504
      %v5507 = vcvt.s32.f32 %v5500
      %v5508 = vmul.f32 %v5507, %v5505
      %v5509 = vxor.u32 %v5508, 2147483648
      %v5510 = vsel %vm5427, %v5509, %v5508
      %v5511 = vsub.s32 4, %v5487
      %v5512 = vsel %vm5427, %v5511, %v5487
      %v5513 = vsel %vm5426, %v2749, %v5510
      %v5514 = vsel %vm5426, 0, %v5512
      %v5515 = vcosq.f32.pop %v5513
      %v5516 = vsinq.f32.pop %v5513
      %vm5517 = vweird.f32 %v2749
      %v5518 = vand.u32 %v5514, 3
      %vm5519 = vcmp.lt.s32.totalorder %v5518, 2
      %vm5520 = vcmp.eq.s32.totalorder %v5518, 0
      %v5521 = vxor.u32 %v5516, 2147483648
      %v5522 = vsel %vm5520, %v5515, %v5521
      %vm5523 = vcmp.eq.s32.totalorder %v5518, 2
      %v5524 = vxor.u32 %v5515, 2147483648
      %v5525 = vsel %vm5523, %v5524, %v5516
      %v5526 = vsel %vm5519, %v5522, %v5525
      %v5527 = vsel %vm5517, nan, %v5526
      %v5528 = vand.u32 2147483647, %v2750
      %vm5529 = vcmp.le.f32.partialorder %v5528, 0.7853982
      %vm5530 = vcmp.lt.s32.totalorder %v2750, 0
      %v5531 = vand.u32 %v2750, 2139095040
      %v5532 = vshrl.u32 %v5531, 23
      %v5533 = vsub.s32 %v5532, 127
      %v5534 = vand.u32 2147483647, %v2750
      %v5535 = vand.u32 %v5534, 8388607
      %v5536 = vor.u32 %v5535, 8388608
      %v5537 = vsub.s32 0, %v5536
      %v5538 = vadd.s32 %v5533, 1
      %vm5539 = vcmp.gt.s32.totalorder %v5538, 0
      %v5540 = vsel %vm5539, %v5538, 0
      %v5541 = vshrl.u32 %v5540, 5
      %v5542 = vand.u32 %v5540, 31
      %v5543 = vsub.s32 32, %v5542
      %v5544 = vshrl.u32 683565275, %v5543
      %v5545 = vshll.u32 683565275, %v5542
      %v5546 = vshrl.u32 2475754826, %v5543
      %v5547 = vor.u32 %v5545, %v5546
      %v5548 = vshll.u32 2475754826, %v5542
      %v5549 = vshrl.u32 2131351028, %v5543
      %v5550 = vor.u32 %v5548, %v5549
      %v5551 = vshll.u32 2131351028, %v5542
      %v5552 = vshrl.u32 2102212464, %v5543
      %v5553 = vor.u32 %v5551, %v5552
      %v5554 = vshll.u32 2102212464, %v5542
      %v5555 = vshrl.u32 920167782, %v5543
      %v5556 = vor.u32 %v5554, %v5555
      %v5557 = vshll.u32 920167782, %v5542
      %v5558 = vshrl.u32 1326507024, %v5543
      %v5559 = vor.u32 %v5557, %v5558
      %vm5560 = vcmp.lt.s32.totalorder %v5541, 1
      %vm5561 = vcmp.lt.s32.totalorder %v5541, 2
      %vm5562 = vcmp.lt.s32.totalorder %v5541, 3
      %vm5563 = vcmp.lt.s32.totalorder %v5541, 4
      %v5564 = vsel %vm5560, %v5544, %v5547
      %v5565 = vsel %vm5563, %v5553, 2102212464
      %v5566 = vsel %vm5562, %v5550, %v5565
      %v5567 = vsel %vm5561, %v5564, %v5566
      %v5568 = vsel %vm5560, %v5547, %v5550
      %v5569 = vsel %vm5563, %v5556, 920167782
      %v5570 = vsel %vm5562, %v5553, %v5569
      %v5571 = vsel %vm5561, %v5568, %v5570
      %v5572 = vsel %vm5560, %v5550, %v5553
      %v5573 = vsel %vm5563, %v5559, 1326507024
      %v5574 = vsel %vm5562, %v5556, %v5573
      %v5575 = vsel %vm5561, %v5572, %v5574
      %v5576 = vshll.u32 %v5536, 8
      %v5577 = vmul.u32.u64.compose %v5576, %v5575
      %v5578 = vextract.low.u32 %v5577
      %v5579 = vextract.high.u32 %v5577
      %v5580 = vmul.u32.u64.compose %v5576, %v5571
      %v5581 = vextract.low.u32 %v5580
      %v5582 = vextract.high.u32 %v5580
      %v5583 = vmul.u32 %v5576, %v5567
      %v5584 = vadd.s32 %v5579, %v5581
      %vm5585 = vc.u32 %v5579, %v5581
      %v5586 = vadd.s32 %v5582, 1
      %v5587 = vsel %vm5585, %v5586, %v5582
      %v5588 = vadd.s32 %v5583, %v5587
      %v5589 = vadd.s32 %v5588, 536870912
      %v5590 = vshrl.u32 %v5589, 30
      %v5591 = vshll.u32 %v5590, 30
      %v5592 = vsub.s32 %v5588, %v5591
      %vm5593 = vcmp.lt.s32.totalorder %v5592, 0
      %v5594 = vsub.s32 0, %v5592
      %v5595 = vsel %vm5593, %v5594, %v5592
      %v5596 = vclz %v5595
      %v5597 = vsub.s32 %v5596, 2
      %vm5598 = vcmp.gt.s32.totalorder 0, %v5597
      %v5599 = vsel %vm5598, 0, %v5597
      %v5600 = vsub.s32 32, %v5599
      %v5601 = vshll.u32 %v5592, %v5599
      %v5602 = vshrl.u32 %v5584, %v5600
      %v5603 = vor.u32 %v5601, %v5602
      %v5604 = vsub.s32 4294967266, %v5599
      %v5605 = vadd.s32 %v5604, 127
      %v5606 = vshll.u32 %v5605, 23
      %v5607 = vor.u32 4788187, %v5606
      %v5608 = vand.u32 2147483647, %v5607
      %v5610 = vcvt.s32.f32 %v5603
      %v5611 = vmul.f32 %v5610, %v5608
      %v5612 = vxor.u32 %v5611, 2147483648
      %v5613 = vsel %vm5530, %v5612, %v5611
      %v5614 = vsub.s32 4, %v5590
      %v5615 = vsel %vm5530, %v5614, %v5590
      %v5616 = vsel %vm5529, %v2750, %v5613
      %v5617 = vsel %vm5529, 0, %v5615
      %v5618 = vcosq.f32.pop %v5616
      %v5619 = vsinq.f32.pop %v5616
      %vm5620 = vweird.f32 %v2750
      %v5621 = vand.u32 %v5617, 3
      %vm5622 = vcmp.lt.s32.totalorder %v5621, 2
      %vm5623 = vcmp.eq.s32.totalorder %v5621, 0
      %v5624 = vxor.u32 %v5619, 2147483648
      %v5625 = vsel %vm5623, %v5618, %v5624
      %vm5626 = vcmp.eq.s32.totalorder %v5621, 2
      %v5627 = vxor.u32 %v5618, 2147483648
      %v5628 = vsel %vm5626, %v5627, %v5619
      %v5629 = vsel %vm5622, %v5625, %v5628
      %v5630 = vsel %vm5620, nan, %v5629
      %v5631 = vld [vmem:[%s1] sm:$0x7]
      %v5633 = vlaneseq
      %v5634 = vshrl.u32 %v5633, 7
      %v5635 = vsub.s32 0, %v5634
      %v5636 = vrot.slane %v5631, %v5635
      %v5637 = vlaneseq
      %v5638 = vshrl.u32 %v5637, 7
      %v5639 = vsub.s32 1, %v5638
      %v5640 = vrot.slane %v5631, %v5639
      %v5641 = vlaneseq
      %v5642 = vshrl.u32 %v5641, 7
      %v5643 = vsub.s32 2, %v5642
      %v5644 = vrot.slane %v5631, %v5643
      %v5648 = vmul.f32 %v4497, %v5636
      %v5649 = vmul.f32 %v4600, %v5640
      %v5650 = vmul.f32 %v4703, %v5644
      %v5651 = vmul.f32 %v4806, %v5636
      %v5652 = vmul.f32 %v4909, %v5640
      %v5653 = vmul.f32 %v5012, %v5644
      %v5654 = vmul.f32 %v5115, %v5636
      %v5655 = vmul.f32 %v5218, %v5640
      %v5656 = vmul.f32 %v5321, %v5644
      %v5657 = vmul.f32 %v5424, %v5636
      %v5658 = vmul.f32 %v5527, %v5640
      %v5659 = vmul.f32 %v5630, %v5644
      %5660 = vrot.lane.b32.xlu0 %v5648, 19
      %v5661 = vpop.permute.xlu0 %5660
      %5662 = vrot.lane.b32.xlu0 %v5651, 19
      %v5663 = vpop.permute.xlu0 %5662
      %5664 = vrot.lane.b32.xlu0 %v5654, 19
      %v5665 = vpop.permute.xlu0 %5664
      %5666 = vrot.lane.b32.xlu0 %v5657, 19
      %v5667 = vpop.permute.xlu0 %5666
      %5668 = vrot.lane.b32.xlu0 %v5649, 19
      %v5669 = vpop.permute.xlu0 %5668
      %5670 = vrot.lane.b32.xlu0 %v5652, 19
      %v5671 = vpop.permute.xlu0 %5670
      %5672 = vrot.lane.b32.xlu0 %v5655, 19
      %v5673 = vpop.permute.xlu0 %5672
      %5674 = vrot.lane.b32.xlu0 %v5658, 19
      %v5675 = vpop.permute.xlu0 %5674
      %5676 = vrot.lane.b32.xlu0 %v5650, 19
      %v5677 = vpop.permute.xlu0 %5676
      %5678 = vrot.lane.b32.xlu0 %v5653, 19
      %v5679 = vpop.permute.xlu0 %5678
      %5680 = vrot.lane.b32.xlu0 %v5656, 19
      %v5681 = vpop.permute.xlu0 %5680
      %5682 = vrot.lane.b32.xlu0 %v5659, 19
      %v5683 = vpop.permute.xlu0 %5682
      %v5684 = vsel %vm399, %v5669, %v5677
      %v5685 = vsel %vm399, %v5671, %v5679
      %v5686 = vsel %vm399, %v5673, %v5681
      %v5687 = vsel %vm399, %v5675, %v5683
      %v5688 = vsel %vm399, %v5661, %v5669
      %v5689 = vsel %vm399, %v5663, %v5671
      %v5690 = vsel %vm399, %v5665, %v5673
      %v5691 = vsel %vm399, %v5667, %v5675
      %v5692 = vsel %vm399, %v5677, %v5661
      %v5693 = vsel %vm399, %v5679, %v5663
      %v5694 = vsel %vm399, %v5681, %v5665
      %v5695 = vsel %vm399, %v5683, %v5667
      %v5696 = vpack.c.bf16 %v5693, %v5692
      %v5697 = vpack.c.bf16 %v5689, %v5688
      %v5698 = vpack.c.bf16 %v5685, %v5684
      %v5699 = vpack.c.bf16 %v5695, %v5694
      %v5700 = vpack.c.bf16 %v5691, %v5690
      %v5701 = vpack.c.bf16 %v5687, %v5686
      %5702 = vst [vmem:[#allocation3 + $0x1b0] sm:$0xff] %v5696
      %5703 = vst [vmem:[#allocation3 + $0x1b8] sm:$0xff] %v5697
      %5704 = vst [vmem:[#allocation3 + $0x1c0] sm:$0xff] %v5698
      %5705 = vst [vmem:[#allocation3 + $0x1c8] sm:$0xff] %v5699
      %5706 = vst [vmem:[#allocation3 + $0x1d0] sm:$0xff] %v5700
      %5707 = vst [vmem:[#allocation3 + $0x1d8] sm:$0xff] %v5701
      %5708 = vrot.lane.b32.xlu0 %v5648, 18
      %v5709 = vpop.permute.xlu0 %5708
      %5710 = vrot.lane.b32.xlu0 %v5651, 18
      %v5711 = vpop.permute.xlu0 %5710
      %5712 = vrot.lane.b32.xlu0 %v5654, 18
      %v5713 = vpop.permute.xlu0 %5712
      %5714 = vrot.lane.b32.xlu0 %v5657, 18
      %v5715 = vpop.permute.xlu0 %5714
      %5716 = vrot.lane.b32.xlu0 %v5649, 18
      %v5717 = vpop.permute.xlu0 %5716
      %5718 = vrot.lane.b32.xlu0 %v5652, 18
      %v5719 = vpop.permute.xlu0 %5718
      %5720 = vrot.lane.b32.xlu0 %v5655, 18
      %v5721 = vpop.permute.xlu0 %5720
      %5722 = vrot.lane.b32.xlu0 %v5658, 18
      %v5723 = vpop.permute.xlu0 %5722
      %5724 = vrot.lane.b32.xlu0 %v5650, 18
      %v5725 = vpop.permute.xlu0 %5724
      %5726 = vrot.lane.b32.xlu0 %v5653, 18
      %v5727 = vpop.permute.xlu0 %5726
      %5728 = vrot.lane.b32.xlu0 %v5656, 18
      %v5729 = vpop.permute.xlu0 %5728
      %5730 = vrot.lane.b32.xlu0 %v5659, 18
      %v5731 = vpop.permute.xlu0 %5730
      %v5732 = vsel %vm448, %v5717, %v5725
      %v5733 = vsel %vm448, %v5719, %v5727
      %v5734 = vsel %vm448, %v5721, %v5729
      %v5735 = vsel %vm448, %v5723, %v5731
      %v5736 = vsel %vm448, %v5709, %v5717
      %v5737 = vsel %vm448, %v5711, %v5719
      %v5738 = vsel %vm448, %v5713, %v5721
      %v5739 = vsel %vm448, %v5715, %v5723
      %v5740 = vsel %vm448, %v5725, %v5709
      %v5741 = vsel %vm448, %v5727, %v5711
      %v5742 = vsel %vm448, %v5729, %v5713
      %v5743 = vsel %vm448, %v5731, %v5715
      %v5744 = vpack.c.bf16 %v5741, %v5740
      %v5745 = vpack.c.bf16 %v5737, %v5736
      %v5746 = vpack.c.bf16 %v5733, %v5732
      %v5747 = vpack.c.bf16 %v5743, %v5742
      %v5748 = vpack.c.bf16 %v5739, %v5738
      %v5749 = vpack.c.bf16 %v5735, %v5734
      %5750 = vst [vmem:[#allocation3 + $0x1e0] sm:$0xff] %v5744
      %5751 = vst [vmem:[#allocation3 + $0x1e8] sm:$0xff] %v5745
      %5752 = vst [vmem:[#allocation3 + $0x1f0] sm:$0xff] %v5746
      %5753 = vst [vmem:[#allocation3 + $0x1f8] sm:$0xff] %v5747
      %5754 = vst [vmem:[#allocation3 + $0x200] sm:$0xff] %v5748
      %5755 = vst [vmem:[#allocation3 + $0x208] sm:$0xff] %v5749
      %5756 = vrot.lane.b32.xlu0 %v5648, 17
      %v5757 = vpop.permute.xlu0 %5756
      %5758 = vrot.lane.b32.xlu0 %v5651, 17
      %v5759 = vpop.permute.xlu0 %5758
      %5760 = vrot.lane.b32.xlu0 %v5654, 17
      %v5761 = vpop.permute.xlu0 %5760
      %5762 = vrot.lane.b32.xlu0 %v5657, 17
      %v5763 = vpop.permute.xlu0 %5762
      %5764 = vrot.lane.b32.xlu0 %v5649, 17
      %v5765 = vpop.permute.xlu0 %5764
      %5766 = vrot.lane.b32.xlu0 %v5652, 17
      %v5767 = vpop.permute.xlu0 %5766
      %5768 = vrot.lane.b32.xlu0 %v5655, 17
      %v5769 = vpop.permute.xlu0 %5768
      %5770 = vrot.lane.b32.xlu0 %v5658, 17
      %v5771 = vpop.permute.xlu0 %5770
      %5772 = vrot.lane.b32.xlu0 %v5650, 17
      %v5773 = vpop.permute.xlu0 %5772
      %5774 = vrot.lane.b32.xlu0 %v5653, 17
      %v5775 = vpop.permute.xlu0 %5774
      %5776 = vrot.lane.b32.xlu0 %v5656, 17
      %v5777 = vpop.permute.xlu0 %5776
      %5778 = vrot.lane.b32.xlu0 %v5659, 17
      %v5779 = vpop.permute.xlu0 %5778
      %v5780 = vsel %vm497, %v5765, %v5773
      %v5781 = vsel %vm497, %v5767, %v5775
      %v5782 = vsel %vm497, %v5769, %v5777
      %v5783 = vsel %vm497, %v5771, %v5779
      %v5784 = vsel %vm497, %v5757, %v5765
      %v5785 = vsel %vm497, %v5759, %v5767
      %v5786 = vsel %vm497, %v5761, %v5769
      %v5787 = vsel %vm497, %v5763, %v5771
      %v5788 = vsel %vm497, %v5773, %v5757
      %v5789 = vsel %vm497, %v5775, %v5759
      %v5790 = vsel %vm497, %v5777, %v5761
      %v5791 = vsel %vm497, %v5779, %v5763
      %v5792 = vpack.c.bf16 %v5789, %v5788
      %v5793 = vpack.c.bf16 %v5785, %v5784
      %v5794 = vpack.c.bf16 %v5781, %v5780
      %v5795 = vpack.c.bf16 %v5791, %v5790
      %v5796 = vpack.c.bf16 %v5787, %v5786
      %v5797 = vpack.c.bf16 %v5783, %v5782
      %5798 = vst [vmem:[#allocation3 + $0x210] sm:$0xff] %v5792
      %5799 = vst [vmem:[#allocation3 + $0x218] sm:$0xff] %v5793
      %5800 = vst [vmem:[#allocation3 + $0x220] sm:$0xff] %v5794
      %5801 = vst [vmem:[#allocation3 + $0x228] sm:$0xff] %v5795
      %5802 = vst [vmem:[#allocation3 + $0x230] sm:$0xff] %v5796
      %5803 = vst [vmem:[#allocation3 + $0x238] sm:$0xff] %v5797
      %5804 = vrot.lane.b32.xlu0 %v5648, 1
      %v5805 = vpop.permute.xlu0 %5804
      %5806 = vrot.lane.b32.xlu0 %v5651, 1
      %v5807 = vpop.permute.xlu0 %5806
      %5808 = vrot.lane.b32.xlu0 %v5654, 1
      %v5809 = vpop.permute.xlu0 %5808
      %5810 = vrot.lane.b32.xlu0 %v5657, 1
      %v5811 = vpop.permute.xlu0 %5810
      %5812 = vrot.lane.b32.xlu0 %v5649, 1
      %v5813 = vpop.permute.xlu0 %5812
      %5814 = vrot.lane.b32.xlu0 %v5652, 1
      %v5815 = vpop.permute.xlu0 %5814
      %5816 = vrot.lane.b32.xlu0 %v5655, 1
      %v5817 = vpop.permute.xlu0 %5816
      %5818 = vrot.lane.b32.xlu0 %v5658, 1
      %v5819 = vpop.permute.xlu0 %5818
      %5820 = vrot.lane.b32.xlu0 %v5650, 1
      %v5821 = vpop.permute.xlu0 %5820
      %5822 = vrot.lane.b32.xlu0 %v5653, 1
      %v5823 = vpop.permute.xlu0 %5822
      %5824 = vrot.lane.b32.xlu0 %v5656, 1
      %v5825 = vpop.permute.xlu0 %5824
      %5826 = vrot.lane.b32.xlu0 %v5659, 1
      %v5827 = vpop.permute.xlu0 %5826
      %v5828 = vsel %vm546, %v5813, %v5821
      %v5829 = vsel %vm546, %v5815, %v5823
      %v5830 = vsel %vm546, %v5817, %v5825
      %v5831 = vsel %vm546, %v5819, %v5827
      %v5832 = vsel %vm546, %v5805, %v5813
      %v5833 = vsel %vm546, %v5807, %v5815
      %v5834 = vsel %vm546, %v5809, %v5817
      %v5835 = vsel %vm546, %v5811, %v5819
      %v5836 = vsel %vm546, %v5821, %v5805
      %v5837 = vsel %vm546, %v5823, %v5807
      %v5838 = vsel %vm546, %v5825, %v5809
      %v5839 = vsel %vm546, %v5827, %v5811
      %v5840 = vpack.c.bf16 %v5837, %v5836
      %v5841 = vpack.c.bf16 %v5833, %v5832
      %v5842 = vpack.c.bf16 %v5829, %v5828
      %v5843 = vpack.c.bf16 %v5839, %v5838
      %v5844 = vpack.c.bf16 %v5835, %v5834
      %v5845 = vpack.c.bf16 %v5831, %v5830
      %5846 = vst [vmem:[#allocation3 + $0x240] sm:$0xff] %v5840
      %5847 = vst [vmem:[#allocation3 + $0x248] sm:$0xff] %v5841
      %5848 = vst [vmem:[#allocation3 + $0x250] sm:$0xff] %v5842
      %5849 = vst [vmem:[#allocation3 + $0x258] sm:$0xff] %v5843
      %5850 = vst [vmem:[#allocation3 + $0x260] sm:$0xff] %v5844
      %5851 = vst [vmem:[#allocation3 + $0x268] sm:$0xff] %v5845
      %v5852 = vpack.c.bf16 %v5651, %v5648
      %v5853 = vpack.c.bf16 %v5652, %v5649
      %v5854 = vpack.c.bf16 %v5653, %v5650
      %v5855 = vpack.c.bf16 %v5657, %v5654
      %v5856 = vpack.c.bf16 %v5658, %v5655
      %v5857 = vpack.c.bf16 %v5659, %v5656
      %5858 = vst [vmem:[#allocation3 + $0x270] sm:$0xff] %v5852
      %5859 = vst [vmem:[#allocation3 + $0x278] sm:$0xff] %v5853
      %5860 = vst [vmem:[#allocation3 + $0x280] sm:$0xff] %v5854
      %5861 = vst [vmem:[#allocation3 + $0x288] sm:$0xff] %v5855
      %5862 = vst [vmem:[#allocation3 + $0x290] sm:$0xff] %v5856
      %5863 = vst [vmem:[#allocation3 + $0x298] sm:$0xff] %v5857
      %5864 = vrot.lane.b32.xlu0 %v5648, 127
      %v5865 = vpop.permute.xlu0 %5864
      %5866 = vrot.lane.b32.xlu0 %v5651, 127
      %v5867 = vpop.permute.xlu0 %5866
      %5868 = vrot.lane.b32.xlu0 %v5654, 127
      %v5869 = vpop.permute.xlu0 %5868
      %5870 = vrot.lane.b32.xlu0 %v5657, 127
      %v5871 = vpop.permute.xlu0 %5870
      %5872 = vrot.lane.b32.xlu0 %v5649, 127
      %v5873 = vpop.permute.xlu0 %5872
      %5874 = vrot.lane.b32.xlu0 %v5652, 127
      %v5875 = vpop.permute.xlu0 %5874
      %5876 = vrot.lane.b32.xlu0 %v5655, 127
      %v5877 = vpop.permute.xlu0 %5876
      %5878 = vrot.lane.b32.xlu0 %v5658, 127
      %v5879 = vpop.permute.xlu0 %5878
      %5880 = vrot.lane.b32.xlu0 %v5650, 127
      %v5881 = vpop.permute.xlu0 %5880
      %5882 = vrot.lane.b32.xlu0 %v5653, 127
      %v5883 = vpop.permute.xlu0 %5882
      %5884 = vrot.lane.b32.xlu0 %v5656, 127
      %v5885 = vpop.permute.xlu0 %5884
      %5886 = vrot.lane.b32.xlu0 %v5659, 127
      %v5887 = vpop.permute.xlu0 %5886
      %v5888 = vsel %vm607, %v5873, %v5881
      %v5889 = vsel %vm607, %v5875, %v5883
      %v5890 = vsel %vm607, %v5877, %v5885
      %v5891 = vsel %vm607, %v5879, %v5887
      %v5892 = vsel %vm607, %v5865, %v5873
      %v5893 = vsel %vm607, %v5867, %v5875
      %v5894 = vsel %vm607, %v5869, %v5877
      %v5895 = vsel %vm607, %v5871, %v5879
      %v5896 = vsel %vm607, %v5881, %v5865
      %v5897 = vsel %vm607, %v5883, %v5867
      %v5898 = vsel %vm607, %v5885, %v5869
      %v5899 = vsel %vm607, %v5887, %v5871
      %v5900 = vpack.c.bf16 %v5893, %v5892
      %v5901 = vpack.c.bf16 %v5889, %v5888
      %v5902 = vpack.c.bf16 %v5897, %v5896
      %v5903 = vpack.c.bf16 %v5895, %v5894
      %v5904 = vpack.c.bf16 %v5891, %v5890
      %v5905 = vpack.c.bf16 %v5899, %v5898
      %5906 = vst [vmem:[#allocation3 + $0x2a0] sm:$0xff] %v5900
      %5907 = vst [vmem:[#allocation3 + $0x2a8] sm:$0xff] %v5901
      %5908 = vst [vmem:[#allocation3 + $0x2b0] sm:$0xff] %v5902
      %5909 = vst [vmem:[#allocation3 + $0x2b8] sm:$0xff] %v5903
      %5910 = vst [vmem:[#allocation3 + $0x2c0] sm:$0xff] %v5904
      %5911 = vst [vmem:[#allocation3 + $0x2c8] sm:$0xff] %v5905
      %5912 = vrot.lane.b32.xlu0 %v5648, 111
      %v5913 = vpop.permute.xlu0 %5912
      %5914 = vrot.lane.b32.xlu0 %v5651, 111
      %v5915 = vpop.permute.xlu0 %5914
      %5916 = vrot.lane.b32.xlu0 %v5654, 111
      %v5917 = vpop.permute.xlu0 %5916
      %5918 = vrot.lane.b32.xlu0 %v5657, 111
      %v5919 = vpop.permute.xlu0 %5918
      %5920 = vrot.lane.b32.xlu0 %v5649, 111
      %v5921 = vpop.permute.xlu0 %5920
      %5922 = vrot.lane.b32.xlu0 %v5652, 111
      %v5923 = vpop.permute.xlu0 %5922
      %5924 = vrot.lane.b32.xlu0 %v5655, 111
      %v5925 = vpop.permute.xlu0 %5924
      %5926 = vrot.lane.b32.xlu0 %v5658, 111
      %v5927 = vpop.permute.xlu0 %5926
      %5928 = vrot.lane.b32.xlu0 %v5650, 111
      %v5929 = vpop.permute.xlu0 %5928
      %5930 = vrot.lane.b32.xlu0 %v5653, 111
      %v5931 = vpop.permute.xlu0 %5930
      %5932 = vrot.lane.b32.xlu0 %v5656, 111
      %v5933 = vpop.permute.xlu0 %5932
      %5934 = vrot.lane.b32.xlu0 %v5659, 111
      %v5935 = vpop.permute.xlu0 %5934
      %v5936 = vsel %vm656, %v5921, %v5929
      %v5937 = vsel %vm656, %v5923, %v5931
      %v5938 = vsel %vm656, %v5925, %v5933
      %v5939 = vsel %vm656, %v5927, %v5935
      %v5940 = vsel %vm656, %v5913, %v5921
      %v5941 = vsel %vm656, %v5915, %v5923
      %v5942 = vsel %vm656, %v5917, %v5925
      %v5943 = vsel %vm656, %v5919, %v5927
      %v5944 = vsel %vm656, %v5929, %v5913
      %v5945 = vsel %vm656, %v5931, %v5915
      %v5946 = vsel %vm656, %v5933, %v5917
      %v5947 = vsel %vm656, %v5935, %v5919
      %v5948 = vpack.c.bf16 %v5941, %v5940
      %v5949 = vpack.c.bf16 %v5937, %v5936
      %v5950 = vpack.c.bf16 %v5945, %v5944
      %v5951 = vpack.c.bf16 %v5943, %v5942
      %v5952 = vpack.c.bf16 %v5939, %v5938
      %v5953 = vpack.c.bf16 %v5947, %v5946
      %5954 = vst [vmem:[#allocation3 + $0x2d0] sm:$0xff] %v5948
      %5955 = vst [vmem:[#allocation3 + $0x2d8] sm:$0xff] %v5949
      %5956 = vst [vmem:[#allocation3 + $0x2e0] sm:$0xff] %v5950
      %5957 = vst [vmem:[#allocation3 + $0x2e8] sm:$0xff] %v5951
      %5958 = vst [vmem:[#allocation3 + $0x2f0] sm:$0xff] %v5952
      %5959 = vst [vmem:[#allocation3 + $0x2f8] sm:$0xff] %v5953
      %5960 = vrot.lane.b32.xlu0 %v5648, 110
      %v5961 = vpop.permute.xlu0 %5960
      %5962 = vrot.lane.b32.xlu0 %v5651, 110
      %v5963 = vpop.permute.xlu0 %5962
      %5964 = vrot.lane.b32.xlu0 %v5654, 110
      %v5965 = vpop.permute.xlu0 %5964
      %5966 = vrot.lane.b32.xlu0 %v5657, 110
      %v5967 = vpop.permute.xlu0 %5966
      %5968 = vrot.lane.b32.xlu0 %v5649, 110
      %v5969 = vpop.permute.xlu0 %5968
      %5970 = vrot.lane.b32.xlu0 %v5652, 110
      %v5971 = vpop.permute.xlu0 %5970
      %5972 = vrot.lane.b32.xlu0 %v5655, 110
      %v5973 = vpop.permute.xlu0 %5972
      %5974 = vrot.lane.b32.xlu0 %v5658, 110
      %v5975 = vpop.permute.xlu0 %5974
      %5976 = vrot.lane.b32.xlu0 %v5650, 110
      %v5977 = vpop.permute.xlu0 %5976
      %5978 = vrot.lane.b32.xlu0 %v5653, 110
      %v5979 = vpop.permute.xlu0 %5978
      %5980 = vrot.lane.b32.xlu0 %v5656, 110
      %v5981 = vpop.permute.xlu0 %5980
      %5982 = vrot.lane.b32.xlu0 %v5659, 110
      %v5983 = vpop.permute.xlu0 %5982
      %v5984 = vsel %vm705, %v5969, %v5977
      %v5985 = vsel %vm705, %v5971, %v5979
      %v5986 = vsel %vm705, %v5973, %v5981
      %v5987 = vsel %vm705, %v5975, %v5983
      %v5988 = vsel %vm705, %v5961, %v5969
      %v5989 = vsel %vm705, %v5963, %v5971
      %v5990 = vsel %vm705, %v5965, %v5973
      %v5991 = vsel %vm705, %v5967, %v5975
      %v5992 = vsel %vm705, %v5977, %v5961
      %v5993 = vsel %vm705, %v5979, %v5963
      %v5994 = vsel %vm705, %v5981, %v5965
      %v5995 = vsel %vm705, %v5983, %v5967
      %v5996 = vpack.c.bf16 %v5989, %v5988
      %v5997 = vpack.c.bf16 %v5985, %v5984
      %v5998 = vpack.c.bf16 %v5993, %v5992
      %v5999 = vpack.c.bf16 %v5991, %v5990
      %v6000 = vpack.c.bf16 %v5987, %v5986
      %v6001 = vpack.c.bf16 %v5995, %v5994
      %6002 = vst [vmem:[#allocation3 + $0x300] sm:$0xff] %v5996
      %6003 = vst [vmem:[#allocation3 + $0x308] sm:$0xff] %v5997
      %6004 = vst [vmem:[#allocation3 + $0x310] sm:$0xff] %v5998
      %6005 = vst [vmem:[#allocation3 + $0x318] sm:$0xff] %v5999
      %6006 = vst [vmem:[#allocation3 + $0x320] sm:$0xff] %v6000
      %6007 = vst [vmem:[#allocation3 + $0x328] sm:$0xff] %v6001
      %6008 = vrot.lane.b32.xlu0 %v5648, 109
      %v6009 = vpop.permute.xlu0 %6008
      %6010 = vrot.lane.b32.xlu0 %v5651, 109
      %v6011 = vpop.permute.xlu0 %6010
      %6012 = vrot.lane.b32.xlu0 %v5654, 109
      %v6013 = vpop.permute.xlu0 %6012
      %6014 = vrot.lane.b32.xlu0 %v5657, 109
      %v6015 = vpop.permute.xlu0 %6014
      %6016 = vrot.lane.b32.xlu0 %v5649, 109
      %v6017 = vpop.permute.xlu0 %6016
      %6018 = vrot.lane.b32.xlu0 %v5652, 109
      %v6019 = vpop.permute.xlu0 %6018
      %6020 = vrot.lane.b32.xlu0 %v5655, 109
      %v6021 = vpop.permute.xlu0 %6020
      %6022 = vrot.lane.b32.xlu0 %v5658, 109
      %v6023 = vpop.permute.xlu0 %6022
      %6024 = vrot.lane.b32.xlu0 %v5650, 109
      %v6025 = vpop.permute.xlu0 %6024
      %6026 = vrot.lane.b32.xlu0 %v5653, 109
      %v6027 = vpop.permute.xlu0 %6026
      %6028 = vrot.lane.b32.xlu0 %v5656, 109
      %v6029 = vpop.permute.xlu0 %6028
      %6030 = vrot.lane.b32.xlu0 %v5659, 109
      %v6031 = vpop.permute.xlu0 %6030
      %v6032 = vsel %vm754, %v6017, %v6025
      %v6033 = vsel %vm754, %v6019, %v6027
      %v6034 = vsel %vm754, %v6021, %v6029
      %v6035 = vsel %vm754, %v6023, %v6031
      %v6036 = vsel %vm754, %v6009, %v6017
      %v6037 = vsel %vm754, %v6011, %v6019
      %v6038 = vsel %vm754, %v6013, %v6021
      %v6039 = vsel %vm754, %v6015, %v6023
      %v6040 = vsel %vm754, %v6025, %v6009
      %v6041 = vsel %vm754, %v6027, %v6011
      %v6042 = vsel %vm754, %v6029, %v6013
      %v6043 = vsel %vm754, %v6031, %v6015
      %v6044 = vpack.c.bf16 %v6037, %v6036
      %v6045 = vpack.c.bf16 %v6033, %v6032
      %v6046 = vpack.c.bf16 %v6041, %v6040
      %v6047 = vpack.c.bf16 %v6039, %v6038
      %v6048 = vpack.c.bf16 %v6035, %v6034
      %v6049 = vpack.c.bf16 %v6043, %v6042
      %6050 = vst [vmem:[#allocation3 + $0x330] sm:$0xff] %v6044
      %6051 = vst [vmem:[#allocation3 + $0x338] sm:$0xff] %v6045
      %6052 = vst [vmem:[#allocation3 + $0x340] sm:$0xff] %v6046
      %6053 = vst [vmem:[#allocation3 + $0x348] sm:$0xff] %v6047
      %6054 = vst [vmem:[#allocation3 + $0x350] sm:$0xff] %v6048
      %6055 = vst [vmem:[#allocation3 + $0x358] sm:$0xff] %v6049
      %v6056 = vld [vmem:[%s6] sm:$0xff]
      %v6057 = vld [vmem:[%s6 + $0x8] sm:$0xff]
      %v6058 = vld [vmem:[%s6 + $0x10] sm:$0xf]
      %v6059 = vld [vmem:[%s6 + $0x14] sm:$0xff]
      %v6060 = vld [vmem:[%s6 + $0x1c] sm:$0xff]
      %v6061 = vld [vmem:[%s6 + $0x24] sm:$0xf]
      %v6062 = vld [vmem:[%s6 + $0x28] sm:$0xff]
      %v6063 = vld [vmem:[%s6 + $0x30] sm:$0xff]
      %v6064 = vld [vmem:[%s6 + $0x38] sm:$0xf]
      %v6065 = vld [vmem:[%s6 + $0x3c] sm:$0xff]
      %v6066 = vld [vmem:[%s6 + $0x44] sm:$0xff]
      %v6067 = vld [vmem:[%s6 + $0x4c] sm:$0xf]
      %v6068 = vld [vmem:[%s7] sm:$0xff]
      %v6069 = vld [vmem:[%s7 + $0x8] sm:$0xff]
      %v6070 = vld [vmem:[%s7 + $0x10] sm:$0xff]
      %v6071 = vld [vmem:[%s7 + $0x18] sm:$0xff]
      %v6072 = vld [vmem:[#allocation3] sm:$0xff]
      %v6073 = vld [vmem:[#allocation3 + $0x8] sm:$0xff]
      %v6074 = vld [vmem:[#allocation3 + $0x10] sm:$0xff]
      %v6075 = vld [vmem:[#allocation3 + $0x18] sm:$0xff]
      %v6076 = vld [vmem:[#allocation3 + $0x20] sm:$0xff]
      %v6077 = vld [vmem:[#allocation3 + $0x28] sm:$0xff]
      %v6078 = vld [vmem:[#allocation3 + $0x30] sm:$0xff]
      %v6079 = vld [vmem:[#allocation3 + $0x38] sm:$0xff]
      %v6080 = vld [vmem:[#allocation3 + $0x40] sm:$0xff]
      %v6081 = vld [vmem:[#allocation3 + $0x48] sm:$0xff]
      %v6082 = vld [vmem:[#allocation3 + $0x50] sm:$0xff]
      %v6083 = vld [vmem:[#allocation3 + $0x58] sm:$0xff]
      %v6084 = vld [vmem:[#allocation3 + $0x60] sm:$0xff]
      %v6085 = vld [vmem:[#allocation3 + $0x68] sm:$0xff]
      %v6086 = vld [vmem:[#allocation3 + $0x70] sm:$0xff]
      %v6087 = vld [vmem:[#allocation3 + $0x78] sm:$0xff]
      %v6088 = vld [vmem:[#allocation3 + $0x80] sm:$0xff]
      %v6089 = vld [vmem:[#allocation3 + $0x88] sm:$0xff]
      %v6090 = vld [vmem:[#allocation3 + $0x90] sm:$0xff]
      %v6091 = vld [vmem:[#allocation3 + $0x98] sm:$0xff]
      %v6092 = vld [vmem:[#allocation3 + $0xa0] sm:$0xff]
      %v6093 = vld [vmem:[#allocation3 + $0xa8] sm:$0xff]
      %v6094 = vld [vmem:[#allocation3 + $0xb0] sm:$0xff]
      %v6095 = vld [vmem:[#allocation3 + $0xb8] sm:$0xff]
      %v6096 = vld [vmem:[#allocation3 + $0xc0] sm:$0xff]
      %v6097 = vld [vmem:[#allocation3 + $0xc8] sm:$0xff]
      %v6098 = vld [vmem:[#allocation3 + $0xd0] sm:$0xff]
      %v6099 = vld [vmem:[#allocation3 + $0xd8] sm:$0xff]
      %v6100 = vld [vmem:[#allocation3 + $0xe0] sm:$0xff]
      %v6101 = vld [vmem:[#allocation3 + $0xe8] sm:$0xff]
      %v6102 = vld [vmem:[#allocation3 + $0xf0] sm:$0xff]
      %v6103 = vld [vmem:[#allocation3 + $0xf8] sm:$0xff]
      %v6104 = vld [vmem:[#allocation3 + $0x100] sm:$0xff]
      %v6105 = vld [vmem:[#allocation3 + $0x108] sm:$0xff]
      %v6106 = vld [vmem:[#allocation3 + $0x110] sm:$0xff]
      %v6107 = vld [vmem:[#allocation3 + $0x118] sm:$0xff]
      %v6108 = vld [vmem:[#allocation3 + $0x120] sm:$0xff]
      %v6109 = vld [vmem:[#allocation3 + $0x128] sm:$0xff]
      %v6110 = vld [vmem:[#allocation3 + $0x130] sm:$0xff]
      %v6111 = vld [vmem:[#allocation3 + $0x138] sm:$0xff]
      %v6112 = vld [vmem:[#allocation3 + $0x140] sm:$0xff]
      %v6113 = vld [vmem:[#allocation3 + $0x148] sm:$0xff]
      %v6114 = vld [vmem:[#allocation3 + $0x150] sm:$0xff]
      %v6115 = vld [vmem:[#allocation3 + $0x158] sm:$0xff]
      %v6116 = vld [vmem:[#allocation3 + $0x160] sm:$0xff]
      %v6117 = vld [vmem:[#allocation3 + $0x168] sm:$0xff]
      %v6118 = vld [vmem:[#allocation3 + $0x170] sm:$0xff]
      %v6119 = vld [vmem:[#allocation3 + $0x178] sm:$0xff]
      %v6120 = vld [vmem:[#allocation3 + $0x180] sm:$0xff]
      %v6121 = vld [vmem:[#allocation3 + $0x188] sm:$0xff]
      %v6122 = vld [vmem:[#allocation3 + $0x190] sm:$0xff]
      %v6123 = vld [vmem:[#allocation3 + $0x198] sm:$0xff]
      %v6124 = vld [vmem:[#allocation3 + $0x1a0] sm:$0xff]
      %v6125 = vld [vmem:[#allocation3 + $0x1a8] sm:$0xff]
      %v6126 = vld [vmem:[#allocation3 + $0x1b0] sm:$0xff]
      %v6127 = vld [vmem:[#allocation3 + $0x1b8] sm:$0xff]
      %v6128 = vld [vmem:[#allocation3 + $0x1c0] sm:$0xff]
      %v6129 = vld [vmem:[#allocation3 + $0x1c8] sm:$0xff]
      %v6130 = vld [vmem:[#allocation3 + $0x1d0] sm:$0xff]
      %v6131 = vld [vmem:[#allocation3 + $0x1d8] sm:$0xff]
      %v6132 = vld [vmem:[#allocation3 + $0x1e0] sm:$0xff]
      %v6133 = vld [vmem:[#allocation3 + $0x1e8] sm:$0xff]
      %v6134 = vld [vmem:[#allocation3 + $0x1f0] sm:$0xff]
      %v6135 = vld [vmem:[#allocation3 + $0x1f8] sm:$0xff]
      %v6136 = vld [vmem:[#allocation3 + $0x200] sm:$0xff]
      %v6137 = vld [vmem:[#allocation3 + $0x208] sm:$0xff]
      %v6138 = vld [vmem:[#allocation3 + $0x210] sm:$0xff]
      %v6139 = vld [vmem:[#allocation3 + $0x218] sm:$0xff]
      %v6140 = vld [vmem:[#allocation3 + $0x220] sm:$0xff]
      %v6141 = vld [vmem:[#allocation3 + $0x228] sm:$0xff]
      %v6142 = vld [vmem:[#allocation3 + $0x230] sm:$0xff]
      %v6143 = vld [vmem:[#allocation3 + $0x238] sm:$0xff]
      %v6144 = vld [vmem:[#allocation3 + $0x240] sm:$0xff]
      %v6145 = vld [vmem:[#allocation3 + $0x248] sm:$0xff]
      %v6146 = vld [vmem:[#allocation3 + $0x250] sm:$0xff]
      %v6147 = vld [vmem:[#allocation3 + $0x258] sm:$0xff]
      %v6148 = vld [vmem:[#allocation3 + $0x260] sm:$0xff]
      %v6149 = vld [vmem:[#allocation3 + $0x268] sm:$0xff]
      %v6150 = vld [vmem:[#allocation3 + $0x270] sm:$0xff]
      %v6151 = vld [vmem:[#allocation3 + $0x278] sm:$0xff]
      %v6152 = vld [vmem:[#allocation3 + $0x280] sm:$0xff]
      %v6153 = vld [vmem:[#allocation3 + $0x288] sm:$0xff]
      %v6154 = vld [vmem:[#allocation3 + $0x290] sm:$0xff]
      %v6155 = vld [vmem:[#allocation3 + $0x298] sm:$0xff]
      %v6156 = vld [vmem:[#allocation3 + $0x2a0] sm:$0xff]
      %v6157 = vld [vmem:[#allocation3 + $0x2a8] sm:$0xff]
      %v6158 = vld [vmem:[#allocation3 + $0x2b0] sm:$0xff]
      %v6159 = vld [vmem:[#allocation3 + $0x2b8] sm:$0xff]
      %v6160 = vld [vmem:[#allocation3 + $0x2c0] sm:$0xff]
      %v6161 = vld [vmem:[#allocation3 + $0x2c8] sm:$0xff]
      %v6162 = vld [vmem:[#allocation3 + $0x2d0] sm:$0xff]
      %v6163 = vld [vmem:[#allocation3 + $0x2d8] sm:$0xff]
      %v6164 = vld [vmem:[#allocation3 + $0x2e0] sm:$0xff]
      %v6165 = vld [vmem:[#allocation3 + $0x2e8] sm:$0xff]
      %v6166 = vld [vmem:[#allocation3 + $0x2f0] sm:$0xff]
      %v6167 = vld [vmem:[#allocation3 + $0x2f8] sm:$0xff]
      %v6168 = vld [vmem:[#allocation3 + $0x300] sm:$0xff]
      %v6169 = vld [vmem:[#allocation3 + $0x308] sm:$0xff]
      %v6170 = vld [vmem:[#allocation3 + $0x310] sm:$0xff]
      %v6171 = vld [vmem:[#allocation3 + $0x318] sm:$0xff]
      %v6172 = vld [vmem:[#allocation3 + $0x320] sm:$0xff]
      %v6173 = vld [vmem:[#allocation3 + $0x328] sm:$0xff]
      %v6174 = vld [vmem:[#allocation3 + $0x330] sm:$0xff]
      %v6175 = vld [vmem:[#allocation3 + $0x338] sm:$0xff]
      %v6176 = vld [vmem:[#allocation3 + $0x340] sm:$0xff]
      %v6177 = vld [vmem:[#allocation3 + $0x348] sm:$0xff]
      %v6178 = vld [vmem:[#allocation3 + $0x350] sm:$0xff]
      %v6179 = vld [vmem:[#allocation3 + $0x358] sm:$0xff]
      %6181 = vset.pattern.permute.xlu0 0
      %6182 = vperm.xlu0 %6181, %v6068
      %v6183 = vpop.permute.xlu0 %6182
      %6186 = vset.pattern.permute.xlu0 0
      %6187 = vperm.xlu0 %6186, %v6069
      %v6188 = vpop.permute.xlu0 %6187
      %6191 = vset.pattern.permute.xlu0 0
      %6192 = vperm.xlu0 %6191, %v6070
      %v6193 = vpop.permute.xlu0 %6192
      %6196 = vset.pattern.permute.xlu0 0
      %6197 = vperm.xlu0 %6196, %v6071
      %v6198 = vpop.permute.xlu0 %6197
      %v6212 = vunpack.c.l.b16 %v6056
      %v6213 = vunpack.c.h.b16 %v6056
      %v6214 = vunpack.c.l.b16 %v6057
      %v6215 = vunpack.c.h.b16 %v6057
      %v6216 = vunpack.c.l.b16 %v6058
      %v6217 = vunpack.c.l.b16 %v6059
      %v6218 = vunpack.c.h.b16 %v6059
      %v6219 = vunpack.c.l.b16 %v6060
      %v6220 = vunpack.c.h.b16 %v6060
      %v6221 = vunpack.c.l.b16 %v6061
      %v6222 = vunpack.c.l.b16 %v6062
      %v6223 = vunpack.c.h.b16 %v6062
      %v6224 = vunpack.c.l.b16 %v6063
      %v6225 = vunpack.c.h.b16 %v6063
      %v6226 = vunpack.c.l.b16 %v6064
      %v6227 = vunpack.c.l.b16 %v6065
      %v6228 = vunpack.c.h.b16 %v6065
      %v6229 = vunpack.c.l.b16 %v6066
      %v6230 = vunpack.c.h.b16 %v6066
      %v6231 = vunpack.c.l.b16 %v6067
      %v6232 = vpack.c.b16 %v6217, %v6212
      %v6233 = vpack.c.b16 %v6218, %v6213
      %v6234 = vpack.c.b16 %v6219, %v6214
      %v6235 = vpack.c.b16 %v6220, %v6215
      %v6236 = vpack.c.b16 %v6221, %v6216
      %v6237 = vpack.c.b16 %v6227, %v6222
      %v6238 = vpack.c.b16 %v6228, %v6223
      %v6239 = vpack.c.b16 %v6229, %v6224
      %v6240 = vpack.c.b16 %v6230, %v6225
      %v6241 = vpack.c.b16 %v6231, %v6226
      %vm6250 = vcmask 523264
      %v6252 = vsel %vm6250, %v6236, 0
      %v6255 = vsel %vm6250, %v6241, 0
      %6257 = vmatprep.subr.bf16.mxu0 %v6073
      %6258 = vmatpush1.bf16.msra.mxu0 %v6072
      %6259 = vmatprep.subr.bf16.mxu0 %v6076
      %6260 = vmatpush1.bf16.msra.mxu0 %v6075
      %6261 = vmatprep.subr.bf16.mxu0 %v6079
      %6262 = vmatpush1.bf16.msra.mxu0 %v6078
      %6263 = vmatprep.subr.bf16.mxu0 %v6082
      %6264 = vmatpush1.bf16.msra.mxu0 %v6081
      %6265 = vmatprep.subr.bf16.mxu0 %v6085
      %6266 = vmatpush1.bf16.msra.mxu0 %v6084
      %6267 = vmatprep.subr.bf16.mxu0 %v6088
      %6268 = vmatpush1.bf16.msra.mxu0 %v6087
      %6269 = vmatprep.subr.bf16.mxu0 %v6091
      %6270 = vmatpush1.bf16.msra.mxu0 %v6090
      %6271 = vmatprep.subr.bf16.mxu0 %v6094
      %6272 = vmatpush1.bf16.msra.mxu0 %v6093
      %6273 = vmatprep.subr.bf16.mxu0 %v6097
      %6274 = vmatpush1.bf16.msra.mxu0 %v6096
      %6275 = vmatprep.subr.bf16.mxu0 %v6100
      %6276 = vmatpush1.bf16.msra.mxu0 %v6099
      %6277 = vmatprep.subr.bf16.mxu0 %v6103
      %6278 = vmatpush1.bf16.msra.mxu0 %v6102
      %6279 = vmatprep.subr.bf16.mxu0 %v6106
      %6280 = vmatpush1.bf16.msra.mxu0 %v6105
      %6281 = vmatprep.subr.bf16.mxu0 %v6109
      %6282 = vmatpush1.bf16.msra.mxu0 %v6108
      %6283 = vmatprep.subr.bf16.mxu0 %v6112
      %6284 = vmatpush1.bf16.msra.mxu0 %v6111
      %6285 = vmatprep.subr.bf16.mxu0 %v6115
      %6286 = vmatpush1.bf16.msra.mxu0 %v6114
      %6287 = vmatprep.subr.bf16.mxu0 %v6118
      %6288 = vmatpush1.bf16.msra.mxu0 %v6117
      %6289 = vmatprep.mubr.bf16.mxu0 %v6233
      %6290 = vmatmul.mubr.bf16.gmra.mrb[0].mxu0 %v6232
      %v6291 = vpop.f32.mrb[0].mxu0
      %v6292 = vadd.f32 %v6183, %v6291
      %v6293 = vpop.f32.mrb[0].mxu0
      %v6294 = vadd.f32 %v6183, %v6293
      %v6295 = vpop.f32.mrb[0].mxu0
      %v6296 = vadd.f32 %v6188, %v6295
      %v6297 = vpop.f32.mrb[0].mxu0
      %v6298 = vadd.f32 %v6188, %v6297
      %6299 = vmatprep.mubr.bf16.mxu0 %v6238
      %6300 = vmatmul.mubr.bf16.gmra.mrb[0].mxu0 %v6237
      %v6301 = vpop.f32.mrb[0].mxu0
      %v6302 = vadd.f32 %v6193, %v6301
      %v6303 = vpop.f32.mrb[0].mxu0
      %v6304 = vadd.f32 %v6193, %v6303
      %v6305 = vpop.f32.mrb[0].mxu0
      %v6306 = vadd.f32 %v6198, %v6305
      %v6307 = vpop.f32.mrb[0].mxu0
      %v6308 = vadd.f32 %v6198, %v6307
      %6309 = vdwg.mxu0
      %6310 = vmatprep.subr.bf16.mxu0 %v6121
      %6311 = vmatpush1.bf16.msra.mxu0 %v6120
      %6312 = vmatprep.subr.bf16.mxu0 %v6124
      %6313 = vmatpush1.bf16.msra.mxu0 %v6123
      %6314 = vmatprep.subr.bf16.mxu0 %v6127
      %6315 = vmatpush1.bf16.msra.mxu0 %v6126
      %6316 = vmatprep.subr.bf16.mxu0 %v6130
      %6317 = vmatpush1.bf16.msra.mxu0 %v6129
      %6318 = vmatprep.subr.bf16.mxu0 %v6133
      %6319 = vmatpush1.bf16.msra.mxu0 %v6132
      %6320 = vmatprep.subr.bf16.mxu0 %v6136
      %6321 = vmatpush1.bf16.msra.mxu0 %v6135
      %6322 = vmatprep.subr.bf16.mxu0 %v6139
      %6323 = vmatpush1.bf16.msra.mxu0 %v6138
      %6324 = vmatprep.subr.bf16.mxu0 %v6142
      %6325 = vmatpush1.bf16.msra.mxu0 %v6141
      %6326 = vmatprep.subr.bf16.mxu0 %v6145
      %6327 = vmatpush1.bf16.msra.mxu0 %v6144
      %6328 = vmatprep.subr.bf16.mxu0 %v6148
      %6329 = vmatpush1.bf16.msra.mxu0 %v6147
      %6330 = vmatprep.subr.bf16.mxu0 %v6151
      %6331 = vmatpush1.bf16.msra.mxu0 %v6150
      %6332 = vmatprep.subr.bf16.mxu0 %v6154
      %6333 = vmatpush1.bf16.msra.mxu0 %v6153
      %6334 = vmatprep.subr.bf16.mxu0 %v6157
      %6335 = vmatpush1.bf16.msra.mxu0 %v6156
      %6336 = vmatprep.subr.bf16.mxu0 %v6160
      %6337 = vmatpush1.bf16.msra.mxu0 %v6159
      %6338 = vmatprep.subr.bf16.mxu0 %v6163
      %6339 = vmatpush1.bf16.msra.mxu0 %v6162
      %6340 = vmatprep.subr.bf16.mxu0 %v6166
      %6341 = vmatpush1.bf16.msra.mxu0 %v6165
      %6342 = vmatprep.mubr.bf16.mxu0 %v6235
      %6343 = vmatmul.mubr.bf16.gmra.mrb[0].mxu0 %v6234
      %v6344 = vpop.f32.mrb[0].mxu0
      %v6345 = vadd.f32 %v6292, %v6344
      %v6346 = vpop.f32.mrb[0].mxu0
      %v6347 = vadd.f32 %v6294, %v6346
      %v6348 = vpop.f32.mrb[0].mxu0
      %v6349 = vadd.f32 %v6296, %v6348
      %v6350 = vpop.f32.mrb[0].mxu0
      %v6351 = vadd.f32 %v6298, %v6350
      %6352 = vmatprep.mubr.bf16.mxu0 %v6240
      %6353 = vmatmul.mubr.bf16.gmra.mrb[0].mxu0 %v6239
      %v6354 = vpop.f32.mrb[0].mxu0
      %v6355 = vadd.f32 %v6302, %v6354
      %v6356 = vpop.f32.mrb[0].mxu0
      %v6357 = vadd.f32 %v6304, %v6356
      %v6358 = vpop.f32.mrb[0].mxu0
      %v6359 = vadd.f32 %v6306, %v6358
      %v6360 = vpop.f32.mrb[0].mxu0
      %v6361 = vadd.f32 %v6308, %v6360
      %6362 = vdwg.mxu0
      %6363 = vmatprep.subr.bf16.mxu0 %v6169
      %6364 = vmatpush1.bf16.msra.mxu0 %v6168
      %6365 = vmatprep.subr.bf16.mxu0 %v6172
      %6366 = vmatpush1.bf16.msra.mxu0 %v6171
      %6367 = vmatprep.subr.bf16.mxu0 %v6175
      %6368 = vmatpush1.bf16.msra.mxu0 %v6174
      %6369 = vmatprep.subr.bf16.mxu0 %v6178
      %6370 = vmatpush1.bf16.msra.mxu0 %v6177
      %6371 = vmatprep.subr.bf16.mxu0 0
      %6372 = vmatpush1.bf16.msra.mxu0 0
      %6373 = vmatprep.subr.bf16.mxu0 0
      %6374 = vmatpush1.bf16.msra.mxu0 0
      %6375 = vmatprep.subr.bf16.mxu0 0
      %6376 = vmatpush1.bf16.msra.mxu0 0
      %6377 = vmatprep.subr.bf16.mxu0 0
      %6378 = vmatpush1.bf16.msra.mxu0 0
      %6379 = vmatprep.subr.bf16.mxu0 0
      %6380 = vmatpush1.bf16.msra.mxu0 0
      %6381 = vmatprep.subr.bf16.mxu0 0
      %6382 = vmatpush1.bf16.msra.mxu0 0
      %6383 = vmatprep.subr.bf16.mxu0 0
      %6384 = vmatpush1.bf16.msra.mxu0 0
      %6385 = vmatprep.subr.bf16.mxu0 0
      %6386 = vmatpush1.bf16.msra.mxu0 0
      %6387 = vmatprep.subr.bf16.mxu0 0
      %6388 = vmatpush1.bf16.msra.mxu0 0
      %6389 = vmatprep.subr.bf16.mxu0 0
      %6390 = vmatpush1.bf16.msra.mxu0 0
      %6391 = vmatprep.subr.bf16.mxu0 0
      %6392 = vmatpush1.bf16.msra.mxu0 0
      %6393 = vmatprep.subr.bf16.mxu0 0
      %6394 = vmatpush1.bf16.msra.mxu0 0
      %6395 = vmatprep.mubr.bf16.mxu0 0
      %6396 = vmatmul.mubr.bf16.gmra.mrb[0].mxu0 %v6252
      %v6397 = vpop.f32.mrb[0].mxu0
      %v6398 = vadd.f32 %v6345, %v6397
      %v6399 = vpop.f32.mrb[0].mxu0
      %v6400 = vadd.f32 %v6347, %v6399
      %v6401 = vpop.f32.mrb[0].mxu0
      %v6402 = vadd.f32 %v6349, %v6401
      %v6403 = vpop.f32.mrb[0].mxu0
      %v6404 = vadd.f32 %v6351, %v6403
      %6405 = vmatprep.mubr.bf16.mxu0 0
      %6406 = vmatmul.mubr.bf16.gmra.mrb[0].mxu0 %v6255
      %v6407 = vpop.f32.mrb[0].mxu0
      %v6408 = vadd.f32 %v6355, %v6407
      %v6409 = vpop.f32.mrb[0].mxu0
      %v6410 = vadd.f32 %v6357, %v6409
      %v6411 = vpop.f32.mrb[0].mxu0
      %v6412 = vadd.f32 %v6359, %v6411
      %v6413 = vpop.f32.mrb[0].mxu0
      %v6414 = vadd.f32 %v6361, %v6413
      %6415 = vdwg.mxu0
      %6416 = vmatprep.subr.bf16.mxu0 0
      %6417 = vmatpush1.bf16.msra.mxu0 %v6074
      %6418 = vmatprep.subr.bf16.mxu0 0
      %6419 = vmatpush1.bf16.msra.mxu0 %v6077
      %6420 = vmatprep.subr.bf16.mxu0 0
      %6421 = vmatpush1.bf16.msra.mxu0 %v6080
      %6422 = vmatprep.subr.bf16.mxu0 0
      %6423 = vmatpush1.bf16.msra.mxu0 %v6083
      %6424 = vmatprep.subr.bf16.mxu0 0
      %6425 = vmatpush1.bf16.msra.mxu0 %v6086
      %6426 = vmatprep.subr.bf16.mxu0 0
      %6427 = vmatpush1.bf16.msra.mxu0 %v6089
      %6428 = vmatprep.subr.bf16.mxu0 0
      %6429 = vmatpush1.bf16.msra.mxu0 %v6092
      %6430 = vmatprep.subr.bf16.mxu0 0
      %6431 = vmatpush1.bf16.msra.mxu0 %v6095
      %6432 = vmatprep.subr.bf16.mxu0 0
      %6433 = vmatpush1.bf16.msra.mxu0 %v6098
      %6434 = vmatprep.subr.bf16.mxu0 0
      %6435 = vmatpush1.bf16.msra.mxu0 %v6101
      %6436 = vmatprep.subr.bf16.mxu0 0
      %6437 = vmatpush1.bf16.msra.mxu0 %v6104
      %6438 = vmatprep.subr.bf16.mxu0 0
      %6439 = vmatpush1.bf16.msra.mxu0 %v6107
      %6440 = vmatprep.subr.bf16.mxu0 0
      %6441 = vmatpush1.bf16.msra.mxu0 %v6110
      %6442 = vmatprep.subr.bf16.mxu0 0
      %6443 = vmatpush1.bf16.msra.mxu0 %v6113
      %6444 = vmatprep.subr.bf16.mxu0 0
      %6445 = vmatpush1.bf16.msra.mxu0 %v6116
      %6446 = vmatprep.subr.bf16.mxu0 0
      %6447 = vmatpush1.bf16.msra.mxu0 %v6119
      %6448 = vmatprep.mubr.bf16.mxu0 %v6233
      %6449 = vmatmul.mubr.bf16.gmra.mrb[0].mxu0 %v6232
      %v6450 = vpop.f32.mrb[0].mxu0
      %v6451 = vadd.f32 %v6183, %v6450
      %v6452 = vpop.f32.mrb[0].mxu0
      %v6453 = vpop.f32.mrb[0].mxu0
      %v6454 = vadd.f32 %v6188, %v6453
      %v6455 = vpop.f32.mrb[0].mxu0
      %6456 = vmatprep.mubr.bf16.mxu0 %v6238
      %6457 = vmatmul.mubr.bf16.gmra.mrb[0].mxu0 %v6237
      %v6458 = vpop.f32.mrb[0].mxu0
      %v6459 = vadd.f32 %v6193, %v6458
      %v6460 = vpop.f32.mrb[0].mxu0
      %v6461 = vpop.f32.mrb[0].mxu0
      %v6462 = vadd.f32 %v6198, %v6461
      %v6463 = vpop.f32.mrb[0].mxu0
      %6464 = vdwg.mxu0
      %6465 = vmatprep.subr.bf16.mxu0 0
      %6466 = vmatpush1.bf16.msra.mxu0 %v6122
      %6467 = vmatprep.subr.bf16.mxu0 0
      %6468 = vmatpush1.bf16.msra.mxu0 %v6125
      %6469 = vmatprep.subr.bf16.mxu0 0
      %6470 = vmatpush1.bf16.msra.mxu0 %v6128
      %6471 = vmatprep.subr.bf16.mxu0 0
      %6472 = vmatpush1.bf16.msra.mxu0 %v6131
      %6473 = vmatprep.subr.bf16.mxu0 0
      %6474 = vmatpush1.bf16.msra.mxu0 %v6134
      %6475 = vmatprep.subr.bf16.mxu0 0
      %6476 = vmatpush1.bf16.msra.mxu0 %v6137
      %6477 = vmatprep.subr.bf16.mxu0 0
      %6478 = vmatpush1.bf16.msra.mxu0 %v6140
      %6479 = vmatprep.subr.bf16.mxu0 0
      %6480 = vmatpush1.bf16.msra.mxu0 %v6143
      %6481 = vmatprep.subr.bf16.mxu0 0
      %6482 = vmatpush1.bf16.msra.mxu0 %v6146
      %6483 = vmatprep.subr.bf16.mxu0 0
      %6484 = vmatpush1.bf16.msra.mxu0 %v6149
      %6485 = vmatprep.subr.bf16.mxu0 0
      %6486 = vmatpush1.bf16.msra.mxu0 %v6152
      %6487 = vmatprep.subr.bf16.mxu0 0
      %6488 = vmatpush1.bf16.msra.mxu0 %v6155
      %6489 = vmatprep.subr.bf16.mxu0 0
      %6490 = vmatpush1.bf16.msra.mxu0 %v6158
      %6491 = vmatprep.subr.bf16.mxu0 0
      %6492 = vmatpush1.bf16.msra.mxu0 %v6161
      %6493 = vmatprep.subr.bf16.mxu0 0
      %6494 = vmatpush1.bf16.msra.mxu0 %v6164
      %6495 = vmatprep.subr.bf16.mxu0 0
      %6496 = vmatpush1.bf16.msra.mxu0 %v6167
      %6497 = vmatprep.mubr.bf16.mxu0 %v6235
      %6498 = vmatmul.mubr.bf16.gmra.mrb[0].mxu0 %v6234
      %v6499 = vpop.f32.mrb[0].mxu0
      %v6500 = vadd.f32 %v6451, %v6499
      %v6501 = vpop.f32.mrb[0].mxu0
      %v6502 = vpop.f32.mrb[0].mxu0
      %v6503 = vadd.f32 %v6454, %v6502
      %v6504 = vpop.f32.mrb[0].mxu0
      %6505 = vmatprep.mubr.bf16.mxu0 %v6240
      %6506 = vmatmul.mubr.bf16.gmra.mrb[0].mxu0 %v6239
      %v6507 = vpop.f32.mrb[0].mxu0
      %v6508 = vadd.f32 %v6459, %v6507
      %v6509 = vpop.f32.mrb[0].mxu0
      %v6510 = vpop.f32.mrb[0].mxu0
      %v6511 = vadd.f32 %v6462, %v6510
      %v6512 = vpop.f32.mrb[0].mxu0
      %6513 = vdwg.mxu0
      %6514 = vmatprep.subr.bf16.mxu0 0
      %6515 = vmatpush1.bf16.msra.mxu0 %v6170
      %6516 = vmatprep.subr.bf16.mxu0 0
      %6517 = vmatpush1.bf16.msra.mxu0 %v6173
      %6518 = vmatprep.subr.bf16.mxu0 0
      %6519 = vmatpush1.bf16.msra.mxu0 %v6176
      %6520 = vmatprep.subr.bf16.mxu0 0
      %6521 = vmatpush1.bf16.msra.mxu0 %v6179
      %6522 = vmatprep.subr.bf16.mxu0 0
      %6523 = vmatpush1.bf16.msra.mxu0 0
      %6524 = vmatprep.subr.bf16.mxu0 0
      %6525 = vmatpush1.bf16.msra.mxu0 0
      %6526 = vmatprep.subr.bf16.mxu0 0
      %6527 = vmatpush1.bf16.msra.mxu0 0
      %6528 = vmatprep.subr.bf16.mxu0 0
      %6529 = vmatpush1.bf16.msra.mxu0 0
      %6530 = vmatprep.subr.bf16.mxu0 0
      %6531 = vmatpush1.bf16.msra.mxu0 0
      %6532 = vmatprep.subr.bf16.mxu0 0
      %6533 = vmatpush1.bf16.msra.mxu0 0
      %6534 = vmatprep.subr.bf16.mxu0 0
      %6535 = vmatpush1.bf16.msra.mxu0 0
      %6536 = vmatprep.subr.bf16.mxu0 0
      %6537 = vmatpush1.bf16.msra.mxu0 0
      %6538 = vmatprep.subr.bf16.mxu0 0
      %6539 = vmatpush1.bf16.msra.mxu0 0
      %6540 = vmatprep.subr.bf16.mxu0 0
      %6541 = vmatpush1.bf16.msra.mxu0 0
      %6542 = vmatprep.subr.bf16.mxu0 0
      %6543 = vmatpush1.bf16.msra.mxu0 0
      %6544 = vmatprep.subr.bf16.mxu0 0
      %6545 = vmatpush1.bf16.msra.mxu0 0
      %6546 = vmatprep.mubr.bf16.mxu0 0
      %6547 = vmatmul.mubr.bf16.gmra.mrb[0].mxu0 %v6252
      %v6548 = vpop.f32.mrb[0].mxu0
      %v6549 = vadd.f32 %v6500, %v6548
      %v6550 = vpop.f32.mrb[0].mxu0
      %v6551 = vpop.f32.mrb[0].mxu0
      %v6552 = vadd.f32 %v6503, %v6551
      %v6553 = vpop.f32.mrb[0].mxu0
      %6554 = vmatprep.mubr.bf16.mxu0 0
      %6555 = vmatmul.mubr.bf16.gmra.mrb[0].mxu0 %v6255
      %v6556 = vpop.f32.mrb[0].mxu0
      %v6557 = vadd.f32 %v6508, %v6556
      %v6558 = vpop.f32.mrb[0].mxu0
      %v6559 = vpop.f32.mrb[0].mxu0
      %v6560 = vadd.f32 %v6511, %v6559
      %v6561 = vpop.f32.mrb[0].mxu0
      %6562 = vdwg.mxu0
      %v6563 = vld [vmem:[%s1] sm:$0x7]
      %v6565 = vlaneseq
      %v6566 = vshrl.u32 %v6565, 7
      %v6567 = vsub.s32 0, %v6566
      %v6568 = vrot.slane %v6563, %v6567
      %v6569 = vlaneseq
      %v6570 = vshrl.u32 %v6569, 7
      %v6571 = vsub.s32 1, %v6570
      %v6572 = vrot.slane %v6563, %v6571
      %v6573 = vlaneseq
      %v6574 = vshrl.u32 %v6573, 7
      %v6575 = vsub.s32 2, %v6574
      %v6576 = vrot.slane %v6563, %v6575
      %v6580 = vmul.f32 %v6398, %v6568
      %v6581 = vmul.f32 %v6400, %v6572
      %v6582 = vmul.f32 %v6549, %v6576
      %v6583 = vmul.f32 %v6402, %v6568
      %v6584 = vmul.f32 %v6404, %v6572
      %v6585 = vmul.f32 %v6552, %v6576
      %v6586 = vmul.f32 %v6408, %v6568
      %v6587 = vmul.f32 %v6410, %v6572
      %v6588 = vmul.f32 %v6557, %v6576
      %v6589 = vmul.f32 %v6412, %v6568
      %v6590 = vmul.f32 %v6414, %v6572
      %v6591 = vmul.f32 %v6560, %v6576
      %6592 = vst [vmem:[#allocation2] sm:$0xff] %v6580
      %6593 = vst [vmem:[#allocation2 + $0x8] sm:$0xff] %v6581
      %6594 = vst [vmem:[#allocation2 + $0x10] sm:$0xff] %v6582
      %6595 = vst [vmem:[#allocation2 + $0x18] sm:$0xff] %v6583
      %6596 = vst [vmem:[#allocation2 + $0x20] sm:$0xff] %v6584
      %6597 = vst [vmem:[#allocation2 + $0x28] sm:$0xff] %v6585
      %6598 = vst [vmem:[#allocation2 + $0x30] sm:$0xff] %v6586
      %6599 = vst [vmem:[#allocation2 + $0x38] sm:$0xff] %v6587
      %6600 = vst [vmem:[#allocation2 + $0x40] sm:$0xff] %v6588
      %6601 = vst [vmem:[#allocation2 + $0x48] sm:$0xff] %v6589
      %6602 = vst [vmem:[#allocation2 + $0x50] sm:$0xff] %v6590
      %6603 = vst [vmem:[#allocation2 + $0x58] sm:$0xff] %v6591
      loop: start=0, step=1, limit=4
      $region68: #{dft_feature_extractor.1} parent=59 // loop_pre_header
        _
      $region69: #{dft_feature_extractor.1} parent=59 // loop_header
        %s6605 = sphi 0, %s6609
        %p6606 = scmp.ge.s32.totalorder %s6605, 4
      $region70: #{dft_feature_extractor.1} parent=59 // loop_header_branch
        %6608 = sbr.rel (%p6606) target = $region74
      $region71: #{dft_feature_extractor.1} parent=59 // loop_body
        %v6610 = vld [vmem:[#allocation2] sm:$0xff]
        %v6611 = vld [vmem:[#allocation2 + $0x8] sm:$0xff]
        %v6612 = vld [vmem:[#allocation2 + $0x10] sm:$0xff]
        %v6613 = vld [vmem:[#allocation2 + $0x18] sm:$0xff]
        %v6614 = vld [vmem:[#allocation2 + $0x20] sm:$0xff]
        %v6615 = vld [vmem:[#allocation2 + $0x28] sm:$0xff]
        %v6616 = vld [vmem:[#allocation2 + $0x30] sm:$0xff]
        %v6617 = vld [vmem:[#allocation2 + $0x38] sm:$0xff]
        %v6618 = vld [vmem:[#allocation2 + $0x40] sm:$0xff]
        %v6619 = vld [vmem:[#allocation2 + $0x48] sm:$0xff]
        %v6620 = vld [vmem:[#allocation2 + $0x50] sm:$0xff]
        %v6621 = vld [vmem:[#allocation2 + $0x58] sm:$0xff]
        %6622 = vrot.lane.b32.xlu0 %v6610, 19
        %v6623 = vpop.permute.xlu0 %6622
        %6624 = vrot.lane.b32.xlu0 %v6613, 19
        %v6625 = vpop.permute.xlu0 %6624
        %6626 = vrot.lane.b32.xlu0 %v6616, 19
        %v6627 = vpop.permute.xlu0 %6626
        %6628 = vrot.lane.b32.xlu0 %v6619, 19
        %v6629 = vpop.permute.xlu0 %6628
        %6630 = vrot.lane.b32.xlu0 %v6611, 19
        %v6631 = vpop.permute.xlu0 %6630
        %6632 = vrot.lane.b32.xlu0 %v6614, 19
        %v6633 = vpop.permute.xlu0 %6632
        %6634 = vrot.lane.b32.xlu0 %v6617, 19
        %v6635 = vpop.permute.xlu0 %6634
        %6636 = vrot.lane.b32.xlu0 %v6620, 19
        %v6637 = vpop.permute.xlu0 %6636
        %6638 = vrot.lane.b32.xlu0 %v6612, 19
        %v6639 = vpop.permute.xlu0 %6638
        %6640 = vrot.lane.b32.xlu0 %v6615, 19
        %v6641 = vpop.permute.xlu0 %6640
        %6642 = vrot.lane.b32.xlu0 %v6618, 19
        %v6643 = vpop.permute.xlu0 %6642
        %6644 = vrot.lane.b32.xlu0 %v6621, 19
        %v6645 = vpop.permute.xlu0 %6644
        %v6646 = vsel %vm399, %v6631, %v6639
        %v6647 = vsel %vm399, %v6633, %v6641
        %v6648 = vsel %vm399, %v6635, %v6643
        %v6649 = vsel %vm399, %v6637, %v6645
        %v6650 = vsel %vm399, %v6623, %v6631
        %v6651 = vsel %vm399, %v6625, %v6633
        %v6652 = vsel %vm399, %v6627, %v6635
        %v6653 = vsel %vm399, %v6629, %v6637
        %v6654 = vsel %vm399, %v6639, %v6623
        %v6655 = vsel %vm399, %v6641, %v6625
        %v6656 = vsel %vm399, %v6643, %v6627
        %v6657 = vsel %vm399, %v6645, %v6629
        %v6658 = vpack.c.bf16 %v6655, %v6654
        %v6659 = vpack.c.bf16 %v6651, %v6650
        %v6660 = vpack.c.bf16 %v6647, %v6646
        %v6661 = vpack.c.bf16 %v6657, %v6656
        %v6662 = vpack.c.bf16 %v6653, %v6652
        %v6663 = vpack.c.bf16 %v6649, %v6648
        %6664 = vst [vmem:[#allocation3] sm:$0xff] %v6658
        %6665 = vst [vmem:[#allocation3 + $0x8] sm:$0xff] %v6659
        %6666 = vst [vmem:[#allocation3 + $0x10] sm:$0xff] %v6660
        %6667 = vst [vmem:[#allocation3 + $0x18] sm:$0xff] %v6661
        %6668 = vst [vmem:[#allocation3 + $0x20] sm:$0xff] %v6662
        %6669 = vst [vmem:[#allocation3 + $0x28] sm:$0xff] %v6663
        %6670 = vrot.lane.b32.xlu0 %v6610, 18
        %v6671 = vpop.permute.xlu0 %6670
        %6672 = vrot.lane.b32.xlu0 %v6613, 18
        %v6673 = vpop.permute.xlu0 %6672
        %6674 = vrot.lane.b32.xlu0 %v6616, 18
        %v6675 = vpop.permute.xlu0 %6674
        %6676 = vrot.lane.b32.xlu0 %v6619, 18
        %v6677 = vpop.permute.xlu0 %6676
        %6678 = vrot.lane.b32.xlu0 %v6611, 18
        %v6679 = vpop.permute.xlu0 %6678
        %6680 = vrot.lane.b32.xlu0 %v6614, 18
        %v6681 = vpop.permute.xlu0 %6680
        %6682 = vrot.lane.b32.xlu0 %v6617, 18
        %v6683 = vpop.permute.xlu0 %6682
        %6684 = vrot.lane.b32.xlu0 %v6620, 18
        %v6685 = vpop.permute.xlu0 %6684
        %6686 = vrot.lane.b32.xlu0 %v6612, 18
        %v6687 = vpop.permute.xlu0 %6686
        %6688 = vrot.lane.b32.xlu0 %v6615, 18
        %v6689 = vpop.permute.xlu0 %6688
        %6690 = vrot.lane.b32.xlu0 %v6618, 18
        %v6691 = vpop.permute.xlu0 %6690
        %6692 = vrot.lane.b32.xlu0 %v6621, 18
        %v6693 = vpop.permute.xlu0 %6692
        %v6694 = vsel %vm448, %v6679, %v6687
        %v6695 = vsel %vm448, %v6681, %v6689
        %v6696 = vsel %vm448, %v6683, %v6691
        %v6697 = vsel %vm448, %v6685, %v6693
        %v6698 = vsel %vm448, %v6671, %v6679
        %v6699 = vsel %vm448, %v6673, %v6681
        %v6700 = vsel %vm448, %v6675, %v6683
        %v6701 = vsel %vm448, %v6677, %v6685
        %v6702 = vsel %vm448, %v6687, %v6671
        %v6703 = vsel %vm448, %v6689, %v6673
        %v6704 = vsel %vm448, %v6691, %v6675
        %v6705 = vsel %vm448, %v6693, %v6677
        %v6706 = vpack.c.bf16 %v6703, %v6702
        %v6707 = vpack.c.bf16 %v6699, %v6698
        %v6708 = vpack.c.bf16 %v6695, %v6694
        %v6709 = vpack.c.bf16 %v6705, %v6704
        %v6710 = vpack.c.bf16 %v6701, %v6700
        %v6711 = vpack.c.bf16 %v6697, %v6696
        %6712 = vst [vmem:[#allocation3 + $0x30] sm:$0xff] %v6706
        %6713 = vst [vmem:[#allocation3 + $0x38] sm:$0xff] %v6707
        %6714 = vst [vmem:[#allocation3 + $0x40] sm:$0xff] %v6708
        %6715 = vst [vmem:[#allocation3 + $0x48] sm:$0xff] %v6709
        %6716 = vst [vmem:[#allocation3 + $0x50] sm:$0xff] %v6710
        %6717 = vst [vmem:[#allocation3 + $0x58] sm:$0xff] %v6711
        %6718 = vrot.lane.b32.xlu0 %v6610, 17
        %v6719 = vpop.permute.xlu0 %6718
        %6720 = vrot.lane.b32.xlu0 %v6613, 17
        %v6721 = vpop.permute.xlu0 %6720
        %6722 = vrot.lane.b32.xlu0 %v6616, 17
        %v6723 = vpop.permute.xlu0 %6722
        %6724 = vrot.lane.b32.xlu0 %v6619, 17
        %v6725 = vpop.permute.xlu0 %6724
        %6726 = vrot.lane.b32.xlu0 %v6611, 17
        %v6727 = vpop.permute.xlu0 %6726
        %6728 = vrot.lane.b32.xlu0 %v6614, 17
        %v6729 = vpop.permute.xlu0 %6728
        %6730 = vrot.lane.b32.xlu0 %v6617, 17
        %v6731 = vpop.permute.xlu0 %6730
        %6732 = vrot.lane.b32.xlu0 %v6620, 17
        %v6733 = vpop.permute.xlu0 %6732
        %6734 = vrot.lane.b32.xlu0 %v6612, 17
        %v6735 = vpop.permute.xlu0 %6734
        %6736 = vrot.lane.b32.xlu0 %v6615, 17
        %v6737 = vpop.permute.xlu0 %6736
        %6738 = vrot.lane.b32.xlu0 %v6618, 17
        %v6739 = vpop.permute.xlu0 %6738
        %6740 = vrot.lane.b32.xlu0 %v6621, 17
        %v6741 = vpop.permute.xlu0 %6740
        %v6742 = vsel %vm497, %v6727, %v6735
        %v6743 = vsel %vm497, %v6729, %v6737
        %v6744 = vsel %vm497, %v6731, %v6739
        %v6745 = vsel %vm497, %v6733, %v6741
        %v6746 = vsel %vm497, %v6719, %v6727
        %v6747 = vsel %vm497, %v6721, %v6729
        %v6748 = vsel %vm497, %v6723, %v6731
        %v6749 = vsel %vm497, %v6725, %v6733
        %v6750 = vsel %vm497, %v6735, %v6719
        %v6751 = vsel %vm497, %v6737, %v6721
        %v6752 = vsel %vm497, %v6739, %v6723
        %v6753 = vsel %vm497, %v6741, %v6725
        %v6754 = vpack.c.bf16 %v6751, %v6750
        %v6755 = vpack.c.bf16 %v6747, %v6746
        %v6756 = vpack.c.bf16 %v6743, %v6742
        %v6757 = vpack.c.bf16 %v6753, %v6752
        %v6758 = vpack.c.bf16 %v6749, %v6748
        %v6759 = vpack.c.bf16 %v6745, %v6744
        %6760 = vst [vmem:[#allocation3 + $0x60] sm:$0xff] %v6754
        %6761 = vst [vmem:[#allocation3 + $0x68] sm:$0xff] %v6755
        %6762 = vst [vmem:[#allocation3 + $0x70] sm:$0xff] %v6756
        %6763 = vst [vmem:[#allocation3 + $0x78] sm:$0xff] %v6757
        %6764 = vst [vmem:[#allocation3 + $0x80] sm:$0xff] %v6758
        %6765 = vst [vmem:[#allocation3 + $0x88] sm:$0xff] %v6759
        %6766 = vrot.lane.b32.xlu0 %v6610, 1
        %v6767 = vpop.permute.xlu0 %6766
        %6768 = vrot.lane.b32.xlu0 %v6613, 1
        %v6769 = vpop.permute.xlu0 %6768
        %6770 = vrot.lane.b32.xlu0 %v6616, 1
        %v6771 = vpop.permute.xlu0 %6770
        %6772 = vrot.lane.b32.xlu0 %v6619, 1
        %v6773 = vpop.permute.xlu0 %6772
        %6774 = vrot.lane.b32.xlu0 %v6611, 1
        %v6775 = vpop.permute.xlu0 %6774
        %6776 = vrot.lane.b32.xlu0 %v6614, 1
        %v6777 = vpop.permute.xlu0 %6776
        %6778 = vrot.lane.b32.xlu0 %v6617, 1
        %v6779 = vpop.permute.xlu0 %6778
        %6780 = vrot.lane.b32.xlu0 %v6620, 1
        %v6781 = vpop.permute.xlu0 %6780
        %6782 = vrot.lane.b32.xlu0 %v6612, 1
        %v6783 = vpop.permute.xlu0 %6782
        %6784 = vrot.lane.b32.xlu0 %v6615, 1
        %v6785 = vpop.permute.xlu0 %6784
        %6786 = vrot.lane.b32.xlu0 %v6618, 1
        %v6787 = vpop.permute.xlu0 %6786
        %6788 = vrot.lane.b32.xlu0 %v6621, 1
        %v6789 = vpop.permute.xlu0 %6788
        %v6790 = vsel %vm546, %v6775, %v6783
        %v6791 = vsel %vm546, %v6777, %v6785
        %v6792 = vsel %vm546, %v6779, %v6787
        %v6793 = vsel %vm546, %v6781, %v6789
        %v6794 = vsel %vm546, %v6767, %v6775
        %v6795 = vsel %vm546, %v6769, %v6777
        %v6796 = vsel %vm546, %v6771, %v6779
        %v6797 = vsel %vm546, %v6773, %v6781
        %v6798 = vsel %vm546, %v6783, %v6767
        %v6799 = vsel %vm546, %v6785, %v6769
        %v6800 = vsel %vm546, %v6787, %v6771
        %v6801 = vsel %vm546, %v6789, %v6773
        %v6802 = vpack.c.bf16 %v6799, %v6798
        %v6803 = vpack.c.bf16 %v6795, %v6794
        %v6804 = vpack.c.bf16 %v6791, %v6790
        %v6805 = vpack.c.bf16 %v6801, %v6800
        %v6806 = vpack.c.bf16 %v6797, %v6796
        %v6807 = vpack.c.bf16 %v6793, %v6792
        %6808 = vst [vmem:[#allocation3 + $0x90] sm:$0xff] %v6802
        %6809 = vst [vmem:[#allocation3 + $0x98] sm:$0xff] %v6803
        %6810 = vst [vmem:[#allocation3 + $0xa0] sm:$0xff] %v6804
        %6811 = vst [vmem:[#allocation3 + $0xa8] sm:$0xff] %v6805
        %6812 = vst [vmem:[#allocation3 + $0xb0] sm:$0xff] %v6806
        %6813 = vst [vmem:[#allocation3 + $0xb8] sm:$0xff] %v6807
        %v6814 = vpack.c.bf16 %v6613, %v6610
        %v6815 = vpack.c.bf16 %v6614, %v6611
        %v6816 = vpack.c.bf16 %v6615, %v6612
        %v6817 = vpack.c.bf16 %v6619, %v6616
        %v6818 = vpack.c.bf16 %v6620, %v6617
        %v6819 = vpack.c.bf16 %v6621, %v6618
        %6820 = vst [vmem:[#allocation3 + $0xc0] sm:$0xff] %v6814
        %6821 = vst [vmem:[#allocation3 + $0xc8] sm:$0xff] %v6815
        %6822 = vst [vmem:[#allocation3 + $0xd0] sm:$0xff] %v6816
        %6823 = vst [vmem:[#allocation3 + $0xd8] sm:$0xff] %v6817
        %6824 = vst [vmem:[#allocation3 + $0xe0] sm:$0xff] %v6818
        %6825 = vst [vmem:[#allocation3 + $0xe8] sm:$0xff] %v6819
        %6826 = vrot.lane.b32.xlu0 %v6610, 127
        %v6827 = vpop.permute.xlu0 %6826
        %6828 = vrot.lane.b32.xlu0 %v6613, 127
        %v6829 = vpop.permute.xlu0 %6828
        %6830 = vrot.lane.b32.xlu0 %v6616, 127
        %v6831 = vpop.permute.xlu0 %6830
        %6832 = vrot.lane.b32.xlu0 %v6619, 127
        %v6833 = vpop.permute.xlu0 %6832
        %6834 = vrot.lane.b32.xlu0 %v6611, 127
        %v6835 = vpop.permute.xlu0 %6834
        %6836 = vrot.lane.b32.xlu0 %v6614, 127
        %v6837 = vpop.permute.xlu0 %6836
        %6838 = vrot.lane.b32.xlu0 %v6617, 127
        %v6839 = vpop.permute.xlu0 %6838
        %6840 = vrot.lane.b32.xlu0 %v6620, 127
        %v6841 = vpop.permute.xlu0 %6840
        %6842 = vrot.lane.b32.xlu0 %v6612, 127
        %v6843 = vpop.permute.xlu0 %6842
        %6844 = vrot.lane.b32.xlu0 %v6615, 127
        %v6845 = vpop.permute.xlu0 %6844
        %6846 = vrot.lane.b32.xlu0 %v6618, 127
        %v6847 = vpop.permute.xlu0 %6846
        %6848 = vrot.lane.b32.xlu0 %v6621, 127
        %v6849 = vpop.permute.xlu0 %6848
        %v6850 = vsel %vm607, %v6835, %v6843
        %v6851 = vsel %vm607, %v6837, %v6845
        %v6852 = vsel %vm607, %v6839, %v6847
        %v6853 = vsel %vm607, %v6841, %v6849
        %v6854 = vsel %vm607, %v6827, %v6835
        %v6855 = vsel %vm607, %v6829, %v6837
        %v6856 = vsel %vm607, %v6831, %v6839
        %v6857 = vsel %vm607, %v6833, %v6841
        %v6858 = vsel %vm607, %v6843, %v6827
        %v6859 = vsel %vm607, %v6845, %v6829
        %v6860 = vsel %vm607, %v6847, %v6831
        %v6861 = vsel %vm607, %v6849, %v6833
        %v6862 = vpack.c.bf16 %v6855, %v6854
        %v6863 = vpack.c.bf16 %v6851, %v6850
        %v6864 = vpack.c.bf16 %v6859, %v6858
        %v6865 = vpack.c.bf16 %v6857, %v6856
        %v6866 = vpack.c.bf16 %v6853, %v6852
        %v6867 = vpack.c.bf16 %v6861, %v6860
        %6868 = vst [vmem:[#allocation3 + $0xf0] sm:$0xff] %v6862
        %6869 = vst [vmem:[#allocation3 + $0xf8] sm:$0xff] %v6863
        %6870 = vst [vmem:[#allocation3 + $0x100] sm:$0xff] %v6864
        %6871 = vst [vmem:[#allocation3 + $0x108] sm:$0xff] %v6865
        %6872 = vst [vmem:[#allocation3 + $0x110] sm:$0xff] %v6866
        %6873 = vst [vmem:[#allocation3 + $0x118] sm:$0xff] %v6867
        %6874 = vrot.lane.b32.xlu0 %v6610, 111
        %v6875 = vpop.permute.xlu0 %6874
        %6876 = vrot.lane.b32.xlu0 %v6613, 111
        %v6877 = vpop.permute.xlu0 %6876
        %6878 = vrot.lane.b32.xlu0 %v6616, 111
        %v6879 = vpop.permute.xlu0 %6878
        %6880 = vrot.lane.b32.xlu0 %v6619, 111
        %v6881 = vpop.permute.xlu0 %6880
        %6882 = vrot.lane.b32.xlu0 %v6611, 111
        %v6883 = vpop.permute.xlu0 %6882
        %6884 = vrot.lane.b32.xlu0 %v6614, 111
        %v6885 = vpop.permute.xlu0 %6884
        %6886 = vrot.lane.b32.xlu0 %v6617, 111
        %v6887 = vpop.permute.xlu0 %6886
        %6888 = vrot.lane.b32.xlu0 %v6620, 111
        %v6889 = vpop.permute.xlu0 %6888
        %6890 = vrot.lane.b32.xlu0 %v6612, 111
        %v6891 = vpop.permute.xlu0 %6890
        %6892 = vrot.lane.b32.xlu0 %v6615, 111
        %v6893 = vpop.permute.xlu0 %6892
        %6894 = vrot.lane.b32.xlu0 %v6618, 111
        %v6895 = vpop.permute.xlu0 %6894
        %6896 = vrot.lane.b32.xlu0 %v6621, 111
        %v6897 = vpop.permute.xlu0 %6896
        %v6898 = vsel %vm656, %v6883, %v6891
        %v6899 = vsel %vm656, %v6885, %v6893
        %v6900 = vsel %vm656, %v6887, %v6895
        %v6901 = vsel %vm656, %v6889, %v6897
        %v6902 = vsel %vm656, %v6875, %v6883
        %v6903 = vsel %vm656, %v6877, %v6885
        %v6904 = vsel %vm656, %v6879, %v6887
        %v6905 = vsel %vm656, %v6881, %v6889
        %v6906 = vsel %vm656, %v6891, %v6875
        %v6907 = vsel %vm656, %v6893, %v6877
        %v6908 = vsel %vm656, %v6895, %v6879
        %v6909 = vsel %vm656, %v6897, %v6881
        %v6910 = vpack.c.bf16 %v6903, %v6902
        %v6911 = vpack.c.bf16 %v6899, %v6898
        %v6912 = vpack.c.bf16 %v6907, %v6906
        %v6913 = vpack.c.bf16 %v6905, %v6904
        %v6914 = vpack.c.bf16 %v6901, %v6900
        %v6915 = vpack.c.bf16 %v6909, %v6908
        %6916 = vst [vmem:[#allocation3 + $0x120] sm:$0xff] %v6910
        %6917 = vst [vmem:[#allocation3 + $0x128] sm:$0xff] %v6911
        %6918 = vst [vmem:[#allocation3 + $0x130] sm:$0xff] %v6912
        %6919 = vst [vmem:[#allocation3 + $0x138] sm:$0xff] %v6913
        %6920 = vst [vmem:[#allocation3 + $0x140] sm:$0xff] %v6914
        %6921 = vst [vmem:[#allocation3 + $0x148] sm:$0xff] %v6915
        %6922 = vrot.lane.b32.xlu0 %v6610, 110
        %v6923 = vpop.permute.xlu0 %6922
        %6924 = vrot.lane.b32.xlu0 %v6613, 110
        %v6925 = vpop.permute.xlu0 %6924
        %6926 = vrot.lane.b32.xlu0 %v6616, 110
        %v6927 = vpop.permute.xlu0 %6926
        %6928 = vrot.lane.b32.xlu0 %v6619, 110
        %v6929 = vpop.permute.xlu0 %6928
        %6930 = vrot.lane.b32.xlu0 %v6611, 110
        %v6931 = vpop.permute.xlu0 %6930
        %6932 = vrot.lane.b32.xlu0 %v6614, 110
        %v6933 = vpop.permute.xlu0 %6932
        %6934 = vrot.lane.b32.xlu0 %v6617, 110
        %v6935 = vpop.permute.xlu0 %6934
        %6936 = vrot.lane.b32.xlu0 %v6620, 110
        %v6937 = vpop.permute.xlu0 %6936
        %6938 = vrot.lane.b32.xlu0 %v6612, 110
        %v6939 = vpop.permute.xlu0 %6938
        %6940 = vrot.lane.b32.xlu0 %v6615, 110
        %v6941 = vpop.permute.xlu0 %6940
        %6942 = vrot.lane.b32.xlu0 %v6618, 110
        %v6943 = vpop.permute.xlu0 %6942
        %6944 = vrot.lane.b32.xlu0 %v6621, 110
        %v6945 = vpop.permute.xlu0 %6944
        %v6946 = vsel %vm705, %v6931, %v6939
        %v6947 = vsel %vm705, %v6933, %v6941
        %v6948 = vsel %vm705, %v6935, %v6943
        %v6949 = vsel %vm705, %v6937, %v6945
        %v6950 = vsel %vm705, %v6923, %v6931
        %v6951 = vsel %vm705, %v6925, %v6933
        %v6952 = vsel %vm705, %v6927, %v6935
        %v6953 = vsel %vm705, %v6929, %v6937
        %v6954 = vsel %vm705, %v6939, %v6923
        %v6955 = vsel %vm705, %v6941, %v6925
        %v6956 = vsel %vm705, %v6943, %v6927
        %v6957 = vsel %vm705, %v6945, %v6929
        %v6958 = vpack.c.bf16 %v6951, %v6950
        %v6959 = vpack.c.bf16 %v6947, %v6946
        %v6960 = vpack.c.bf16 %v6955, %v6954
        %v6961 = vpack.c.bf16 %v6953, %v6952
        %v6962 = vpack.c.bf16 %v6949, %v6948
        %v6963 = vpack.c.bf16 %v6957, %v6956
        %6964 = vst [vmem:[#allocation3 + $0x150] sm:$0xff] %v6958
        %6965 = vst [vmem:[#allocation3 + $0x158] sm:$0xff] %v6959
        %6966 = vst [vmem:[#allocation3 + $0x160] sm:$0xff] %v6960
        %6967 = vst [vmem:[#allocation3 + $0x168] sm:$0xff] %v6961
        %6968 = vst [vmem:[#allocation3 + $0x170] sm:$0xff] %v6962
        %6969 = vst [vmem:[#allocation3 + $0x178] sm:$0xff] %v6963
        %6970 = vrot.lane.b32.xlu0 %v6610, 109
        %v6971 = vpop.permute.xlu0 %6970
        %6972 = vrot.lane.b32.xlu0 %v6613, 109
        %v6973 = vpop.permute.xlu0 %6972
        %6974 = vrot.lane.b32.xlu0 %v6616, 109
        %v6975 = vpop.permute.xlu0 %6974
        %6976 = vrot.lane.b32.xlu0 %v6619, 109
        %v6977 = vpop.permute.xlu0 %6976
        %6978 = vrot.lane.b32.xlu0 %v6611, 109
        %v6979 = vpop.permute.xlu0 %6978
        %6980 = vrot.lane.b32.xlu0 %v6614, 109
        %v6981 = vpop.permute.xlu0 %6980
        %6982 = vrot.lane.b32.xlu0 %v6617, 109
        %v6983 = vpop.permute.xlu0 %6982
        %6984 = vrot.lane.b32.xlu0 %v6620, 109
        %v6985 = vpop.permute.xlu0 %6984
        %6986 = vrot.lane.b32.xlu0 %v6612, 109
        %v6987 = vpop.permute.xlu0 %6986
        %6988 = vrot.lane.b32.xlu0 %v6615, 109
        %v6989 = vpop.permute.xlu0 %6988
        %6990 = vrot.lane.b32.xlu0 %v6618, 109
        %v6991 = vpop.permute.xlu0 %6990
        %6992 = vrot.lane.b32.xlu0 %v6621, 109
        %v6993 = vpop.permute.xlu0 %6992
        %v6994 = vsel %vm754, %v6979, %v6987
        %v6995 = vsel %vm754, %v6981, %v6989
        %v6996 = vsel %vm754, %v6983, %v6991
        %v6997 = vsel %vm754, %v6985, %v6993
        %v6998 = vsel %vm754, %v6971, %v6979
        %v6999 = vsel %vm754, %v6973, %v6981
        %v7000 = vsel %vm754, %v6975, %v6983
        %v7001 = vsel %vm754, %v6977, %v6985
        %v7002 = vsel %vm754, %v6987, %v6971
        %v7003 = vsel %vm754, %v6989, %v6973
        %v7004 = vsel %vm754, %v6991, %v6975
        %v7005 = vsel %vm754, %v6993, %v6977
        %v7006 = vpack.c.bf16 %v6999, %v6998
        %v7007 = vpack.c.bf16 %v6995, %v6994
        %v7008 = vpack.c.bf16 %v7003, %v7002
        %v7009 = vpack.c.bf16 %v7001, %v7000
        %v7010 = vpack.c.bf16 %v6997, %v6996
        %v7011 = vpack.c.bf16 %v7005, %v7004
        %7012 = vst [vmem:[#allocation3 + $0x180] sm:$0xff] %v7006
        %7013 = vst [vmem:[#allocation3 + $0x188] sm:$0xff] %v7007
        %7014 = vst [vmem:[#allocation3 + $0x190] sm:$0xff] %v7008
        %7015 = vst [vmem:[#allocation3 + $0x198] sm:$0xff] %v7009
        %7016 = vst [vmem:[#allocation3 + $0x1a0] sm:$0xff] %v7010
        %7017 = vst [vmem:[#allocation3 + $0x1a8] sm:$0xff] %v7011
        %s7018 = smul.u32 %s6605, 2
        %s7019 = smul.u32 %s7018, 12
        %s7020 = smul.addr %s7019, 4
        %s7021 = scalar_lea.vmem %s8, %s7020
        %v7022 = vld [vmem:[%s7021] sm:$0xff]
        %v7023 = vld [vmem:[%s7021 + $0x8] sm:$0xf]
        %v7024 = vld [vmem:[%s7021 + $0xc] sm:$0xff]
        %v7025 = vld [vmem:[%s7021 + $0x14] sm:$0xf]
        %v7026 = vld [vmem:[%s7021 + $0x18] sm:$0xff]
        %v7027 = vld [vmem:[%s7021 + $0x20] sm:$0xf]
        %v7028 = vld [vmem:[%s7021 + $0x24] sm:$0xff]
        %v7029 = vld [vmem:[%s7021 + $0x2c] sm:$0xf]
        %s7030 = smul.u32 %s7018, 32
        %s7031 = scalar_lea.vmem %s9, %s7030
        %v7032 = vld [vmem:[%s7031] sm:$0xff]
        %v7033 = vld [vmem:[%s7031 + $0x8] sm:$0xff]
        %v7034 = vld [vmem:[%s7031 + $0x10] sm:$0xff]
        %v7035 = vld [vmem:[%s7031 + $0x18] sm:$0xff]
        %v7036 = vld [vmem:[#allocation3] sm:$0xff]
        %v7037 = vld [vmem:[#allocation3 + $0x8] sm:$0xff]
        %v7038 = vld [vmem:[#allocation3 + $0x10] sm:$0xff]
        %v7039 = vld [vmem:[#allocation3 + $0x18] sm:$0xff]
        %v7040 = vld [vmem:[#allocation3 + $0x20] sm:$0xff]
        %v7041 = vld [vmem:[#allocation3 + $0x28] sm:$0xff]
        %v7042 = vld [vmem:[#allocation3 + $0x30] sm:$0xff]
        %v7043 = vld [vmem:[#allocation3 + $0x38] sm:$0xff]
        %v7044 = vld [vmem:[#allocation3 + $0x40] sm:$0xff]
        %v7045 = vld [vmem:[#allocation3 + $0x48] sm:$0xff]
        %v7046 = vld [vmem:[#allocation3 + $0x50] sm:$0xff]
        %v7047 = vld [vmem:[#allocation3 + $0x58] sm:$0xff]
        %v7048 = vld [vmem:[#allocation3 + $0x60] sm:$0xff]
        %v7049 = vld [vmem:[#allocation3 + $0x68] sm:$0xff]
        %v7050 = vld [vmem:[#allocation3 + $0x70] sm:$0xff]
        %v7051 = vld [vmem:[#allocation3 + $0x78] sm:$0xff]
        %v7052 = vld [vmem:[#allocation3 + $0x80] sm:$0xff]
        %v7053 = vld [vmem:[#allocation3 + $0x88] sm:$0xff]
        %v7054 = vld [vmem:[#allocation3 + $0x90] sm:$0xff]
        %v7055 = vld [vmem:[#allocation3 + $0x98] sm:$0xff]
        %v7056 = vld [vmem:[#allocation3 + $0xa0] sm:$0xff]
        %v7057 = vld [vmem:[#allocation3 + $0xa8] sm:$0xff]
        %v7058 = vld [vmem:[#allocation3 + $0xb0] sm:$0xff]
        %v7059 = vld [vmem:[#allocation3 + $0xb8] sm:$0xff]
        %v7060 = vld [vmem:[#allocation3 + $0xc0] sm:$0xff]
        %v7061 = vld [vmem:[#allocation3 + $0xc8] sm:$0xff]
        %v7062 = vld [vmem:[#allocation3 + $0xd0] sm:$0xff]
        %v7063 = vld [vmem:[#allocation3 + $0xd8] sm:$0xff]
        %v7064 = vld [vmem:[#allocation3 + $0xe0] sm:$0xff]
        %v7065 = vld [vmem:[#allocation3 + $0xe8] sm:$0xff]
        %v7066 = vld [vmem:[#allocation3 + $0xf0] sm:$0xff]
        %v7067 = vld [vmem:[#allocation3 + $0xf8] sm:$0xff]
        %v7068 = vld [vmem:[#allocation3 + $0x100] sm:$0xff]
        %v7069 = vld [vmem:[#allocation3 + $0x108] sm:$0xff]
        %v7070 = vld [vmem:[#allocation3 + $0x110] sm:$0xff]
        %v7071 = vld [vmem:[#allocation3 + $0x118] sm:$0xff]
        %v7072 = vld [vmem:[#allocation3 + $0x120] sm:$0xff]
        %v7073 = vld [vmem:[#allocation3 + $0x128] sm:$0xff]
        %v7074 = vld [vmem:[#allocation3 + $0x130] sm:$0xff]
        %v7075 = vld [vmem:[#allocation3 + $0x138] sm:$0xff]
        %v7076 = vld [vmem:[#allocation3 + $0x140] sm:$0xff]
        %v7077 = vld [vmem:[#allocation3 + $0x148] sm:$0xff]
        %v7078 = vld [vmem:[#allocation3 + $0x150] sm:$0xff]
        %v7079 = vld [vmem:[#allocation3 + $0x158] sm:$0xff]
        %v7080 = vld [vmem:[#allocation3 + $0x160] sm:$0xff]
        %v7081 = vld [vmem:[#allocation3 + $0x168] sm:$0xff]
        %v7082 = vld [vmem:[#allocation3 + $0x170] sm:$0xff]
        %v7083 = vld [vmem:[#allocation3 + $0x178] sm:$0xff]
        %v7084 = vld [vmem:[#allocation3 + $0x180] sm:$0xff]
        %v7085 = vld [vmem:[#allocation3 + $0x188] sm:$0xff]
        %v7086 = vld [vmem:[#allocation3 + $0x190] sm:$0xff]
        %v7087 = vld [vmem:[#allocation3 + $0x198] sm:$0xff]
        %v7088 = vld [vmem:[#allocation3 + $0x1a0] sm:$0xff]
        %v7089 = vld [vmem:[#allocation3 + $0x1a8] sm:$0xff]
        %7091 = vset.pattern.permute.xlu0 0
        %7092 = vperm.xlu0 %7091, %v7032
        %v7093 = vpop.permute.xlu0 %7092
        %7096 = vset.pattern.permute.xlu0 0
        %7097 = vperm.xlu0 %7096, %v7033
        %v7098 = vpop.permute.xlu0 %7097
        %7101 = vset.pattern.permute.xlu0 0
        %7102 = vperm.xlu0 %7101, %v7034
        %v7103 = vpop.permute.xlu0 %7102
        %7106 = vset.pattern.permute.xlu0 0
        %7107 = vperm.xlu0 %7106, %v7035
        %v7108 = vpop.permute.xlu0 %7107
        %v7118 = vunpack.c.l.b16 %v7022
        %v7119 = vunpack.c.h.b16 %v7022
        %v7120 = vunpack.c.l.b16 %v7023
        %v7121 = vunpack.c.l.b16 %v7024
        %v7122 = vunpack.c.h.b16 %v7024
        %v7123 = vunpack.c.l.b16 %v7025
        %v7124 = vunpack.c.l.b16 %v7026
        %v7125 = vunpack.c.h.b16 %v7026
        %v7126 = vunpack.c.l.b16 %v7027
        %v7127 = vunpack.c.l.b16 %v7028
        %v7128 = vunpack.c.h.b16 %v7028
        %v7129 = vunpack.c.l.b16 %v7029
        %v7130 = vpack.c.b16 %v7121, %v7118
        %v7131 = vpack.c.b16 %v7122, %v7119
        %v7132 = vpack.c.b16 %v7123, %v7120
        %v7133 = vpack.c.b16 %v7127, %v7124
        %v7134 = vpack.c.b16 %v7128, %v7125
        %v7135 = vpack.c.b16 %v7129, %v7126
        %v7141 = vsel %vm895, %v7132, 0
        %v7144 = vsel %vm895, %v7135, 0
        %7146 = vmatprep.subr.bf16.mxu0 %v7037
        %7147 = vmatpush1.bf16.msra.mxu0 %v7036
        %7148 = vmatprep.subr.bf16.mxu0 %v7040
        %7149 = vmatpush1.bf16.msra.mxu0 %v7039
        %7150 = vmatprep.subr.bf16.mxu0 %v7043
        %7151 = vmatpush1.bf16.msra.mxu0 %v7042
        %7152 = vmatprep.subr.bf16.mxu0 %v7046
        %7153 = vmatpush1.bf16.msra.mxu0 %v7045
        %7154 = vmatprep.subr.bf16.mxu0 %v7049
        %7155 = vmatpush1.bf16.msra.mxu0 %v7048
        %7156 = vmatprep.subr.bf16.mxu0 %v7052
        %7157 = vmatpush1.bf16.msra.mxu0 %v7051
        %7158 = vmatprep.subr.bf16.mxu0 %v7055
        %7159 = vmatpush1.bf16.msra.mxu0 %v7054
        %7160 = vmatprep.subr.bf16.mxu0 %v7058
        %7161 = vmatpush1.bf16.msra.mxu0 %v7057
        %7162 = vmatprep.subr.bf16.mxu0 %v7061
        %7163 = vmatpush1.bf16.msra.mxu0 %v7060
        %7164 = vmatprep.subr.bf16.mxu0 %v7064
        %7165 = vmatpush1.bf16.msra.mxu0 %v7063
        %7166 = vmatprep.subr.bf16.mxu0 %v7067
        %7167 = vmatpush1.bf16.msra.mxu0 %v7066
        %7168 = vmatprep.subr.bf16.mxu0 %v7070
        %7169 = vmatpush1.bf16.msra.mxu0 %v7069
        %7170 = vmatprep.subr.bf16.mxu0 %v7073
        %7171 = vmatpush1.bf16.msra.mxu0 %v7072
        %7172 = vmatprep.subr.bf16.mxu0 %v7076
        %7173 = vmatpush1.bf16.msra.mxu0 %v7075
        %7174 = vmatprep.subr.bf16.mxu0 %v7079
        %7175 = vmatpush1.bf16.msra.mxu0 %v7078
        %7176 = vmatprep.subr.bf16.mxu0 %v7082
        %7177 = vmatpush1.bf16.msra.mxu0 %v7081
        %7178 = vmatprep.mubr.bf16.mxu0 %v7131
        %7179 = vmatmul.mubr.bf16.gmra.mrb[0].mxu0 %v7130
        %v7180 = vpop.f32.mrb[0].mxu0
        %v7181 = vadd.f32 %v7093, %v7180
        %v7182 = vpop.f32.mrb[0].mxu0
        %v7183 = vadd.f32 %v7093, %v7182
        %v7184 = vpop.f32.mrb[0].mxu0
        %v7185 = vadd.f32 %v7098, %v7184
        %v7186 = vpop.f32.mrb[0].mxu0
        %v7187 = vadd.f32 %v7098, %v7186
        %7188 = vmatprep.mubr.bf16.mxu0 %v7134
        %7189 = vmatmul.mubr.bf16.gmra.mrb[0].mxu0 %v7133
        %v7190 = vpop.f32.mrb[0].mxu0
        %v7191 = vadd.f32 %v7103, %v7190
        %v7192 = vpop.f32.mrb[0].mxu0
        %v7193 = vadd.f32 %v7103, %v7192
        %v7194 = vpop.f32.mrb[0].mxu0
        %v7195 = vadd.f32 %v7108, %v7194
        %v7196 = vpop.f32.mrb[0].mxu0
        %v7197 = vadd.f32 %v7108, %v7196
        %7198 = vdwg.mxu0
        %7199 = vmatprep.subr.bf16.mxu0 %v7085
        %7200 = vmatpush1.bf16.msra.mxu0 %v7084
        %7201 = vmatprep.subr.bf16.mxu0 %v7088
        %7202 = vmatpush1.bf16.msra.mxu0 %v7087
        %7203 = vmatprep.subr.bf16.mxu0 0
        %7204 = vmatpush1.bf16.msra.mxu0 0
        %7205 = vmatprep.subr.bf16.mxu0 0
        %7206 = vmatpush1.bf16.msra.mxu0 0
        %7207 = vmatprep.subr.bf16.mxu0 0
        %7208 = vmatpush1.bf16.msra.mxu0 0
        %7209 = vmatprep.subr.bf16.mxu0 0
        %7210 = vmatpush1.bf16.msra.mxu0 0
        %7211 = vmatprep.subr.bf16.mxu0 0
        %7212 = vmatpush1.bf16.msra.mxu0 0
        %7213 = vmatprep.subr.bf16.mxu0 0
        %7214 = vmatpush1.bf16.msra.mxu0 0
        %7215 = vmatprep.subr.bf16.mxu0 0
        %7216 = vmatpush1.bf16.msra.mxu0 0
        %7217 = vmatprep.subr.bf16.mxu0 0
        %7218 = vmatpush1.bf16.msra.mxu0 0
        %7219 = vmatprep.subr.bf16.mxu0 0
        %7220 = vmatpush1.bf16.msra.mxu0 0
        %7221 = vmatprep.subr.bf16.mxu0 0
        %7222 = vmatpush1.bf16.msra.mxu0 0
        %7223 = vmatprep.subr.bf16.mxu0 0
        %7224 = vmatpush1.bf16.msra.mxu0 0
        %7225 = vmatprep.subr.bf16.mxu0 0
        %7226 = vmatpush1.bf16.msra.mxu0 0
        %7227 = vmatprep.subr.bf16.mxu0 0
        %7228 = vmatpush1.bf16.msra.mxu0 0
        %7229 = vmatprep.subr.bf16.mxu0 0
        %7230 = vmatpush1.bf16.msra.mxu0 0
        %7231 = vmatprep.mubr.bf16.mxu0 0
        %7232 = vmatmul.mubr.bf16.gmra.mrb[0].mxu0 %v7141
        %v7233 = vpop.f32.mrb[0].mxu0
        %v7234 = vadd.f32 %v7181, %v7233
        %v7235 = vpop.f32.mrb[0].mxu0
        %v7236 = vadd.f32 %v7183, %v7235
        %v7237 = vpop.f32.mrb[0].mxu0
        %v7238 = vadd.f32 %v7185, %v7237
        %v7239 = vpop.f32.mrb[0].mxu0
        %v7240 = vadd.f32 %v7187, %v7239
        %7241 = vmatprep.mubr.bf16.mxu0 0
        %7242 = vmatmul.mubr.bf16.gmra.mrb[0].mxu0 %v7144
        %v7243 = vpop.f32.mrb[0].mxu0
        %v7244 = vadd.f32 %v7191, %v7243
        %v7245 = vpop.f32.mrb[0].mxu0
        %v7246 = vadd.f32 %v7193, %v7245
        %v7247 = vpop.f32.mrb[0].mxu0
        %v7248 = vadd.f32 %v7195, %v7247
        %v7249 = vpop.f32.mrb[0].mxu0
        %v7250 = vadd.f32 %v7197, %v7249
        %7251 = vdwg.mxu0
        %7252 = vmatprep.subr.bf16.mxu0 0
        %7253 = vmatpush1.bf16.msra.mxu0 %v7038
        %7254 = vmatprep.subr.bf16.mxu0 0
        %7255 = vmatpush1.bf16.msra.mxu0 %v7041
        %7256 = vmatprep.subr.bf16.mxu0 0
        %7257 = vmatpush1.bf16.msra.mxu0 %v7044
        %7258 = vmatprep.subr.bf16.mxu0 0
        %7259 = vmatpush1.bf16.msra.mxu0 %v7047
        %7260 = vmatprep.subr.bf16.mxu0 0
        %7261 = vmatpush1.bf16.msra.mxu0 %v7050
        %7262 = vmatprep.subr.bf16.mxu0 0
        %7263 = vmatpush1.bf16.msra.mxu0 %v7053
        %7264 = vmatprep.subr.bf16.mxu0 0
        %7265 = vmatpush1.bf16.msra.mxu0 %v7056
        %7266 = vmatprep.subr.bf16.mxu0 0
        %7267 = vmatpush1.bf16.msra.mxu0 %v7059
        %7268 = vmatprep.subr.bf16.mxu0 0
        %7269 = vmatpush1.bf16.msra.mxu0 %v7062
        %7270 = vmatprep.subr.bf16.mxu0 0
        %7271 = vmatpush1.bf16.msra.mxu0 %v7065
        %7272 = vmatprep.subr.bf16.mxu0 0
        %7273 = vmatpush1.bf16.msra.mxu0 %v7068
        %7274 = vmatprep.subr.bf16.mxu0 0
        %7275 = vmatpush1.bf16.msra.mxu0 %v7071
        %7276 = vmatprep.subr.bf16.mxu0 0
        %7277 = vmatpush1.bf16.msra.mxu0 %v7074
        %7278 = vmatprep.subr.bf16.mxu0 0
        %7279 = vmatpush1.bf16.msra.mxu0 %v7077
        %7280 = vmatprep.subr.bf16.mxu0 0
        %7281 = vmatpush1.bf16.msra.mxu0 %v7080
        %7282 = vmatprep.subr.bf16.mxu0 0
        %7283 = vmatpush1.bf16.msra.mxu0 %v7083
        %7284 = vmatprep.mubr.bf16.mxu0 %v7131
        %7285 = vmatmul.mubr.bf16.gmra.mrb[0].mxu0 %v7130
        %v7286 = vpop.f32.mrb[0].mxu0
        %v7287 = vadd.f32 %v7093, %v7286
        %v7288 = vpop.f32.mrb[0].mxu0
        %v7289 = vpop.f32.mrb[0].mxu0
        %v7290 = vadd.f32 %v7098, %v7289
        %v7291 = vpop.f32.mrb[0].mxu0
        %7292 = vmatprep.mubr.bf16.mxu0 %v7134
        %7293 = vmatmul.mubr.bf16.gmra.mrb[0].mxu0 %v7133
        %v7294 = vpop.f32.mrb[0].mxu0
        %v7295 = vadd.f32 %v7103, %v7294
        %v7296 = vpop.f32.mrb[0].mxu0
        %v7297 = vpop.f32.mrb[0].mxu0
        %v7298 = vadd.f32 %v7108, %v7297
        %v7299 = vpop.f32.mrb[0].mxu0
        %7300 = vdwg.mxu0
        %7301 = vmatprep.subr.bf16.mxu0 0
        %7302 = vmatpush1.bf16.msra.mxu0 %v7086
        %7303 = vmatprep.subr.bf16.mxu0 0
        %7304 = vmatpush1.bf16.msra.mxu0 %v7089
        %7305 = vmatprep.subr.bf16.mxu0 0
        %7306 = vmatpush1.bf16.msra.mxu0 0
        %7307 = vmatprep.subr.bf16.mxu0 0
        %7308 = vmatpush1.bf16.msra.mxu0 0
        %7309 = vmatprep.subr.bf16.mxu0 0
        %7310 = vmatpush1.bf16.msra.mxu0 0
        %7311 = vmatprep.subr.bf16.mxu0 0
        %7312 = vmatpush1.bf16.msra.mxu0 0
        %7313 = vmatprep.subr.bf16.mxu0 0
        %7314 = vmatpush1.bf16.msra.mxu0 0
        %7315 = vmatprep.subr.bf16.mxu0 0
        %7316 = vmatpush1.bf16.msra.mxu0 0
        %7317 = vmatprep.subr.bf16.mxu0 0
        %7318 = vmatpush1.bf16.msra.mxu0 0
        %7319 = vmatprep.subr.bf16.mxu0 0
        %7320 = vmatpush1.bf16.msra.mxu0 0
        %7321 = vmatprep.subr.bf16.mxu0 0
        %7322 = vmatpush1.bf16.msra.mxu0 0
        %7323 = vmatprep.subr.bf16.mxu0 0
        %7324 = vmatpush1.bf16.msra.mxu0 0
        %7325 = vmatprep.subr.bf16.mxu0 0
        %7326 = vmatpush1.bf16.msra.mxu0 0
        %7327 = vmatprep.subr.bf16.mxu0 0
        %7328 = vmatpush1.bf16.msra.mxu0 0
        %7329 = vmatprep.subr.bf16.mxu0 0
        %7330 = vmatpush1.bf16.msra.mxu0 0
        %7331 = vmatprep.subr.bf16.mxu0 0
        %7332 = vmatpush1.bf16.msra.mxu0 0
        %7333 = vmatprep.mubr.bf16.mxu0 0
        %7334 = vmatmul.mubr.bf16.gmra.mrb[0].mxu0 %v7141
        %v7335 = vpop.f32.mrb[0].mxu0
        %v7336 = vadd.f32 %v7287, %v7335
        %v7337 = vpop.f32.mrb[0].mxu0
        %v7338 = vpop.f32.mrb[0].mxu0
        %v7339 = vadd.f32 %v7290, %v7338
        %v7340 = vpop.f32.mrb[0].mxu0
        %7341 = vmatprep.mubr.bf16.mxu0 0
        %7342 = vmatmul.mubr.bf16.gmra.mrb[0].mxu0 %v7144
        %v7343 = vpop.f32.mrb[0].mxu0
        %v7344 = vadd.f32 %v7295, %v7343
        %v7345 = vpop.f32.mrb[0].mxu0
        %v7346 = vpop.f32.mrb[0].mxu0
        %v7347 = vadd.f32 %v7298, %v7346
        %v7348 = vpop.f32.mrb[0].mxu0
        %7349 = vdwg.mxu0
        %v7350 = vmax.f32 %v7234, 0.0
        %v7351 = vmax.f32 %v7236, 0.0
        %v7352 = vmax.f32 %v7336, 0.0
        %v7353 = vmax.f32 %v7238, 0.0
        %v7354 = vmax.f32 %v7240, 0.0
        %v7355 = vmax.f32 %v7339, 0.0
        %v7356 = vmax.f32 %v7244, 0.0
        %v7357 = vmax.f32 %v7246, 0.0
        %v7358 = vmax.f32 %v7344, 0.0
        %v7359 = vmax.f32 %v7248, 0.0
        %v7360 = vmax.f32 %v7250, 0.0
        %v7361 = vmax.f32 %v7347, 0.0
        %v7362 = vld [vmem:[%s1] sm:$0x7]
        %v7364 = vlaneseq
        %v7365 = vshrl.u32 %v7364, 7
        %v7366 = vsub.s32 0, %v7365
        %v7367 = vrot.slane %v7362, %v7366
        %v7368 = vlaneseq
        %v7369 = vshrl.u32 %v7368, 7
        %v7370 = vsub.s32 1, %v7369
        %v7371 = vrot.slane %v7362, %v7370
        %v7372 = vlaneseq
        %v7373 = vshrl.u32 %v7372, 7
        %v7374 = vsub.s32 2, %v7373
        %v7375 = vrot.slane %v7362, %v7374
        %v7379 = vmul.f32 %v7350, %v7367
        %v7380 = vmul.f32 %v7351, %v7371
        %v7381 = vmul.f32 %v7352, %v7375
        %v7382 = vmul.f32 %v7353, %v7367
        %v7383 = vmul.f32 %v7354, %v7371
        %v7384 = vmul.f32 %v7355, %v7375
        %v7385 = vmul.f32 %v7356, %v7367
        %v7386 = vmul.f32 %v7357, %v7371
        %v7387 = vmul.f32 %v7358, %v7375
        %v7388 = vmul.f32 %v7359, %v7367
        %v7389 = vmul.f32 %v7360, %v7371
        %v7390 = vmul.f32 %v7361, %v7375
        %7391 = vrot.lane.b32.xlu0 %v7379, 19
        %v7392 = vpop.permute.xlu0 %7391
        %7393 = vrot.lane.b32.xlu0 %v7382, 19
        %v7394 = vpop.permute.xlu0 %7393
        %7395 = vrot.lane.b32.xlu0 %v7385, 19
        %v7396 = vpop.permute.xlu0 %7395
        %7397 = vrot.lane.b32.xlu0 %v7388, 19
        %v7398 = vpop.permute.xlu0 %7397
        %7399 = vrot.lane.b32.xlu0 %v7380, 19
        %v7400 = vpop.permute.xlu0 %7399
        %7401 = vrot.lane.b32.xlu0 %v7383, 19
        %v7402 = vpop.permute.xlu0 %7401
        %7403 = vrot.lane.b32.xlu0 %v7386, 19
        %v7404 = vpop.permute.xlu0 %7403
        %7405 = vrot.lane.b32.xlu0 %v7389, 19
        %v7406 = vpop.permute.xlu0 %7405
        %7407 = vrot.lane.b32.xlu0 %v7381, 19
        %v7408 = vpop.permute.xlu0 %7407
        %7409 = vrot.lane.b32.xlu0 %v7384, 19
        %v7410 = vpop.permute.xlu0 %7409
        %7411 = vrot.lane.b32.xlu0 %v7387, 19
        %v7412 = vpop.permute.xlu0 %7411
        %7413 = vrot.lane.b32.xlu0 %v7390, 19
        %v7414 = vpop.permute.xlu0 %7413
        %v7415 = vsel %vm399, %v7400, %v7408
        %v7416 = vsel %vm399, %v7402, %v7410
        %v7417 = vsel %vm399, %v7404, %v7412
        %v7418 = vsel %vm399, %v7406, %v7414
        %v7419 = vsel %vm399, %v7392, %v7400
        %v7420 = vsel %vm399, %v7394, %v7402
        %v7421 = vsel %vm399, %v7396, %v7404
        %v7422 = vsel %vm399, %v7398, %v7406
        %v7423 = vsel %vm399, %v7408, %v7392
        %v7424 = vsel %vm399, %v7410, %v7394
        %v7425 = vsel %vm399, %v7412, %v7396
        %v7426 = vsel %vm399, %v7414, %v7398
        %v7427 = vpack.c.bf16 %v7424, %v7423
        %v7428 = vpack.c.bf16 %v7420, %v7419
        %v7429 = vpack.c.bf16 %v7416, %v7415
        %v7430 = vpack.c.bf16 %v7426, %v7425
        %v7431 = vpack.c.bf16 %v7422, %v7421
        %v7432 = vpack.c.bf16 %v7418, %v7417
        %7433 = vst [vmem:[#allocation3] sm:$0xff] %v7427
        %7434 = vst [vmem:[#allocation3 + $0x8] sm:$0xff] %v7428
        %7435 = vst [vmem:[#allocation3 + $0x10] sm:$0xff] %v7429
        %7436 = vst [vmem:[#allocation3 + $0x18] sm:$0xff] %v7430
        %7437 = vst [vmem:[#allocation3 + $0x20] sm:$0xff] %v7431
        %7438 = vst [vmem:[#allocation3 + $0x28] sm:$0xff] %v7432
        %7439 = vrot.lane.b32.xlu0 %v7379, 18
        %v7440 = vpop.permute.xlu0 %7439
        %7441 = vrot.lane.b32.xlu0 %v7382, 18
        %v7442 = vpop.permute.xlu0 %7441
        %7443 = vrot.lane.b32.xlu0 %v7385, 18
        %v7444 = vpop.permute.xlu0 %7443
        %7445 = vrot.lane.b32.xlu0 %v7388, 18
        %v7446 = vpop.permute.xlu0 %7445
        %7447 = vrot.lane.b32.xlu0 %v7380, 18
        %v7448 = vpop.permute.xlu0 %7447
        %7449 = vrot.lane.b32.xlu0 %v7383, 18
        %v7450 = vpop.permute.xlu0 %7449
        %7451 = vrot.lane.b32.xlu0 %v7386, 18
        %v7452 = vpop.permute.xlu0 %7451
        %7453 = vrot.lane.b32.xlu0 %v7389, 18
        %v7454 = vpop.permute.xlu0 %7453
        %7455 = vrot.lane.b32.xlu0 %v7381, 18
        %v7456 = vpop.permute.xlu0 %7455
        %7457 = vrot.lane.b32.xlu0 %v7384, 18
        %v7458 = vpop.permute.xlu0 %7457
        %7459 = vrot.lane.b32.xlu0 %v7387, 18
        %v7460 = vpop.permute.xlu0 %7459
        %7461 = vrot.lane.b32.xlu0 %v7390, 18
        %v7462 = vpop.permute.xlu0 %7461
        %v7463 = vsel %vm448, %v7448, %v7456
        %v7464 = vsel %vm448, %v7450, %v7458
        %v7465 = vsel %vm448, %v7452, %v7460
        %v7466 = vsel %vm448, %v7454, %v7462
        %v7467 = vsel %vm448, %v7440, %v7448
        %v7468 = vsel %vm448, %v7442, %v7450
        %v7469 = vsel %vm448, %v7444, %v7452
        %v7470 = vsel %vm448, %v7446, %v7454
        %v7471 = vsel %vm448, %v7456, %v7440
        %v7472 = vsel %vm448, %v7458, %v7442
        %v7473 = vsel %vm448, %v7460, %v7444
        %v7474 = vsel %vm448, %v7462, %v7446
        %v7475 = vpack.c.bf16 %v7472, %v7471
        %v7476 = vpack.c.bf16 %v7468, %v7467
        %v7477 = vpack.c.bf16 %v7464, %v7463
        %v7478 = vpack.c.bf16 %v7474, %v7473
        %v7479 = vpack.c.bf16 %v7470, %v7469
        %v7480 = vpack.c.bf16 %v7466, %v7465
        %7481 = vst [vmem:[#allocation3 + $0x30] sm:$0xff] %v7475
        %7482 = vst [vmem:[#allocation3 + $0x38] sm:$0xff] %v7476
        %7483 = vst [vmem:[#allocation3 + $0x40] sm:$0xff] %v7477
        %7484 = vst [vmem:[#allocation3 + $0x48] sm:$0xff] %v7478
        %7485 = vst [vmem:[#allocation3 + $0x50] sm:$0xff] %v7479
        %7486 = vst [vmem:[#allocation3 + $0x58] sm:$0xff] %v7480
        %7487 = vrot.lane.b32.xlu0 %v7379, 17
        %v7488 = vpop.permute.xlu0 %7487
        %7489 = vrot.lane.b32.xlu0 %v7382, 17
        %v7490 = vpop.permute.xlu0 %7489
        %7491 = vrot.lane.b32.xlu0 %v7385, 17
        %v7492 = vpop.permute.xlu0 %7491
        %7493 = vrot.lane.b32.xlu0 %v7388, 17
        %v7494 = vpop.permute.xlu0 %7493
        %7495 = vrot.lane.b32.xlu0 %v7380, 17
        %v7496 = vpop.permute.xlu0 %7495
        %7497 = vrot.lane.b32.xlu0 %v7383, 17
        %v7498 = vpop.permute.xlu0 %7497
        %7499 = vrot.lane.b32.xlu0 %v7386, 17
        %v7500 = vpop.permute.xlu0 %7499
        %7501 = vrot.lane.b32.xlu0 %v7389, 17
        %v7502 = vpop.permute.xlu0 %7501
        %7503 = vrot.lane.b32.xlu0 %v7381, 17
        %v7504 = vpop.permute.xlu0 %7503
        %7505 = vrot.lane.b32.xlu0 %v7384, 17
        %v7506 = vpop.permute.xlu0 %7505
        %7507 = vrot.lane.b32.xlu0 %v7387, 17
        %v7508 = vpop.permute.xlu0 %7507
        %7509 = vrot.lane.b32.xlu0 %v7390, 17
        %v7510 = vpop.permute.xlu0 %7509
        %v7511 = vsel %vm497, %v7496, %v7504
        %v7512 = vsel %vm497, %v7498, %v7506
        %v7513 = vsel %vm497, %v7500, %v7508
        %v7514 = vsel %vm497, %v7502, %v7510
        %v7515 = vsel %vm497, %v7488, %v7496
        %v7516 = vsel %vm497, %v7490, %v7498
        %v7517 = vsel %vm497, %v7492, %v7500
        %v7518 = vsel %vm497, %v7494, %v7502
        %v7519 = vsel %vm497, %v7504, %v7488
        %v7520 = vsel %vm497, %v7506, %v7490
        %v7521 = vsel %vm497, %v7508, %v7492
        %v7522 = vsel %vm497, %v7510, %v7494
        %v7523 = vpack.c.bf16 %v7520, %v7519
        %v7524 = vpack.c.bf16 %v7516, %v7515
        %v7525 = vpack.c.bf16 %v7512, %v7511
        %v7526 = vpack.c.bf16 %v7522, %v7521
        %v7527 = vpack.c.bf16 %v7518, %v7517
        %v7528 = vpack.c.bf16 %v7514, %v7513
        %7529 = vst [vmem:[#allocation3 + $0x60] sm:$0xff] %v7523
        %7530 = vst [vmem:[#allocation3 + $0x68] sm:$0xff] %v7524
        %7531 = vst [vmem:[#allocation3 + $0x70] sm:$0xff] %v7525
        %7532 = vst [vmem:[#allocation3 + $0x78] sm:$0xff] %v7526
        %7533 = vst [vmem:[#allocation3 + $0x80] sm:$0xff] %v7527
        %7534 = vst [vmem:[#allocation3 + $0x88] sm:$0xff] %v7528
        %7535 = vrot.lane.b32.xlu0 %v7379, 1
        %v7536 = vpop.permute.xlu0 %7535
        %7537 = vrot.lane.b32.xlu0 %v7382, 1
        %v7538 = vpop.permute.xlu0 %7537
        %7539 = vrot.lane.b32.xlu0 %v7385, 1
        %v7540 = vpop.permute.xlu0 %7539
        %7541 = vrot.lane.b32.xlu0 %v7388, 1
        %v7542 = vpop.permute.xlu0 %7541
        %7543 = vrot.lane.b32.xlu0 %v7380, 1
        %v7544 = vpop.permute.xlu0 %7543
        %7545 = vrot.lane.b32.xlu0 %v7383, 1
        %v7546 = vpop.permute.xlu0 %7545
        %7547 = vrot.lane.b32.xlu0 %v7386, 1
        %v7548 = vpop.permute.xlu0 %7547
        %7549 = vrot.lane.b32.xlu0 %v7389, 1
        %v7550 = vpop.permute.xlu0 %7549
        %7551 = vrot.lane.b32.xlu0 %v7381, 1
        %v7552 = vpop.permute.xlu0 %7551
        %7553 = vrot.lane.b32.xlu0 %v7384, 1
        %v7554 = vpop.permute.xlu0 %7553
        %7555 = vrot.lane.b32.xlu0 %v7387, 1
        %v7556 = vpop.permute.xlu0 %7555
        %7557 = vrot.lane.b32.xlu0 %v7390, 1
        %v7558 = vpop.permute.xlu0 %7557
        %v7559 = vsel %vm546, %v7544, %v7552
        %v7560 = vsel %vm546, %v7546, %v7554
        %v7561 = vsel %vm546, %v7548, %v7556
        %v7562 = vsel %vm546, %v7550, %v7558
        %v7563 = vsel %vm546, %v7536, %v7544
        %v7564 = vsel %vm546, %v7538, %v7546
        %v7565 = vsel %vm546, %v7540, %v7548
        %v7566 = vsel %vm546, %v7542, %v7550
        %v7567 = vsel %vm546, %v7552, %v7536
        %v7568 = vsel %vm546, %v7554, %v7538
        %v7569 = vsel %vm546, %v7556, %v7540
        %v7570 = vsel %vm546, %v7558, %v7542
        %v7571 = vpack.c.bf16 %v7568, %v7567
        %v7572 = vpack.c.bf16 %v7564, %v7563
        %v7573 = vpack.c.bf16 %v7560, %v7559
        %v7574 = vpack.c.bf16 %v7570, %v7569
        %v7575 = vpack.c.bf16 %v7566, %v7565
        %v7576 = vpack.c.bf16 %v7562, %v7561
        %7577 = vst [vmem:[#allocation3 + $0x90] sm:$0xff] %v7571
        %7578 = vst [vmem:[#allocation3 + $0x98] sm:$0xff] %v7572
        %7579 = vst [vmem:[#allocation3 + $0xa0] sm:$0xff] %v7573
        %7580 = vst [vmem:[#allocation3 + $0xa8] sm:$0xff] %v7574
        %7581 = vst [vmem:[#allocation3 + $0xb0] sm:$0xff] %v7575
        %7582 = vst [vmem:[#allocation3 + $0xb8] sm:$0xff] %v7576
        %v7583 = vpack.c.bf16 %v7382, %v7379
        %v7584 = vpack.c.bf16 %v7383, %v7380
        %v7585 = vpack.c.bf16 %v7384, %v7381
        %v7586 = vpack.c.bf16 %v7388, %v7385
        %v7587 = vpack.c.bf16 %v7389, %v7386
        %v7588 = vpack.c.bf16 %v7390, %v7387
        %7589 = vst [vmem:[#allocation3 + $0xc0] sm:$0xff] %v7583
        %7590 = vst [vmem:[#allocation3 + $0xc8] sm:$0xff] %v7584
        %7591 = vst [vmem:[#allocation3 + $0xd0] sm:$0xff] %v7585
        %7592 = vst [vmem:[#allocation3 + $0xd8] sm:$0xff] %v7586
        %7593 = vst [vmem:[#allocation3 + $0xe0] sm:$0xff] %v7587
        %7594 = vst [vmem:[#allocation3 + $0xe8] sm:$0xff] %v7588
        %7595 = vrot.lane.b32.xlu0 %v7379, 127
        %v7596 = vpop.permute.xlu0 %7595
        %7597 = vrot.lane.b32.xlu0 %v7382, 127
        %v7598 = vpop.permute.xlu0 %7597
        %7599 = vrot.lane.b32.xlu0 %v7385, 127
        %v7600 = vpop.permute.xlu0 %7599
        %7601 = vrot.lane.b32.xlu0 %v7388, 127
        %v7602 = vpop.permute.xlu0 %7601
        %7603 = vrot.lane.b32.xlu0 %v7380, 127
        %v7604 = vpop.permute.xlu0 %7603
        %7605 = vrot.lane.b32.xlu0 %v7383, 127
        %v7606 = vpop.permute.xlu0 %7605
        %7607 = vrot.lane.b32.xlu0 %v7386, 127
        %v7608 = vpop.permute.xlu0 %7607
        %7609 = vrot.lane.b32.xlu0 %v7389, 127
        %v7610 = vpop.permute.xlu0 %7609
        %7611 = vrot.lane.b32.xlu0 %v7381, 127
        %v7612 = vpop.permute.xlu0 %7611
        %7613 = vrot.lane.b32.xlu0 %v7384, 127
        %v7614 = vpop.permute.xlu0 %7613
        %7615 = vrot.lane.b32.xlu0 %v7387, 127
        %v7616 = vpop.permute.xlu0 %7615
        %7617 = vrot.lane.b32.xlu0 %v7390, 127
        %v7618 = vpop.permute.xlu0 %7617
        %v7619 = vsel %vm607, %v7604, %v7612
        %v7620 = vsel %vm607, %v7606, %v7614
        %v7621 = vsel %vm607, %v7608, %v7616
        %v7622 = vsel %vm607, %v7610, %v7618
        %v7623 = vsel %vm607, %v7596, %v7604
        %v7624 = vsel %vm607, %v7598, %v7606
        %v7625 = vsel %vm607, %v7600, %v7608
        %v7626 = vsel %vm607, %v7602, %v7610
        %v7627 = vsel %vm607, %v7612, %v7596
        %v7628 = vsel %vm607, %v7614, %v7598
        %v7629 = vsel %vm607, %v7616, %v7600
        %v7630 = vsel %vm607, %v7618, %v7602
        %v7631 = vpack.c.bf16 %v7624, %v7623
        %v7632 = vpack.c.bf16 %v7620, %v7619
        %v7633 = vpack.c.bf16 %v7628, %v7627
        %v7634 = vpack.c.bf16 %v7626, %v7625
        %v7635 = vpack.c.bf16 %v7622, %v7621
        %v7636 = vpack.c.bf16 %v7630, %v7629
        %7637 = vst [vmem:[#allocation3 + $0xf0] sm:$0xff] %v7631
        %7638 = vst [vmem:[#allocation3 + $0xf8] sm:$0xff] %v7632
        %7639 = vst [vmem:[#allocation3 + $0x100] sm:$0xff] %v7633
        %7640 = vst [vmem:[#allocation3 + $0x108] sm:$0xff] %v7634
        %7641 = vst [vmem:[#allocation3 + $0x110] sm:$0xff] %v7635
        %7642 = vst [vmem:[#allocation3 + $0x118] sm:$0xff] %v7636
        %7643 = vrot.lane.b32.xlu0 %v7379, 111
        %v7644 = vpop.permute.xlu0 %7643
        %7645 = vrot.lane.b32.xlu0 %v7382, 111
        %v7646 = vpop.permute.xlu0 %7645
        %7647 = vrot.lane.b32.xlu0 %v7385, 111
        %v7648 = vpop.permute.xlu0 %7647
        %7649 = vrot.lane.b32.xlu0 %v7388, 111
        %v7650 = vpop.permute.xlu0 %7649
        %7651 = vrot.lane.b32.xlu0 %v7380, 111
        %v7652 = vpop.permute.xlu0 %7651
        %7653 = vrot.lane.b32.xlu0 %v7383, 111
        %v7654 = vpop.permute.xlu0 %7653
        %7655 = vrot.lane.b32.xlu0 %v7386, 111
        %v7656 = vpop.permute.xlu0 %7655
        %7657 = vrot.lane.b32.xlu0 %v7389, 111
        %v7658 = vpop.permute.xlu0 %7657
        %7659 = vrot.lane.b32.xlu0 %v7381, 111
        %v7660 = vpop.permute.xlu0 %7659
        %7661 = vrot.lane.b32.xlu0 %v7384, 111
        %v7662 = vpop.permute.xlu0 %7661
        %7663 = vrot.lane.b32.xlu0 %v7387, 111
        %v7664 = vpop.permute.xlu0 %7663
        %7665 = vrot.lane.b32.xlu0 %v7390, 111
        %v7666 = vpop.permute.xlu0 %7665
        %v7667 = vsel %vm656, %v7652, %v7660
        %v7668 = vsel %vm656, %v7654, %v7662
        %v7669 = vsel %vm656, %v7656, %v7664
        %v7670 = vsel %vm656, %v7658, %v7666
        %v7671 = vsel %vm656, %v7644, %v7652
        %v7672 = vsel %vm656, %v7646, %v7654
        %v7673 = vsel %vm656, %v7648, %v7656
        %v7674 = vsel %vm656, %v7650, %v7658
        %v7675 = vsel %vm656, %v7660, %v7644
        %v7676 = vsel %vm656, %v7662, %v7646
        %v7677 = vsel %vm656, %v7664, %v7648
        %v7678 = vsel %vm656, %v7666, %v7650
        %v7679 = vpack.c.bf16 %v7672, %v7671
        %v7680 = vpack.c.bf16 %v7668, %v7667
        %v7681 = vpack.c.bf16 %v7676, %v7675
        %v7682 = vpack.c.bf16 %v7674, %v7673
        %v7683 = vpack.c.bf16 %v7670, %v7669
        %v7684 = vpack.c.bf16 %v7678, %v7677
        %7685 = vst [vmem:[#allocation3 + $0x120] sm:$0xff] %v7679
        %7686 = vst [vmem:[#allocation3 + $0x128] sm:$0xff] %v7680
        %7687 = vst [vmem:[#allocation3 + $0x130] sm:$0xff] %v7681
        %7688 = vst [vmem:[#allocation3 + $0x138] sm:$0xff] %v7682
        %7689 = vst [vmem:[#allocation3 + $0x140] sm:$0xff] %v7683
        %7690 = vst [vmem:[#allocation3 + $0x148] sm:$0xff] %v7684
        %7691 = vrot.lane.b32.xlu0 %v7379, 110
        %v7692 = vpop.permute.xlu0 %7691
        %7693 = vrot.lane.b32.xlu0 %v7382, 110
        %v7694 = vpop.permute.xlu0 %7693
        %7695 = vrot.lane.b32.xlu0 %v7385, 110
        %v7696 = vpop.permute.xlu0 %7695
        %7697 = vrot.lane.b32.xlu0 %v7388, 110
        %v7698 = vpop.permute.xlu0 %7697
        %7699 = vrot.lane.b32.xlu0 %v7380, 110
        %v7700 = vpop.permute.xlu0 %7699
        %7701 = vrot.lane.b32.xlu0 %v7383, 110
        %v7702 = vpop.permute.xlu0 %7701
        %7703 = vrot.lane.b32.xlu0 %v7386, 110
        %v7704 = vpop.permute.xlu0 %7703
        %7705 = vrot.lane.b32.xlu0 %v7389, 110
        %v7706 = vpop.permute.xlu0 %7705
        %7707 = vrot.lane.b32.xlu0 %v7381, 110
        %v7708 = vpop.permute.xlu0 %7707
        %7709 = vrot.lane.b32.xlu0 %v7384, 110
        %v7710 = vpop.permute.xlu0 %7709
        %7711 = vrot.lane.b32.xlu0 %v7387, 110
        %v7712 = vpop.permute.xlu0 %7711
        %7713 = vrot.lane.b32.xlu0 %v7390, 110
        %v7714 = vpop.permute.xlu0 %7713
        %v7715 = vsel %vm705, %v7700, %v7708
        %v7716 = vsel %vm705, %v7702, %v7710
        %v7717 = vsel %vm705, %v7704, %v7712
        %v7718 = vsel %vm705, %v7706, %v7714
        %v7719 = vsel %vm705, %v7692, %v7700
        %v7720 = vsel %vm705, %v7694, %v7702
        %v7721 = vsel %vm705, %v7696, %v7704
        %v7722 = vsel %vm705, %v7698, %v7706
        %v7723 = vsel %vm705, %v7708, %v7692
        %v7724 = vsel %vm705, %v7710, %v7694
        %v7725 = vsel %vm705, %v7712, %v7696
        %v7726 = vsel %vm705, %v7714, %v7698
        %v7727 = vpack.c.bf16 %v7720, %v7719
        %v7728 = vpack.c.bf16 %v7716, %v7715
        %v7729 = vpack.c.bf16 %v7724, %v7723
        %v7730 = vpack.c.bf16 %v7722, %v7721
        %v7731 = vpack.c.bf16 %v7718, %v7717
        %v7732 = vpack.c.bf16 %v7726, %v7725
        %7733 = vst [vmem:[#allocation3 + $0x150] sm:$0xff] %v7727
        %7734 = vst [vmem:[#allocation3 + $0x158] sm:$0xff] %v7728
        %7735 = vst [vmem:[#allocation3 + $0x160] sm:$0xff] %v7729
        %7736 = vst [vmem:[#allocation3 + $0x168] sm:$0xff] %v7730
        %7737 = vst [vmem:[#allocation3 + $0x170] sm:$0xff] %v7731
        %7738 = vst [vmem:[#allocation3 + $0x178] sm:$0xff] %v7732
        %7739 = vrot.lane.b32.xlu0 %v7379, 109
        %v7740 = vpop.permute.xlu0 %7739
        %7741 = vrot.lane.b32.xlu0 %v7382, 109
        %v7742 = vpop.permute.xlu0 %7741
        %7743 = vrot.lane.b32.xlu0 %v7385, 109
        %v7744 = vpop.permute.xlu0 %7743
        %7745 = vrot.lane.b32.xlu0 %v7388, 109
        %v7746 = vpop.permute.xlu0 %7745
        %7747 = vrot.lane.b32.xlu0 %v7380, 109
        %v7748 = vpop.permute.xlu0 %7747
        %7749 = vrot.lane.b32.xlu0 %v7383, 109
        %v7750 = vpop.permute.xlu0 %7749
        %7751 = vrot.lane.b32.xlu0 %v7386, 109
        %v7752 = vpop.permute.xlu0 %7751
        %7753 = vrot.lane.b32.xlu0 %v7389, 109
        %v7754 = vpop.permute.xlu0 %7753
        %7755 = vrot.lane.b32.xlu0 %v7381, 109
        %v7756 = vpop.permute.xlu0 %7755
        %7757 = vrot.lane.b32.xlu0 %v7384, 109
        %v7758 = vpop.permute.xlu0 %7757
        %7759 = vrot.lane.b32.xlu0 %v7387, 109
        %v7760 = vpop.permute.xlu0 %7759
        %7761 = vrot.lane.b32.xlu0 %v7390, 109
        %v7762 = vpop.permute.xlu0 %7761
        %v7763 = vsel %vm754, %v7748, %v7756
        %v7764 = vsel %vm754, %v7750, %v7758
        %v7765 = vsel %vm754, %v7752, %v7760
        %v7766 = vsel %vm754, %v7754, %v7762
        %v7767 = vsel %vm754, %v7740, %v7748
        %v7768 = vsel %vm754, %v7742, %v7750
        %v7769 = vsel %vm754, %v7744, %v7752
        %v7770 = vsel %vm754, %v7746, %v7754
        %v7771 = vsel %vm754, %v7756, %v7740
        %v7772 = vsel %vm754, %v7758, %v7742
        %v7773 = vsel %vm754, %v7760, %v7744
        %v7774 = vsel %vm754, %v7762, %v7746
        %v7775 = vpack.c.bf16 %v7768, %v7767
        %v7776 = vpack.c.bf16 %v7764, %v7763
        %v7777 = vpack.c.bf16 %v7772, %v7771
        %v7778 = vpack.c.bf16 %v7770, %v7769
        %v7779 = vpack.c.bf16 %v7766, %v7765
        %v7780 = vpack.c.bf16 %v7774, %v7773
        %7781 = vst [vmem:[#allocation3 + $0x180] sm:$0xff] %v7775
        %7782 = vst [vmem:[#allocation3 + $0x188] sm:$0xff] %v7776
        %7783 = vst [vmem:[#allocation3 + $0x190] sm:$0xff] %v7777
        %7784 = vst [vmem:[#allocation3 + $0x198] sm:$0xff] %v7778
        %7785 = vst [vmem:[#allocation3 + $0x1a0] sm:$0xff] %v7779
        %7786 = vst [vmem:[#allocation3 + $0x1a8] sm:$0xff] %v7780
        %s7787 = sadd.s32 %s7018, 1
        %s7788 = smul.u32 %s7787, 12
        %s7789 = smul.addr %s7788, 4
        %s7790 = scalar_lea.vmem %s8, %s7789
        %v7791 = vld [vmem:[%s7790] sm:$0xff]
        %v7792 = vld [vmem:[%s7790 + $0x8] sm:$0xf]
        %v7793 = vld [vmem:[%s7790 + $0xc] sm:$0xff]
        %v7794 = vld [vmem:[%s7790 + $0x14] sm:$0xf]
        %v7795 = vld [vmem:[%s7790 + $0x18] sm:$0xff]
        %v7796 = vld [vmem:[%s7790 + $0x20] sm:$0xf]
        %v7797 = vld [vmem:[%s7790 + $0x24] sm:$0xff]
        %v7798 = vld [vmem:[%s7790 + $0x2c] sm:$0xf]
        %s7799 = smul.u32 %s7787, 32
        %s7800 = scalar_lea.vmem %s9, %s7799
        %v7801 = vld [vmem:[%s7800] sm:$0xff]
        %v7802 = vld [vmem:[%s7800 + $0x8] sm:$0xff]
        %v7803 = vld [vmem:[%s7800 + $0x10] sm:$0xff]
        %v7804 = vld [vmem:[%s7800 + $0x18] sm:$0xff]
        %v7805 = vld [vmem:[#allocation2] sm:$0xff]
        %v7806 = vld [vmem:[#allocation2 + $0x8] sm:$0xff]
        %v7807 = vld [vmem:[#allocation2 + $0x10] sm:$0xff]
        %v7808 = vld [vmem:[#allocation2 + $0x18] sm:$0xff]
        %v7809 = vld [vmem:[#allocation2 + $0x20] sm:$0xff]
        %v7810 = vld [vmem:[#allocation2 + $0x28] sm:$0xff]
        %v7811 = vld [vmem:[#allocation2 + $0x30] sm:$0xff]
        %v7812 = vld [vmem:[#allocation2 + $0x38] sm:$0xff]
        %v7813 = vld [vmem:[#allocation2 + $0x40] sm:$0xff]
        %v7814 = vld [vmem:[#allocation2 + $0x48] sm:$0xff]
        %v7815 = vld [vmem:[#allocation2 + $0x50] sm:$0xff]
        %v7816 = vld [vmem:[#allocation2 + $0x58] sm:$0xff]
        %v7817 = vld [vmem:[#allocation3] sm:$0xff]
        %v7818 = vld [vmem:[#allocation3 + $0x8] sm:$0xff]
        %v7819 = vld [vmem:[#allocation3 + $0x10] sm:$0xff]
        %v7820 = vld [vmem:[#allocation3 + $0x18] sm:$0xff]
        %v7821 = vld [vmem:[#allocation3 + $0x20] sm:$0xff]
        %v7822 = vld [vmem:[#allocation3 + $0x28] sm:$0xff]
        %v7823 = vld [vmem:[#allocation3 + $0x30] sm:$0xff]
        %v7824 = vld [vmem:[#allocation3 + $0x38] sm:$0xff]
        %v7825 = vld [vmem:[#allocation3 + $0x40] sm:$0xff]
        %v7826 = vld [vmem:[#allocation3 + $0x48] sm:$0xff]
        %v7827 = vld [vmem:[#allocation3 + $0x50] sm:$0xff]
        %v7828 = vld [vmem:[#allocation3 + $0x58] sm:$0xff]
        %v7829 = vld [vmem:[#allocation3 + $0x60] sm:$0xff]
        %v7830 = vld [vmem:[#allocation3 + $0x68] sm:$0xff]
        %v7831 = vld [vmem:[#allocation3 + $0x70] sm:$0xff]
        %v7832 = vld [vmem:[#allocation3 + $0x78] sm:$0xff]
        %v7833 = vld [vmem:[#allocation3 + $0x80] sm:$0xff]
        %v7834 = vld [vmem:[#allocation3 + $0x88] sm:$0xff]
        %v7835 = vld [vmem:[#allocation3 + $0x90] sm:$0xff]
        %v7836 = vld [vmem:[#allocation3 + $0x98] sm:$0xff]
        %v7837 = vld [vmem:[#allocation3 + $0xa0] sm:$0xff]
        %v7838 = vld [vmem:[#allocation3 + $0xa8] sm:$0xff]
        %v7839 = vld [vmem:[#allocation3 + $0xb0] sm:$0xff]
        %v7840 = vld [vmem:[#allocation3 + $0xb8] sm:$0xff]
        %v7841 = vld [vmem:[#allocation3 + $0xc0] sm:$0xff]
        %v7842 = vld [vmem:[#allocation3 + $0xc8] sm:$0xff]
        %v7843 = vld [vmem:[#allocation3 + $0xd0] sm:$0xff]
        %v7844 = vld [vmem:[#allocation3 + $0xd8] sm:$0xff]
        %v7845 = vld [vmem:[#allocation3 + $0xe0] sm:$0xff]
        %v7846 = vld [vmem:[#allocation3 + $0xe8] sm:$0xff]
        %v7847 = vld [vmem:[#allocation3 + $0xf0] sm:$0xff]
        %v7848 = vld [vmem:[#allocation3 + $0xf8] sm:$0xff]
        %v7849 = vld [vmem:[#allocation3 + $0x100] sm:$0xff]
        %v7850 = vld [vmem:[#allocation3 + $0x108] sm:$0xff]
        %v7851 = vld [vmem:[#allocation3 + $0x110] sm:$0xff]
        %v7852 = vld [vmem:[#allocation3 + $0x118] sm:$0xff]
        %v7853 = vld [vmem:[#allocation3 + $0x120] sm:$0xff]
        %v7854 = vld [vmem:[#allocation3 + $0x128] sm:$0xff]
        %v7855 = vld [vmem:[#allocation3 + $0x130] sm:$0xff]
        %v7856 = vld [vmem:[#allocation3 + $0x138] sm:$0xff]
        %v7857 = vld [vmem:[#allocation3 + $0x140] sm:$0xff]
        %v7858 = vld [vmem:[#allocation3 + $0x148] sm:$0xff]
        %v7859 = vld [vmem:[#allocation3 + $0x150] sm:$0xff]
        %v7860 = vld [vmem:[#allocation3 + $0x158] sm:$0xff]
        %v7861 = vld [vmem:[#allocation3 + $0x160] sm:$0xff]
        %v7862 = vld [vmem:[#allocation3 + $0x168] sm:$0xff]
        %v7863 = vld [vmem:[#allocation3 + $0x170] sm:$0xff]
        %v7864 = vld [vmem:[#allocation3 + $0x178] sm:$0xff]
        %v7865 = vld [vmem:[#allocation3 + $0x180] sm:$0xff]
        %v7866 = vld [vmem:[#allocation3 + $0x188] sm:$0xff]
        %v7867 = vld [vmem:[#allocation3 + $0x190] sm:$0xff]
        %v7868 = vld [vmem:[#allocation3 + $0x198] sm:$0xff]
        %v7869 = vld [vmem:[#allocation3 + $0x1a0] sm:$0xff]
        %v7870 = vld [vmem:[#allocation3 + $0x1a8] sm:$0xff]
        %7872 = vset.pattern.permute.xlu0 0
        %7873 = vperm.xlu0 %7872, %v7801
        %v7874 = vpop.permute.xlu0 %7873
        %7877 = vset.pattern.permute.xlu0 0
        %7878 = vperm.xlu0 %7877, %v7802
        %v7879 = vpop.permute.xlu0 %7878
        %7882 = vset.pattern.permute.xlu0 0
        %7883 = vperm.xlu0 %7882, %v7803
        %v7884 = vpop.permute.xlu0 %7883
        %7887 = vset.pattern.permute.xlu0 0
        %7888 = vperm.xlu0 %7887, %v7804
        %v7889 = vpop.permute.xlu0 %7888
        %v7899 = vunpack.c.l.b16 %v7791
        %v7900 = vunpack.c.h.b16 %v7791
        %v7901 = vunpack.c.l.b16 %v7792
        %v7902 = vunpack.c.l.b16 %v7793
        %v7903 = vunpack.c.h.b16 %v7793
        %v7904 = vunpack.c.l.b16 %v7794
        %v7905 = vunpack.c.l.b16 %v7795
        %v7906 = vunpack.c.h.b16 %v7795
        %v7907 = vunpack.c.l.b16 %v7796
        %v7908 = vunpack.c.l.b16 %v7797
        %v7909 = vunpack.c.h.b16 %v7797
        %v7910 = vunpack.c.l.b16 %v7798
        %v7911 = vpack.c.b16 %v7902, %v7899
        %v7912 = vpack.c.b16 %v7903, %v7900
        %v7913 = vpack.c.b16 %v7904, %v7901
        %v7914 = vpack.c.b16 %v7908, %v7905
        %v7915 = vpack.c.b16 %v7909, %v7906
        %v7916 = vpack.c.b16 %v7910, %v7907
        %v7922 = vsel %vm895, %v7913, 0
        %v7925 = vsel %vm895, %v7916, 0
        %7927 = vmatprep.subr.bf16.mxu0 %v7818
        %7928 = vmatpush1.bf16.msra.mxu0 %v7817
        %7929 = vmatprep.subr.bf16.mxu0 %v7821
        %7930 = vmatpush1.bf16.msra.mxu0 %v7820
        %7931 = vmatprep.subr.bf16.mxu0 %v7824
        %7932 = vmatpush1.bf16.msra.mxu0 %v7823
        %7933 = vmatprep.subr.bf16.mxu0 %v7827
        %7934 = vmatpush1.bf16.msra.mxu0 %v7826
        %7935 = vmatprep.subr.bf16.mxu0 %v7830
        %7936 = vmatpush1.bf16.msra.mxu0 %v7829
        %7937 = vmatprep.subr.bf16.mxu0 %v7833
        %7938 = vmatpush1.bf16.msra.mxu0 %v7832
        %7939 = vmatprep.subr.bf16.mxu0 %v7836
        %7940 = vmatpush1.bf16.msra.mxu0 %v7835
        %7941 = vmatprep.subr.bf16.mxu0 %v7839
        %7942 = vmatpush1.bf16.msra.mxu0 %v7838
        %7943 = vmatprep.subr.bf16.mxu0 %v7842
        %7944 = vmatpush1.bf16.msra.mxu0 %v7841
        %7945 = vmatprep.subr.bf16.mxu0 %v7845
        %7946 = vmatpush1.bf16.msra.mxu0 %v7844
        %7947 = vmatprep.subr.bf16.mxu0 %v7848
        %7948 = vmatpush1.bf16.msra.mxu0 %v7847
        %7949 = vmatprep.subr.bf16.mxu0 %v7851
        %7950 = vmatpush1.bf16.msra.mxu0 %v7850
        %7951 = vmatprep.subr.bf16.mxu0 %v7854
        %7952 = vmatpush1.bf16.msra.mxu0 %v7853
        %7953 = vmatprep.subr.bf16.mxu0 %v7857
        %7954 = vmatpush1.bf16.msra.mxu0 %v7856
        %7955 = vmatprep.subr.bf16.mxu0 %v7860
        %7956 = vmatpush1.bf16.msra.mxu0 %v7859
        %7957 = vmatprep.subr.bf16.mxu0 %v7863
        %7958 = vmatpush1.bf16.msra.mxu0 %v7862
        %7959 = vmatprep.mubr.bf16.mxu0 %v7912
        %7960 = vmatmul.mubr.bf16.gmra.mrb[0].mxu0 %v7911
        %v7961 = vpop.f32.mrb[0].mxu0
        %v7962 = vadd.f32 %v7874, %v7961
        %v7963 = vpop.f32.mrb[0].mxu0
        %v7964 = vadd.f32 %v7874, %v7963
        %v7965 = vpop.f32.mrb[0].mxu0
        %v7966 = vadd.f32 %v7879, %v7965
        %v7967 = vpop.f32.mrb[0].mxu0
        %v7968 = vadd.f32 %v7879, %v7967
        %7969 = vmatprep.mubr.bf16.mxu0 %v7915
        %7970 = vmatmul.mubr.bf16.gmra.mrb[0].mxu0 %v7914
        %v7971 = vpop.f32.mrb[0].mxu0
        %v7972 = vadd.f32 %v7884, %v7971
        %v7973 = vpop.f32.mrb[0].mxu0
        %v7974 = vadd.f32 %v7884, %v7973
        %v7975 = vpop.f32.mrb[0].mxu0
        %v7976 = vadd.f32 %v7889, %v7975
        %v7977 = vpop.f32.mrb[0].mxu0
        %v7978 = vadd.f32 %v7889, %v7977
        %7979 = vdwg.mxu0
        %7980 = vmatprep.subr.bf16.mxu0 %v7866
        %7981 = vmatpush1.bf16.msra.mxu0 %v7865
        %7982 = vmatprep.subr.bf16.mxu0 %v7869
        %7983 = vmatpush1.bf16.msra.mxu0 %v7868
        %7984 = vmatprep.subr.bf16.mxu0 0
        %7985 = vmatpush1.bf16.msra.mxu0 0
        %7986 = vmatprep.subr.bf16.mxu0 0
        %7987 = vmatpush1.bf16.msra.mxu0 0
        %7988 = vmatprep.subr.bf16.mxu0 0
        %7989 = vmatpush1.bf16.msra.mxu0 0
        %7990 = vmatprep.subr.bf16.mxu0 0
        %7991 = vmatpush1.bf16.msra.mxu0 0
        %7992 = vmatprep.subr.bf16.mxu0 0
        %7993 = vmatpush1.bf16.msra.mxu0 0
        %7994 = vmatprep.subr.bf16.mxu0 0
        %7995 = vmatpush1.bf16.msra.mxu0 0
        %7996 = vmatprep.subr.bf16.mxu0 0
        %7997 = vmatpush1.bf16.msra.mxu0 0
        %7998 = vmatprep.subr.bf16.mxu0 0
        %7999 = vmatpush1.bf16.msra.mxu0 0
        %8000 = vmatprep.subr.bf16.mxu0 0
        %8001 = vmatpush1.bf16.msra.mxu0 0
        %8002 = vmatprep.subr.bf16.mxu0 0
        %8003 = vmatpush1.bf16.msra.mxu0 0
        %8004 = vmatprep.subr.bf16.mxu0 0
        %8005 = vmatpush1.bf16.msra.mxu0 0
        %8006 = vmatprep.subr.bf16.mxu0 0
        %8007 = vmatpush1.bf16.msra.mxu0 0
        %8008 = vmatprep.subr.bf16.mxu0 0
        %8009 = vmatpush1.bf16.msra.mxu0 0
        %8010 = vmatprep.subr.bf16.mxu0 0
        %8011 = vmatpush1.bf16.msra.mxu0 0
        %8012 = vmatprep.mubr.bf16.mxu0 0
        %8013 = vmatmul.mubr.bf16.gmra.mrb[0].mxu0 %v7922
        %v8014 = vpop.f32.mrb[0].mxu0
        %v8015 = vadd.f32 %v7962, %v8014
        %v8016 = vpop.f32.mrb[0].mxu0
        %v8017 = vadd.f32 %v7964, %v8016
        %v8018 = vpop.f32.mrb[0].mxu0
        %v8019 = vadd.f32 %v7966, %v8018
        %v8020 = vpop.f32.mrb[0].mxu0
        %v8021 = vadd.f32 %v7968, %v8020
        %8022 = vmatprep.mubr.bf16.mxu0 0
        %8023 = vmatmul.mubr.bf16.gmra.mrb[0].mxu0 %v7925
        %v8024 = vpop.f32.mrb[0].mxu0
        %v8025 = vadd.f32 %v7972, %v8024
        %v8026 = vpop.f32.mrb[0].mxu0
        %v8027 = vadd.f32 %v7974, %v8026
        %v8028 = vpop.f32.mrb[0].mxu0
        %v8029 = vadd.f32 %v7976, %v8028
        %v8030 = vpop.f32.mrb[0].mxu0
        %v8031 = vadd.f32 %v7978, %v8030
        %8032 = vdwg.mxu0
        %8033 = vmatprep.subr.bf16.mxu0 0
        %8034 = vmatpush1.bf16.msra.mxu0 %v7819
        %8035 = vmatprep.subr.bf16.mxu0 0
        %8036 = vmatpush1.bf16.msra.mxu0 %v7822
        %8037 = vmatprep.subr.bf16.mxu0 0
        %8038 = vmatpush1.bf16.msra.mxu0 %v7825
        %8039 = vmatprep.subr.bf16.mxu0 0
        %8040 = vmatpush1.bf16.msra.mxu0 %v7828
        %8041 = vmatprep.subr.bf16.mxu0 0
        %8042 = vmatpush1.bf16.msra.mxu0 %v7831
        %8043 = vmatprep.subr.bf16.mxu0 0
        %8044 = vmatpush1.bf16.msra.mxu0 %v7834
        %8045 = vmatprep.subr.bf16.mxu0 0
        %8046 = vmatpush1.bf16.msra.mxu0 %v7837
        %8047 = vmatprep.subr.bf16.mxu0 0
        %8048 = vmatpush1.bf16.msra.mxu0 %v7840
        %8049 = vmatprep.subr.bf16.mxu0 0
        %8050 = vmatpush1.bf16.msra.mxu0 %v7843
        %8051 = vmatprep.subr.bf16.mxu0 0
        %8052 = vmatpush1.bf16.msra.mxu0 %v7846
        %8053 = vmatprep.subr.bf16.mxu0 0
        %8054 = vmatpush1.bf16.msra.mxu0 %v7849
        %8055 = vmatprep.subr.bf16.mxu0 0
        %8056 = vmatpush1.bf16.msra.mxu0 %v7852
        %8057 = vmatprep.subr.bf16.mxu0 0
        %8058 = vmatpush1.bf16.msra.mxu0 %v7855
        %8059 = vmatprep.subr.bf16.mxu0 0
        %8060 = vmatpush1.bf16.msra.mxu0 %v7858
        %8061 = vmatprep.subr.bf16.mxu0 0
        %8062 = vmatpush1.bf16.msra.mxu0 %v7861
        %8063 = vmatprep.subr.bf16.mxu0 0
        %8064 = vmatpush1.bf16.msra.mxu0 %v7864
        %8065 = vmatprep.mubr.bf16.mxu0 %v7912
        %8066 = vmatmul.mubr.bf16.gmra.mrb[0].mxu0 %v7911
        %v8067 = vpop.f32.mrb[0].mxu0
        %v8068 = vadd.f32 %v7874, %v8067
        %v8069 = vpop.f32.mrb[0].mxu0
        %v8070 = vpop.f32.mrb[0].mxu0
        %v8071 = vadd.f32 %v7879, %v8070
        %v8072 = vpop.f32.mrb[0].mxu0
        %8073 = vmatprep.mubr.bf16.mxu0 %v7915
        %8074 = vmatmul.mubr.bf16.gmra.mrb[0].mxu0 %v7914
        %v8075 = vpop.f32.mrb[0].mxu0
        %v8076 = vadd.f32 %v7884, %v8075
        %v8077 = vpop.f32.mrb[0].mxu0
        %v8078 = vpop.f32.mrb[0].mxu0
        %v8079 = vadd.f32 %v7889, %v8078
        %v8080 = vpop.f32.mrb[0].mxu0
        %8081 = vdwg.mxu0
        %8082 = vmatprep.subr.bf16.mxu0 0
        %8083 = vmatpush1.bf16.msra.mxu0 %v7867
        %8084 = vmatprep.subr.bf16.mxu0 0
        %8085 = vmatpush1.bf16.msra.mxu0 %v7870
        %8086 = vmatprep.subr.bf16.mxu0 0
        %8087 = vmatpush1.bf16.msra.mxu0 0
        %8088 = vmatprep.subr.bf16.mxu0 0
        %8089 = vmatpush1.bf16.msra.mxu0 0
        %8090 = vmatprep.subr.bf16.mxu0 0
        %8091 = vmatpush1.bf16.msra.mxu0 0
        %8092 = vmatprep.subr.bf16.mxu0 0
        %8093 = vmatpush1.bf16.msra.mxu0 0
        %8094 = vmatprep.subr.bf16.mxu0 0
        %8095 = vmatpush1.bf16.msra.mxu0 0
        %8096 = vmatprep.subr.bf16.mxu0 0
        %8097 = vmatpush1.bf16.msra.mxu0 0
        %8098 = vmatprep.subr.bf16.mxu0 0
        %8099 = vmatpush1.bf16.msra.mxu0 0
        %8100 = vmatprep.subr.bf16.mxu0 0
        %8101 = vmatpush1.bf16.msra.mxu0 0
        %8102 = vmatprep.subr.bf16.mxu0 0
        %8103 = vmatpush1.bf16.msra.mxu0 0
        %8104 = vmatprep.subr.bf16.mxu0 0
        %8105 = vmatpush1.bf16.msra.mxu0 0
        %8106 = vmatprep.subr.bf16.mxu0 0
        %8107 = vmatpush1.bf16.msra.mxu0 0
        %8108 = vmatprep.subr.bf16.mxu0 0
        %8109 = vmatpush1.bf16.msra.mxu0 0
        %8110 = vmatprep.subr.bf16.mxu0 0
        %8111 = vmatpush1.bf16.msra.mxu0 0
        %8112 = vmatprep.subr.bf16.mxu0 0
        %8113 = vmatpush1.bf16.msra.mxu0 0
        %8114 = vmatprep.mubr.bf16.mxu0 0
        %8115 = vmatmul.mubr.bf16.gmra.mrb[0].mxu0 %v7922
        %v8116 = vpop.f32.mrb[0].mxu0
        %v8117 = vadd.f32 %v8068, %v8116
        %v8118 = vpop.f32.mrb[0].mxu0
        %v8119 = vpop.f32.mrb[0].mxu0
        %v8120 = vadd.f32 %v8071, %v8119
        %v8121 = vpop.f32.mrb[0].mxu0
        %8122 = vmatprep.mubr.bf16.mxu0 0
        %8123 = vmatmul.mubr.bf16.gmra.mrb[0].mxu0 %v7925
        %v8124 = vpop.f32.mrb[0].mxu0
        %v8125 = vadd.f32 %v8076, %v8124
        %v8126 = vpop.f32.mrb[0].mxu0
        %v8127 = vpop.f32.mrb[0].mxu0
        %v8128 = vadd.f32 %v8079, %v8127
        %v8129 = vpop.f32.mrb[0].mxu0
        %8130 = vdwg.mxu0
        %v8131 = vadd.f32 %v8015, %v7805
        %v8132 = vadd.f32 %v8017, %v7806
        %v8133 = vadd.f32 %v8117, %v7807
        %v8134 = vadd.f32 %v8019, %v7808
        %v8135 = vadd.f32 %v8021, %v7809
        %v8136 = vadd.f32 %v8120, %v7810
        %v8137 = vadd.f32 %v8025, %v7811
        %v8138 = vadd.f32 %v8027, %v7812
        %v8139 = vadd.f32 %v8125, %v7813
        %v8140 = vadd.f32 %v8029, %v7814
        %v8141 = vadd.f32 %v8031, %v7815
        %v8142 = vadd.f32 %v8128, %v7816
        %v8143 = vld [vmem:[%s1] sm:$0x7]
        %v8145 = vlaneseq
        %v8146 = vshrl.u32 %v8145, 7
        %v8147 = vsub.s32 0, %v8146
        %v8148 = vrot.slane %v8143, %v8147
        %v8149 = vlaneseq
        %v8150 = vshrl.u32 %v8149, 7
        %v8151 = vsub.s32 1, %v8150
        %v8152 = vrot.slane %v8143, %v8151
        %v8153 = vlaneseq
        %v8154 = vshrl.u32 %v8153, 7
        %v8155 = vsub.s32 2, %v8154
        %v8156 = vrot.slane %v8143, %v8155
        %v8160 = vmul.f32 %v8131, %v8148
        %v8161 = vmul.f32 %v8132, %v8152
        %v8162 = vmul.f32 %v8133, %v8156
        %v8163 = vmul.f32 %v8134, %v8148
        %v8164 = vmul.f32 %v8135, %v8152
        %v8165 = vmul.f32 %v8136, %v8156
        %v8166 = vmul.f32 %v8137, %v8148
        %v8167 = vmul.f32 %v8138, %v8152
        %v8168 = vmul.f32 %v8139, %v8156
        %v8169 = vmul.f32 %v8140, %v8148
        %v8170 = vmul.f32 %v8141, %v8152
        %v8171 = vmul.f32 %v8142, %v8156
        %8172 = vst [vmem:[#allocation2] sm:$0xff] %v8160
        %8173 = vst [vmem:[#allocation2 + $0x8] sm:$0xff] %v8161
        %8174 = vst [vmem:[#allocation2 + $0x10] sm:$0xff] %v8162
        %8175 = vst [vmem:[#allocation2 + $0x18] sm:$0xff] %v8163
        %8176 = vst [vmem:[#allocation2 + $0x20] sm:$0xff] %v8164
        %8177 = vst [vmem:[#allocation2 + $0x28] sm:$0xff] %v8165
        %8178 = vst [vmem:[#allocation2 + $0x30] sm:$0xff] %v8166
        %8179 = vst [vmem:[#allocation2 + $0x38] sm:$0xff] %v8167
        %8180 = vst [vmem:[#allocation2 + $0x40] sm:$0xff] %v8168
        %8181 = vst [vmem:[#allocation2 + $0x48] sm:$0xff] %v8169
        %8182 = vst [vmem:[#allocation2 + $0x50] sm:$0xff] %v8170
        %8183 = vst [vmem:[#allocation2 + $0x58] sm:$0xff] %v8171
      $region72: #{dft_feature_extractor.1} parent=59 // loop_footer
        %s6609 = sadd.s32 1, %s6605
      $region73: #{dft_feature_extractor.1} parent=59 // loop_footer_branch
        %6604 = sbr.rel target = $region69
      $region74: #{dft_feature_extractor.1} parent=59 // loop_exit
        _
      %v8184 = vld [vmem:[#allocation2] sm:$0xff]
      %v8185 = vld [vmem:[#allocation2 + $0x8] sm:$0xff]
      %v8186 = vld [vmem:[#allocation2 + $0x10] sm:$0xff]
      %v8187 = vld [vmem:[#allocation2 + $0x18] sm:$0xff]
      %v8188 = vld [vmem:[#allocation2 + $0x20] sm:$0xff]
      %v8189 = vld [vmem:[#allocation2 + $0x28] sm:$0xff]
      %v8190 = vld [vmem:[#allocation2 + $0x30] sm:$0xff]
      %v8191 = vld [vmem:[#allocation2 + $0x38] sm:$0xff]
      %v8192 = vld [vmem:[#allocation2 + $0x40] sm:$0xff]
      %v8193 = vld [vmem:[#allocation2 + $0x48] sm:$0xff]
      %v8194 = vld [vmem:[#allocation2 + $0x50] sm:$0xff]
      %v8195 = vld [vmem:[#allocation2 + $0x58] sm:$0xff]
      %8196 = vst [vmem:[%s359] sm:$0xff] %v8184
      %8197 = vst [vmem:[%s359 + $0x8] sm:$0xff] %v8185
      %8198 = vst [vmem:[%s359 + $0x10] sm:$0xff] %v8186
      %8199 = vst [vmem:[%s359 + $0x18] sm:$0xff] %v8187
      %8200 = vst [vmem:[%s359 + $0x20] sm:$0xff] %v8188
      %8201 = vst [vmem:[%s359 + $0x28] sm:$0xff] %v8189
      %8202 = vst [vmem:[%s359 + $0x30] sm:$0xff] %v8190
      %8203 = vst [vmem:[%s359 + $0x38] sm:$0xff] %v8191
      %8204 = vst [vmem:[%s359 + $0x40] sm:$0xff] %v8192
      %8205 = vst [vmem:[%s359 + $0x48] sm:$0xff] %v8193
      %8206 = vst [vmem:[%s359 + $0x50] sm:$0xff] %v8194
      %8207 = vst [vmem:[%s359 + $0x58] sm:$0xff] %v8195
      %p8208 = scmp.lt.s32.totalorder %s21, 1
      %s8209 = scalar_select %p8208, %s21, 1
      %s8210 = smul.addr %s8209, 12
      %s8211 = smul.addr %s8210, 8
      %s8212 = scalar_lea.vmem %s10, %s8211
      // Predicated region
      $region75: #{dft_feature_extractor.1} parent=59 // pred_check
        %p8213 = pneg %p254
      $region76: #{dft_feature_extractor.1} parent=59 // pred_check_branch
        %8215 = sbr.rel (%p8213) target = $region78
      $region77: #{dft_feature_extractor.1} parent=59 // pred_region
        _
      $region78: #{dft_feature_extractor.1} parent=59 // pred_fallthru
        _
    $region60: #{dft_feature_extractor.1} parent=5 // pred_fallthru
      _
    %p8216 = scmp.le.s32.totalorder 2, %s16
    // Predicated region
    $region79: #{dft_feature_extractor.1} parent=5 // pred_check
      %p8217 = pneg %p8216
    $region80: #{dft_feature_extractor.1} parent=5 // pred_check_branch
      %8219 = sbr.rel (%p8217) target = $region82
    $region81: #{dft_feature_extractor.1} parent=5 // pred_region
      %s8220 = ssub.s32 %s16, 2
      // Predicated region
      $region83: #{dft_feature_extractor.1} parent=81 // pred_check
        %p8221 = pneg %p260
      $region84: #{dft_feature_extractor.1} parent=81 // pred_check_branch
        %8223 = sbr.rel (%p8221) target = $region86
      $region85: #{dft_feature_extractor.1} parent=81 // pred_region
        %p8224 = scmp.lt.s32.totalorder %s22, 1
        %s8225 = scalar_select %p8224, %s22, 1
        %s8226 = smul.addr %s8225, 12
        %s8227 = smul.addr %s8226, 8
        %s8228 = scalar_lea.vmem %s10, %s8227
      $region86: #{dft_feature_extractor.1} parent=81 // pred_fallthru
        _
    $region82: #{dft_feature_extractor.1} parent=5 // pred_fallthru
      _
  $region6: #{dft_feature_extractor.1} parent=0 // loop_footer
    %s20 = sadd.s32 1, %s16
  $region7: #{dft_feature_extractor.1} parent=0 // loop_footer_branch
    %15 = sbr.rel target = $region3
  $region8: #{dft_feature_extractor.1} parent=0 // loop_exit
    _

</llo_original>
